<compile_context>
chip_gen: v5e
topology: v5e:2x2
jax: 0.10.0
libtpu: 0.0.40
codegen_flags: <defaults>
</compile_context>

<pallas_src>
import functools

import jax
import jax.numpy as jnp
from jax import lax
from jax.experimental import pallas as pl
from jax.experimental.pallas import tpu as pltpu


# --------------------------------------------------------------------------- #
# Kernel
# --------------------------------------------------------------------------- #
def _conv_bn_relu_kernel(x_ref, w_ref, shift_ref, o_ref, *scratch, KH, KW,
                         stride, dilation, tho, Wo, relu6, mode, row_axis):
    """One grid step computes `tho` full output rows of one image.

    x_ref:     (1, stride*stride, Hq, Wq, Cin)  phase-split padded image (bf16),
               resident per image (block index only depends on the batch axis).
    w_ref:     (KH*KW*Cin, Cout)                BN-scale-folded weights (bf16).
    shift_ref: (1, Cout)                        BN shift (f32).
    o_ref:     (1, tho, Wo, Cout)               output tile.
    scratch:   ()                                     mode == "direct" (1x1 conv)
               (VMEM (tho*Wo, KH*KW*Cin) bf16)        mode == "slab"  (Cin < 128)
               (VMEM (tho*Wo, Cout) f32)              mode == "taps"  (Cin >= 128)
    """
    i = pl.program_id(row_axis)                 # row-tile index within the image
    Cin = x_ref.shape[-1]
    ho0 = i * tho                               # first output row of this tile
    if tho % 8 == 0:
        ho0 = pl.multiple_of(ho0, 8)

    taps = [(kh, kw) for kh in range(KH) for kw in range(KW)]

    def tap(kh, kw):
        # input row = ho*stride + kh*dilation = (ho + dh)*stride + a
        # -> phase (a, b), unit-stride slice of the phase plane.
        a, dh = (kh * dilation) % stride, (kh * dilation) // stride
        b, dw = (kw * dilation) % stride, (kw * dilation) // stride
        patch = x_ref[0, a * stride + b,
                      pl.ds(ho0 + dh, tho), pl.ds(dw, Wo), :]   # (tho, Wo, Cin)
        return patch.reshape(tho * Wo, Cin)

    if mode == "direct":
        # 1x1 conv: already a single matmul, no scratch needed.
        acc = jnp.dot(tap(0, 0), w_ref[...], preferred_element_type=jnp.float32)
        acc = acc + shift_ref[...]
    elif mode == "slab":
        # Fused im2col: scatter the KH*KW taps into a VMEM slab so the MXU sees
        # one contraction of depth K = KH*KW*Cin instead of KH*KW tiny ones.
        slab_ref = scratch[0]
        for t, (kh, kw) in enumerate(taps):
            slab_ref[:, t * Cin:(t + 1) * Cin] = tap(kh, kw)
        acc = jnp.dot(slab_ref[...], w_ref[...],
                      preferred_element_type=jnp.float32)
        acc = acc + shift_ref[...]
    else:  # "taps": Cin >= 128 -> per-tap matmuls already fill the MXU depth.
        acc_ref = scratch[0]
        # Initialize the in-place VMEM accumulator with the BN shift (saves one
        # full-pass VPU add in the epilogue).
        acc_ref[...] = jnp.broadcast_to(shift_ref[...], acc_ref.shape)
        for t, (kh, kw) in enumerate(taps):
            acc_ref[...] += jnp.dot(tap(kh, kw),
                                    w_ref[t * Cin:(t + 1) * Cin, :],
                                    preferred_element_type=jnp.float32)
        acc = acc_ref[...]

    y = jnp.maximum(acc, 0.0)
    if relu6:
        y = jnp.minimum(y, 6.0)
    o_ref[0] = y.reshape(tho, Wo, -1).astype(o_ref.dtype)


# --------------------------------------------------------------------------- #
# Helpers
# --------------------------------------------------------------------------- #
def _ceil_to(a, b):
    return -(-a // b) * b


def _vmem_capacity_bytes():
    """Physical VMEM per TensorCore; conservative fallback if the query fails."""
    try:
        info = pltpu.get_tpu_info()
        for attr in ("vmem_capacity_bytes", "vmem_size_bytes", "vmem_bytes"):
            cap = getattr(info, attr, None)
            if cap:
                return int(cap)
    except Exception:
        pass
    return 64 << 20          # v7x per-core size: safe lower bound for v5e/v6e too


def _pick_tho(Ho, Wo, target_px=512):
    """Largest divisor of Ho whose tile has <= ~target output pixels.

    tho=1 always qualifies, so awkward (e.g. prime) Ho never falls back to a
    whole-image tile; 8-aligned tiles are preferred for layout friendliness.
    """
    cap = max(target_px, Wo)
    divs = [d for d in range(1, Ho + 1) if Ho % d == 0 and d * Wo <= cap]
    aligned = [d for d in divs if (d * Wo) % 8 == 0]
    return max(aligned) if aligned else max(divs)


# --------------------------------------------------------------------------- #
# Wrapper
# --------------------------------------------------------------------------- #
def conv_bn_relu(x_nchw, weight, gamma, beta, running_mean, running_var, *,
                 stride=1, padding=0, dilation=1, groups=1, eps=1e-5,
                 relu6=False, compute_dtype=jnp.bfloat16, out_dtype=jnp.float32):
    """Forward pass matching PyTorch ConvBNReLU in eval mode.

    x_nchw: [N, Cin, H, W]; weight: [Cout, Cin, KH, KW]. Returns [N, Cout, Ho, Wo].
    """
    N, Cin, H, W = x_nchw.shape
    Cout, Cin_w, KH, KW = weight.shape
    if groups != 1 or Cin_w != Cin:
        # TODO(synk): grouped / depthwise convolution not implemented in the kernel.
        raise NotImplementedError("conv_bn_relu Pallas kernel supports groups=1 only")

    Ho = (H + 2 * padding - dilation * (KH - 1) - 1) // stride + 1
    Wo = (W + 2 * padding - dilation * (KW - 1) - 1) // stride + 1
    Hp, Wp = H + 2 * padding, W + 2 * padding
    Hq, Wq = -(-Hp // stride), -(-Wp // stride)       # phase-plane extents
    ss = stride * stride
    K = KH * KW * Cin

    # ---- layout glue (one pass): NCHW -> NHWC, zero-pad, bf16, phase split ----
    x = jnp.transpose(x_nchw, (0, 2, 3, 1)).astype(compute_dtype)
    x = jnp.pad(x, ((0, 0),
                    (padding, padding + Hq * stride - Hp),
                    (padding, padding + Wq * stride - Wp),
                    (0, 0)))
    xp = (x.reshape(N, Hq, stride, Wq, stride, Cin)
            .transpose(0, 2, 4, 1, 3, 5)
            .reshape(N, ss, Hq, Wq, Cin))

    # ---- fold BatchNorm (inference) into the conv weights + per-channel shift ----
    scale = (gamma / jnp.sqrt(running_var + eps)).astype(jnp.float32)      # [Cout]
    shift = (beta - running_mean * scale).astype(jnp.float32).reshape(1, Cout)
    w2d = jnp.transpose(weight, (2, 3, 1, 0)).reshape(K, Cout)             # (kh,kw,ci)-major
    w2d = (w2d.astype(jnp.float32) * scale[None, :]).astype(compute_dtype)

    # ---- tiling: whole output rows, ~512 output pixels per grid step ----
    tho = _pick_tho(Ho, Wo)
    n_tiles = Ho // tho

    if KH * KW == 1:
        mode, scratch_shapes = "direct", []
    elif Cin < 128:
        mode, scratch_shapes = "slab", [pltpu.VMEM((tho * Wo, K), compute_dtype)]
    else:
        mode, scratch_shapes = "taps", [pltpu.VMEM((tho * Wo, Cout), jnp.float32)]

    # Batch-1: 1-D grid over row tiles so the megacore-sharded axis has work.
    if N == 1:
        grid, row_axis, dims = (n_tiles,), 0, ("parallel",)
        x_map = lambda i: (0, 0, 0, 0, 0)
        w_map = lambda i: (0, 0)
        s_map = lambda i: (0, 0)
        o_map = lambda i: (0, i, 0, 0)
    else:
        grid, row_axis, dims = (N, n_tiles), 1, ("parallel", "parallel")
        x_map = lambda n, i: (n, 0, 0, 0, 0)
        w_map = lambda n, i: (0, 0)
        s_map = lambda n, i: (0, 0)
        o_map = lambda n, i: (n, i, 0, 0)

    kernel = functools.partial(
        _conv_bn_relu_kernel, KH=KH, KW=KW, stride=stride, dilation=dilation,
        tho=tho, Wo=Wo, relu6=relu6, mode=mode, row_axis=row_axis)

    # ---- VMEM budget (per-generation clamp) and cost hint ----
    itemsize = jnp.dtype(compute_dtype).itemsize
    out_itemsize = jnp.dtype(out_dtype).itemsize
    cap = _vmem_capacity_bytes()
    x_tile_b = ss * Hq * _ceil_to(Wq, 8) * _ceil_to(Cin, 128) * itemsize
    w_b = _ceil_to(K, 8) * _ceil_to(Cout, 128) * itemsize
    out_tile_b = tho * _ceil_to(Wo, 8) * _ceil_to(Cout, 128) * out_itemsize
    if mode == "slab":
        scr_b = _ceil_to(tho * Wo, 8) * _ceil_to(K, 128) * itemsize
    elif mode == "taps":
        scr_b = _ceil_to(tho * Wo, 8) * _ceil_to(Cout, 128) * 4
    else:
        scr_b = 0
    vmem_est = 2 * (x_tile_b + out_tile_b) + 2 * w_b + scr_b + (4 << 20)
    vmem_limit = int(min(max(vmem_est, 32 << 20), int(cap * 0.8)))
    # Single-buffer the resident image only when it is a big VMEM consumer
    # (keeps next-image prefetch overlap otherwise).
    x_single = (2 * x_tile_b) > (cap // 4)

    cost = pl.CostEstimate(
        flops=int(2 * N * Ho * Wo * K * Cout),
        transcendentals=0,
        bytes_accessed=int(xp.size) * itemsize + int(w2d.size) * itemsize
                       + N * Ho * Wo * Cout * out_itemsize)

    def _spec(shape, index_map, single_buffer):
        if single_buffer:
            try:
                return pl.BlockSpec(shape, index_map,
                                    pipeline_mode=pl.Buffered(1))
            except Exception:
                pass
        return pl.BlockSpec(shape, index_map)

    def _build(consts_single, x_single_):
        in_specs = [
            # phase-split image: block depends only on n -> fetched once per image
            _spec((1, ss, Hq, Wq, Cin), x_map, x_single_),
            # folded weights + shift: constant across the whole grid
            _spec((K, Cout), w_map, consts_single),
            _spec((1, Cout), s_map, consts_single),
        ]
        return pl.pallas_call(
            kernel,
            out_shape=jax.ShapeDtypeStruct((N, Ho, Wo, Cout), out_dtype),
            grid_spec=pltpu.PrefetchScalarGridSpec(
                num_scalar_prefetch=0,
                grid=grid,
                in_specs=in_specs,
                out_specs=pl.BlockSpec((1, tho, Wo, Cout), o_map),
                scratch_shapes=scratch_shapes),
            compiler_params=pltpu.CompilerParams(
                dimension_semantics=dims, vmem_limit_bytes=vmem_limit),
            cost_estimate=cost)

    try:
        out_nhwc = _build(True, x_single)(xp, w2d, shift)
    except Exception:
        # pl.Buffered(1) not supported by this Pallas version -> default buffering.
        out_nhwc = _build(False, False)(xp, w2d, shift)

    return jnp.transpose(out_nhwc, (0, 3, 1, 2))      # back to NCHW


# --------------------------------------------------------------------------- #
# Pure-JAX reference (PyTorch semantics, f32)
# --------------------------------------------------------------------------- #
def _reference(x, weight, gamma, beta, mean, var, *, stride, padding, dilation,
               eps, relu6):
    y = lax.conv_general_dilated(
        x.astype(jnp.float32), weight.astype(jnp.float32),
        window_strides=(stride, stride),
        padding=[(padding, padding), (padding, padding)],
        rhs_dilation=(dilation, dilation),
        dimension_numbers=("NCHW", "OIHW", "NCHW"))
    s = gamma / jnp.sqrt(var + eps)
    y = y * s[None, :, None, None] + (beta - mean * s)[None, :, None, None]
    y = jnp.maximum(y, 0.0)
    if relu6:
        y = jnp.minimum(y, 6.0)
    return y


if __name__ == "__main__":
    key = jax.random.PRNGKey(0)
    k_x, k_w, k_g, k_b, k_m, k_v = jax.random.split(key, 6)

    # ConvBNReLU(in_channels=4, out_channels=8, kernel_size=3, stride=1, padding=1)
    N, Cin, H, W = 2, 4, 16, 16
    Cout, KH, KW = 8, 3, 3
    stride, padding, dilation, eps, relu6 = 1, 1, 1, 1e-5, False

    x = jax.random.normal(k_x, (N, Cin, H, W), dtype=jnp.float32)
    weight = jax.random.normal(k_w, (Cout, Cin, KH, KW), dtype=jnp.float32) * 0.1
    gamma = jax.random.normal(k_g, (Cout,), dtype=jnp.float32) * 0.1 + 1.0
    beta = jax.random.normal(k_b, (Cout,), dtype=jnp.float32) * 0.1
    running_mean = jax.random.normal(k_m, (Cout,), dtype=jnp.float32) * 0.1
    running_var = jnp.abs(jax.random.normal(k_v, (Cout,), dtype=jnp.float32)) * 0.1 + 1.0

    out = conv_bn_relu(x, weight, gamma, beta, running_mean, running_var,
                       stride=stride, padding=padding, dilation=dilation,
                       eps=eps, relu6=relu6)
    out = jax.block_until_ready(out)

    ref = _reference(x, weight, gamma, beta, running_mean, running_var,
                     stride=stride, padding=padding, dilation=dilation,
                     eps=eps, relu6=relu6)
    assert out.shape == (N, Cout, H, W)
    # bf16 operands (f32 MXU accumulation) => loosened tolerance vs f32 reference.
    assert jnp.allclose(out, ref, atol=5e-2, rtol=5e-2), "mismatch vs reference"

    print("KERNEL_OK")
</pallas_src>

<mosaic_0001>
module attributes {stable_mosaic.version = 11 : i64} {
  func.func @_conv_bn_relu_kernel(%arg0: i32, %arg1: i32, %arg2: memref<1x1x18x18x4xbf16, #tpu.memory_space<vmem>>, %arg3: memref<36x8xbf16, #tpu.memory_space<vmem>>, %arg4: memref<1x8xf32, #tpu.memory_space<vmem>>, %arg5: memref<1x16x16x8xf32, #tpu.memory_space<vmem>>, %arg6: memref<256x36xbf16, #tpu.memory_space<vmem>>) attributes {dimension_semantics = [#tpu.dimension_semantics<parallel>, #tpu.dimension_semantics<parallel>], iteration_bounds = array<i64: 2, 1>, scalar_prefetch = 0 : i64, scratch_operands = 1 : i64, tpu.core_type = #tpu.core_type<tc>, window_params = [{transform_indices = @transform_0, window_bounds = array<i64: 1, 1, 18, 18, 4>}, {pipeline_mode = #tpu.pipeline_mode<synchronous>, transform_indices = @transform_1, window_bounds = array<i64: 36, 8>}, {pipeline_mode = #tpu.pipeline_mode<synchronous>, transform_indices = @transform_2, window_bounds = array<i64: 1, 8>}, {transform_indices = @transform_3, window_bounds = array<i64: 1, 16, 16, 8>}]} {
    %c16_i32 = arith.constant 16 : i32
    %0 = arith.muli %arg1, %c16_i32 : i32
    %1 = tpu.assume_multiple %0, 8 : i32
    %c0_i32 = arith.constant 0 : i32
    %2 = arith.addi %1, %c0_i32 : i32
    %c0 = arith.constant 0 : index
    %c0_0 = arith.constant 0 : index
    %3 = arith.index_cast %2 : i32 to index
    %c0_1 = arith.constant 0 : index
    %c0_2 = arith.constant 0 : index
    %4 = vector.load %arg2[%c0, %c0_0, %3, %c0_1, %c0_2] : memref<1x1x18x18x4xbf16, #tpu.memory_space<vmem>>, vector<1x1x16x16x4xbf16>
    %5 = vector.shape_cast %4 : vector<1x1x16x16x4xbf16> to vector<16x16x4xbf16>
    %6 = vector.shape_cast %5 : vector<16x16x4xbf16> to vector<256x4xbf16>
    %c0_3 = arith.constant 0 : index
    %c0_4 = arith.constant 0 : index
    %7 = vector.load %arg6[%c0_3, %c0_4] : memref<256x36xbf16, #tpu.memory_space<vmem>>, vector<256x4xbf16>
    tpu.vector_store %arg6[%c0_3, %c0_4], %6 {strides = array<i32>} : memref<256x36xbf16, #tpu.memory_space<vmem>>, vector<256x4xbf16>,
    %c0_i32_5 = arith.constant 0 : i32
    %8 = arith.addi %1, %c0_i32_5 : i32
    %c0_6 = arith.constant 0 : index
    %c0_7 = arith.constant 0 : index
    %9 = arith.index_cast %8 : i32 to index
    %c1 = arith.constant 1 : index
    %c0_8 = arith.constant 0 : index
    %10 = vector.load %arg2[%c0_6, %c0_7, %9, %c1, %c0_8] : memref<1x1x18x18x4xbf16, #tpu.memory_space<vmem>>, vector<1x1x16x16x4xbf16>
    %11 = vector.shape_cast %10 : vector<1x1x16x16x4xbf16> to vector<16x16x4xbf16>
    %12 = vector.shape_cast %11 : vector<16x16x4xbf16> to vector<256x4xbf16>
    %c0_9 = arith.constant 0 : index
    %c4 = arith.constant 4 : index
    %13 = vector.load %arg6[%c0_9, %c4] : memref<256x36xbf16, #tpu.memory_space<vmem>>, vector<256x4xbf16>
    tpu.vector_store %arg6[%c0_9, %c4], %12 {strides = array<i32>} : memref<256x36xbf16, #tpu.memory_space<vmem>>, vector<256x4xbf16>,
    %c0_i32_10 = arith.constant 0 : i32
    %14 = arith.addi %1, %c0_i32_10 : i32
    %c0_11 = arith.constant 0 : index
    %c0_12 = arith.constant 0 : index
    %15 = arith.index_cast %14 : i32 to index
    %c2 = arith.constant 2 : index
    %c0_13 = arith.constant 0 : index
    %16 = vector.load %arg2[%c0_11, %c0_12, %15, %c2, %c0_13] : memref<1x1x18x18x4xbf16, #tpu.memory_space<vmem>>, vector<1x1x16x16x4xbf16>
    %17 = vector.shape_cast %16 : vector<1x1x16x16x4xbf16> to vector<16x16x4xbf16>
    %18 = vector.shape_cast %17 : vector<16x16x4xbf16> to vector<256x4xbf16>
    %c0_14 = arith.constant 0 : index
    %c8 = arith.constant 8 : index
    %19 = vector.load %arg6[%c0_14, %c8] : memref<256x36xbf16, #tpu.memory_space<vmem>>, vector<256x4xbf16>
    tpu.vector_store %arg6[%c0_14, %c8], %18 {strides = array<i32>} : memref<256x36xbf16, #tpu.memory_space<vmem>>, vector<256x4xbf16>,
    %c1_i32 = arith.constant 1 : i32
    %20 = arith.addi %1, %c1_i32 : i32
    %c0_15 = arith.constant 0 : index
    %c0_16 = arith.constant 0 : index
    %21 = arith.index_cast %20 : i32 to index
    %c0_17 = arith.constant 0 : index
    %c0_18 = arith.constant 0 : index
    %22 = vector.load %arg2[%c0_15, %c0_16, %21, %c0_17, %c0_18] : memref<1x1x18x18x4xbf16, #tpu.memory_space<vmem>>, vector<1x1x16x16x4xbf16>
    %23 = vector.shape_cast %22 : vector<1x1x16x16x4xbf16> to vector<16x16x4xbf16>
    %24 = vector.shape_cast %23 : vector<16x16x4xbf16> to vector<256x4xbf16>
    %c0_19 = arith.constant 0 : index
    %c12 = arith.constant 12 : index
    %25 = vector.load %arg6[%c0_19, %c12] : memref<256x36xbf16, #tpu.memory_space<vmem>>, vector<256x4xbf16>
    tpu.vector_store %arg6[%c0_19, %c12], %24 {strides = array<i32>} : memref<256x36xbf16, #tpu.memory_space<vmem>>, vector<256x4xbf16>,
    %c1_i32_20 = arith.constant 1 : i32
    %26 = arith.addi %1, %c1_i32_20 : i32
    %c0_21 = arith.constant 0 : index
    %c0_22 = arith.constant 0 : index
    %27 = arith.index_cast %26 : i32 to index
    %c1_23 = arith.constant 1 : index
    %c0_24 = arith.constant 0 : index
    %28 = vector.load %arg2[%c0_21, %c0_22, %27, %c1_23, %c0_24] : memref<1x1x18x18x4xbf16, #tpu.memory_space<vmem>>, vector<1x1x16x16x4xbf16>
    %29 = vector.shape_cast %28 : vector<1x1x16x16x4xbf16> to vector<16x16x4xbf16>
    %30 = vector.shape_cast %29 : vector<16x16x4xbf16> to vector<256x4xbf16>
    %c0_25 = arith.constant 0 : index
    %c16 = arith.constant 16 : index
    %31 = vector.load %arg6[%c0_25, %c16] : memref<256x36xbf16, #tpu.memory_space<vmem>>, vector<256x4xbf16>
    tpu.vector_store %arg6[%c0_25, %c16], %30 {strides = array<i32>} : memref<256x36xbf16, #tpu.memory_space<vmem>>, vector<256x4xbf16>,
    %c1_i32_26 = arith.constant 1 : i32
    %32 = arith.addi %1, %c1_i32_26 : i32
    %c0_27 = arith.constant 0 : index
    %c0_28 = arith.constant 0 : index
    %33 = arith.index_cast %32 : i32 to index
    %c2_29 = arith.constant 2 : index
    %c0_30 = arith.constant 0 : index
    %34 = vector.load %arg2[%c0_27, %c0_28, %33, %c2_29, %c0_30] : memref<1x1x18x18x4xbf16, #tpu.memory_space<vmem>>, vector<1x1x16x16x4xbf16>
    %35 = vector.shape_cast %34 : vector<1x1x16x16x4xbf16> to vector<16x16x4xbf16>
    %36 = vector.shape_cast %35 : vector<16x16x4xbf16> to vector<256x4xbf16>
    %c0_31 = arith.constant 0 : index
    %c20 = arith.constant 20 : index
    %37 = vector.load %arg6[%c0_31, %c20] : memref<256x36xbf16, #tpu.memory_space<vmem>>, vector<256x4xbf16>
    tpu.vector_store %arg6[%c0_31, %c20], %36 {strides = array<i32>} : memref<256x36xbf16, #tpu.memory_space<vmem>>, vector<256x4xbf16>,
    %c2_i32 = arith.constant 2 : i32
    %38 = arith.addi %1, %c2_i32 : i32
    %c0_32 = arith.constant 0 : index
    %c0_33 = arith.constant 0 : index
    %39 = arith.index_cast %38 : i32 to index
    %c0_34 = arith.constant 0 : index
    %c0_35 = arith.constant 0 : index
    %40 = vector.load %arg2[%c0_32, %c0_33, %39, %c0_34, %c0_35] : memref<1x1x18x18x4xbf16, #tpu.memory_space<vmem>>, vector<1x1x16x16x4xbf16>
    %41 = vector.shape_cast %40 : vector<1x1x16x16x4xbf16> to vector<16x16x4xbf16>
    %42 = vector.shape_cast %41 : vector<16x16x4xbf16> to vector<256x4xbf16>
    %c0_36 = arith.constant 0 : index
    %c24 = arith.constant 24 : index
    %43 = vector.load %arg6[%c0_36, %c24] : memref<256x36xbf16, #tpu.memory_space<vmem>>, vector<256x4xbf16>
    tpu.vector_store %arg6[%c0_36, %c24], %42 {strides = array<i32>} : memref<256x36xbf16, #tpu.memory_space<vmem>>, vector<256x4xbf16>,
    %c2_i32_37 = arith.constant 2 : i32
    %44 = arith.addi %1, %c2_i32_37 : i32
    %c0_38 = arith.constant 0 : index
    %c0_39 = arith.constant 0 : index
    %45 = arith.index_cast %44 : i32 to index
    %c1_40 = arith.constant 1 : index
    %c0_41 = arith.constant 0 : index
    %46 = vector.load %arg2[%c0_38, %c0_39, %45, %c1_40, %c0_41] : memref<1x1x18x18x4xbf16, #tpu.memory_space<vmem>>, vector<1x1x16x16x4xbf16>
    %47 = vector.shape_cast %46 : vector<1x1x16x16x4xbf16> to vector<16x16x4xbf16>
    %48 = vector.shape_cast %47 : vector<16x16x4xbf16> to vector<256x4xbf16>
    %c0_42 = arith.constant 0 : index
    %c28 = arith.constant 28 : index
    %49 = vector.load %arg6[%c0_42, %c28] : memref<256x36xbf16, #tpu.memory_space<vmem>>, vector<256x4xbf16>
    tpu.vector_store %arg6[%c0_42, %c28], %48 {strides = array<i32>} : memref<256x36xbf16, #tpu.memory_space<vmem>>, vector<256x4xbf16>,
    %c2_i32_43 = arith.constant 2 : i32
    %50 = arith.addi %1, %c2_i32_43 : i32
    %c0_44 = arith.constant 0 : index
    %c0_45 = arith.constant 0 : index
    %51 = arith.index_cast %50 : i32 to index
    %c2_46 = arith.constant 2 : index
    %c0_47 = arith.constant 0 : index
    %52 = vector.load %arg2[%c0_44, %c0_45, %51, %c2_46, %c0_47] : memref<1x1x18x18x4xbf16, #tpu.memory_space<vmem>>, vector<1x1x16x16x4xbf16>
    %53 = vector.shape_cast %52 : vector<1x1x16x16x4xbf16> to vector<16x16x4xbf16>
    %54 = vector.shape_cast %53 : vector<16x16x4xbf16> to vector<256x4xbf16>
    %c0_48 = arith.constant 0 : index
    %c32 = arith.constant 32 : index
    %55 = vector.load %arg6[%c0_48, %c32] : memref<256x36xbf16, #tpu.memory_space<vmem>>, vector<256x4xbf16>
    tpu.vector_store %arg6[%c0_48, %c32], %54 {strides = array<i32>} : memref<256x36xbf16, #tpu.memory_space<vmem>>, vector<256x4xbf16>,
    %c0_49 = arith.constant 0 : index
    %c0_50 = arith.constant 0 : index
    %56 = vector.load %arg6[%c0_49, %c0_50] : memref<256x36xbf16, #tpu.memory_space<vmem>>, vector<256x36xbf16>
    %c0_51 = arith.constant 0 : index
    %c0_52 = arith.constant 0 : index
    %57 = vector.load %arg3[%c0_51, %c0_52] : memref<36x8xbf16, #tpu.memory_space<vmem>>, vector<36x8xbf16>
    %cst = arith.constant dense<0.000000e+00> : vector<256x8xf32>
    %58 = tpu.matmul %56, %57, %cst {dimension_numbers = #tpu.dot_dimension_numbers<[1], [0], [0], [1], [0, 0, 1, 1], [], []>} : vector<256x36xbf16>, vector<36x8xbf16>, vector<256x8xf32> -> vector<256x8xf32>
    %c0_53 = arith.constant 0 : index
    %c0_54 = arith.constant 0 : index
    %59 = vector.load %arg4[%c0_53, %c0_54] : memref<1x8xf32, #tpu.memory_space<vmem>>, vector<1x8xf32>
    %60 = vector.broadcast %59 : vector<1x8xf32> to vector<256x8xf32>
    %61 = arith.addf %58, %60 : vector<256x8xf32>
    %cst_55 = arith.constant 0.000000e+00 : f32
    %62 = vector.broadcast %cst_55 : f32 to vector<256x8xf32>
    %63 = arith.maximumf %61, %62 : vector<256x8xf32>
    %64 = vector.shape_cast %63 : vector<256x8xf32> to vector<16x16x8xf32>
    %c0_56 = arith.constant 0 : index
    %c0_57 = arith.constant 0 : index
    %c0_58 = arith.constant 0 : index
    %c0_59 = arith.constant 0 : index
    %65 = vector.load %arg5[%c0_56, %c0_57, %c0_58, %c0_59] : memref<1x16x16x8xf32, #tpu.memory_space<vmem>>, vector<1x16x16x8xf32>
    %66 = vector.shape_cast %65 : vector<1x16x16x8xf32> to vector<16x16x8xf32>
    %67 = vector.shape_cast %64 : vector<16x16x8xf32> to vector<1x16x16x8xf32>
    tpu.vector_store %arg5[%c0_56, %c0_57, %c0_58, %c0_59], %67 {strides = array<i32>} : memref<1x16x16x8xf32, #tpu.memory_space<vmem>>, vector<1x16x16x8xf32>,
    return
  }
  func.func @transform_0(%arg0: i32, %arg1: i32) -> (i32, i32, i32, i32, i32) {
    %c0_i32 = arith.constant 0 : i32
    %c0_i32_0 = arith.constant 0 : i32
    %c0_i32_1 = arith.constant 0 : i32
    %c0_i32_2 = arith.constant 0 : i32
    %c0_i32_3 = arith.constant 0 : i32
    return %arg0, %c0_i32, %c0_i32_0, %c0_i32_1, %c0_i32_2 : i32, i32, i32, i32, i32
  }
  func.func @transform_1(%arg0: i32, %arg1: i32) -> (i32, i32) {
    %c0_i32 = arith.constant 0 : i32
    %c0_i32_0 = arith.constant 0 : i32
    %c0_i32_1 = arith.constant 0 : i32
    return %c0_i32, %c0_i32_0 : i32, i32
  }
  func.func @transform_2(%arg0: i32, %arg1: i32) -> (i32, i32) {
    %c0_i32 = arith.constant 0 : i32
    %c0_i32_0 = arith.constant 0 : i32
    %c0_i32_1 = arith.constant 0 : i32
    return %c0_i32, %c0_i32_0 : i32, i32
  }
  func.func @transform_3(%arg0: i32, %arg1: i32) -> (i32, i32, i32, i32) {
    %c0_i32 = arith.constant 0 : i32
    %c0_i32_0 = arith.constant 0 : i32
    %c0_i32_1 = arith.constant 0 : i32
    return %arg0, %arg1, %c0_i32, %c0_i32_0 : i32, i32, i32, i32
  }
}

module attributes {stable_mosaic.version = 11 : i64} {
  func.func @_conv_bn_relu_kernel(%arg0: i32, %arg1: i32, %arg2: memref<1x1x18x18x4xbf16, #tpu.memory_space<vmem>>, %arg3: memref<36x8xbf16, #tpu.memory_space<vmem>>, %arg4: memref<1x8xf32, #tpu.memory_space<vmem>>, %arg5: memref<1x16x16x8xf32, #tpu.memory_space<vmem>>, %arg6: memref<256x36xbf16, #tpu.memory_space<vmem>>) attributes {dimension_semantics = [#tpu.dimension_semantics<parallel>, #tpu.dimension_semantics<parallel>], iteration_bounds = array<i64: 2, 1>, scalar_prefetch = 0 : i64, scratch_operands = 1 : i64, tpu.core_type = #tpu.core_type<tc>, window_params = [{transform_indices = @transform_0, window_bounds = array<i64: 1, 1, 18, 18, 4>}, {pipeline_mode = #tpu.pipeline_mode<synchronous>, transform_indices = @transform_1, window_bounds = array<i64: 36, 8>}, {pipeline_mode = #tpu.pipeline_mode<synchronous>, transform_indices = @transform_2, window_bounds = array<i64: 1, 8>}, {transform_indices = @transform_3, window_bounds = array<i64: 1, 16, 16, 8>}]} {
    %c16_i32 = arith.constant 16 : i32
    %0 = arith.muli %arg1, %c16_i32 : i32
    %1 = tpu.assume_multiple %0, 8 : i32
    %c0_i32 = arith.constant 0 : i32
    %2 = arith.addi %1, %c0_i32 : i32
    %c0 = arith.constant 0 : index
    %c0_0 = arith.constant 0 : index
    %3 = arith.index_cast %2 : i32 to index
    %c0_1 = arith.constant 0 : index
    %c0_2 = arith.constant 0 : index
    %4 = vector.load %arg2[%c0, %c0_0, %3, %c0_1, %c0_2] : memref<1x1x18x18x4xbf16, #tpu.memory_space<vmem>>, vector<1x1x16x16x4xbf16>
    %5 = vector.shape_cast %4 : vector<1x1x16x16x4xbf16> to vector<16x16x4xbf16>
    %6 = vector.shape_cast %5 : vector<16x16x4xbf16> to vector<256x4xbf16>
    %c0_3 = arith.constant 0 : index
    %c0_4 = arith.constant 0 : index
    %7 = vector.load %arg6[%c0_3, %c0_4] : memref<256x36xbf16, #tpu.memory_space<vmem>>, vector<256x4xbf16>
    tpu.vector_store %arg6[%c0_3, %c0_4], %6 {strides = array<i32>} : memref<256x36xbf16, #tpu.memory_space<vmem>>, vector<256x4xbf16>,
    %c0_i32_5 = arith.constant 0 : i32
    %8 = arith.addi %1, %c0_i32_5 : i32
    %c0_6 = arith.constant 0 : index
    %c0_7 = arith.constant 0 : index
    %9 = arith.index_cast %8 : i32 to index
    %c1 = arith.constant 1 : index
    %c0_8 = arith.constant 0 : index
    %10 = vector.load %arg2[%c0_6, %c0_7, %9, %c1, %c0_8] : memref<1x1x18x18x4xbf16, #tpu.memory_space<vmem>>, vector<1x1x16x16x4xbf16>
    %11 = vector.shape_cast %10 : vector<1x1x16x16x4xbf16> to vector<16x16x4xbf16>
    %12 = vector.shape_cast %11 : vector<16x16x4xbf16> to vector<256x4xbf16>
    %c0_9 = arith.constant 0 : index
    %c4 = arith.constant 4 : index
    %13 = vector.load %arg6[%c0_9, %c4] : memref<256x36xbf16, #tpu.memory_space<vmem>>, vector<256x4xbf16>
    tpu.vector_store %arg6[%c0_9, %c4], %12 {strides = array<i32>} : memref<256x36xbf16, #tpu.memory_space<vmem>>, vector<256x4xbf16>,
    %c0_i32_10 = arith.constant 0 : i32
    %14 = arith.addi %1, %c0_i32_10 : i32
    %c0_11 = arith.constant 0 : index
    %c0_12 = arith.constant 0 : index
    %15 = arith.index_cast %14 : i32 to index
    %c2 = arith.constant 2 : index
    %c0_13 = arith.constant 0 : index
    %16 = vector.load %arg2[%c0_11, %c0_12, %15, %c2, %c0_13] : memref<1x1x18x18x4xbf16, #tpu.memory_space<vmem>>, vector<1x1x16x16x4xbf16>
    %17 = vector.shape_cast %16 : vector<1x1x16x16x4xbf16> to vector<16x16x4xbf16>
    %18 = vector.shape_cast %17 : vector<16x16x4xbf16> to vector<256x4xbf16>
    %c0_14 = arith.constant 0 : index
    %c8 = arith.constant 8 : index
    %19 = vector.load %arg6[%c0_14, %c8] : memref<256x36xbf16, #tpu.memory_space<vmem>>, vector<256x4xbf16>
    tpu.vector_store %arg6[%c0_14, %c8], %18 {strides = array<i32>} : memref<256x36xbf16, #tpu.memory_space<vmem>>, vector<256x4xbf16>,
    %c1_i32 = arith.constant 1 : i32
    %20 = arith.addi %1, %c1_i32 : i32
    %c0_15 = arith.constant 0 : index
    %c0_16 = arith.constant 0 : index
    %21 = arith.index_cast %20 : i32 to index
    %c0_17 = arith.constant 0 : index
    %c0_18 = arith.constant 0 : index
    %22 = vector.load %arg2[%c0_15, %c0_16, %21, %c0_17, %c0_18] : memref<1x1x18x18x4xbf16, #tpu.memory_space<vmem>>, vector<1x1x16x16x4xbf16>
    %23 = vector.shape_cast %22 : vector<1x1x16x16x4xbf16> to vector<16x16x4xbf16>
    %24 = vector.shape_cast %23 : vector<16x16x4xbf16> to vector<256x4xbf16>
    %c0_19 = arith.constant 0 : index
    %c12 = arith.constant 12 : index
    %25 = vector.load %arg6[%c0_19, %c12] : memref<256x36xbf16, #tpu.memory_space<vmem>>, vector<256x4xbf16>
    tpu.vector_store %arg6[%c0_19, %c12], %24 {strides = array<i32>} : memref<256x36xbf16, #tpu.memory_space<vmem>>, vector<256x4xbf16>,
    %c1_i32_20 = arith.constant 1 : i32
    %26 = arith.addi %1, %c1_i32_20 : i32
    %c0_21 = arith.constant 0 : index
    %c0_22 = arith.constant 0 : index
    %27 = arith.index_cast %26 : i32 to index
    %c1_23 = arith.constant 1 : index
    %c0_24 = arith.constant 0 : index
    %28 = vector.load %arg2[%c0_21, %c0_22, %27, %c1_23, %c0_24] : memref<1x1x18x18x4xbf16, #tpu.memory_space<vmem>>, vector<1x1x16x16x4xbf16>
    %29 = vector.shape_cast %28 : vector<1x1x16x16x4xbf16> to vector<16x16x4xbf16>
    %30 = vector.shape_cast %29 : vector<16x16x4xbf16> to vector<256x4xbf16>
    %c0_25 = arith.constant 0 : index
    %c16 = arith.constant 16 : index
    %31 = vector.load %arg6[%c0_25, %c16] : memref<256x36xbf16, #tpu.memory_space<vmem>>, vector<256x4xbf16>
    tpu.vector_store %arg6[%c0_25, %c16], %30 {strides = array<i32>} : memref<256x36xbf16, #tpu.memory_space<vmem>>, vector<256x4xbf16>,
    %c1_i32_26 = arith.constant 1 : i32
    %32 = arith.addi %1, %c1_i32_26 : i32
    %c0_27 = arith.constant 0 : index
    %c0_28 = arith.constant 0 : index
    %33 = arith.index_cast %32 : i32 to index
    %c2_29 = arith.constant 2 : index
    %c0_30 = arith.constant 0 : index
    %34 = vector.load %arg2[%c0_27, %c0_28, %33, %c2_29, %c0_30] : memref<1x1x18x18x4xbf16, #tpu.memory_space<vmem>>, vector<1x1x16x16x4xbf16>
    %35 = vector.shape_cast %34 : vector<1x1x16x16x4xbf16> to vector<16x16x4xbf16>
    %36 = vector.shape_cast %35 : vector<16x16x4xbf16> to vector<256x4xbf16>
    %c0_31 = arith.constant 0 : index
    %c20 = arith.constant 20 : index
    %37 = vector.load %arg6[%c0_31, %c20] : memref<256x36xbf16, #tpu.memory_space<vmem>>, vector<256x4xbf16>
    tpu.vector_store %arg6[%c0_31, %c20], %36 {strides = array<i32>} : memref<256x36xbf16, #tpu.memory_space<vmem>>, vector<256x4xbf16>,
    %c2_i32 = arith.constant 2 : i32
    %38 = arith.addi %1, %c2_i32 : i32
    %c0_32 = arith.constant 0 : index
    %c0_33 = arith.constant 0 : index
    %39 = arith.index_cast %38 : i32 to index
    %c0_34 = arith.constant 0 : index
    %c0_35 = arith.constant 0 : index
    %40 = vector.load %arg2[%c0_32, %c0_33, %39, %c0_34, %c0_35] : memref<1x1x18x18x4xbf16, #tpu.memory_space<vmem>>, vector<1x1x16x16x4xbf16>
    %41 = vector.shape_cast %40 : vector<1x1x16x16x4xbf16> to vector<16x16x4xbf16>
    %42 = vector.shape_cast %41 : vector<16x16x4xbf16> to vector<256x4xbf16>
    %c0_36 = arith.constant 0 : index
    %c24 = arith.constant 24 : index
    %43 = vector.load %arg6[%c0_36, %c24] : memref<256x36xbf16, #tpu.memory_space<vmem>>, vector<256x4xbf16>
    tpu.vector_store %arg6[%c0_36, %c24], %42 {strides = array<i32>} : memref<256x36xbf16, #tpu.memory_space<vmem>>, vector<256x4xbf16>,
    %c2_i32_37 = arith.constant 2 : i32
    %44 = arith.addi %1, %c2_i32_37 : i32
    %c0_38 = arith.constant 0 : index
    %c0_39 = arith.constant 0 : index
    %45 = arith.index_cast %44 : i32 to index
    %c1_40 = arith.constant 1 : index
    %c0_41 = arith.constant 0 : index
    %46 = vector.load %arg2[%c0_38, %c0_39, %45, %c1_40, %c0_41] : memref<1x1x18x18x4xbf16, #tpu.memory_space<vmem>>, vector<1x1x16x16x4xbf16>
    %47 = vector.shape_cast %46 : vector<1x1x16x16x4xbf16> to vector<16x16x4xbf16>
    %48 = vector.shape_cast %47 : vector<16x16x4xbf16> to vector<256x4xbf16>
    %c0_42 = arith.constant 0 : index
    %c28 = arith.constant 28 : index
    %49 = vector.load %arg6[%c0_42, %c28] : memref<256x36xbf16, #tpu.memory_space<vmem>>, vector<256x4xbf16>
    tpu.vector_store %arg6[%c0_42, %c28], %48 {strides = array<i32>} : memref<256x36xbf16, #tpu.memory_space<vmem>>, vector<256x4xbf16>,
    %c2_i32_43 = arith.constant 2 : i32
    %50 = arith.addi %1, %c2_i32_43 : i32
    %c0_44 = arith.constant 0 : index
    %c0_45 = arith.constant 0 : index
    %51 = arith.index_cast %50 : i32 to index
    %c2_46 = arith.constant 2 : index
    %c0_47 = arith.constant 0 : index
    %52 = vector.load %arg2[%c0_44, %c0_45, %51, %c2_46, %c0_47] : memref<1x1x18x18x4xbf16, #tpu.memory_space<vmem>>, vector<1x1x16x16x4xbf16>
    %53 = vector.shape_cast %52 : vector<1x1x16x16x4xbf16> to vector<16x16x4xbf16>
    %54 = vector.shape_cast %53 : vector<16x16x4xbf16> to vector<256x4xbf16>
    %c0_48 = arith.constant 0 : index
    %c32 = arith.constant 32 : index
    %55 = vector.load %arg6[%c0_48, %c32] : memref<256x36xbf16, #tpu.memory_space<vmem>>, vector<256x4xbf16>
    tpu.vector_store %arg6[%c0_48, %c32], %54 {strides = array<i32>} : memref<256x36xbf16, #tpu.memory_space<vmem>>, vector<256x4xbf16>,
    %c0_49 = arith.constant 0 : index
    %c0_50 = arith.constant 0 : index
    %56 = vector.load %arg6[%c0_49, %c0_50] : memref<256x36xbf16, #tpu.memory_space<vmem>>, vector<256x36xbf16>
    %c0_51 = arith.constant 0 : index
    %c0_52 = arith.constant 0 : index
    %57 = vector.load %arg3[%c0_51, %c0_52] : memref<36x8xbf16, #tpu.memory_space<vmem>>, vector<36x8xbf16>
    %cst = arith.constant dense<0.000000e+00> : vector<256x8xf32>
    %58 = tpu.matmul %56, %57, %cst {dimension_numbers = #tpu.dot_dimension_numbers<[1], [0], [0], [1], [0, 0, 1, 1], [], []>} : vector<256x36xbf16>, vector<36x8xbf16>, vector<256x8xf32> -> vector<256x8xf32>
    %c0_53 = arith.constant 0 : index
    %c0_54 = arith.constant 0 : index
    %59 = vector.load %arg4[%c0_53, %c0_54] : memref<1x8xf32, #tpu.memory_space<vmem>>, vector<1x8xf32>
    %60 = vector.broadcast %59 : vector<1x8xf32> to vector<256x8xf32>
    %61 = arith.addf %58, %60 : vector<256x8xf32>
    %cst_55 = arith.constant 0.000000e+00 : f32
    %62 = vector.broadcast %cst_55 : f32 to vector<256x8xf32>
    %63 = arith.maximumf %61, %62 : vector<256x8xf32>
    %64 = vector.shape_cast %63 : vector<256x8xf32> to vector<16x16x8xf32>
    %c0_56 = arith.constant 0 : index
    %c0_57 = arith.constant 0 : index
    %c0_58 = arith.constant 0 : index
    %c0_59 = arith.constant 0 : index
    %65 = vector.load %arg5[%c0_56, %c0_57, %c0_58, %c0_59] : memref<1x16x16x8xf32, #tpu.memory_space<vmem>>, vector<1x16x16x8xf32>
    %66 = vector.shape_cast %65 : vector<1x16x16x8xf32> to vector<16x16x8xf32>
    %67 = vector.shape_cast %64 : vector<16x16x8xf32> to vector<1x16x16x8xf32>
    tpu.vector_store %arg5[%c0_56, %c0_57, %c0_58, %c0_59], %67 {strides = array<i32>} : memref<1x16x16x8xf32, #tpu.memory_space<vmem>>, vector<1x16x16x8xf32>,
    return
  }
  func.func @transform_0(%arg0: i32, %arg1: i32) -> (i32, i32, i32, i32, i32) {
    %c0_i32 = arith.constant 0 : i32
    %c0_i32_0 = arith.constant 0 : i32
    %c0_i32_1 = arith.constant 0 : i32
    %c0_i32_2 = arith.constant 0 : i32
    %c0_i32_3 = arith.constant 0 : i32
    return %arg0, %c0_i32, %c0_i32_0, %c0_i32_1, %c0_i32_2 : i32, i32, i32, i32, i32
  }
  func.func @transform_1(%arg0: i32, %arg1: i32) -> (i32, i32) {
    %c0_i32 = arith.constant 0 : i32
    %c0_i32_0 = arith.constant 0 : i32
    %c0_i32_1 = arith.constant 0 : i32
    return %c0_i32, %c0_i32_0 : i32, i32
  }
  func.func @transform_2(%arg0: i32, %arg1: i32) -> (i32, i32) {
    %c0_i32 = arith.constant 0 : i32
    %c0_i32_0 = arith.constant 0 : i32
    %c0_i32_1 = arith.constant 0 : i32
    return %c0_i32, %c0_i32_0 : i32, i32
  }
  func.func @transform_3(%arg0: i32, %arg1: i32) -> (i32, i32, i32, i32) {
    %c0_i32 = arith.constant 0 : i32
    %c0_i32_0 = arith.constant 0 : i32
    %c0_i32_1 = arith.constant 0 : i32
    return %arg0, %arg1, %c0_i32, %c0_i32_0 : i32, i32, i32, i32
  }
}

</mosaic_0001>

<llo_original>
// kernel: tpu_custom_call.1
$region0: #{tpu_custom_call.1}
  #allocation0 [shape = 'u32[]', space=smem, size = 0x4, offset = 0x4, fixed_abs, tag = 'smem constant byte address 0x4 - core index']
  #allocation1 [shape = 'u32[72,128]{1,0:T(1,128)}', space=vmem, size = 0x9000, scoped, tag = 'internal scratch']
  #allocation2 [shape = 'bf16[256,36]{1,0:T(8,128)(2,1)}', space=vmem, size = 0x10000, scoped, tag = 'scratch operand']
  %s0 = inlined_call_operand.vmem [shape: bf16[2,1,18,18,4], index: 0, kind: input, shape index: {}]
  %s1 = inlined_call_operand.vmem [shape: bf16[36,8], index: 1, kind: input, shape index: {}]
  %s2 = inlined_call_operand.vmem [shape: f32[1,8], index: 2, kind: input, shape index: {}]
  %s3 = inlined_call_operand.vmem [shape: f32[2,16,16,8], index: 3, kind: output, shape index: {}]
  %s4 = sld [smem:[#allocation0]]
  $region45: #{tpu_custom_call.1} parent=0
    _
  %s6 = ssub.s32 1, %s4
  %s7 = scalar_select 0, %s6, %s4
  loop: start=0, step=1, limit=4
  $region2: #{tpu_custom_call.1} parent=0 // loop_pre_header
    _
  $region3: #{tpu_custom_call.1} parent=0 // loop_header
    %s9 = sphi 0, %s13
    %p10 = scmp.ge.s32.totalorder %s9, 4
    %s16 = sphi 0, %s28
    %s17 = sphi 0, %s24
    %s18 = sphi 0, %s16
    %s19 = sphi 0, %s17
    %s20 = sphi 0, %s18
    %s21 = sphi 0, %s19
    %s31 = sphi 0, %s33
    %s34 = sphi 0, %s31
    %s35 = sphi 0, %s34
    %s51 = sphi 0, %s35
    %s55 = sphi 0, %s55
    %s57 = sphi 0, %s55
    %s58 = sphi 0, %s57
    %s72 = sphi 0, %s58
    %s76 = sphi 0, %s76
    %s78 = sphi 0, %s76
    %s79 = sphi 0, %s78
    %s93 = sphi 0, %s79
    %s101 = sphi 0, %s103
    %s104 = sphi 0, %s101
    %s105 = sphi 0, %s104
    %s121 = sphi 0, %s105
  $region4: #{tpu_custom_call.1} parent=0 // loop_header_branch
    %12 = sbr.rel (%p10) target = $region8
  $region5: #{tpu_custom_call.1} parent=0 // loop_body
    %s14 = ssub.s32 %s9, 1
    %s15 = ssub.s32 %s9, 2
    %s22 = sadd.s32 1, %s17
    %p23 = scmp.ge.s32.totalorder %s22, 1
    %s24 = scalar_select %p23, 0, %s22
    %s25 = sadd.s32 1, %s16
    %s26 = scalar_select %p23, %s25, %s16
    %p27 = scmp.ge.s32.totalorder %s26, 2
    %s28 = scalar_select %p27, 0, %s26
    %s29 = ssub.s32 %s16, %s28
    %p30 = scmp.eq.s32.totalorder %s29, 0
    %s32 = sadd.s32 %s31, 1
    %s33 = scalar_select %p30, %s31, %s32
    %p36 = pneg %p30
    %p37 = scmp.eq.s32.totalorder %s9, 1
    %p38 = por %p36, %p37
    %p39 = scmp.ne.s32.totalorder %s31, %s34
    %p40 = scmp.eq.s32.totalorder %s9, 0
    %p41 = por %p39, %p40
    %p42 = scmp.ne.s32.totalorder %s31, %s34
    %p43 = scmp.eq.s32.totalorder %s14, 1
    %p44 = por %p42, %p43
    %p45 = scmp.ne.s32.totalorder %s34, %s35
    %p46 = scmp.eq.s32.totalorder %s14, 0
    %p47 = por %p45, %p46
    %p48 = scmp.ne.s32.totalorder %s34, %s35
    %p49 = scmp.eq.s32.totalorder %s15, 1
    %p50 = por %p48, %p49
    %p52 = scmp.ne.s32.totalorder %s35, %s51
    %p53 = scmp.eq.s32.totalorder %s15, 0
    %p54 = por %p52, %p53
    %s56 = sadd.s32 %s55, 1
    %p59 = scmp.eq.s32.totalorder %s9, 1
    %p60 = scmp.ne.s32.totalorder %s55, %s57
    %p61 = scmp.eq.s32.totalorder %s9, 0
    %p62 = por %p60, %p61
    %p63 = scmp.ne.s32.totalorder %s55, %s57
    %p64 = scmp.eq.s32.totalorder %s14, 1
    %p65 = por %p63, %p64
    %p66 = scmp.ne.s32.totalorder %s57, %s58
    %p67 = scmp.eq.s32.totalorder %s14, 0
    %p68 = por %p66, %p67
    %p69 = scmp.ne.s32.totalorder %s57, %s58
    %p70 = scmp.eq.s32.totalorder %s15, 1
    %p71 = por %p69, %p70
    %p73 = scmp.ne.s32.totalorder %s58, %s72
    %p74 = scmp.eq.s32.totalorder %s15, 0
    %p75 = por %p73, %p74
    %s77 = sadd.s32 %s76, 1
    %p80 = scmp.eq.s32.totalorder %s9, 1
    %p81 = scmp.ne.s32.totalorder %s76, %s78
    %p82 = scmp.eq.s32.totalorder %s9, 0
    %p83 = por %p81, %p82
    %p84 = scmp.ne.s32.totalorder %s76, %s78
    %p85 = scmp.eq.s32.totalorder %s14, 1
    %p86 = por %p84, %p85
    %p87 = scmp.ne.s32.totalorder %s78, %s79
    %p88 = scmp.eq.s32.totalorder %s14, 0
    %p89 = por %p87, %p88
    %p90 = scmp.ne.s32.totalorder %s78, %s79
    %p91 = scmp.eq.s32.totalorder %s15, 1
    %p92 = por %p90, %p91
    %p94 = scmp.ne.s32.totalorder %s79, %s93
    %p95 = scmp.eq.s32.totalorder %s15, 0
    %p96 = por %p94, %p95
    %s97 = ssub.s32 %s16, %s28
    %s98 = ssub.s32 %s17, %s24
    %s99 = sor.u32 %s97, %s98
    %p100 = scmp.eq.s32.totalorder %s99, 0
    %s102 = sadd.s32 %s101, 1
    %s103 = scalar_select %p100, %s101, %s102
    %p106 = pneg %p100
    %p107 = scmp.eq.s32.totalorder %s9, 1
    %p108 = por %p106, %p107
    %p109 = scmp.ne.s32.totalorder %s101, %s104
    %p110 = scmp.eq.s32.totalorder %s9, 0
    %p111 = por %p109, %p110
    %p112 = scmp.ne.s32.totalorder %s101, %s104
    %p113 = scmp.eq.s32.totalorder %s14, 1
    %p114 = por %p112, %p113
    %p115 = scmp.ne.s32.totalorder %s104, %s105
    %p116 = scmp.eq.s32.totalorder %s14, 0
    %p117 = por %p115, %p116
    %p118 = scmp.ne.s32.totalorder %s104, %s105
    %p119 = scmp.eq.s32.totalorder %s15, 1
    %p120 = por %p118, %p119
    %p122 = scmp.ne.s32.totalorder %s105, %s121
    %p123 = scmp.eq.s32.totalorder %s15, 0
    %p124 = por %p122, %p123
    %p125 = scmp.le.s32.totalorder 1, %s9
    %p126 = scmp.lt.s32.totalorder %s9, 3
    %p127 = pnand %p125, %p126
    %p128 = pneg %p127
    // Predicated region
    $region9: #{tpu_custom_call.1} parent=5 // pred_check
      _
    $region10: #{tpu_custom_call.1} parent=5 // pred_check_branch
      %130 = sbr.rel (%p127) target = $region12
    $region11: #{tpu_custom_call.1} parent=5 // pred_region
      %s131 = ssub.s32 %s9, 1
      // Predicated region
      $region13: #{tpu_custom_call.1} parent=11 // pred_check
        %p132 = pneg %p68
      $region14: #{tpu_custom_call.1} parent=11 // pred_check_branch
        %134 = sbr.rel (%p132) target = $region16
      $region15: #{tpu_custom_call.1} parent=11 // pred_region
        _
      $region16: #{tpu_custom_call.1} parent=11 // pred_fallthru
        _
      // Predicated region
      $region17: #{tpu_custom_call.1} parent=11 // pred_check
        %p135 = pneg %p89
      $region18: #{tpu_custom_call.1} parent=11 // pred_check_branch
        %137 = sbr.rel (%p135) target = $region20
      $region19: #{tpu_custom_call.1} parent=11 // pred_region
        _
      $region20: #{tpu_custom_call.1} parent=11 // pred_fallthru
        _
    $region12: #{tpu_custom_call.1} parent=5 // pred_fallthru
      _
    %p138 = scmp.lt.s32.totalorder %s9, 2
    // Predicated region
    $region21: #{tpu_custom_call.1} parent=5 // pred_check
      %p139 = pneg %p138
    $region22: #{tpu_custom_call.1} parent=5 // pred_check_branch
      %141 = sbr.rel (%p139) target = $region24
    $region23: #{tpu_custom_call.1} parent=5 // pred_region
      // Predicated region
      $region25: #{tpu_custom_call.1} parent=23 // pred_check
        %p142 = pneg %p41
      $region26: #{tpu_custom_call.1} parent=23 // pred_check_branch
        %144 = sbr.rel (%p142) target = $region28
      $region27: #{tpu_custom_call.1} parent=23 // pred_region
        %p145 = scmp.lt.s32.totalorder %s16, 1
        %s146 = scalar_select %p145, %s16, 1
        %s147 = smul.addr %s146, 54
        %s148 = smul.addr %s147, 4
        %s149 = scalar_lea.vmem %s0, %s148
      $region28: #{tpu_custom_call.1} parent=23 // pred_fallthru
        _
    $region24: #{tpu_custom_call.1} parent=5 // pred_fallthru
      _
    %p150 = scmp.le.s32.totalorder 1, %s9
    %p151 = scmp.lt.s32.totalorder %s9, 3
    %p152 = pnand %p150, %p151
    %p153 = pneg %p152
    // Predicated region
    $region29: #{tpu_custom_call.1} parent=5 // pred_check
      _
    $region30: #{tpu_custom_call.1} parent=5 // pred_check_branch
      %155 = sbr.rel (%p152) target = $region32
    $region31: #{tpu_custom_call.1} parent=5 // pred_region
      %s156 = ssub.s32 %s9, 1
      %p157 = scmp.lt.s32.totalorder %s18, 1
      %s158 = scalar_select %p157, %s18, 1
      %s159 = smul.addr %s158, 54
      %s160 = smul.addr %s159, 4
      %s161 = scalar_lea.vmem %s0, %s160
      %p162 = pneg %p47
      %p163 = pneg %p44
      %p164 = pneg %p68
      %p165 = pneg %p65
      %p166 = pneg %p89
      %p167 = pneg %p86
      %p168 = pneg %p117
      %p169 = pneg %p114
      %s170 = smul.u32 16, %s19
      %p171 = scmp.lt.s32.totalorder %s18, 1
      %s172 = scalar_select %p171, %s18, 1
      %p173 = scmp.lt.s32.totalorder %s170, 15
      %s174 = scalar_select %p173, %s170, 15
      %s175 = smul.addr %s174, 2
      %s176 = smul.addr %s172, 32
      %s177 = sadd.s32 %s175, %s176
      %s178 = smul.addr %s177, 8
      %s179 = scalar_lea.vmem %s3, %s178
      %p180 = scmp.lt.s32.totalorder %s18, 1
      %s181 = scalar_select %p180, %s18, 1
      %s182 = smul.addr %s181, 54
      %s183 = smul.addr %s182, 4
      %s184 = scalar_lea.vmem %s0, %s183
      %s185 = smul.u32 16, %s19
      %p186 = scmp.lt.s32.totalorder %s18, 1
      %s187 = scalar_select %p186, %s18, 1
      %p188 = scmp.lt.s32.totalorder %s185, 15
      %s189 = scalar_select %p188, %s185, 15
      %s190 = smul.addr %s189, 2
      %s191 = smul.addr %s187, 32
      %s192 = sadd.s32 %s190, %s191
      %s193 = smul.addr %s192, 8
      %s194 = scalar_lea.vmem %s3, %s193
      %s195 = smul.u32 16, %s19
      %s197 = smul.u32 %s19, 16
      %s198 = smul.u32 %s197, 3
      %s199 = smul.addr %s198, 4
      %s200 = scalar_lea.vmem %s184, %s199
      %v201 = vld [vmem:[%s200] sm:$0xf]
      %v202 = vld [vmem:[%s200 + $0x4] sm:$0xf]
      %v203 = vld [vmem:[%s200 + $0xc] sm:$0xf]
      %v204 = vld [vmem:[%s200 + $0x10] sm:$0xf]
      %v205 = vld [vmem:[%s200 + $0x18] sm:$0xf]
      %v206 = vld [vmem:[%s200 + $0x1c] sm:$0xf]
      %v207 = vld [vmem:[%s200 + $0x24] sm:$0xf]
      %v208 = vld [vmem:[%s200 + $0x28] sm:$0xf]
      %v209 = vld [vmem:[%s200 + $0x30] sm:$0xf]
      %v210 = vld [vmem:[%s200 + $0x34] sm:$0xf]
      %v211 = vld [vmem:[%s200 + $0x3c] sm:$0xf]
      %v212 = vld [vmem:[%s200 + $0x40] sm:$0xf]
      %v213 = vld [vmem:[%s200 + $0x48] sm:$0xf]
      %v214 = vld [vmem:[%s200 + $0x4c] sm:$0xf]
      %v215 = vld [vmem:[%s200 + $0x54] sm:$0xf]
      %v216 = vld [vmem:[%s200 + $0x58] sm:$0xf]
      %v217 = vld [vmem:[%s200 + $0x60] sm:$0xf]
      %v218 = vld [vmem:[%s200 + $0x64] sm:$0xf]
      %v219 = vld [vmem:[%s200 + $0x6c] sm:$0xf]
      %v220 = vld [vmem:[%s200 + $0x70] sm:$0xf]
      %v221 = vld [vmem:[%s200 + $0x78] sm:$0xf]
      %v222 = vld [vmem:[%s200 + $0x7c] sm:$0xf]
      %v223 = vld [vmem:[%s200 + $0x84] sm:$0xf]
      %v224 = vld [vmem:[%s200 + $0x88] sm:$0xf]
      %v225 = vld [vmem:[%s200 + $0x90] sm:$0xf]
      %v226 = vld [vmem:[%s200 + $0x94] sm:$0xf]
      %v227 = vld [vmem:[%s200 + $0x9c] sm:$0xf]
      %v228 = vld [vmem:[%s200 + $0xa0] sm:$0xf]
      %v229 = vld [vmem:[%s200 + $0xa8] sm:$0xf]
      %v230 = vld [vmem:[%s200 + $0xac] sm:$0xf]
      %v231 = vld [vmem:[%s200 + $0xb4] sm:$0xf]
      %v232 = vld [vmem:[%s200 + $0xb8] sm:$0xf]
      %vm233 = vcmask 27648
      %234 = vst.msk [vmem:[#allocation2] sm:$0xf] %vm233, %v201
      %235 = vst.msk [vmem:[#allocation2 + $0x4] sm:$0xf] %vm233, %v202
      %236 = vst.msk [vmem:[#allocation2 + $0x8] sm:$0xf] %vm233, %v203
      %237 = vst.msk [vmem:[#allocation2 + $0xc] sm:$0xf] %vm233, %v204
      %238 = vst.msk [vmem:[#allocation2 + $0x10] sm:$0xf] %vm233, %v205
      %239 = vst.msk [vmem:[#allocation2 + $0x14] sm:$0xf] %vm233, %v206
      %240 = vst.msk [vmem:[#allocation2 + $0x18] sm:$0xf] %vm233, %v207
      %241 = vst.msk [vmem:[#allocation2 + $0x1c] sm:$0xf] %vm233, %v208
      %242 = vst.msk [vmem:[#allocation2 + $0x20] sm:$0xf] %vm233, %v209
      %243 = vst.msk [vmem:[#allocation2 + $0x24] sm:$0xf] %vm233, %v210
      %244 = vst.msk [vmem:[#allocation2 + $0x28] sm:$0xf] %vm233, %v211
      %245 = vst.msk [vmem:[#allocation2 + $0x2c] sm:$0xf] %vm233, %v212
      %246 = vst.msk [vmem:[#allocation2 + $0x30] sm:$0xf] %vm233, %v213
      %247 = vst.msk [vmem:[#allocation2 + $0x34] sm:$0xf] %vm233, %v214
      %248 = vst.msk [vmem:[#allocation2 + $0x38] sm:$0xf] %vm233, %v215
      %249 = vst.msk [vmem:[#allocation2 + $0x3c] sm:$0xf] %vm233, %v216
      %250 = vst.msk [vmem:[#allocation2 + $0x40] sm:$0xf] %vm233, %v217
      %251 = vst.msk [vmem:[#allocation2 + $0x44] sm:$0xf] %vm233, %v218
      %252 = vst.msk [vmem:[#allocation2 + $0x48] sm:$0xf] %vm233, %v219
      %253 = vst.msk [vmem:[#allocation2 + $0x4c] sm:$0xf] %vm233, %v220
      %254 = vst.msk [vmem:[#allocation2 + $0x50] sm:$0xf] %vm233, %v221
      %255 = vst.msk [vmem:[#allocation2 + $0x54] sm:$0xf] %vm233, %v222
      %256 = vst.msk [vmem:[#allocation2 + $0x58] sm:$0xf] %vm233, %v223
      %257 = vst.msk [vmem:[#allocation2 + $0x5c] sm:$0xf] %vm233, %v224
      %258 = vst.msk [vmem:[#allocation2 + $0x60] sm:$0xf] %vm233, %v225
      %259 = vst.msk [vmem:[#allocation2 + $0x64] sm:$0xf] %vm233, %v226
      %260 = vst.msk [vmem:[#allocation2 + $0x68] sm:$0xf] %vm233, %v227
      %261 = vst.msk [vmem:[#allocation2 + $0x6c] sm:$0xf] %vm233, %v228
      %262 = vst.msk [vmem:[#allocation2 + $0x70] sm:$0xf] %vm233, %v229
      %263 = vst.msk [vmem:[#allocation2 + $0x74] sm:$0xf] %vm233, %v230
      %264 = vst.msk [vmem:[#allocation2 + $0x78] sm:$0xf] %vm233, %v231
      %265 = vst.msk [vmem:[#allocation2 + $0x7c] sm:$0xf] %vm233, %v232
      %v266 = vld [vmem:[%s200] sm:$0xf]
      %v267 = vld [vmem:[%s200 + $0x4] sm:$0xf]
      %v268 = vld [vmem:[%s200 + $0x8] sm:$0x1]
      %v269 = vld [vmem:[%s200 + $0xc] sm:$0xf]
      %v270 = vld [vmem:[%s200 + $0x10] sm:$0xf]
      %v271 = vld [vmem:[%s200 + $0x14] sm:$0x1]
      %v272 = vld [vmem:[%s200 + $0x18] sm:$0xf]
      %v273 = vld [vmem:[%s200 + $0x1c] sm:$0xf]
      %v274 = vld [vmem:[%s200 + $0x20] sm:$0x1]
      %v275 = vld [vmem:[%s200 + $0x24] sm:$0xf]
      %v276 = vld [vmem:[%s200 + $0x28] sm:$0xf]
      %v277 = vld [vmem:[%s200 + $0x2c] sm:$0x1]
      %v278 = vld [vmem:[%s200 + $0x30] sm:$0xf]
      %v279 = vld [vmem:[%s200 + $0x34] sm:$0xf]
      %v280 = vld [vmem:[%s200 + $0x38] sm:$0x1]
      %v281 = vld [vmem:[%s200 + $0x3c] sm:$0xf]
      %v282 = vld [vmem:[%s200 + $0x40] sm:$0xf]
      %v283 = vld [vmem:[%s200 + $0x44] sm:$0x1]
      %v284 = vld [vmem:[%s200 + $0x48] sm:$0xf]
      %v285 = vld [vmem:[%s200 + $0x4c] sm:$0xf]
      %v286 = vld [vmem:[%s200 + $0x50] sm:$0x1]
      %v287 = vld [vmem:[%s200 + $0x54] sm:$0xf]
      %v288 = vld [vmem:[%s200 + $0x58] sm:$0xf]
      %v289 = vld [vmem:[%s200 + $0x5c] sm:$0x1]
      %v290 = vld [vmem:[%s200 + $0x60] sm:$0xf]
      %v291 = vld [vmem:[%s200 + $0x64] sm:$0xf]
      %v292 = vld [vmem:[%s200 + $0x68] sm:$0x1]
      %v293 = vld [vmem:[%s200 + $0x6c] sm:$0xf]
      %v294 = vld [vmem:[%s200 + $0x70] sm:$0xf]
      %v295 = vld [vmem:[%s200 + $0x74] sm:$0x1]
      %v296 = vld [vmem:[%s200 + $0x78] sm:$0xf]
      %v297 = vld [vmem:[%s200 + $0x7c] sm:$0xf]
      %v298 = vld [vmem:[%s200 + $0x80] sm:$0x1]
      %v299 = vld [vmem:[%s200 + $0x84] sm:$0xf]
      %v300 = vld [vmem:[%s200 + $0x88] sm:$0xf]
      %v301 = vld [vmem:[%s200 + $0x8c] sm:$0x1]
      %v302 = vld [vmem:[%s200 + $0x90] sm:$0xf]
      %v303 = vld [vmem:[%s200 + $0x94] sm:$0xf]
      %v304 = vld [vmem:[%s200 + $0x98] sm:$0x1]
      %v305 = vld [vmem:[%s200 + $0x9c] sm:$0xf]
      %v306 = vld [vmem:[%s200 + $0xa0] sm:$0xf]
      %v307 = vld [vmem:[%s200 + $0xa4] sm:$0x1]
      %v308 = vld [vmem:[%s200 + $0xa8] sm:$0xf]
      %v309 = vld [vmem:[%s200 + $0xac] sm:$0xf]
      %v310 = vld [vmem:[%s200 + $0xb0] sm:$0x1]
      %v311 = vld [vmem:[%s200 + $0xb4] sm:$0xf]
      %v312 = vld [vmem:[%s200 + $0xb8] sm:$0xf]
      %v313 = vld [vmem:[%s200 + $0xbc] sm:$0x1]
      %vm314 = vsmask.f32 3328
      %vm315 = vsmask.f32 7440
      %vm316 = vmor %vm314, %vm315
      %v318 = vshrl.u32 %v266, 16
      %v320 = vrot.slane %v318, 4
      %v321 = vshll.u32 %v266, 16
      %v323 = vrot.slane %v321, 5
      %v324 = vor.u32 %v320, %v323
      %v325 = vrot.slane %v324, 4
      %v327 = vshll.u32 %v267, 16
      %v329 = vrot.slane %v327, 5
      %v330 = vsel %vm316, %v325, %v329
      %v331 = vshrl.u32 %v267, 16
      %v333 = vrot.slane %v331, 4
      %v334 = vor.u32 %v333, %v329
      %v335 = vrot.slane %v334, 4
      %v337 = vshll.u32 %v268, 16
      %v339 = vrot.slane %v337, 5
      %v340 = vsel %vm316, %v335, %v339
      %v342 = vshrl.u32 %v269, 16
      %v344 = vrot.slane %v342, 4
      %v345 = vshll.u32 %v269, 16
      %v347 = vrot.slane %v345, 5
      %v348 = vor.u32 %v344, %v347
      %v349 = vrot.slane %v348, 4
      %v351 = vshll.u32 %v270, 16
      %v353 = vrot.slane %v351, 5
      %v354 = vsel %vm316, %v349, %v353
      %v355 = vshrl.u32 %v270, 16
      %v357 = vrot.slane %v355, 4
      %v358 = vor.u32 %v357, %v353
      %v359 = vrot.slane %v358, 4
      %v361 = vshll.u32 %v271, 16
      %v363 = vrot.slane %v361, 5
      %v364 = vsel %vm316, %v359, %v363
      %v366 = vshrl.u32 %v272, 16
      %v368 = vrot.slane %v366, 4
      %v369 = vshll.u32 %v272, 16
      %v371 = vrot.slane %v369, 5
      %v372 = vor.u32 %v368, %v371
      %v373 = vrot.slane %v372, 4
      %v375 = vshll.u32 %v273, 16
      %v377 = vrot.slane %v375, 5
      %v378 = vsel %vm316, %v373, %v377
      %v379 = vshrl.u32 %v273, 16
      %v381 = vrot.slane %v379, 4
      %v382 = vor.u32 %v381, %v377
      %v383 = vrot.slane %v382, 4
      %v385 = vshll.u32 %v274, 16
      %v387 = vrot.slane %v385, 5
      %v388 = vsel %vm316, %v383, %v387
      %v390 = vshrl.u32 %v275, 16
      %v392 = vrot.slane %v390, 4
      %v393 = vshll.u32 %v275, 16
      %v395 = vrot.slane %v393, 5
      %v396 = vor.u32 %v392, %v395
      %v397 = vrot.slane %v396, 4
      %v399 = vshll.u32 %v276, 16
      %v401 = vrot.slane %v399, 5
      %v402 = vsel %vm316, %v397, %v401
      %v403 = vshrl.u32 %v276, 16
      %v405 = vrot.slane %v403, 4
      %v406 = vor.u32 %v405, %v401
      %v407 = vrot.slane %v406, 4
      %v409 = vshll.u32 %v277, 16
      %v411 = vrot.slane %v409, 5
      %v412 = vsel %vm316, %v407, %v411
      %v414 = vshrl.u32 %v278, 16
      %v416 = vrot.slane %v414, 4
      %v417 = vshll.u32 %v278, 16
      %v419 = vrot.slane %v417, 5
      %v420 = vor.u32 %v416, %v419
      %v421 = vrot.slane %v420, 4
      %v423 = vshll.u32 %v279, 16
      %v425 = vrot.slane %v423, 5
      %v426 = vsel %vm316, %v421, %v425
      %v427 = vshrl.u32 %v279, 16
      %v429 = vrot.slane %v427, 4
      %v430 = vor.u32 %v429, %v425
      %v431 = vrot.slane %v430, 4
      %v433 = vshll.u32 %v280, 16
      %v435 = vrot.slane %v433, 5
      %v436 = vsel %vm316, %v431, %v435
      %v438 = vshrl.u32 %v281, 16
      %v440 = vrot.slane %v438, 4
      %v441 = vshll.u32 %v281, 16
      %v443 = vrot.slane %v441, 5
      %v444 = vor.u32 %v440, %v443
      %v445 = vrot.slane %v444, 4
      %v447 = vshll.u32 %v282, 16
      %v449 = vrot.slane %v447, 5
      %v450 = vsel %vm316, %v445, %v449
      %v451 = vshrl.u32 %v282, 16
      %v453 = vrot.slane %v451, 4
      %v454 = vor.u32 %v453, %v449
      %v455 = vrot.slane %v454, 4
      %v457 = vshll.u32 %v283, 16
      %v459 = vrot.slane %v457, 5
      %v460 = vsel %vm316, %v455, %v459
      %v462 = vshrl.u32 %v284, 16
      %v464 = vrot.slane %v462, 4
      %v465 = vshll.u32 %v284, 16
      %v467 = vrot.slane %v465, 5
      %v468 = vor.u32 %v464, %v467
      %v469 = vrot.slane %v468, 4
      %v471 = vshll.u32 %v285, 16
      %v473 = vrot.slane %v471, 5
      %v474 = vsel %vm316, %v469, %v473
      %v475 = vshrl.u32 %v285, 16
      %v477 = vrot.slane %v475, 4
      %v478 = vor.u32 %v477, %v473
      %v479 = vrot.slane %v478, 4
      %v481 = vshll.u32 %v286, 16
      %v483 = vrot.slane %v481, 5
      %v484 = vsel %vm316, %v479, %v483
      %v486 = vshrl.u32 %v287, 16
      %v488 = vrot.slane %v486, 4
      %v489 = vshll.u32 %v287, 16
      %v491 = vrot.slane %v489, 5
      %v492 = vor.u32 %v488, %v491
      %v493 = vrot.slane %v492, 4
      %v495 = vshll.u32 %v288, 16
      %v497 = vrot.slane %v495, 5
      %v498 = vsel %vm316, %v493, %v497
      %v499 = vshrl.u32 %v288, 16
      %v501 = vrot.slane %v499, 4
      %v502 = vor.u32 %v501, %v497
      %v503 = vrot.slane %v502, 4
      %v505 = vshll.u32 %v289, 16
      %v507 = vrot.slane %v505, 5
      %v508 = vsel %vm316, %v503, %v507
      %v510 = vshrl.u32 %v290, 16
      %v512 = vrot.slane %v510, 4
      %v513 = vshll.u32 %v290, 16
      %v515 = vrot.slane %v513, 5
      %v516 = vor.u32 %v512, %v515
      %v517 = vrot.slane %v516, 4
      %v519 = vshll.u32 %v291, 16
      %v521 = vrot.slane %v519, 5
      %v522 = vsel %vm316, %v517, %v521
      %v523 = vshrl.u32 %v291, 16
      %v525 = vrot.slane %v523, 4
      %v526 = vor.u32 %v525, %v521
      %v527 = vrot.slane %v526, 4
      %v529 = vshll.u32 %v292, 16
      %v531 = vrot.slane %v529, 5
      %v532 = vsel %vm316, %v527, %v531
      %v534 = vshrl.u32 %v293, 16
      %v536 = vrot.slane %v534, 4
      %v537 = vshll.u32 %v293, 16
      %v539 = vrot.slane %v537, 5
      %v540 = vor.u32 %v536, %v539
      %v541 = vrot.slane %v540, 4
      %v543 = vshll.u32 %v294, 16
      %v545 = vrot.slane %v543, 5
      %v546 = vsel %vm316, %v541, %v545
      %v547 = vshrl.u32 %v294, 16
      %v549 = vrot.slane %v547, 4
      %v550 = vor.u32 %v549, %v545
      %v551 = vrot.slane %v550, 4
      %v553 = vshll.u32 %v295, 16
      %v555 = vrot.slane %v553, 5
      %v556 = vsel %vm316, %v551, %v555
      %v558 = vshrl.u32 %v296, 16
      %v560 = vrot.slane %v558, 4
      %v561 = vshll.u32 %v296, 16
      %v563 = vrot.slane %v561, 5
      %v564 = vor.u32 %v560, %v563
      %v565 = vrot.slane %v564, 4
      %v567 = vshll.u32 %v297, 16
      %v569 = vrot.slane %v567, 5
      %v570 = vsel %vm316, %v565, %v569
      %v571 = vshrl.u32 %v297, 16
      %v573 = vrot.slane %v571, 4
      %v574 = vor.u32 %v573, %v569
      %v575 = vrot.slane %v574, 4
      %v577 = vshll.u32 %v298, 16
      %v579 = vrot.slane %v577, 5
      %v580 = vsel %vm316, %v575, %v579
      %v582 = vshrl.u32 %v299, 16
      %v584 = vrot.slane %v582, 4
      %v585 = vshll.u32 %v299, 16
      %v587 = vrot.slane %v585, 5
      %v588 = vor.u32 %v584, %v587
      %v589 = vrot.slane %v588, 4
      %v591 = vshll.u32 %v300, 16
      %v593 = vrot.slane %v591, 5
      %v594 = vsel %vm316, %v589, %v593
      %v595 = vshrl.u32 %v300, 16
      %v597 = vrot.slane %v595, 4
      %v598 = vor.u32 %v597, %v593
      %v599 = vrot.slane %v598, 4
      %v601 = vshll.u32 %v301, 16
      %v603 = vrot.slane %v601, 5
      %v604 = vsel %vm316, %v599, %v603
      %v606 = vshrl.u32 %v302, 16
      %v608 = vrot.slane %v606, 4
      %v609 = vshll.u32 %v302, 16
      %v611 = vrot.slane %v609, 5
      %v612 = vor.u32 %v608, %v611
      %v613 = vrot.slane %v612, 4
      %v615 = vshll.u32 %v303, 16
      %v617 = vrot.slane %v615, 5
      %v618 = vsel %vm316, %v613, %v617
      %v619 = vshrl.u32 %v303, 16
      %v621 = vrot.slane %v619, 4
      %v622 = vor.u32 %v621, %v617
      %v623 = vrot.slane %v622, 4
      %v625 = vshll.u32 %v304, 16
      %v627 = vrot.slane %v625, 5
      %v628 = vsel %vm316, %v623, %v627
      %v630 = vshrl.u32 %v305, 16
      %v632 = vrot.slane %v630, 4
      %v633 = vshll.u32 %v305, 16
      %v635 = vrot.slane %v633, 5
      %v636 = vor.u32 %v632, %v635
      %v637 = vrot.slane %v636, 4
      %v639 = vshll.u32 %v306, 16
      %v641 = vrot.slane %v639, 5
      %v642 = vsel %vm316, %v637, %v641
      %v643 = vshrl.u32 %v306, 16
      %v645 = vrot.slane %v643, 4
      %v646 = vor.u32 %v645, %v641
      %v647 = vrot.slane %v646, 4
      %v649 = vshll.u32 %v307, 16
      %v651 = vrot.slane %v649, 5
      %v652 = vsel %vm316, %v647, %v651
      %v654 = vshrl.u32 %v308, 16
      %v656 = vrot.slane %v654, 4
      %v657 = vshll.u32 %v308, 16
      %v659 = vrot.slane %v657, 5
      %v660 = vor.u32 %v656, %v659
      %v661 = vrot.slane %v660, 4
      %v663 = vshll.u32 %v309, 16
      %v665 = vrot.slane %v663, 5
      %v666 = vsel %vm316, %v661, %v665
      %v667 = vshrl.u32 %v309, 16
      %v669 = vrot.slane %v667, 4
      %v670 = vor.u32 %v669, %v665
      %v671 = vrot.slane %v670, 4
      %v673 = vshll.u32 %v310, 16
      %v675 = vrot.slane %v673, 5
      %v676 = vsel %vm316, %v671, %v675
      %v678 = vshrl.u32 %v311, 16
      %v680 = vrot.slane %v678, 4
      %v681 = vshll.u32 %v311, 16
      %v683 = vrot.slane %v681, 5
      %v684 = vor.u32 %v680, %v683
      %v685 = vrot.slane %v684, 4
      %v687 = vshll.u32 %v312, 16
      %v689 = vrot.slane %v687, 5
      %v690 = vsel %vm316, %v685, %v689
      %v691 = vshrl.u32 %v312, 16
      %v693 = vrot.slane %v691, 4
      %v694 = vor.u32 %v693, %v689
      %v695 = vrot.slane %v694, 4
      %v697 = vshll.u32 %v313, 16
      %v699 = vrot.slane %v697, 5
      %v700 = vsel %vm316, %v695, %v699
      %701 = vrot.lane.b32.xlu0 %v330, 4
      %v702 = vpop.permute.xlu0 %701
      %703 = vrot.lane.b32.xlu0 %v340, 4
      %v704 = vpop.permute.xlu0 %703
      %705 = vrot.lane.b32.xlu0 %v354, 4
      %v706 = vpop.permute.xlu0 %705
      %707 = vrot.lane.b32.xlu0 %v364, 4
      %v708 = vpop.permute.xlu0 %707
      %709 = vrot.lane.b32.xlu0 %v378, 4
      %v710 = vpop.permute.xlu0 %709
      %711 = vrot.lane.b32.xlu0 %v388, 4
      %v712 = vpop.permute.xlu0 %711
      %713 = vrot.lane.b32.xlu0 %v402, 4
      %v714 = vpop.permute.xlu0 %713
      %715 = vrot.lane.b32.xlu0 %v412, 4
      %v716 = vpop.permute.xlu0 %715
      %717 = vrot.lane.b32.xlu0 %v426, 4
      %v718 = vpop.permute.xlu0 %717
      %719 = vrot.lane.b32.xlu0 %v436, 4
      %v720 = vpop.permute.xlu0 %719
      %721 = vrot.lane.b32.xlu0 %v450, 4
      %v722 = vpop.permute.xlu0 %721
      %723 = vrot.lane.b32.xlu0 %v460, 4
      %v724 = vpop.permute.xlu0 %723
      %725 = vrot.lane.b32.xlu0 %v474, 4
      %v726 = vpop.permute.xlu0 %725
      %727 = vrot.lane.b32.xlu0 %v484, 4
      %v728 = vpop.permute.xlu0 %727
      %729 = vrot.lane.b32.xlu0 %v498, 4
      %v730 = vpop.permute.xlu0 %729
      %731 = vrot.lane.b32.xlu0 %v508, 4
      %v732 = vpop.permute.xlu0 %731
      %733 = vrot.lane.b32.xlu0 %v522, 4
      %v734 = vpop.permute.xlu0 %733
      %735 = vrot.lane.b32.xlu0 %v532, 4
      %v736 = vpop.permute.xlu0 %735
      %737 = vrot.lane.b32.xlu0 %v546, 4
      %v738 = vpop.permute.xlu0 %737
      %739 = vrot.lane.b32.xlu0 %v556, 4
      %v740 = vpop.permute.xlu0 %739
      %741 = vrot.lane.b32.xlu0 %v570, 4
      %v742 = vpop.permute.xlu0 %741
      %743 = vrot.lane.b32.xlu0 %v580, 4
      %v744 = vpop.permute.xlu0 %743
      %745 = vrot.lane.b32.xlu0 %v594, 4
      %v746 = vpop.permute.xlu0 %745
      %747 = vrot.lane.b32.xlu0 %v604, 4
      %v748 = vpop.permute.xlu0 %747
      %749 = vrot.lane.b32.xlu0 %v618, 4
      %v750 = vpop.permute.xlu0 %749
      %751 = vrot.lane.b32.xlu0 %v628, 4
      %v752 = vpop.permute.xlu0 %751
      %753 = vrot.lane.b32.xlu0 %v642, 4
      %v754 = vpop.permute.xlu0 %753
      %755 = vrot.lane.b32.xlu0 %v652, 4
      %v756 = vpop.permute.xlu0 %755
      %757 = vrot.lane.b32.xlu0 %v666, 4
      %v758 = vpop.permute.xlu0 %757
      %759 = vrot.lane.b32.xlu0 %v676, 4
      %v760 = vpop.permute.xlu0 %759
      %761 = vrot.lane.b32.xlu0 %v690, 4
      %v762 = vpop.permute.xlu0 %761
      %763 = vrot.lane.b32.xlu0 %v700, 4
      %v764 = vpop.permute.xlu0 %763
      %vm797 = vcmask 60448
      %798 = vst.msk [vmem:[#allocation2] sm:$0xf] %vm797, %v702
      %799 = vst.msk [vmem:[#allocation2 + $0x4] sm:$0xf] %vm797, %v704
      %800 = vst.msk [vmem:[#allocation2 + $0x8] sm:$0xf] %vm797, %v706
      %801 = vst.msk [vmem:[#allocation2 + $0xc] sm:$0xf] %vm797, %v708
      %802 = vst.msk [vmem:[#allocation2 + $0x10] sm:$0xf] %vm797, %v710
      %803 = vst.msk [vmem:[#allocation2 + $0x14] sm:$0xf] %vm797, %v712
      %804 = vst.msk [vmem:[#allocation2 + $0x18] sm:$0xf] %vm797, %v714
      %805 = vst.msk [vmem:[#allocation2 + $0x1c] sm:$0xf] %vm797, %v716
      %806 = vst.msk [vmem:[#allocation2 + $0x20] sm:$0xf] %vm797, %v718
      %807 = vst.msk [vmem:[#allocation2 + $0x24] sm:$0xf] %vm797, %v720
      %808 = vst.msk [vmem:[#allocation2 + $0x28] sm:$0xf] %vm797, %v722
      %809 = vst.msk [vmem:[#allocation2 + $0x2c] sm:$0xf] %vm797, %v724
      %810 = vst.msk [vmem:[#allocation2 + $0x30] sm:$0xf] %vm797, %v726
      %811 = vst.msk [vmem:[#allocation2 + $0x34] sm:$0xf] %vm797, %v728
      %812 = vst.msk [vmem:[#allocation2 + $0x38] sm:$0xf] %vm797, %v730
      %813 = vst.msk [vmem:[#allocation2 + $0x3c] sm:$0xf] %vm797, %v732
      %814 = vst.msk [vmem:[#allocation2 + $0x40] sm:$0xf] %vm797, %v734
      %815 = vst.msk [vmem:[#allocation2 + $0x44] sm:$0xf] %vm797, %v736
      %816 = vst.msk [vmem:[#allocation2 + $0x48] sm:$0xf] %vm797, %v738
      %817 = vst.msk [vmem:[#allocation2 + $0x4c] sm:$0xf] %vm797, %v740
      %818 = vst.msk [vmem:[#allocation2 + $0x50] sm:$0xf] %vm797, %v742
      %819 = vst.msk [vmem:[#allocation2 + $0x54] sm:$0xf] %vm797, %v744
      %820 = vst.msk [vmem:[#allocation2 + $0x58] sm:$0xf] %vm797, %v746
      %821 = vst.msk [vmem:[#allocation2 + $0x5c] sm:$0xf] %vm797, %v748
      %822 = vst.msk [vmem:[#allocation2 + $0x60] sm:$0xf] %vm797, %v750
      %823 = vst.msk [vmem:[#allocation2 + $0x64] sm:$0xf] %vm797, %v752
      %824 = vst.msk [vmem:[#allocation2 + $0x68] sm:$0xf] %vm797, %v754
      %825 = vst.msk [vmem:[#allocation2 + $0x6c] sm:$0xf] %vm797, %v756
      %826 = vst.msk [vmem:[#allocation2 + $0x70] sm:$0xf] %vm797, %v758
      %827 = vst.msk [vmem:[#allocation2 + $0x74] sm:$0xf] %vm797, %v760
      %828 = vst.msk [vmem:[#allocation2 + $0x78] sm:$0xf] %vm797, %v762
      %829 = vst.msk [vmem:[#allocation2 + $0x7c] sm:$0xf] %vm797, %v764
      %v830 = vld [vmem:[%s200] sm:$0xe]
      %v831 = vld [vmem:[%s200 + $0x4] sm:$0xf]
      %v832 = vld [vmem:[%s200 + $0x8] sm:$0x1]
      %v833 = vld [vmem:[%s200 + $0xc] sm:$0xe]
      %v834 = vld [vmem:[%s200 + $0x10] sm:$0xf]
      %v835 = vld [vmem:[%s200 + $0x14] sm:$0x1]
      %v836 = vld [vmem:[%s200 + $0x18] sm:$0xe]
      %v837 = vld [vmem:[%s200 + $0x1c] sm:$0xf]
      %v838 = vld [vmem:[%s200 + $0x20] sm:$0x1]
      %v839 = vld [vmem:[%s200 + $0x24] sm:$0xe]
      %v840 = vld [vmem:[%s200 + $0x28] sm:$0xf]
      %v841 = vld [vmem:[%s200 + $0x2c] sm:$0x1]
      %v842 = vld [vmem:[%s200 + $0x30] sm:$0xe]
      %v843 = vld [vmem:[%s200 + $0x34] sm:$0xf]
      %v844 = vld [vmem:[%s200 + $0x38] sm:$0x1]
      %v845 = vld [vmem:[%s200 + $0x3c] sm:$0xe]
      %v846 = vld [vmem:[%s200 + $0x40] sm:$0xf]
      %v847 = vld [vmem:[%s200 + $0x44] sm:$0x1]
      %v848 = vld [vmem:[%s200 + $0x48] sm:$0xe]
      %v849 = vld [vmem:[%s200 + $0x4c] sm:$0xf]
      %v850 = vld [vmem:[%s200 + $0x50] sm:$0x1]
      %v851 = vld [vmem:[%s200 + $0x54] sm:$0xe]
      %v852 = vld [vmem:[%s200 + $0x58] sm:$0xf]
      %v853 = vld [vmem:[%s200 + $0x5c] sm:$0x1]
      %v854 = vld [vmem:[%s200 + $0x60] sm:$0xe]
      %v855 = vld [vmem:[%s200 + $0x64] sm:$0xf]
      %v856 = vld [vmem:[%s200 + $0x68] sm:$0x1]
      %v857 = vld [vmem:[%s200 + $0x6c] sm:$0xe]
      %v858 = vld [vmem:[%s200 + $0x70] sm:$0xf]
      %v859 = vld [vmem:[%s200 + $0x74] sm:$0x1]
      %v860 = vld [vmem:[%s200 + $0x78] sm:$0xe]
      %v861 = vld [vmem:[%s200 + $0x7c] sm:$0xf]
      %v862 = vld [vmem:[%s200 + $0x80] sm:$0x1]
      %v863 = vld [vmem:[%s200 + $0x84] sm:$0xe]
      %v864 = vld [vmem:[%s200 + $0x88] sm:$0xf]
      %v865 = vld [vmem:[%s200 + $0x8c] sm:$0x1]
      %v866 = vld [vmem:[%s200 + $0x90] sm:$0xe]
      %v867 = vld [vmem:[%s200 + $0x94] sm:$0xf]
      %v868 = vld [vmem:[%s200 + $0x98] sm:$0x1]
      %v869 = vld [vmem:[%s200 + $0x9c] sm:$0xe]
      %v870 = vld [vmem:[%s200 + $0xa0] sm:$0xf]
      %v871 = vld [vmem:[%s200 + $0xa4] sm:$0x1]
      %v872 = vld [vmem:[%s200 + $0xa8] sm:$0xe]
      %v873 = vld [vmem:[%s200 + $0xac] sm:$0xf]
      %v874 = vld [vmem:[%s200 + $0xb0] sm:$0x1]
      %v875 = vld [vmem:[%s200 + $0xb4] sm:$0xe]
      %v876 = vld [vmem:[%s200 + $0xb8] sm:$0xf]
      %v877 = vld [vmem:[%s200 + $0xbc] sm:$0x1]
      %vm926 = vcmask 1042432
      %vm927 = vcmask 1046532
      %vm928 = vmor %vm926, %vm927
      %v929 = vrot.slane %v830, 5
      %v930 = vrot.slane %v929, 4
      %v931 = vrot.slane %v831, 5
      %v932 = vsel %vm928, %v930, %v931
      %v933 = vrot.slane %v931, 4
      %v934 = vrot.slane %v832, 5
      %v935 = vsel %vm928, %v933, %v934
      %v936 = vrot.slane %v833, 5
      %v937 = vrot.slane %v936, 4
      %v938 = vrot.slane %v834, 5
      %v939 = vsel %vm928, %v937, %v938
      %v940 = vrot.slane %v938, 4
      %v941 = vrot.slane %v835, 5
      %v942 = vsel %vm928, %v940, %v941
      %v943 = vrot.slane %v836, 5
      %v944 = vrot.slane %v943, 4
      %v945 = vrot.slane %v837, 5
      %v946 = vsel %vm928, %v944, %v945
      %v947 = vrot.slane %v945, 4
      %v948 = vrot.slane %v838, 5
      %v949 = vsel %vm928, %v947, %v948
      %v950 = vrot.slane %v839, 5
      %v951 = vrot.slane %v950, 4
      %v952 = vrot.slane %v840, 5
      %v953 = vsel %vm928, %v951, %v952
      %v954 = vrot.slane %v952, 4
      %v955 = vrot.slane %v841, 5
      %v956 = vsel %vm928, %v954, %v955
      %v957 = vrot.slane %v842, 5
      %v958 = vrot.slane %v957, 4
      %v959 = vrot.slane %v843, 5
      %v960 = vsel %vm928, %v958, %v959
      %v961 = vrot.slane %v959, 4
      %v962 = vrot.slane %v844, 5
      %v963 = vsel %vm928, %v961, %v962
      %v964 = vrot.slane %v845, 5
      %v965 = vrot.slane %v964, 4
      %v966 = vrot.slane %v846, 5
      %v967 = vsel %vm928, %v965, %v966
      %v968 = vrot.slane %v966, 4
      %v969 = vrot.slane %v847, 5
      %v970 = vsel %vm928, %v968, %v969
      %v971 = vrot.slane %v848, 5
      %v972 = vrot.slane %v971, 4
      %v973 = vrot.slane %v849, 5
      %v974 = vsel %vm928, %v972, %v973
      %v975 = vrot.slane %v973, 4
      %v976 = vrot.slane %v850, 5
      %v977 = vsel %vm928, %v975, %v976
      %v978 = vrot.slane %v851, 5
      %v979 = vrot.slane %v978, 4
      %v980 = vrot.slane %v852, 5
      %v981 = vsel %vm928, %v979, %v980
      %v982 = vrot.slane %v980, 4
      %v983 = vrot.slane %v853, 5
      %v984 = vsel %vm928, %v982, %v983
      %v985 = vrot.slane %v854, 5
      %v986 = vrot.slane %v985, 4
      %v987 = vrot.slane %v855, 5
      %v988 = vsel %vm928, %v986, %v987
      %v989 = vrot.slane %v987, 4
      %v990 = vrot.slane %v856, 5
      %v991 = vsel %vm928, %v989, %v990
      %v992 = vrot.slane %v857, 5
      %v993 = vrot.slane %v992, 4
      %v994 = vrot.slane %v858, 5
      %v995 = vsel %vm928, %v993, %v994
      %v996 = vrot.slane %v994, 4
      %v997 = vrot.slane %v859, 5
      %v998 = vsel %vm928, %v996, %v997
      %v999 = vrot.slane %v860, 5
      %v1000 = vrot.slane %v999, 4
      %v1001 = vrot.slane %v861, 5
      %v1002 = vsel %vm928, %v1000, %v1001
      %v1003 = vrot.slane %v1001, 4
      %v1004 = vrot.slane %v862, 5
      %v1005 = vsel %vm928, %v1003, %v1004
      %v1006 = vrot.slane %v863, 5
      %v1007 = vrot.slane %v1006, 4
      %v1008 = vrot.slane %v864, 5
      %v1009 = vsel %vm928, %v1007, %v1008
      %v1010 = vrot.slane %v1008, 4
      %v1011 = vrot.slane %v865, 5
      %v1012 = vsel %vm928, %v1010, %v1011
      %v1013 = vrot.slane %v866, 5
      %v1014 = vrot.slane %v1013, 4
      %v1015 = vrot.slane %v867, 5
      %v1016 = vsel %vm928, %v1014, %v1015
      %v1017 = vrot.slane %v1015, 4
      %v1018 = vrot.slane %v868, 5
      %v1019 = vsel %vm928, %v1017, %v1018
      %v1020 = vrot.slane %v869, 5
      %v1021 = vrot.slane %v1020, 4
      %v1022 = vrot.slane %v870, 5
      %v1023 = vsel %vm928, %v1021, %v1022
      %v1024 = vrot.slane %v1022, 4
      %v1025 = vrot.slane %v871, 5
      %v1026 = vsel %vm928, %v1024, %v1025
      %v1027 = vrot.slane %v872, 5
      %v1028 = vrot.slane %v1027, 4
      %v1029 = vrot.slane %v873, 5
      %v1030 = vsel %vm928, %v1028, %v1029
      %v1031 = vrot.slane %v1029, 4
      %v1032 = vrot.slane %v874, 5
      %v1033 = vsel %vm928, %v1031, %v1032
      %v1034 = vrot.slane %v875, 5
      %v1035 = vrot.slane %v1034, 4
      %v1036 = vrot.slane %v876, 5
      %v1037 = vsel %vm928, %v1035, %v1036
      %v1038 = vrot.slane %v1036, 4
      %v1039 = vrot.slane %v877, 5
      %v1040 = vsel %vm928, %v1038, %v1039
      %1041 = vrot.lane.b32.xlu0 %v932, 8
      %v1042 = vpop.permute.xlu0 %1041
      %1043 = vrot.lane.b32.xlu0 %v935, 8
      %v1044 = vpop.permute.xlu0 %1043
      %1045 = vrot.lane.b32.xlu0 %v939, 8
      %v1046 = vpop.permute.xlu0 %1045
      %1047 = vrot.lane.b32.xlu0 %v942, 8
      %v1048 = vpop.permute.xlu0 %1047
      %1049 = vrot.lane.b32.xlu0 %v946, 8
      %v1050 = vpop.permute.xlu0 %1049
      %1051 = vrot.lane.b32.xlu0 %v949, 8
      %v1052 = vpop.permute.xlu0 %1051
      %1053 = vrot.lane.b32.xlu0 %v953, 8
      %v1054 = vpop.permute.xlu0 %1053
      %1055 = vrot.lane.b32.xlu0 %v956, 8
      %v1056 = vpop.permute.xlu0 %1055
      %1057 = vrot.lane.b32.xlu0 %v960, 8
      %v1058 = vpop.permute.xlu0 %1057
      %1059 = vrot.lane.b32.xlu0 %v963, 8
      %v1060 = vpop.permute.xlu0 %1059
      %1061 = vrot.lane.b32.xlu0 %v967, 8
      %v1062 = vpop.permute.xlu0 %1061
      %1063 = vrot.lane.b32.xlu0 %v970, 8
      %v1064 = vpop.permute.xlu0 %1063
      %1065 = vrot.lane.b32.xlu0 %v974, 8
      %v1066 = vpop.permute.xlu0 %1065
      %1067 = vrot.lane.b32.xlu0 %v977, 8
      %v1068 = vpop.permute.xlu0 %1067
      %1069 = vrot.lane.b32.xlu0 %v981, 8
      %v1070 = vpop.permute.xlu0 %1069
      %1071 = vrot.lane.b32.xlu0 %v984, 8
      %v1072 = vpop.permute.xlu0 %1071
      %1073 = vrot.lane.b32.xlu0 %v988, 8
      %v1074 = vpop.permute.xlu0 %1073
      %1075 = vrot.lane.b32.xlu0 %v991, 8
      %v1076 = vpop.permute.xlu0 %1075
      %1077 = vrot.lane.b32.xlu0 %v995, 8
      %v1078 = vpop.permute.xlu0 %1077
      %1079 = vrot.lane.b32.xlu0 %v998, 8
      %v1080 = vpop.permute.xlu0 %1079
      %1081 = vrot.lane.b32.xlu0 %v1002, 8
      %v1082 = vpop.permute.xlu0 %1081
      %1083 = vrot.lane.b32.xlu0 %v1005, 8
      %v1084 = vpop.permute.xlu0 %1083
      %1085 = vrot.lane.b32.xlu0 %v1009, 8
      %v1086 = vpop.permute.xlu0 %1085
      %1087 = vrot.lane.b32.xlu0 %v1012, 8
      %v1088 = vpop.permute.xlu0 %1087
      %1089 = vrot.lane.b32.xlu0 %v1016, 8
      %v1090 = vpop.permute.xlu0 %1089
      %1091 = vrot.lane.b32.xlu0 %v1019, 8
      %v1092 = vpop.permute.xlu0 %1091
      %1093 = vrot.lane.b32.xlu0 %v1023, 8
      %v1094 = vpop.permute.xlu0 %1093
      %1095 = vrot.lane.b32.xlu0 %v1026, 8
      %v1096 = vpop.permute.xlu0 %1095
      %1097 = vrot.lane.b32.xlu0 %v1030, 8
      %v1098 = vpop.permute.xlu0 %1097
      %1099 = vrot.lane.b32.xlu0 %v1033, 8
      %v1100 = vpop.permute.xlu0 %1099
      %1101 = vrot.lane.b32.xlu0 %v1037, 8
      %v1102 = vpop.permute.xlu0 %1101
      %1103 = vrot.lane.b32.xlu0 %v1040, 8
      %v1104 = vpop.permute.xlu0 %1103
      %vm1137 = vcmask 93248
      %1138 = vst.msk [vmem:[#allocation2] sm:$0xf] %vm1137, %v1042
      %1139 = vst.msk [vmem:[#allocation2 + $0x4] sm:$0xf] %vm1137, %v1044
      %1140 = vst.msk [vmem:[#allocation2 + $0x8] sm:$0xf] %vm1137, %v1046
      %1141 = vst.msk [vmem:[#allocation2 + $0xc] sm:$0xf] %vm1137, %v1048
      %1142 = vst.msk [vmem:[#allocation2 + $0x10] sm:$0xf] %vm1137, %v1050
      %1143 = vst.msk [vmem:[#allocation2 + $0x14] sm:$0xf] %vm1137, %v1052
      %1144 = vst.msk [vmem:[#allocation2 + $0x18] sm:$0xf] %vm1137, %v1054
      %1145 = vst.msk [vmem:[#allocation2 + $0x1c] sm:$0xf] %vm1137, %v1056
      %1146 = vst.msk [vmem:[#allocation2 + $0x20] sm:$0xf] %vm1137, %v1058
      %1147 = vst.msk [vmem:[#allocation2 + $0x24] sm:$0xf] %vm1137, %v1060
      %1148 = vst.msk [vmem:[#allocation2 + $0x28] sm:$0xf] %vm1137, %v1062
      %1149 = vst.msk [vmem:[#allocation2 + $0x2c] sm:$0xf] %vm1137, %v1064
      %1150 = vst.msk [vmem:[#allocation2 + $0x30] sm:$0xf] %vm1137, %v1066
      %1151 = vst.msk [vmem:[#allocation2 + $0x34] sm:$0xf] %vm1137, %v1068
      %1152 = vst.msk [vmem:[#allocation2 + $0x38] sm:$0xf] %vm1137, %v1070
      %1153 = vst.msk [vmem:[#allocation2 + $0x3c] sm:$0xf] %vm1137, %v1072
      %1154 = vst.msk [vmem:[#allocation2 + $0x40] sm:$0xf] %vm1137, %v1074
      %1155 = vst.msk [vmem:[#allocation2 + $0x44] sm:$0xf] %vm1137, %v1076
      %1156 = vst.msk [vmem:[#allocation2 + $0x48] sm:$0xf] %vm1137, %v1078
      %1157 = vst.msk [vmem:[#allocation2 + $0x4c] sm:$0xf] %vm1137, %v1080
      %1158 = vst.msk [vmem:[#allocation2 + $0x50] sm:$0xf] %vm1137, %v1082
      %1159 = vst.msk [vmem:[#allocation2 + $0x54] sm:$0xf] %vm1137, %v1084
      %1160 = vst.msk [vmem:[#allocation2 + $0x58] sm:$0xf] %vm1137, %v1086
      %1161 = vst.msk [vmem:[#allocation2 + $0x5c] sm:$0xf] %vm1137, %v1088
      %1162 = vst.msk [vmem:[#allocation2 + $0x60] sm:$0xf] %vm1137, %v1090
      %1163 = vst.msk [vmem:[#allocation2 + $0x64] sm:$0xf] %vm1137, %v1092
      %1164 = vst.msk [vmem:[#allocation2 + $0x68] sm:$0xf] %vm1137, %v1094
      %1165 = vst.msk [vmem:[#allocation2 + $0x6c] sm:$0xf] %vm1137, %v1096
      %1166 = vst.msk [vmem:[#allocation2 + $0x70] sm:$0xf] %vm1137, %v1098
      %1167 = vst.msk [vmem:[#allocation2 + $0x74] sm:$0xf] %vm1137, %v1100
      %1168 = vst.msk [vmem:[#allocation2 + $0x78] sm:$0xf] %vm1137, %v1102
      %1169 = vst.msk [vmem:[#allocation2 + $0x7c] sm:$0xf] %vm1137, %v1104
      %s1170 = sadd.s32 %s197, 1
      %s1171 = smul.u32 %s1170, 3
      %s1172 = smul.addr %s1171, 4
      %s1173 = scalar_lea.vmem %s184, %s1172
      %v1174 = vld [vmem:[%s1173] sm:$0xf]
      %v1175 = vld [vmem:[%s1173 + $0x4] sm:$0xf]
      %v1176 = vld [vmem:[%s1173 + $0xc] sm:$0xf]
      %v1177 = vld [vmem:[%s1173 + $0x10] sm:$0xf]
      %v1178 = vld [vmem:[%s1173 + $0x18] sm:$0xf]
      %v1179 = vld [vmem:[%s1173 + $0x1c] sm:$0xf]
      %v1180 = vld [vmem:[%s1173 + $0x24] sm:$0xf]
      %v1181 = vld [vmem:[%s1173 + $0x28] sm:$0xf]
      %v1182 = vld [vmem:[%s1173 + $0x30] sm:$0xf]
      %v1183 = vld [vmem:[%s1173 + $0x34] sm:$0xf]
      %v1184 = vld [vmem:[%s1173 + $0x3c] sm:$0xf]
      %v1185 = vld [vmem:[%s1173 + $0x40] sm:$0xf]
      %v1186 = vld [vmem:[%s1173 + $0x48] sm:$0xf]
      %v1187 = vld [vmem:[%s1173 + $0x4c] sm:$0xf]
      %v1188 = vld [vmem:[%s1173 + $0x54] sm:$0xf]
      %v1189 = vld [vmem:[%s1173 + $0x58] sm:$0xf]
      %v1190 = vld [vmem:[%s1173 + $0x60] sm:$0xf]
      %v1191 = vld [vmem:[%s1173 + $0x64] sm:$0xf]
      %v1192 = vld [vmem:[%s1173 + $0x6c] sm:$0xf]
      %v1193 = vld [vmem:[%s1173 + $0x70] sm:$0xf]
      %v1194 = vld [vmem:[%s1173 + $0x78] sm:$0xf]
      %v1195 = vld [vmem:[%s1173 + $0x7c] sm:$0xf]
      %v1196 = vld [vmem:[%s1173 + $0x84] sm:$0xf]
      %v1197 = vld [vmem:[%s1173 + $0x88] sm:$0xf]
      %v1198 = vld [vmem:[%s1173 + $0x90] sm:$0xf]
      %v1199 = vld [vmem:[%s1173 + $0x94] sm:$0xf]
      %v1200 = vld [vmem:[%s1173 + $0x9c] sm:$0xf]
      %v1201 = vld [vmem:[%s1173 + $0xa0] sm:$0xf]
      %v1202 = vld [vmem:[%s1173 + $0xa8] sm:$0xf]
      %v1203 = vld [vmem:[%s1173 + $0xac] sm:$0xf]
      %v1204 = vld [vmem:[%s1173 + $0xb4] sm:$0xf]
      %v1205 = vld [vmem:[%s1173 + $0xb8] sm:$0xf]
      %1238 = vrot.lane.b32.xlu0 %v1174, 12
      %v1239 = vpop.permute.xlu0 %1238
      %1240 = vrot.lane.b32.xlu0 %v1175, 12
      %v1241 = vpop.permute.xlu0 %1240
      %1242 = vrot.lane.b32.xlu0 %v1176, 12
      %v1243 = vpop.permute.xlu0 %1242
      %1244 = vrot.lane.b32.xlu0 %v1177, 12
      %v1245 = vpop.permute.xlu0 %1244
      %1246 = vrot.lane.b32.xlu0 %v1178, 12
      %v1247 = vpop.permute.xlu0 %1246
      %1248 = vrot.lane.b32.xlu0 %v1179, 12
      %v1249 = vpop.permute.xlu0 %1248
      %1250 = vrot.lane.b32.xlu0 %v1180, 12
      %v1251 = vpop.permute.xlu0 %1250
      %1252 = vrot.lane.b32.xlu0 %v1181, 12
      %v1253 = vpop.permute.xlu0 %1252
      %1254 = vrot.lane.b32.xlu0 %v1182, 12
      %v1255 = vpop.permute.xlu0 %1254
      %1256 = vrot.lane.b32.xlu0 %v1183, 12
      %v1257 = vpop.permute.xlu0 %1256
      %1258 = vrot.lane.b32.xlu0 %v1184, 12
      %v1259 = vpop.permute.xlu0 %1258
      %1260 = vrot.lane.b32.xlu0 %v1185, 12
      %v1261 = vpop.permute.xlu0 %1260
      %1262 = vrot.lane.b32.xlu0 %v1186, 12
      %v1263 = vpop.permute.xlu0 %1262
      %1264 = vrot.lane.b32.xlu0 %v1187, 12
      %v1265 = vpop.permute.xlu0 %1264
      %1266 = vrot.lane.b32.xlu0 %v1188, 12
      %v1267 = vpop.permute.xlu0 %1266
      %1268 = vrot.lane.b32.xlu0 %v1189, 12
      %v1269 = vpop.permute.xlu0 %1268
      %1270 = vrot.lane.b32.xlu0 %v1190, 12
      %v1271 = vpop.permute.xlu0 %1270
      %1272 = vrot.lane.b32.xlu0 %v1191, 12
      %v1273 = vpop.permute.xlu0 %1272
      %1274 = vrot.lane.b32.xlu0 %v1192, 12
      %v1275 = vpop.permute.xlu0 %1274
      %1276 = vrot.lane.b32.xlu0 %v1193, 12
      %v1277 = vpop.permute.xlu0 %1276
      %1278 = vrot.lane.b32.xlu0 %v1194, 12
      %v1279 = vpop.permute.xlu0 %1278
      %1280 = vrot.lane.b32.xlu0 %v1195, 12
      %v1281 = vpop.permute.xlu0 %1280
      %1282 = vrot.lane.b32.xlu0 %v1196, 12
      %v1283 = vpop.permute.xlu0 %1282
      %1284 = vrot.lane.b32.xlu0 %v1197, 12
      %v1285 = vpop.permute.xlu0 %1284
      %1286 = vrot.lane.b32.xlu0 %v1198, 12
      %v1287 = vpop.permute.xlu0 %1286
      %1288 = vrot.lane.b32.xlu0 %v1199, 12
      %v1289 = vpop.permute.xlu0 %1288
      %1290 = vrot.lane.b32.xlu0 %v1200, 12
      %v1291 = vpop.permute.xlu0 %1290
      %1292 = vrot.lane.b32.xlu0 %v1201, 12
      %v1293 = vpop.permute.xlu0 %1292
      %1294 = vrot.lane.b32.xlu0 %v1202, 12
      %v1295 = vpop.permute.xlu0 %1294
      %1296 = vrot.lane.b32.xlu0 %v1203, 12
      %v1297 = vpop.permute.xlu0 %1296
      %1298 = vrot.lane.b32.xlu0 %v1204, 12
      %v1299 = vpop.permute.xlu0 %1298
      %1300 = vrot.lane.b32.xlu0 %v1205, 12
      %v1301 = vpop.permute.xlu0 %1300
      %vm1334 = vcmask 126048
      %1335 = vst.msk [vmem:[#allocation2] sm:$0xf] %vm1334, %v1239
      %1336 = vst.msk [vmem:[#allocation2 + $0x4] sm:$0xf] %vm1334, %v1241
      %1337 = vst.msk [vmem:[#allocation2 + $0x8] sm:$0xf] %vm1334, %v1243
      %1338 = vst.msk [vmem:[#allocation2 + $0xc] sm:$0xf] %vm1334, %v1245
      %1339 = vst.msk [vmem:[#allocation2 + $0x10] sm:$0xf] %vm1334, %v1247
      %1340 = vst.msk [vmem:[#allocation2 + $0x14] sm:$0xf] %vm1334, %v1249
      %1341 = vst.msk [vmem:[#allocation2 + $0x18] sm:$0xf] %vm1334, %v1251
      %1342 = vst.msk [vmem:[#allocation2 + $0x1c] sm:$0xf] %vm1334, %v1253
      %1343 = vst.msk [vmem:[#allocation2 + $0x20] sm:$0xf] %vm1334, %v1255
      %1344 = vst.msk [vmem:[#allocation2 + $0x24] sm:$0xf] %vm1334, %v1257
      %1345 = vst.msk [vmem:[#allocation2 + $0x28] sm:$0xf] %vm1334, %v1259
      %1346 = vst.msk [vmem:[#allocation2 + $0x2c] sm:$0xf] %vm1334, %v1261
      %1347 = vst.msk [vmem:[#allocation2 + $0x30] sm:$0xf] %vm1334, %v1263
      %1348 = vst.msk [vmem:[#allocation2 + $0x34] sm:$0xf] %vm1334, %v1265
      %1349 = vst.msk [vmem:[#allocation2 + $0x38] sm:$0xf] %vm1334, %v1267
      %1350 = vst.msk [vmem:[#allocation2 + $0x3c] sm:$0xf] %vm1334, %v1269
      %1351 = vst.msk [vmem:[#allocation2 + $0x40] sm:$0xf] %vm1334, %v1271
      %1352 = vst.msk [vmem:[#allocation2 + $0x44] sm:$0xf] %vm1334, %v1273
      %1353 = vst.msk [vmem:[#allocation2 + $0x48] sm:$0xf] %vm1334, %v1275
      %1354 = vst.msk [vmem:[#allocation2 + $0x4c] sm:$0xf] %vm1334, %v1277
      %1355 = vst.msk [vmem:[#allocation2 + $0x50] sm:$0xf] %vm1334, %v1279
      %1356 = vst.msk [vmem:[#allocation2 + $0x54] sm:$0xf] %vm1334, %v1281
      %1357 = vst.msk [vmem:[#allocation2 + $0x58] sm:$0xf] %vm1334, %v1283
      %1358 = vst.msk [vmem:[#allocation2 + $0x5c] sm:$0xf] %vm1334, %v1285
      %1359 = vst.msk [vmem:[#allocation2 + $0x60] sm:$0xf] %vm1334, %v1287
      %1360 = vst.msk [vmem:[#allocation2 + $0x64] sm:$0xf] %vm1334, %v1289
      %1361 = vst.msk [vmem:[#allocation2 + $0x68] sm:$0xf] %vm1334, %v1291
      %1362 = vst.msk [vmem:[#allocation2 + $0x6c] sm:$0xf] %vm1334, %v1293
      %1363 = vst.msk [vmem:[#allocation2 + $0x70] sm:$0xf] %vm1334, %v1295
      %1364 = vst.msk [vmem:[#allocation2 + $0x74] sm:$0xf] %vm1334, %v1297
      %1365 = vst.msk [vmem:[#allocation2 + $0x78] sm:$0xf] %vm1334, %v1299
      %1366 = vst.msk [vmem:[#allocation2 + $0x7c] sm:$0xf] %vm1334, %v1301
      %v1367 = vld [vmem:[%s1173] sm:$0xf]
      %v1368 = vld [vmem:[%s1173 + $0x4] sm:$0xf]
      %v1369 = vld [vmem:[%s1173 + $0x8] sm:$0x1]
      %v1370 = vld [vmem:[%s1173 + $0xc] sm:$0xf]
      %v1371 = vld [vmem:[%s1173 + $0x10] sm:$0xf]
      %v1372 = vld [vmem:[%s1173 + $0x14] sm:$0x1]
      %v1373 = vld [vmem:[%s1173 + $0x18] sm:$0xf]
      %v1374 = vld [vmem:[%s1173 + $0x1c] sm:$0xf]
      %v1375 = vld [vmem:[%s1173 + $0x20] sm:$0x1]
      %v1376 = vld [vmem:[%s1173 + $0x24] sm:$0xf]
      %v1377 = vld [vmem:[%s1173 + $0x28] sm:$0xf]
      %v1378 = vld [vmem:[%s1173 + $0x2c] sm:$0x1]
      %v1379 = vld [vmem:[%s1173 + $0x30] sm:$0xf]
      %v1380 = vld [vmem:[%s1173 + $0x34] sm:$0xf]
      %v1381 = vld [vmem:[%s1173 + $0x38] sm:$0x1]
      %v1382 = vld [vmem:[%s1173 + $0x3c] sm:$0xf]
      %v1383 = vld [vmem:[%s1173 + $0x40] sm:$0xf]
      %v1384 = vld [vmem:[%s1173 + $0x44] sm:$0x1]
      %v1385 = vld [vmem:[%s1173 + $0x48] sm:$0xf]
      %v1386 = vld [vmem:[%s1173 + $0x4c] sm:$0xf]
      %v1387 = vld [vmem:[%s1173 + $0x50] sm:$0x1]
      %v1388 = vld [vmem:[%s1173 + $0x54] sm:$0xf]
      %v1389 = vld [vmem:[%s1173 + $0x58] sm:$0xf]
      %v1390 = vld [vmem:[%s1173 + $0x5c] sm:$0x1]
      %v1391 = vld [vmem:[%s1173 + $0x60] sm:$0xf]
      %v1392 = vld [vmem:[%s1173 + $0x64] sm:$0xf]
      %v1393 = vld [vmem:[%s1173 + $0x68] sm:$0x1]
      %v1394 = vld [vmem:[%s1173 + $0x6c] sm:$0xf]
      %v1395 = vld [vmem:[%s1173 + $0x70] sm:$0xf]
      %v1396 = vld [vmem:[%s1173 + $0x74] sm:$0x1]
      %v1397 = vld [vmem:[%s1173 + $0x78] sm:$0xf]
      %v1398 = vld [vmem:[%s1173 + $0x7c] sm:$0xf]
      %v1399 = vld [vmem:[%s1173 + $0x80] sm:$0x1]
      %v1400 = vld [vmem:[%s1173 + $0x84] sm:$0xf]
      %v1401 = vld [vmem:[%s1173 + $0x88] sm:$0xf]
      %v1402 = vld [vmem:[%s1173 + $0x8c] sm:$0x1]
      %v1403 = vld [vmem:[%s1173 + $0x90] sm:$0xf]
      %v1404 = vld [vmem:[%s1173 + $0x94] sm:$0xf]
      %v1405 = vld [vmem:[%s1173 + $0x98] sm:$0x1]
      %v1406 = vld [vmem:[%s1173 + $0x9c] sm:$0xf]
      %v1407 = vld [vmem:[%s1173 + $0xa0] sm:$0xf]
      %v1408 = vld [vmem:[%s1173 + $0xa4] sm:$0x1]
      %v1409 = vld [vmem:[%s1173 + $0xa8] sm:$0xf]
      %v1410 = vld [vmem:[%s1173 + $0xac] sm:$0xf]
      %v1411 = vld [vmem:[%s1173 + $0xb0] sm:$0x1]
      %v1412 = vld [vmem:[%s1173 + $0xb4] sm:$0xf]
      %v1413 = vld [vmem:[%s1173 + $0xb8] sm:$0xf]
      %v1414 = vld [vmem:[%s1173 + $0xbc] sm:$0x1]
      %v1416 = vshrl.u32 %v1367, 16
      %v1418 = vrot.slane %v1416, 4
      %v1419 = vshll.u32 %v1367, 16
      %v1421 = vrot.slane %v1419, 5
      %v1422 = vor.u32 %v1418, %v1421
      %v1423 = vrot.slane %v1422, 4
      %v1425 = vshll.u32 %v1368, 16
      %v1427 = vrot.slane %v1425, 5
      %v1428 = vsel %vm316, %v1423, %v1427
      %v1429 = vshrl.u32 %v1368, 16
      %v1431 = vrot.slane %v1429, 4
      %v1432 = vor.u32 %v1431, %v1427
      %v1433 = vrot.slane %v1432, 4
      %v1435 = vshll.u32 %v1369, 16
      %v1437 = vrot.slane %v1435, 5
      %v1438 = vsel %vm316, %v1433, %v1437
      %v1440 = vshrl.u32 %v1370, 16
      %v1442 = vrot.slane %v1440, 4
      %v1443 = vshll.u32 %v1370, 16
      %v1445 = vrot.slane %v1443, 5
      %v1446 = vor.u32 %v1442, %v1445
      %v1447 = vrot.slane %v1446, 4
      %v1449 = vshll.u32 %v1371, 16
      %v1451 = vrot.slane %v1449, 5
      %v1452 = vsel %vm316, %v1447, %v1451
      %v1453 = vshrl.u32 %v1371, 16
      %v1455 = vrot.slane %v1453, 4
      %v1456 = vor.u32 %v1455, %v1451
      %v1457 = vrot.slane %v1456, 4
      %v1459 = vshll.u32 %v1372, 16
      %v1461 = vrot.slane %v1459, 5
      %v1462 = vsel %vm316, %v1457, %v1461
      %v1464 = vshrl.u32 %v1373, 16
      %v1466 = vrot.slane %v1464, 4
      %v1467 = vshll.u32 %v1373, 16
      %v1469 = vrot.slane %v1467, 5
      %v1470 = vor.u32 %v1466, %v1469
      %v1471 = vrot.slane %v1470, 4
      %v1473 = vshll.u32 %v1374, 16
      %v1475 = vrot.slane %v1473, 5
      %v1476 = vsel %vm316, %v1471, %v1475
      %v1477 = vshrl.u32 %v1374, 16
      %v1479 = vrot.slane %v1477, 4
      %v1480 = vor.u32 %v1479, %v1475
      %v1481 = vrot.slane %v1480, 4
      %v1483 = vshll.u32 %v1375, 16
      %v1485 = vrot.slane %v1483, 5
      %v1486 = vsel %vm316, %v1481, %v1485
      %v1488 = vshrl.u32 %v1376, 16
      %v1490 = vrot.slane %v1488, 4
      %v1491 = vshll.u32 %v1376, 16
      %v1493 = vrot.slane %v1491, 5
      %v1494 = vor.u32 %v1490, %v1493
      %v1495 = vrot.slane %v1494, 4
      %v1497 = vshll.u32 %v1377, 16
      %v1499 = vrot.slane %v1497, 5
      %v1500 = vsel %vm316, %v1495, %v1499
      %v1501 = vshrl.u32 %v1377, 16
      %v1503 = vrot.slane %v1501, 4
      %v1504 = vor.u32 %v1503, %v1499
      %v1505 = vrot.slane %v1504, 4
      %v1507 = vshll.u32 %v1378, 16
      %v1509 = vrot.slane %v1507, 5
      %v1510 = vsel %vm316, %v1505, %v1509
      %v1512 = vshrl.u32 %v1379, 16
      %v1514 = vrot.slane %v1512, 4
      %v1515 = vshll.u32 %v1379, 16
      %v1517 = vrot.slane %v1515, 5
      %v1518 = vor.u32 %v1514, %v1517
      %v1519 = vrot.slane %v1518, 4
      %v1521 = vshll.u32 %v1380, 16
      %v1523 = vrot.slane %v1521, 5
      %v1524 = vsel %vm316, %v1519, %v1523
      %v1525 = vshrl.u32 %v1380, 16
      %v1527 = vrot.slane %v1525, 4
      %v1528 = vor.u32 %v1527, %v1523
      %v1529 = vrot.slane %v1528, 4
      %v1531 = vshll.u32 %v1381, 16
      %v1533 = vrot.slane %v1531, 5
      %v1534 = vsel %vm316, %v1529, %v1533
      %v1536 = vshrl.u32 %v1382, 16
      %v1538 = vrot.slane %v1536, 4
      %v1539 = vshll.u32 %v1382, 16
      %v1541 = vrot.slane %v1539, 5
      %v1542 = vor.u32 %v1538, %v1541
      %v1543 = vrot.slane %v1542, 4
      %v1545 = vshll.u32 %v1383, 16
      %v1547 = vrot.slane %v1545, 5
      %v1548 = vsel %vm316, %v1543, %v1547
      %v1549 = vshrl.u32 %v1383, 16
      %v1551 = vrot.slane %v1549, 4
      %v1552 = vor.u32 %v1551, %v1547
      %v1553 = vrot.slane %v1552, 4
      %v1555 = vshll.u32 %v1384, 16
      %v1557 = vrot.slane %v1555, 5
      %v1558 = vsel %vm316, %v1553, %v1557
      %v1560 = vshrl.u32 %v1385, 16
      %v1562 = vrot.slane %v1560, 4
      %v1563 = vshll.u32 %v1385, 16
      %v1565 = vrot.slane %v1563, 5
      %v1566 = vor.u32 %v1562, %v1565
      %v1567 = vrot.slane %v1566, 4
      %v1569 = vshll.u32 %v1386, 16
      %v1571 = vrot.slane %v1569, 5
      %v1572 = vsel %vm316, %v1567, %v1571
      %v1573 = vshrl.u32 %v1386, 16
      %v1575 = vrot.slane %v1573, 4
      %v1576 = vor.u32 %v1575, %v1571
      %v1577 = vrot.slane %v1576, 4
      %v1579 = vshll.u32 %v1387, 16
      %v1581 = vrot.slane %v1579, 5
      %v1582 = vsel %vm316, %v1577, %v1581
      %v1584 = vshrl.u32 %v1388, 16
      %v1586 = vrot.slane %v1584, 4
      %v1587 = vshll.u32 %v1388, 16
      %v1589 = vrot.slane %v1587, 5
      %v1590 = vor.u32 %v1586, %v1589
      %v1591 = vrot.slane %v1590, 4
      %v1593 = vshll.u32 %v1389, 16
      %v1595 = vrot.slane %v1593, 5
      %v1596 = vsel %vm316, %v1591, %v1595
      %v1597 = vshrl.u32 %v1389, 16
      %v1599 = vrot.slane %v1597, 4
      %v1600 = vor.u32 %v1599, %v1595
      %v1601 = vrot.slane %v1600, 4
      %v1603 = vshll.u32 %v1390, 16
      %v1605 = vrot.slane %v1603, 5
      %v1606 = vsel %vm316, %v1601, %v1605
      %v1608 = vshrl.u32 %v1391, 16
      %v1610 = vrot.slane %v1608, 4
      %v1611 = vshll.u32 %v1391, 16
      %v1613 = vrot.slane %v1611, 5
      %v1614 = vor.u32 %v1610, %v1613
      %v1615 = vrot.slane %v1614, 4
      %v1617 = vshll.u32 %v1392, 16
      %v1619 = vrot.slane %v1617, 5
      %v1620 = vsel %vm316, %v1615, %v1619
      %v1621 = vshrl.u32 %v1392, 16
      %v1623 = vrot.slane %v1621, 4
      %v1624 = vor.u32 %v1623, %v1619
      %v1625 = vrot.slane %v1624, 4
      %v1627 = vshll.u32 %v1393, 16
      %v1629 = vrot.slane %v1627, 5
      %v1630 = vsel %vm316, %v1625, %v1629
      %v1632 = vshrl.u32 %v1394, 16
      %v1634 = vrot.slane %v1632, 4
      %v1635 = vshll.u32 %v1394, 16
      %v1637 = vrot.slane %v1635, 5
      %v1638 = vor.u32 %v1634, %v1637
      %v1639 = vrot.slane %v1638, 4
      %v1641 = vshll.u32 %v1395, 16
      %v1643 = vrot.slane %v1641, 5
      %v1644 = vsel %vm316, %v1639, %v1643
      %v1645 = vshrl.u32 %v1395, 16
      %v1647 = vrot.slane %v1645, 4
      %v1648 = vor.u32 %v1647, %v1643
      %v1649 = vrot.slane %v1648, 4
      %v1651 = vshll.u32 %v1396, 16
      %v1653 = vrot.slane %v1651, 5
      %v1654 = vsel %vm316, %v1649, %v1653
      %v1656 = vshrl.u32 %v1397, 16
      %v1658 = vrot.slane %v1656, 4
      %v1659 = vshll.u32 %v1397, 16
      %v1661 = vrot.slane %v1659, 5
      %v1662 = vor.u32 %v1658, %v1661
      %v1663 = vrot.slane %v1662, 4
      %v1665 = vshll.u32 %v1398, 16
      %v1667 = vrot.slane %v1665, 5
      %v1668 = vsel %vm316, %v1663, %v1667
      %v1669 = vshrl.u32 %v1398, 16
      %v1671 = vrot.slane %v1669, 4
      %v1672 = vor.u32 %v1671, %v1667
      %v1673 = vrot.slane %v1672, 4
      %v1675 = vshll.u32 %v1399, 16
      %v1677 = vrot.slane %v1675, 5
      %v1678 = vsel %vm316, %v1673, %v1677
      %v1680 = vshrl.u32 %v1400, 16
      %v1682 = vrot.slane %v1680, 4
      %v1683 = vshll.u32 %v1400, 16
      %v1685 = vrot.slane %v1683, 5
      %v1686 = vor.u32 %v1682, %v1685
      %v1687 = vrot.slane %v1686, 4
      %v1689 = vshll.u32 %v1401, 16
      %v1691 = vrot.slane %v1689, 5
      %v1692 = vsel %vm316, %v1687, %v1691
      %v1693 = vshrl.u32 %v1401, 16
      %v1695 = vrot.slane %v1693, 4
      %v1696 = vor.u32 %v1695, %v1691
      %v1697 = vrot.slane %v1696, 4
      %v1699 = vshll.u32 %v1402, 16
      %v1701 = vrot.slane %v1699, 5
      %v1702 = vsel %vm316, %v1697, %v1701
      %v1704 = vshrl.u32 %v1403, 16
      %v1706 = vrot.slane %v1704, 4
      %v1707 = vshll.u32 %v1403, 16
      %v1709 = vrot.slane %v1707, 5
      %v1710 = vor.u32 %v1706, %v1709
      %v1711 = vrot.slane %v1710, 4
      %v1713 = vshll.u32 %v1404, 16
      %v1715 = vrot.slane %v1713, 5
      %v1716 = vsel %vm316, %v1711, %v1715
      %v1717 = vshrl.u32 %v1404, 16
      %v1719 = vrot.slane %v1717, 4
      %v1720 = vor.u32 %v1719, %v1715
      %v1721 = vrot.slane %v1720, 4
      %v1723 = vshll.u32 %v1405, 16
      %v1725 = vrot.slane %v1723, 5
      %v1726 = vsel %vm316, %v1721, %v1725
      %v1728 = vshrl.u32 %v1406, 16
      %v1730 = vrot.slane %v1728, 4
      %v1731 = vshll.u32 %v1406, 16
      %v1733 = vrot.slane %v1731, 5
      %v1734 = vor.u32 %v1730, %v1733
      %v1735 = vrot.slane %v1734, 4
      %v1737 = vshll.u32 %v1407, 16
      %v1739 = vrot.slane %v1737, 5
      %v1740 = vsel %vm316, %v1735, %v1739
      %v1741 = vshrl.u32 %v1407, 16
      %v1743 = vrot.slane %v1741, 4
      %v1744 = vor.u32 %v1743, %v1739
      %v1745 = vrot.slane %v1744, 4
      %v1747 = vshll.u32 %v1408, 16
      %v1749 = vrot.slane %v1747, 5
      %v1750 = vsel %vm316, %v1745, %v1749
      %v1752 = vshrl.u32 %v1409, 16
      %v1754 = vrot.slane %v1752, 4
      %v1755 = vshll.u32 %v1409, 16
      %v1757 = vrot.slane %v1755, 5
      %v1758 = vor.u32 %v1754, %v1757
      %v1759 = vrot.slane %v1758, 4
      %v1761 = vshll.u32 %v1410, 16
      %v1763 = vrot.slane %v1761, 5
      %v1764 = vsel %vm316, %v1759, %v1763
      %v1765 = vshrl.u32 %v1410, 16
      %v1767 = vrot.slane %v1765, 4
      %v1768 = vor.u32 %v1767, %v1763
      %v1769 = vrot.slane %v1768, 4
      %v1771 = vshll.u32 %v1411, 16
      %v1773 = vrot.slane %v1771, 5
      %v1774 = vsel %vm316, %v1769, %v1773
      %v1776 = vshrl.u32 %v1412, 16
      %v1778 = vrot.slane %v1776, 4
      %v1779 = vshll.u32 %v1412, 16
      %v1781 = vrot.slane %v1779, 5
      %v1782 = vor.u32 %v1778, %v1781
      %v1783 = vrot.slane %v1782, 4
      %v1785 = vshll.u32 %v1413, 16
      %v1787 = vrot.slane %v1785, 5
      %v1788 = vsel %vm316, %v1783, %v1787
      %v1789 = vshrl.u32 %v1413, 16
      %v1791 = vrot.slane %v1789, 4
      %v1792 = vor.u32 %v1791, %v1787
      %v1793 = vrot.slane %v1792, 4
      %v1795 = vshll.u32 %v1414, 16
      %v1797 = vrot.slane %v1795, 5
      %v1798 = vsel %vm316, %v1793, %v1797
      %1799 = vrot.lane.b32.xlu0 %v1428, 16
      %v1800 = vpop.permute.xlu0 %1799
      %1801 = vrot.lane.b32.xlu0 %v1438, 16
      %v1802 = vpop.permute.xlu0 %1801
      %1803 = vrot.lane.b32.xlu0 %v1452, 16
      %v1804 = vpop.permute.xlu0 %1803
      %1805 = vrot.lane.b32.xlu0 %v1462, 16
      %v1806 = vpop.permute.xlu0 %1805
      %1807 = vrot.lane.b32.xlu0 %v1476, 16
      %v1808 = vpop.permute.xlu0 %1807
      %1809 = vrot.lane.b32.xlu0 %v1486, 16
      %v1810 = vpop.permute.xlu0 %1809
      %1811 = vrot.lane.b32.xlu0 %v1500, 16
      %v1812 = vpop.permute.xlu0 %1811
      %1813 = vrot.lane.b32.xlu0 %v1510, 16
      %v1814 = vpop.permute.xlu0 %1813
      %1815 = vrot.lane.b32.xlu0 %v1524, 16
      %v1816 = vpop.permute.xlu0 %1815
      %1817 = vrot.lane.b32.xlu0 %v1534, 16
      %v1818 = vpop.permute.xlu0 %1817
      %1819 = vrot.lane.b32.xlu0 %v1548, 16
      %v1820 = vpop.permute.xlu0 %1819
      %1821 = vrot.lane.b32.xlu0 %v1558, 16
      %v1822 = vpop.permute.xlu0 %1821
      %1823 = vrot.lane.b32.xlu0 %v1572, 16
      %v1824 = vpop.permute.xlu0 %1823
      %1825 = vrot.lane.b32.xlu0 %v1582, 16
      %v1826 = vpop.permute.xlu0 %1825
      %1827 = vrot.lane.b32.xlu0 %v1596, 16
      %v1828 = vpop.permute.xlu0 %1827
      %1829 = vrot.lane.b32.xlu0 %v1606, 16
      %v1830 = vpop.permute.xlu0 %1829
      %1831 = vrot.lane.b32.xlu0 %v1620, 16
      %v1832 = vpop.permute.xlu0 %1831
      %1833 = vrot.lane.b32.xlu0 %v1630, 16
      %v1834 = vpop.permute.xlu0 %1833
      %1835 = vrot.lane.b32.xlu0 %v1644, 16
      %v1836 = vpop.permute.xlu0 %1835
      %1837 = vrot.lane.b32.xlu0 %v1654, 16
      %v1838 = vpop.permute.xlu0 %1837
      %1839 = vrot.lane.b32.xlu0 %v1668, 16
      %v1840 = vpop.permute.xlu0 %1839
      %1841 = vrot.lane.b32.xlu0 %v1678, 16
      %v1842 = vpop.permute.xlu0 %1841
      %1843 = vrot.lane.b32.xlu0 %v1692, 16
      %v1844 = vpop.permute.xlu0 %1843
      %1845 = vrot.lane.b32.xlu0 %v1702, 16
      %v1846 = vpop.permute.xlu0 %1845
      %1847 = vrot.lane.b32.xlu0 %v1716, 16
      %v1848 = vpop.permute.xlu0 %1847
      %1849 = vrot.lane.b32.xlu0 %v1726, 16
      %v1850 = vpop.permute.xlu0 %1849
      %1851 = vrot.lane.b32.xlu0 %v1740, 16
      %v1852 = vpop.permute.xlu0 %1851
      %1853 = vrot.lane.b32.xlu0 %v1750, 16
      %v1854 = vpop.permute.xlu0 %1853
      %1855 = vrot.lane.b32.xlu0 %v1764, 16
      %v1856 = vpop.permute.xlu0 %1855
      %1857 = vrot.lane.b32.xlu0 %v1774, 16
      %v1858 = vpop.permute.xlu0 %1857
      %1859 = vrot.lane.b32.xlu0 %v1788, 16
      %v1860 = vpop.permute.xlu0 %1859
      %1861 = vrot.lane.b32.xlu0 %v1798, 16
      %v1862 = vpop.permute.xlu0 %1861
      %vm1895 = vcmask 158848
      %1896 = vst.msk [vmem:[#allocation2] sm:$0xf] %vm1895, %v1800
      %1897 = vst.msk [vmem:[#allocation2 + $0x4] sm:$0xf] %vm1895, %v1802
      %1898 = vst.msk [vmem:[#allocation2 + $0x8] sm:$0xf] %vm1895, %v1804
      %1899 = vst.msk [vmem:[#allocation2 + $0xc] sm:$0xf] %vm1895, %v1806
      %1900 = vst.msk [vmem:[#allocation2 + $0x10] sm:$0xf] %vm1895, %v1808
      %1901 = vst.msk [vmem:[#allocation2 + $0x14] sm:$0xf] %vm1895, %v1810
      %1902 = vst.msk [vmem:[#allocation2 + $0x18] sm:$0xf] %vm1895, %v1812
      %1903 = vst.msk [vmem:[#allocation2 + $0x1c] sm:$0xf] %vm1895, %v1814
      %1904 = vst.msk [vmem:[#allocation2 + $0x20] sm:$0xf] %vm1895, %v1816
      %1905 = vst.msk [vmem:[#allocation2 + $0x24] sm:$0xf] %vm1895, %v1818
      %1906 = vst.msk [vmem:[#allocation2 + $0x28] sm:$0xf] %vm1895, %v1820
      %1907 = vst.msk [vmem:[#allocation2 + $0x2c] sm:$0xf] %vm1895, %v1822
      %1908 = vst.msk [vmem:[#allocation2 + $0x30] sm:$0xf] %vm1895, %v1824
      %1909 = vst.msk [vmem:[#allocation2 + $0x34] sm:$0xf] %vm1895, %v1826
      %1910 = vst.msk [vmem:[#allocation2 + $0x38] sm:$0xf] %vm1895, %v1828
      %1911 = vst.msk [vmem:[#allocation2 + $0x3c] sm:$0xf] %vm1895, %v1830
      %1912 = vst.msk [vmem:[#allocation2 + $0x40] sm:$0xf] %vm1895, %v1832
      %1913 = vst.msk [vmem:[#allocation2 + $0x44] sm:$0xf] %vm1895, %v1834
      %1914 = vst.msk [vmem:[#allocation2 + $0x48] sm:$0xf] %vm1895, %v1836
      %1915 = vst.msk [vmem:[#allocation2 + $0x4c] sm:$0xf] %vm1895, %v1838
      %1916 = vst.msk [vmem:[#allocation2 + $0x50] sm:$0xf] %vm1895, %v1840
      %1917 = vst.msk [vmem:[#allocation2 + $0x54] sm:$0xf] %vm1895, %v1842
      %1918 = vst.msk [vmem:[#allocation2 + $0x58] sm:$0xf] %vm1895, %v1844
      %1919 = vst.msk [vmem:[#allocation2 + $0x5c] sm:$0xf] %vm1895, %v1846
      %1920 = vst.msk [vmem:[#allocation2 + $0x60] sm:$0xf] %vm1895, %v1848
      %1921 = vst.msk [vmem:[#allocation2 + $0x64] sm:$0xf] %vm1895, %v1850
      %1922 = vst.msk [vmem:[#allocation2 + $0x68] sm:$0xf] %vm1895, %v1852
      %1923 = vst.msk [vmem:[#allocation2 + $0x6c] sm:$0xf] %vm1895, %v1854
      %1924 = vst.msk [vmem:[#allocation2 + $0x70] sm:$0xf] %vm1895, %v1856
      %1925 = vst.msk [vmem:[#allocation2 + $0x74] sm:$0xf] %vm1895, %v1858
      %1926 = vst.msk [vmem:[#allocation2 + $0x78] sm:$0xf] %vm1895, %v1860
      %1927 = vst.msk [vmem:[#allocation2 + $0x7c] sm:$0xf] %vm1895, %v1862
      %v1928 = vld [vmem:[%s1173] sm:$0xe]
      %v1929 = vld [vmem:[%s1173 + $0x4] sm:$0xf]
      %v1930 = vld [vmem:[%s1173 + $0x8] sm:$0x1]
      %v1931 = vld [vmem:[%s1173 + $0xc] sm:$0xe]
      %v1932 = vld [vmem:[%s1173 + $0x10] sm:$0xf]
      %v1933 = vld [vmem:[%s1173 + $0x14] sm:$0x1]
      %v1934 = vld [vmem:[%s1173 + $0x18] sm:$0xe]
      %v1935 = vld [vmem:[%s1173 + $0x1c] sm:$0xf]
      %v1936 = vld [vmem:[%s1173 + $0x20] sm:$0x1]
      %v1937 = vld [vmem:[%s1173 + $0x24] sm:$0xe]
      %v1938 = vld [vmem:[%s1173 + $0x28] sm:$0xf]
      %v1939 = vld [vmem:[%s1173 + $0x2c] sm:$0x1]
      %v1940 = vld [vmem:[%s1173 + $0x30] sm:$0xe]
      %v1941 = vld [vmem:[%s1173 + $0x34] sm:$0xf]
      %v1942 = vld [vmem:[%s1173 + $0x38] sm:$0x1]
      %v1943 = vld [vmem:[%s1173 + $0x3c] sm:$0xe]
      %v1944 = vld [vmem:[%s1173 + $0x40] sm:$0xf]
      %v1945 = vld [vmem:[%s1173 + $0x44] sm:$0x1]
      %v1946 = vld [vmem:[%s1173 + $0x48] sm:$0xe]
      %v1947 = vld [vmem:[%s1173 + $0x4c] sm:$0xf]
      %v1948 = vld [vmem:[%s1173 + $0x50] sm:$0x1]
      %v1949 = vld [vmem:[%s1173 + $0x54] sm:$0xe]
      %v1950 = vld [vmem:[%s1173 + $0x58] sm:$0xf]
      %v1951 = vld [vmem:[%s1173 + $0x5c] sm:$0x1]
      %v1952 = vld [vmem:[%s1173 + $0x60] sm:$0xe]
      %v1953 = vld [vmem:[%s1173 + $0x64] sm:$0xf]
      %v1954 = vld [vmem:[%s1173 + $0x68] sm:$0x1]
      %v1955 = vld [vmem:[%s1173 + $0x6c] sm:$0xe]
      %v1956 = vld [vmem:[%s1173 + $0x70] sm:$0xf]
      %v1957 = vld [vmem:[%s1173 + $0x74] sm:$0x1]
      %v1958 = vld [vmem:[%s1173 + $0x78] sm:$0xe]
      %v1959 = vld [vmem:[%s1173 + $0x7c] sm:$0xf]
      %v1960 = vld [vmem:[%s1173 + $0x80] sm:$0x1]
      %v1961 = vld [vmem:[%s1173 + $0x84] sm:$0xe]
      %v1962 = vld [vmem:[%s1173 + $0x88] sm:$0xf]
      %v1963 = vld [vmem:[%s1173 + $0x8c] sm:$0x1]
      %v1964 = vld [vmem:[%s1173 + $0x90] sm:$0xe]
      %v1965 = vld [vmem:[%s1173 + $0x94] sm:$0xf]
      %v1966 = vld [vmem:[%s1173 + $0x98] sm:$0x1]
      %v1967 = vld [vmem:[%s1173 + $0x9c] sm:$0xe]
      %v1968 = vld [vmem:[%s1173 + $0xa0] sm:$0xf]
      %v1969 = vld [vmem:[%s1173 + $0xa4] sm:$0x1]
      %v1970 = vld [vmem:[%s1173 + $0xa8] sm:$0xe]
      %v1971 = vld [vmem:[%s1173 + $0xac] sm:$0xf]
      %v1972 = vld [vmem:[%s1173 + $0xb0] sm:$0x1]
      %v1973 = vld [vmem:[%s1173 + $0xb4] sm:$0xe]
      %v1974 = vld [vmem:[%s1173 + $0xb8] sm:$0xf]
      %v1975 = vld [vmem:[%s1173 + $0xbc] sm:$0x1]
      %v2024 = vrot.slane %v1928, 5
      %v2025 = vrot.slane %v2024, 4
      %v2026 = vrot.slane %v1929, 5
      %v2027 = vsel %vm928, %v2025, %v2026
      %v2028 = vrot.slane %v2026, 4
      %v2029 = vrot.slane %v1930, 5
      %v2030 = vsel %vm928, %v2028, %v2029
      %v2031 = vrot.slane %v1931, 5
      %v2032 = vrot.slane %v2031, 4
      %v2033 = vrot.slane %v1932, 5
      %v2034 = vsel %vm928, %v2032, %v2033
      %v2035 = vrot.slane %v2033, 4
      %v2036 = vrot.slane %v1933, 5
      %v2037 = vsel %vm928, %v2035, %v2036
      %v2038 = vrot.slane %v1934, 5
      %v2039 = vrot.slane %v2038, 4
      %v2040 = vrot.slane %v1935, 5
      %v2041 = vsel %vm928, %v2039, %v2040
      %v2042 = vrot.slane %v2040, 4
      %v2043 = vrot.slane %v1936, 5
      %v2044 = vsel %vm928, %v2042, %v2043
      %v2045 = vrot.slane %v1937, 5
      %v2046 = vrot.slane %v2045, 4
      %v2047 = vrot.slane %v1938, 5
      %v2048 = vsel %vm928, %v2046, %v2047
      %v2049 = vrot.slane %v2047, 4
      %v2050 = vrot.slane %v1939, 5
      %v2051 = vsel %vm928, %v2049, %v2050
      %v2052 = vrot.slane %v1940, 5
      %v2053 = vrot.slane %v2052, 4
      %v2054 = vrot.slane %v1941, 5
      %v2055 = vsel %vm928, %v2053, %v2054
      %v2056 = vrot.slane %v2054, 4
      %v2057 = vrot.slane %v1942, 5
      %v2058 = vsel %vm928, %v2056, %v2057
      %v2059 = vrot.slane %v1943, 5
      %v2060 = vrot.slane %v2059, 4
      %v2061 = vrot.slane %v1944, 5
      %v2062 = vsel %vm928, %v2060, %v2061
      %v2063 = vrot.slane %v2061, 4
      %v2064 = vrot.slane %v1945, 5
      %v2065 = vsel %vm928, %v2063, %v2064
      %v2066 = vrot.slane %v1946, 5
      %v2067 = vrot.slane %v2066, 4
      %v2068 = vrot.slane %v1947, 5
      %v2069 = vsel %vm928, %v2067, %v2068
      %v2070 = vrot.slane %v2068, 4
      %v2071 = vrot.slane %v1948, 5
      %v2072 = vsel %vm928, %v2070, %v2071
      %v2073 = vrot.slane %v1949, 5
      %v2074 = vrot.slane %v2073, 4
      %v2075 = vrot.slane %v1950, 5
      %v2076 = vsel %vm928, %v2074, %v2075
      %v2077 = vrot.slane %v2075, 4
      %v2078 = vrot.slane %v1951, 5
      %v2079 = vsel %vm928, %v2077, %v2078
      %v2080 = vrot.slane %v1952, 5
      %v2081 = vrot.slane %v2080, 4
      %v2082 = vrot.slane %v1953, 5
      %v2083 = vsel %vm928, %v2081, %v2082
      %v2084 = vrot.slane %v2082, 4
      %v2085 = vrot.slane %v1954, 5
      %v2086 = vsel %vm928, %v2084, %v2085
      %v2087 = vrot.slane %v1955, 5
      %v2088 = vrot.slane %v2087, 4
      %v2089 = vrot.slane %v1956, 5
      %v2090 = vsel %vm928, %v2088, %v2089
      %v2091 = vrot.slane %v2089, 4
      %v2092 = vrot.slane %v1957, 5
      %v2093 = vsel %vm928, %v2091, %v2092
      %v2094 = vrot.slane %v1958, 5
      %v2095 = vrot.slane %v2094, 4
      %v2096 = vrot.slane %v1959, 5
      %v2097 = vsel %vm928, %v2095, %v2096
      %v2098 = vrot.slane %v2096, 4
      %v2099 = vrot.slane %v1960, 5
      %v2100 = vsel %vm928, %v2098, %v2099
      %v2101 = vrot.slane %v1961, 5
      %v2102 = vrot.slane %v2101, 4
      %v2103 = vrot.slane %v1962, 5
      %v2104 = vsel %vm928, %v2102, %v2103
      %v2105 = vrot.slane %v2103, 4
      %v2106 = vrot.slane %v1963, 5
      %v2107 = vsel %vm928, %v2105, %v2106
      %v2108 = vrot.slane %v1964, 5
      %v2109 = vrot.slane %v2108, 4
      %v2110 = vrot.slane %v1965, 5
      %v2111 = vsel %vm928, %v2109, %v2110
      %v2112 = vrot.slane %v2110, 4
      %v2113 = vrot.slane %v1966, 5
      %v2114 = vsel %vm928, %v2112, %v2113
      %v2115 = vrot.slane %v1967, 5
      %v2116 = vrot.slane %v2115, 4
      %v2117 = vrot.slane %v1968, 5
      %v2118 = vsel %vm928, %v2116, %v2117
      %v2119 = vrot.slane %v2117, 4
      %v2120 = vrot.slane %v1969, 5
      %v2121 = vsel %vm928, %v2119, %v2120
      %v2122 = vrot.slane %v1970, 5
      %v2123 = vrot.slane %v2122, 4
      %v2124 = vrot.slane %v1971, 5
      %v2125 = vsel %vm928, %v2123, %v2124
      %v2126 = vrot.slane %v2124, 4
      %v2127 = vrot.slane %v1972, 5
      %v2128 = vsel %vm928, %v2126, %v2127
      %v2129 = vrot.slane %v1973, 5
      %v2130 = vrot.slane %v2129, 4
      %v2131 = vrot.slane %v1974, 5
      %v2132 = vsel %vm928, %v2130, %v2131
      %v2133 = vrot.slane %v2131, 4
      %v2134 = vrot.slane %v1975, 5
      %v2135 = vsel %vm928, %v2133, %v2134
      %2136 = vrot.lane.b32.xlu0 %v2027, 20
      %v2137 = vpop.permute.xlu0 %2136
      %2138 = vrot.lane.b32.xlu0 %v2030, 20
      %v2139 = vpop.permute.xlu0 %2138
      %2140 = vrot.lane.b32.xlu0 %v2034, 20
      %v2141 = vpop.permute.xlu0 %2140
      %2142 = vrot.lane.b32.xlu0 %v2037, 20
      %v2143 = vpop.permute.xlu0 %2142
      %2144 = vrot.lane.b32.xlu0 %v2041, 20
      %v2145 = vpop.permute.xlu0 %2144
      %2146 = vrot.lane.b32.xlu0 %v2044, 20
      %v2147 = vpop.permute.xlu0 %2146
      %2148 = vrot.lane.b32.xlu0 %v2048, 20
      %v2149 = vpop.permute.xlu0 %2148
      %2150 = vrot.lane.b32.xlu0 %v2051, 20
      %v2151 = vpop.permute.xlu0 %2150
      %2152 = vrot.lane.b32.xlu0 %v2055, 20
      %v2153 = vpop.permute.xlu0 %2152
      %2154 = vrot.lane.b32.xlu0 %v2058, 20
      %v2155 = vpop.permute.xlu0 %2154
      %2156 = vrot.lane.b32.xlu0 %v2062, 20
      %v2157 = vpop.permute.xlu0 %2156
      %2158 = vrot.lane.b32.xlu0 %v2065, 20
      %v2159 = vpop.permute.xlu0 %2158
      %2160 = vrot.lane.b32.xlu0 %v2069, 20
      %v2161 = vpop.permute.xlu0 %2160
      %2162 = vrot.lane.b32.xlu0 %v2072, 20
      %v2163 = vpop.permute.xlu0 %2162
      %2164 = vrot.lane.b32.xlu0 %v2076, 20
      %v2165 = vpop.permute.xlu0 %2164
      %2166 = vrot.lane.b32.xlu0 %v2079, 20
      %v2167 = vpop.permute.xlu0 %2166
      %2168 = vrot.lane.b32.xlu0 %v2083, 20
      %v2169 = vpop.permute.xlu0 %2168
      %2170 = vrot.lane.b32.xlu0 %v2086, 20
      %v2171 = vpop.permute.xlu0 %2170
      %2172 = vrot.lane.b32.xlu0 %v2090, 20
      %v2173 = vpop.permute.xlu0 %2172
      %2174 = vrot.lane.b32.xlu0 %v2093, 20
      %v2175 = vpop.permute.xlu0 %2174
      %2176 = vrot.lane.b32.xlu0 %v2097, 20
      %v2177 = vpop.permute.xlu0 %2176
      %2178 = vrot.lane.b32.xlu0 %v2100, 20
      %v2179 = vpop.permute.xlu0 %2178
      %2180 = vrot.lane.b32.xlu0 %v2104, 20
      %v2181 = vpop.permute.xlu0 %2180
      %2182 = vrot.lane.b32.xlu0 %v2107, 20
      %v2183 = vpop.permute.xlu0 %2182
      %2184 = vrot.lane.b32.xlu0 %v2111, 20
      %v2185 = vpop.permute.xlu0 %2184
      %2186 = vrot.lane.b32.xlu0 %v2114, 20
      %v2187 = vpop.permute.xlu0 %2186
      %2188 = vrot.lane.b32.xlu0 %v2118, 20
      %v2189 = vpop.permute.xlu0 %2188
      %2190 = vrot.lane.b32.xlu0 %v2121, 20
      %v2191 = vpop.permute.xlu0 %2190
      %2192 = vrot.lane.b32.xlu0 %v2125, 20
      %v2193 = vpop.permute.xlu0 %2192
      %2194 = vrot.lane.b32.xlu0 %v2128, 20
      %v2195 = vpop.permute.xlu0 %2194
      %2196 = vrot.lane.b32.xlu0 %v2132, 20
      %v2197 = vpop.permute.xlu0 %2196
      %2198 = vrot.lane.b32.xlu0 %v2135, 20
      %v2199 = vpop.permute.xlu0 %2198
      %vm2232 = vcmask 191648
      %2233 = vst.msk [vmem:[#allocation2] sm:$0xf] %vm2232, %v2137
      %2234 = vst.msk [vmem:[#allocation2 + $0x4] sm:$0xf] %vm2232, %v2139
      %2235 = vst.msk [vmem:[#allocation2 + $0x8] sm:$0xf] %vm2232, %v2141
      %2236 = vst.msk [vmem:[#allocation2 + $0xc] sm:$0xf] %vm2232, %v2143
      %2237 = vst.msk [vmem:[#allocation2 + $0x10] sm:$0xf] %vm2232, %v2145
      %2238 = vst.msk [vmem:[#allocation2 + $0x14] sm:$0xf] %vm2232, %v2147
      %2239 = vst.msk [vmem:[#allocation2 + $0x18] sm:$0xf] %vm2232, %v2149
      %2240 = vst.msk [vmem:[#allocation2 + $0x1c] sm:$0xf] %vm2232, %v2151
      %2241 = vst.msk [vmem:[#allocation2 + $0x20] sm:$0xf] %vm2232, %v2153
      %2242 = vst.msk [vmem:[#allocation2 + $0x24] sm:$0xf] %vm2232, %v2155
      %2243 = vst.msk [vmem:[#allocation2 + $0x28] sm:$0xf] %vm2232, %v2157
      %2244 = vst.msk [vmem:[#allocation2 + $0x2c] sm:$0xf] %vm2232, %v2159
      %2245 = vst.msk [vmem:[#allocation2 + $0x30] sm:$0xf] %vm2232, %v2161
      %2246 = vst.msk [vmem:[#allocation2 + $0x34] sm:$0xf] %vm2232, %v2163
      %2247 = vst.msk [vmem:[#allocation2 + $0x38] sm:$0xf] %vm2232, %v2165
      %2248 = vst.msk [vmem:[#allocation2 + $0x3c] sm:$0xf] %vm2232, %v2167
      %2249 = vst.msk [vmem:[#allocation2 + $0x40] sm:$0xf] %vm2232, %v2169
      %2250 = vst.msk [vmem:[#allocation2 + $0x44] sm:$0xf] %vm2232, %v2171
      %2251 = vst.msk [vmem:[#allocation2 + $0x48] sm:$0xf] %vm2232, %v2173
      %2252 = vst.msk [vmem:[#allocation2 + $0x4c] sm:$0xf] %vm2232, %v2175
      %2253 = vst.msk [vmem:[#allocation2 + $0x50] sm:$0xf] %vm2232, %v2177
      %2254 = vst.msk [vmem:[#allocation2 + $0x54] sm:$0xf] %vm2232, %v2179
      %2255 = vst.msk [vmem:[#allocation2 + $0x58] sm:$0xf] %vm2232, %v2181
      %2256 = vst.msk [vmem:[#allocation2 + $0x5c] sm:$0xf] %vm2232, %v2183
      %2257 = vst.msk [vmem:[#allocation2 + $0x60] sm:$0xf] %vm2232, %v2185
      %2258 = vst.msk [vmem:[#allocation2 + $0x64] sm:$0xf] %vm2232, %v2187
      %2259 = vst.msk [vmem:[#allocation2 + $0x68] sm:$0xf] %vm2232, %v2189
      %2260 = vst.msk [vmem:[#allocation2 + $0x6c] sm:$0xf] %vm2232, %v2191
      %2261 = vst.msk [vmem:[#allocation2 + $0x70] sm:$0xf] %vm2232, %v2193
      %2262 = vst.msk [vmem:[#allocation2 + $0x74] sm:$0xf] %vm2232, %v2195
      %2263 = vst.msk [vmem:[#allocation2 + $0x78] sm:$0xf] %vm2232, %v2197
      %2264 = vst.msk [vmem:[#allocation2 + $0x7c] sm:$0xf] %vm2232, %v2199
      %s2265 = sadd.s32 %s197, 2
      %s2266 = smul.u32 %s2265, 3
      %s2267 = smul.addr %s2266, 4
      %s2268 = scalar_lea.vmem %s184, %s2267
      %v2269 = vld [vmem:[%s2268] sm:$0xf]
      %v2270 = vld [vmem:[%s2268 + $0x4] sm:$0xf]
      %v2271 = vld [vmem:[%s2268 + $0xc] sm:$0xf]
      %v2272 = vld [vmem:[%s2268 + $0x10] sm:$0xf]
      %v2273 = vld [vmem:[%s2268 + $0x18] sm:$0xf]
      %v2274 = vld [vmem:[%s2268 + $0x1c] sm:$0xf]
      %v2275 = vld [vmem:[%s2268 + $0x24] sm:$0xf]
      %v2276 = vld [vmem:[%s2268 + $0x28] sm:$0xf]
      %v2277 = vld [vmem:[%s2268 + $0x30] sm:$0xf]
      %v2278 = vld [vmem:[%s2268 + $0x34] sm:$0xf]
      %v2279 = vld [vmem:[%s2268 + $0x3c] sm:$0xf]
      %v2280 = vld [vmem:[%s2268 + $0x40] sm:$0xf]
      %v2281 = vld [vmem:[%s2268 + $0x48] sm:$0xf]
      %v2282 = vld [vmem:[%s2268 + $0x4c] sm:$0xf]
      %v2283 = vld [vmem:[%s2268 + $0x54] sm:$0xf]
      %v2284 = vld [vmem:[%s2268 + $0x58] sm:$0xf]
      %v2285 = vld [vmem:[%s2268 + $0x60] sm:$0xf]
      %v2286 = vld [vmem:[%s2268 + $0x64] sm:$0xf]
      %v2287 = vld [vmem:[%s2268 + $0x6c] sm:$0xf]
      %v2288 = vld [vmem:[%s2268 + $0x70] sm:$0xf]
      %v2289 = vld [vmem:[%s2268 + $0x78] sm:$0xf]
      %v2290 = vld [vmem:[%s2268 + $0x7c] sm:$0xf]
      %v2291 = vld [vmem:[%s2268 + $0x84] sm:$0xf]
      %v2292 = vld [vmem:[%s2268 + $0x88] sm:$0xf]
      %v2293 = vld [vmem:[%s2268 + $0x90] sm:$0xf]
      %v2294 = vld [vmem:[%s2268 + $0x94] sm:$0xf]
      %v2295 = vld [vmem:[%s2268 + $0x9c] sm:$0xf]
      %v2296 = vld [vmem:[%s2268 + $0xa0] sm:$0xf]
      %v2297 = vld [vmem:[%s2268 + $0xa8] sm:$0xf]
      %v2298 = vld [vmem:[%s2268 + $0xac] sm:$0xf]
      %v2299 = vld [vmem:[%s2268 + $0xb4] sm:$0xf]
      %v2300 = vld [vmem:[%s2268 + $0xb8] sm:$0xf]
      %2333 = vrot.lane.b32.xlu0 %v2269, 24
      %v2334 = vpop.permute.xlu0 %2333
      %2335 = vrot.lane.b32.xlu0 %v2270, 24
      %v2336 = vpop.permute.xlu0 %2335
      %2337 = vrot.lane.b32.xlu0 %v2271, 24
      %v2338 = vpop.permute.xlu0 %2337
      %2339 = vrot.lane.b32.xlu0 %v2272, 24
      %v2340 = vpop.permute.xlu0 %2339
      %2341 = vrot.lane.b32.xlu0 %v2273, 24
      %v2342 = vpop.permute.xlu0 %2341
      %2343 = vrot.lane.b32.xlu0 %v2274, 24
      %v2344 = vpop.permute.xlu0 %2343
      %2345 = vrot.lane.b32.xlu0 %v2275, 24
      %v2346 = vpop.permute.xlu0 %2345
      %2347 = vrot.lane.b32.xlu0 %v2276, 24
      %v2348 = vpop.permute.xlu0 %2347
      %2349 = vrot.lane.b32.xlu0 %v2277, 24
      %v2350 = vpop.permute.xlu0 %2349
      %2351 = vrot.lane.b32.xlu0 %v2278, 24
      %v2352 = vpop.permute.xlu0 %2351
      %2353 = vrot.lane.b32.xlu0 %v2279, 24
      %v2354 = vpop.permute.xlu0 %2353
      %2355 = vrot.lane.b32.xlu0 %v2280, 24
      %v2356 = vpop.permute.xlu0 %2355
      %2357 = vrot.lane.b32.xlu0 %v2281, 24
      %v2358 = vpop.permute.xlu0 %2357
      %2359 = vrot.lane.b32.xlu0 %v2282, 24
      %v2360 = vpop.permute.xlu0 %2359
      %2361 = vrot.lane.b32.xlu0 %v2283, 24
      %v2362 = vpop.permute.xlu0 %2361
      %2363 = vrot.lane.b32.xlu0 %v2284, 24
      %v2364 = vpop.permute.xlu0 %2363
      %2365 = vrot.lane.b32.xlu0 %v2285, 24
      %v2366 = vpop.permute.xlu0 %2365
      %2367 = vrot.lane.b32.xlu0 %v2286, 24
      %v2368 = vpop.permute.xlu0 %2367
      %2369 = vrot.lane.b32.xlu0 %v2287, 24
      %v2370 = vpop.permute.xlu0 %2369
      %2371 = vrot.lane.b32.xlu0 %v2288, 24
      %v2372 = vpop.permute.xlu0 %2371
      %2373 = vrot.lane.b32.xlu0 %v2289, 24
      %v2374 = vpop.permute.xlu0 %2373
      %2375 = vrot.lane.b32.xlu0 %v2290, 24
      %v2376 = vpop.permute.xlu0 %2375
      %2377 = vrot.lane.b32.xlu0 %v2291, 24
      %v2378 = vpop.permute.xlu0 %2377
      %2379 = vrot.lane.b32.xlu0 %v2292, 24
      %v2380 = vpop.permute.xlu0 %2379
      %2381 = vrot.lane.b32.xlu0 %v2293, 24
      %v2382 = vpop.permute.xlu0 %2381
      %2383 = vrot.lane.b32.xlu0 %v2294, 24
      %v2384 = vpop.permute.xlu0 %2383
      %2385 = vrot.lane.b32.xlu0 %v2295, 24
      %v2386 = vpop.permute.xlu0 %2385
      %2387 = vrot.lane.b32.xlu0 %v2296, 24
      %v2388 = vpop.permute.xlu0 %2387
      %2389 = vrot.lane.b32.xlu0 %v2297, 24
      %v2390 = vpop.permute.xlu0 %2389
      %2391 = vrot.lane.b32.xlu0 %v2298, 24
      %v2392 = vpop.permute.xlu0 %2391
      %2393 = vrot.lane.b32.xlu0 %v2299, 24
      %v2394 = vpop.permute.xlu0 %2393
      %2395 = vrot.lane.b32.xlu0 %v2300, 24
      %v2396 = vpop.permute.xlu0 %2395
      %vm2429 = vcmask 224448
      %2430 = vst.msk [vmem:[#allocation2] sm:$0xf] %vm2429, %v2334
      %2431 = vst.msk [vmem:[#allocation2 + $0x4] sm:$0xf] %vm2429, %v2336
      %2432 = vst.msk [vmem:[#allocation2 + $0x8] sm:$0xf] %vm2429, %v2338
      %2433 = vst.msk [vmem:[#allocation2 + $0xc] sm:$0xf] %vm2429, %v2340
      %2434 = vst.msk [vmem:[#allocation2 + $0x10] sm:$0xf] %vm2429, %v2342
      %2435 = vst.msk [vmem:[#allocation2 + $0x14] sm:$0xf] %vm2429, %v2344
      %2436 = vst.msk [vmem:[#allocation2 + $0x18] sm:$0xf] %vm2429, %v2346
      %2437 = vst.msk [vmem:[#allocation2 + $0x1c] sm:$0xf] %vm2429, %v2348
      %2438 = vst.msk [vmem:[#allocation2 + $0x20] sm:$0xf] %vm2429, %v2350
      %2439 = vst.msk [vmem:[#allocation2 + $0x24] sm:$0xf] %vm2429, %v2352
      %2440 = vst.msk [vmem:[#allocation2 + $0x28] sm:$0xf] %vm2429, %v2354
      %2441 = vst.msk [vmem:[#allocation2 + $0x2c] sm:$0xf] %vm2429, %v2356
      %2442 = vst.msk [vmem:[#allocation2 + $0x30] sm:$0xf] %vm2429, %v2358
      %2443 = vst.msk [vmem:[#allocation2 + $0x34] sm:$0xf] %vm2429, %v2360
      %2444 = vst.msk [vmem:[#allocation2 + $0x38] sm:$0xf] %vm2429, %v2362
      %2445 = vst.msk [vmem:[#allocation2 + $0x3c] sm:$0xf] %vm2429, %v2364
      %2446 = vst.msk [vmem:[#allocation2 + $0x40] sm:$0xf] %vm2429, %v2366
      %2447 = vst.msk [vmem:[#allocation2 + $0x44] sm:$0xf] %vm2429, %v2368
      %2448 = vst.msk [vmem:[#allocation2 + $0x48] sm:$0xf] %vm2429, %v2370
      %2449 = vst.msk [vmem:[#allocation2 + $0x4c] sm:$0xf] %vm2429, %v2372
      %2450 = vst.msk [vmem:[#allocation2 + $0x50] sm:$0xf] %vm2429, %v2374
      %2451 = vst.msk [vmem:[#allocation2 + $0x54] sm:$0xf] %vm2429, %v2376
      %2452 = vst.msk [vmem:[#allocation2 + $0x58] sm:$0xf] %vm2429, %v2378
      %2453 = vst.msk [vmem:[#allocation2 + $0x5c] sm:$0xf] %vm2429, %v2380
      %2454 = vst.msk [vmem:[#allocation2 + $0x60] sm:$0xf] %vm2429, %v2382
      %2455 = vst.msk [vmem:[#allocation2 + $0x64] sm:$0xf] %vm2429, %v2384
      %2456 = vst.msk [vmem:[#allocation2 + $0x68] sm:$0xf] %vm2429, %v2386
      %2457 = vst.msk [vmem:[#allocation2 + $0x6c] sm:$0xf] %vm2429, %v2388
      %2458 = vst.msk [vmem:[#allocation2 + $0x70] sm:$0xf] %vm2429, %v2390
      %2459 = vst.msk [vmem:[#allocation2 + $0x74] sm:$0xf] %vm2429, %v2392
      %2460 = vst.msk [vmem:[#allocation2 + $0x78] sm:$0xf] %vm2429, %v2394
      %2461 = vst.msk [vmem:[#allocation2 + $0x7c] sm:$0xf] %vm2429, %v2396
      %v2462 = vld [vmem:[%s2268] sm:$0xf]
      %v2463 = vld [vmem:[%s2268 + $0x4] sm:$0xf]
      %v2464 = vld [vmem:[%s2268 + $0x8] sm:$0x1]
      %v2465 = vld [vmem:[%s2268 + $0xc] sm:$0xf]
      %v2466 = vld [vmem:[%s2268 + $0x10] sm:$0xf]
      %v2467 = vld [vmem:[%s2268 + $0x14] sm:$0x1]
      %v2468 = vld [vmem:[%s2268 + $0x18] sm:$0xf]
      %v2469 = vld [vmem:[%s2268 + $0x1c] sm:$0xf]
      %v2470 = vld [vmem:[%s2268 + $0x20] sm:$0x1]
      %v2471 = vld [vmem:[%s2268 + $0x24] sm:$0xf]
      %v2472 = vld [vmem:[%s2268 + $0x28] sm:$0xf]
      %v2473 = vld [vmem:[%s2268 + $0x2c] sm:$0x1]
      %v2474 = vld [vmem:[%s2268 + $0x30] sm:$0xf]
      %v2475 = vld [vmem:[%s2268 + $0x34] sm:$0xf]
      %v2476 = vld [vmem:[%s2268 + $0x38] sm:$0x1]
      %v2477 = vld [vmem:[%s2268 + $0x3c] sm:$0xf]
      %v2478 = vld [vmem:[%s2268 + $0x40] sm:$0xf]
      %v2479 = vld [vmem:[%s2268 + $0x44] sm:$0x1]
      %v2480 = vld [vmem:[%s2268 + $0x48] sm:$0xf]
      %v2481 = vld [vmem:[%s2268 + $0x4c] sm:$0xf]
      %v2482 = vld [vmem:[%s2268 + $0x50] sm:$0x1]
      %v2483 = vld [vmem:[%s2268 + $0x54] sm:$0xf]
      %v2484 = vld [vmem:[%s2268 + $0x58] sm:$0xf]
      %v2485 = vld [vmem:[%s2268 + $0x5c] sm:$0x1]
      %v2486 = vld [vmem:[%s2268 + $0x60] sm:$0xf]
      %v2487 = vld [vmem:[%s2268 + $0x64] sm:$0xf]
      %v2488 = vld [vmem:[%s2268 + $0x68] sm:$0x1]
      %v2489 = vld [vmem:[%s2268 + $0x6c] sm:$0xf]
      %v2490 = vld [vmem:[%s2268 + $0x70] sm:$0xf]
      %v2491 = vld [vmem:[%s2268 + $0x74] sm:$0x1]
      %v2492 = vld [vmem:[%s2268 + $0x78] sm:$0xf]
      %v2493 = vld [vmem:[%s2268 + $0x7c] sm:$0xf]
      %v2494 = vld [vmem:[%s2268 + $0x80] sm:$0x1]
      %v2495 = vld [vmem:[%s2268 + $0x84] sm:$0xf]
      %v2496 = vld [vmem:[%s2268 + $0x88] sm:$0xf]
      %v2497 = vld [vmem:[%s2268 + $0x8c] sm:$0x1]
      %v2498 = vld [vmem:[%s2268 + $0x90] sm:$0xf]
      %v2499 = vld [vmem:[%s2268 + $0x94] sm:$0xf]
      %v2500 = vld [vmem:[%s2268 + $0x98] sm:$0x1]
      %v2501 = vld [vmem:[%s2268 + $0x9c] sm:$0xf]
      %v2502 = vld [vmem:[%s2268 + $0xa0] sm:$0xf]
      %v2503 = vld [vmem:[%s2268 + $0xa4] sm:$0x1]
      %v2504 = vld [vmem:[%s2268 + $0xa8] sm:$0xf]
      %v2505 = vld [vmem:[%s2268 + $0xac] sm:$0xf]
      %v2506 = vld [vmem:[%s2268 + $0xb0] sm:$0x1]
      %v2507 = vld [vmem:[%s2268 + $0xb4] sm:$0xf]
      %v2508 = vld [vmem:[%s2268 + $0xb8] sm:$0xf]
      %v2509 = vld [vmem:[%s2268 + $0xbc] sm:$0x1]
      %v2511 = vshrl.u32 %v2462, 16
      %v2513 = vrot.slane %v2511, 4
      %v2514 = vshll.u32 %v2462, 16
      %v2516 = vrot.slane %v2514, 5
      %v2517 = vor.u32 %v2513, %v2516
      %v2518 = vrot.slane %v2517, 4
      %v2520 = vshll.u32 %v2463, 16
      %v2522 = vrot.slane %v2520, 5
      %v2523 = vsel %vm316, %v2518, %v2522
      %v2524 = vshrl.u32 %v2463, 16
      %v2526 = vrot.slane %v2524, 4
      %v2527 = vor.u32 %v2526, %v2522
      %v2528 = vrot.slane %v2527, 4
      %v2530 = vshll.u32 %v2464, 16
      %v2532 = vrot.slane %v2530, 5
      %v2533 = vsel %vm316, %v2528, %v2532
      %v2535 = vshrl.u32 %v2465, 16
      %v2537 = vrot.slane %v2535, 4
      %v2538 = vshll.u32 %v2465, 16
      %v2540 = vrot.slane %v2538, 5
      %v2541 = vor.u32 %v2537, %v2540
      %v2542 = vrot.slane %v2541, 4
      %v2544 = vshll.u32 %v2466, 16
      %v2546 = vrot.slane %v2544, 5
      %v2547 = vsel %vm316, %v2542, %v2546
      %v2548 = vshrl.u32 %v2466, 16
      %v2550 = vrot.slane %v2548, 4
      %v2551 = vor.u32 %v2550, %v2546
      %v2552 = vrot.slane %v2551, 4
      %v2554 = vshll.u32 %v2467, 16
      %v2556 = vrot.slane %v2554, 5
      %v2557 = vsel %vm316, %v2552, %v2556
      %v2559 = vshrl.u32 %v2468, 16
      %v2561 = vrot.slane %v2559, 4
      %v2562 = vshll.u32 %v2468, 16
      %v2564 = vrot.slane %v2562, 5
      %v2565 = vor.u32 %v2561, %v2564
      %v2566 = vrot.slane %v2565, 4
      %v2568 = vshll.u32 %v2469, 16
      %v2570 = vrot.slane %v2568, 5
      %v2571 = vsel %vm316, %v2566, %v2570
      %v2572 = vshrl.u32 %v2469, 16
      %v2574 = vrot.slane %v2572, 4
      %v2575 = vor.u32 %v2574, %v2570
      %v2576 = vrot.slane %v2575, 4
      %v2578 = vshll.u32 %v2470, 16
      %v2580 = vrot.slane %v2578, 5
      %v2581 = vsel %vm316, %v2576, %v2580
      %v2583 = vshrl.u32 %v2471, 16
      %v2585 = vrot.slane %v2583, 4
      %v2586 = vshll.u32 %v2471, 16
      %v2588 = vrot.slane %v2586, 5
      %v2589 = vor.u32 %v2585, %v2588
      %v2590 = vrot.slane %v2589, 4
      %v2592 = vshll.u32 %v2472, 16
      %v2594 = vrot.slane %v2592, 5
      %v2595 = vsel %vm316, %v2590, %v2594
      %v2596 = vshrl.u32 %v2472, 16
      %v2598 = vrot.slane %v2596, 4
      %v2599 = vor.u32 %v2598, %v2594
      %v2600 = vrot.slane %v2599, 4
      %v2602 = vshll.u32 %v2473, 16
      %v2604 = vrot.slane %v2602, 5
      %v2605 = vsel %vm316, %v2600, %v2604
      %v2607 = vshrl.u32 %v2474, 16
      %v2609 = vrot.slane %v2607, 4
      %v2610 = vshll.u32 %v2474, 16
      %v2612 = vrot.slane %v2610, 5
      %v2613 = vor.u32 %v2609, %v2612
      %v2614 = vrot.slane %v2613, 4
      %v2616 = vshll.u32 %v2475, 16
      %v2618 = vrot.slane %v2616, 5
      %v2619 = vsel %vm316, %v2614, %v2618
      %v2620 = vshrl.u32 %v2475, 16
      %v2622 = vrot.slane %v2620, 4
      %v2623 = vor.u32 %v2622, %v2618
      %v2624 = vrot.slane %v2623, 4
      %v2626 = vshll.u32 %v2476, 16
      %v2628 = vrot.slane %v2626, 5
      %v2629 = vsel %vm316, %v2624, %v2628
      %v2631 = vshrl.u32 %v2477, 16
      %v2633 = vrot.slane %v2631, 4
      %v2634 = vshll.u32 %v2477, 16
      %v2636 = vrot.slane %v2634, 5
      %v2637 = vor.u32 %v2633, %v2636
      %v2638 = vrot.slane %v2637, 4
      %v2640 = vshll.u32 %v2478, 16
      %v2642 = vrot.slane %v2640, 5
      %v2643 = vsel %vm316, %v2638, %v2642
      %v2644 = vshrl.u32 %v2478, 16
      %v2646 = vrot.slane %v2644, 4
      %v2647 = vor.u32 %v2646, %v2642
      %v2648 = vrot.slane %v2647, 4
      %v2650 = vshll.u32 %v2479, 16
      %v2652 = vrot.slane %v2650, 5
      %v2653 = vsel %vm316, %v2648, %v2652
      %v2655 = vshrl.u32 %v2480, 16
      %v2657 = vrot.slane %v2655, 4
      %v2658 = vshll.u32 %v2480, 16
      %v2660 = vrot.slane %v2658, 5
      %v2661 = vor.u32 %v2657, %v2660
      %v2662 = vrot.slane %v2661, 4
      %v2664 = vshll.u32 %v2481, 16
      %v2666 = vrot.slane %v2664, 5
      %v2667 = vsel %vm316, %v2662, %v2666
      %v2668 = vshrl.u32 %v2481, 16
      %v2670 = vrot.slane %v2668, 4
      %v2671 = vor.u32 %v2670, %v2666
      %v2672 = vrot.slane %v2671, 4
      %v2674 = vshll.u32 %v2482, 16
      %v2676 = vrot.slane %v2674, 5
      %v2677 = vsel %vm316, %v2672, %v2676
      %v2679 = vshrl.u32 %v2483, 16
      %v2681 = vrot.slane %v2679, 4
      %v2682 = vshll.u32 %v2483, 16
      %v2684 = vrot.slane %v2682, 5
      %v2685 = vor.u32 %v2681, %v2684
      %v2686 = vrot.slane %v2685, 4
      %v2688 = vshll.u32 %v2484, 16
      %v2690 = vrot.slane %v2688, 5
      %v2691 = vsel %vm316, %v2686, %v2690
      %v2692 = vshrl.u32 %v2484, 16
      %v2694 = vrot.slane %v2692, 4
      %v2695 = vor.u32 %v2694, %v2690
      %v2696 = vrot.slane %v2695, 4
      %v2698 = vshll.u32 %v2485, 16
      %v2700 = vrot.slane %v2698, 5
      %v2701 = vsel %vm316, %v2696, %v2700
      %v2703 = vshrl.u32 %v2486, 16
      %v2705 = vrot.slane %v2703, 4
      %v2706 = vshll.u32 %v2486, 16
      %v2708 = vrot.slane %v2706, 5
      %v2709 = vor.u32 %v2705, %v2708
      %v2710 = vrot.slane %v2709, 4
      %v2712 = vshll.u32 %v2487, 16
      %v2714 = vrot.slane %v2712, 5
      %v2715 = vsel %vm316, %v2710, %v2714
      %v2716 = vshrl.u32 %v2487, 16
      %v2718 = vrot.slane %v2716, 4
      %v2719 = vor.u32 %v2718, %v2714
      %v2720 = vrot.slane %v2719, 4
      %v2722 = vshll.u32 %v2488, 16
      %v2724 = vrot.slane %v2722, 5
      %v2725 = vsel %vm316, %v2720, %v2724
      %v2727 = vshrl.u32 %v2489, 16
      %v2729 = vrot.slane %v2727, 4
      %v2730 = vshll.u32 %v2489, 16
      %v2732 = vrot.slane %v2730, 5
      %v2733 = vor.u32 %v2729, %v2732
      %v2734 = vrot.slane %v2733, 4
      %v2736 = vshll.u32 %v2490, 16
      %v2738 = vrot.slane %v2736, 5
      %v2739 = vsel %vm316, %v2734, %v2738
      %v2740 = vshrl.u32 %v2490, 16
      %v2742 = vrot.slane %v2740, 4
      %v2743 = vor.u32 %v2742, %v2738
      %v2744 = vrot.slane %v2743, 4
      %v2746 = vshll.u32 %v2491, 16
      %v2748 = vrot.slane %v2746, 5
      %v2749 = vsel %vm316, %v2744, %v2748
      %v2751 = vshrl.u32 %v2492, 16
      %v2753 = vrot.slane %v2751, 4
      %v2754 = vshll.u32 %v2492, 16
      %v2756 = vrot.slane %v2754, 5
      %v2757 = vor.u32 %v2753, %v2756
      %v2758 = vrot.slane %v2757, 4
      %v2760 = vshll.u32 %v2493, 16
      %v2762 = vrot.slane %v2760, 5
      %v2763 = vsel %vm316, %v2758, %v2762
      %v2764 = vshrl.u32 %v2493, 16
      %v2766 = vrot.slane %v2764, 4
      %v2767 = vor.u32 %v2766, %v2762
      %v2768 = vrot.slane %v2767, 4
      %v2770 = vshll.u32 %v2494, 16
      %v2772 = vrot.slane %v2770, 5
      %v2773 = vsel %vm316, %v2768, %v2772
      %v2775 = vshrl.u32 %v2495, 16
      %v2777 = vrot.slane %v2775, 4
      %v2778 = vshll.u32 %v2495, 16
      %v2780 = vrot.slane %v2778, 5
      %v2781 = vor.u32 %v2777, %v2780
      %v2782 = vrot.slane %v2781, 4
      %v2784 = vshll.u32 %v2496, 16
      %v2786 = vrot.slane %v2784, 5
      %v2787 = vsel %vm316, %v2782, %v2786
      %v2788 = vshrl.u32 %v2496, 16
      %v2790 = vrot.slane %v2788, 4
      %v2791 = vor.u32 %v2790, %v2786
      %v2792 = vrot.slane %v2791, 4
      %v2794 = vshll.u32 %v2497, 16
      %v2796 = vrot.slane %v2794, 5
      %v2797 = vsel %vm316, %v2792, %v2796
      %v2799 = vshrl.u32 %v2498, 16
      %v2801 = vrot.slane %v2799, 4
      %v2802 = vshll.u32 %v2498, 16
      %v2804 = vrot.slane %v2802, 5
      %v2805 = vor.u32 %v2801, %v2804
      %v2806 = vrot.slane %v2805, 4
      %v2808 = vshll.u32 %v2499, 16
      %v2810 = vrot.slane %v2808, 5
      %v2811 = vsel %vm316, %v2806, %v2810
      %v2812 = vshrl.u32 %v2499, 16
      %v2814 = vrot.slane %v2812, 4
      %v2815 = vor.u32 %v2814, %v2810
      %v2816 = vrot.slane %v2815, 4
      %v2818 = vshll.u32 %v2500, 16
      %v2820 = vrot.slane %v2818, 5
      %v2821 = vsel %vm316, %v2816, %v2820
      %v2823 = vshrl.u32 %v2501, 16
      %v2825 = vrot.slane %v2823, 4
      %v2826 = vshll.u32 %v2501, 16
      %v2828 = vrot.slane %v2826, 5
      %v2829 = vor.u32 %v2825, %v2828
      %v2830 = vrot.slane %v2829, 4
      %v2832 = vshll.u32 %v2502, 16
      %v2834 = vrot.slane %v2832, 5
      %v2835 = vsel %vm316, %v2830, %v2834
      %v2836 = vshrl.u32 %v2502, 16
      %v2838 = vrot.slane %v2836, 4
      %v2839 = vor.u32 %v2838, %v2834
      %v2840 = vrot.slane %v2839, 4
      %v2842 = vshll.u32 %v2503, 16
      %v2844 = vrot.slane %v2842, 5
      %v2845 = vsel %vm316, %v2840, %v2844
      %v2847 = vshrl.u32 %v2504, 16
      %v2849 = vrot.slane %v2847, 4
      %v2850 = vshll.u32 %v2504, 16
      %v2852 = vrot.slane %v2850, 5
      %v2853 = vor.u32 %v2849, %v2852
      %v2854 = vrot.slane %v2853, 4
      %v2856 = vshll.u32 %v2505, 16
      %v2858 = vrot.slane %v2856, 5
      %v2859 = vsel %vm316, %v2854, %v2858
      %v2860 = vshrl.u32 %v2505, 16
      %v2862 = vrot.slane %v2860, 4
      %v2863 = vor.u32 %v2862, %v2858
      %v2864 = vrot.slane %v2863, 4
      %v2866 = vshll.u32 %v2506, 16
      %v2868 = vrot.slane %v2866, 5
      %v2869 = vsel %vm316, %v2864, %v2868
      %v2871 = vshrl.u32 %v2507, 16
      %v2873 = vrot.slane %v2871, 4
      %v2874 = vshll.u32 %v2507, 16
      %v2876 = vrot.slane %v2874, 5
      %v2877 = vor.u32 %v2873, %v2876
      %v2878 = vrot.slane %v2877, 4
      %v2880 = vshll.u32 %v2508, 16
      %v2882 = vrot.slane %v2880, 5
      %v2883 = vsel %vm316, %v2878, %v2882
      %v2884 = vshrl.u32 %v2508, 16
      %v2886 = vrot.slane %v2884, 4
      %v2887 = vor.u32 %v2886, %v2882
      %v2888 = vrot.slane %v2887, 4
      %v2890 = vshll.u32 %v2509, 16
      %v2892 = vrot.slane %v2890, 5
      %v2893 = vsel %vm316, %v2888, %v2892
      %2894 = vrot.lane.b32.xlu0 %v2523, 28
      %v2895 = vpop.permute.xlu0 %2894
      %2896 = vrot.lane.b32.xlu0 %v2533, 28
      %v2897 = vpop.permute.xlu0 %2896
      %2898 = vrot.lane.b32.xlu0 %v2547, 28
      %v2899 = vpop.permute.xlu0 %2898
      %2900 = vrot.lane.b32.xlu0 %v2557, 28
      %v2901 = vpop.permute.xlu0 %2900
      %2902 = vrot.lane.b32.xlu0 %v2571, 28
      %v2903 = vpop.permute.xlu0 %2902
      %2904 = vrot.lane.b32.xlu0 %v2581, 28
      %v2905 = vpop.permute.xlu0 %2904
      %2906 = vrot.lane.b32.xlu0 %v2595, 28
      %v2907 = vpop.permute.xlu0 %2906
      %2908 = vrot.lane.b32.xlu0 %v2605, 28
      %v2909 = vpop.permute.xlu0 %2908
      %2910 = vrot.lane.b32.xlu0 %v2619, 28
      %v2911 = vpop.permute.xlu0 %2910
      %2912 = vrot.lane.b32.xlu0 %v2629, 28
      %v2913 = vpop.permute.xlu0 %2912
      %2914 = vrot.lane.b32.xlu0 %v2643, 28
      %v2915 = vpop.permute.xlu0 %2914
      %2916 = vrot.lane.b32.xlu0 %v2653, 28
      %v2917 = vpop.permute.xlu0 %2916
      %2918 = vrot.lane.b32.xlu0 %v2667, 28
      %v2919 = vpop.permute.xlu0 %2918
      %2920 = vrot.lane.b32.xlu0 %v2677, 28
      %v2921 = vpop.permute.xlu0 %2920
      %2922 = vrot.lane.b32.xlu0 %v2691, 28
      %v2923 = vpop.permute.xlu0 %2922
      %2924 = vrot.lane.b32.xlu0 %v2701, 28
      %v2925 = vpop.permute.xlu0 %2924
      %2926 = vrot.lane.b32.xlu0 %v2715, 28
      %v2927 = vpop.permute.xlu0 %2926
      %2928 = vrot.lane.b32.xlu0 %v2725, 28
      %v2929 = vpop.permute.xlu0 %2928
      %2930 = vrot.lane.b32.xlu0 %v2739, 28
      %v2931 = vpop.permute.xlu0 %2930
      %2932 = vrot.lane.b32.xlu0 %v2749, 28
      %v2933 = vpop.permute.xlu0 %2932
      %2934 = vrot.lane.b32.xlu0 %v2763, 28
      %v2935 = vpop.permute.xlu0 %2934
      %2936 = vrot.lane.b32.xlu0 %v2773, 28
      %v2937 = vpop.permute.xlu0 %2936
      %2938 = vrot.lane.b32.xlu0 %v2787, 28
      %v2939 = vpop.permute.xlu0 %2938
      %2940 = vrot.lane.b32.xlu0 %v2797, 28
      %v2941 = vpop.permute.xlu0 %2940
      %2942 = vrot.lane.b32.xlu0 %v2811, 28
      %v2943 = vpop.permute.xlu0 %2942
      %2944 = vrot.lane.b32.xlu0 %v2821, 28
      %v2945 = vpop.permute.xlu0 %2944
      %2946 = vrot.lane.b32.xlu0 %v2835, 28
      %v2947 = vpop.permute.xlu0 %2946
      %2948 = vrot.lane.b32.xlu0 %v2845, 28
      %v2949 = vpop.permute.xlu0 %2948
      %2950 = vrot.lane.b32.xlu0 %v2859, 28
      %v2951 = vpop.permute.xlu0 %2950
      %2952 = vrot.lane.b32.xlu0 %v2869, 28
      %v2953 = vpop.permute.xlu0 %2952
      %2954 = vrot.lane.b32.xlu0 %v2883, 28
      %v2955 = vpop.permute.xlu0 %2954
      %2956 = vrot.lane.b32.xlu0 %v2893, 28
      %v2957 = vpop.permute.xlu0 %2956
      %vm2990 = vcmask 257248
      %2991 = vst.msk [vmem:[#allocation2] sm:$0xf] %vm2990, %v2895
      %2992 = vst.msk [vmem:[#allocation2 + $0x4] sm:$0xf] %vm2990, %v2897
      %2993 = vst.msk [vmem:[#allocation2 + $0x8] sm:$0xf] %vm2990, %v2899
      %2994 = vst.msk [vmem:[#allocation2 + $0xc] sm:$0xf] %vm2990, %v2901
      %2995 = vst.msk [vmem:[#allocation2 + $0x10] sm:$0xf] %vm2990, %v2903
      %2996 = vst.msk [vmem:[#allocation2 + $0x14] sm:$0xf] %vm2990, %v2905
      %2997 = vst.msk [vmem:[#allocation2 + $0x18] sm:$0xf] %vm2990, %v2907
      %2998 = vst.msk [vmem:[#allocation2 + $0x1c] sm:$0xf] %vm2990, %v2909
      %2999 = vst.msk [vmem:[#allocation2 + $0x20] sm:$0xf] %vm2990, %v2911
      %3000 = vst.msk [vmem:[#allocation2 + $0x24] sm:$0xf] %vm2990, %v2913
      %3001 = vst.msk [vmem:[#allocation2 + $0x28] sm:$0xf] %vm2990, %v2915
      %3002 = vst.msk [vmem:[#allocation2 + $0x2c] sm:$0xf] %vm2990, %v2917
      %3003 = vst.msk [vmem:[#allocation2 + $0x30] sm:$0xf] %vm2990, %v2919
      %3004 = vst.msk [vmem:[#allocation2 + $0x34] sm:$0xf] %vm2990, %v2921
      %3005 = vst.msk [vmem:[#allocation2 + $0x38] sm:$0xf] %vm2990, %v2923
      %3006 = vst.msk [vmem:[#allocation2 + $0x3c] sm:$0xf] %vm2990, %v2925
      %3007 = vst.msk [vmem:[#allocation2 + $0x40] sm:$0xf] %vm2990, %v2927
      %3008 = vst.msk [vmem:[#allocation2 + $0x44] sm:$0xf] %vm2990, %v2929
      %3009 = vst.msk [vmem:[#allocation2 + $0x48] sm:$0xf] %vm2990, %v2931
      %3010 = vst.msk [vmem:[#allocation2 + $0x4c] sm:$0xf] %vm2990, %v2933
      %3011 = vst.msk [vmem:[#allocation2 + $0x50] sm:$0xf] %vm2990, %v2935
      %3012 = vst.msk [vmem:[#allocation2 + $0x54] sm:$0xf] %vm2990, %v2937
      %3013 = vst.msk [vmem:[#allocation2 + $0x58] sm:$0xf] %vm2990, %v2939
      %3014 = vst.msk [vmem:[#allocation2 + $0x5c] sm:$0xf] %vm2990, %v2941
      %3015 = vst.msk [vmem:[#allocation2 + $0x60] sm:$0xf] %vm2990, %v2943
      %3016 = vst.msk [vmem:[#allocation2 + $0x64] sm:$0xf] %vm2990, %v2945
      %3017 = vst.msk [vmem:[#allocation2 + $0x68] sm:$0xf] %vm2990, %v2947
      %3018 = vst.msk [vmem:[#allocation2 + $0x6c] sm:$0xf] %vm2990, %v2949
      %3019 = vst.msk [vmem:[#allocation2 + $0x70] sm:$0xf] %vm2990, %v2951
      %3020 = vst.msk [vmem:[#allocation2 + $0x74] sm:$0xf] %vm2990, %v2953
      %3021 = vst.msk [vmem:[#allocation2 + $0x78] sm:$0xf] %vm2990, %v2955
      %3022 = vst.msk [vmem:[#allocation2 + $0x7c] sm:$0xf] %vm2990, %v2957
      %v3023 = vld [vmem:[%s2268] sm:$0xe]
      %v3024 = vld [vmem:[%s2268 + $0x4] sm:$0xf]
      %v3025 = vld [vmem:[%s2268 + $0x8] sm:$0x1]
      %v3026 = vld [vmem:[%s2268 + $0xc] sm:$0xe]
      %v3027 = vld [vmem:[%s2268 + $0x10] sm:$0xf]
      %v3028 = vld [vmem:[%s2268 + $0x14] sm:$0x1]
      %v3029 = vld [vmem:[%s2268 + $0x18] sm:$0xe]
      %v3030 = vld [vmem:[%s2268 + $0x1c] sm:$0xf]
      %v3031 = vld [vmem:[%s2268 + $0x20] sm:$0x1]
      %v3032 = vld [vmem:[%s2268 + $0x24] sm:$0xe]
      %v3033 = vld [vmem:[%s2268 + $0x28] sm:$0xf]
      %v3034 = vld [vmem:[%s2268 + $0x2c] sm:$0x1]
      %v3035 = vld [vmem:[%s2268 + $0x30] sm:$0xe]
      %v3036 = vld [vmem:[%s2268 + $0x34] sm:$0xf]
      %v3037 = vld [vmem:[%s2268 + $0x38] sm:$0x1]
      %v3038 = vld [vmem:[%s2268 + $0x3c] sm:$0xe]
      %v3039 = vld [vmem:[%s2268 + $0x40] sm:$0xf]
      %v3040 = vld [vmem:[%s2268 + $0x44] sm:$0x1]
      %v3041 = vld [vmem:[%s2268 + $0x48] sm:$0xe]
      %v3042 = vld [vmem:[%s2268 + $0x4c] sm:$0xf]
      %v3043 = vld [vmem:[%s2268 + $0x50] sm:$0x1]
      %v3044 = vld [vmem:[%s2268 + $0x54] sm:$0xe]
      %v3045 = vld [vmem:[%s2268 + $0x58] sm:$0xf]
      %v3046 = vld [vmem:[%s2268 + $0x5c] sm:$0x1]
      %v3047 = vld [vmem:[%s2268 + $0x60] sm:$0xe]
      %v3048 = vld [vmem:[%s2268 + $0x64] sm:$0xf]
      %v3049 = vld [vmem:[%s2268 + $0x68] sm:$0x1]
      %v3050 = vld [vmem:[%s2268 + $0x6c] sm:$0xe]
      %v3051 = vld [vmem:[%s2268 + $0x70] sm:$0xf]
      %v3052 = vld [vmem:[%s2268 + $0x74] sm:$0x1]
      %v3053 = vld [vmem:[%s2268 + $0x78] sm:$0xe]
      %v3054 = vld [vmem:[%s2268 + $0x7c] sm:$0xf]
      %v3055 = vld [vmem:[%s2268 + $0x80] sm:$0x1]
      %v3056 = vld [vmem:[%s2268 + $0x84] sm:$0xe]
      %v3057 = vld [vmem:[%s2268 + $0x88] sm:$0xf]
      %v3058 = vld [vmem:[%s2268 + $0x8c] sm:$0x1]
      %v3059 = vld [vmem:[%s2268 + $0x90] sm:$0xe]
      %v3060 = vld [vmem:[%s2268 + $0x94] sm:$0xf]
      %v3061 = vld [vmem:[%s2268 + $0x98] sm:$0x1]
      %v3062 = vld [vmem:[%s2268 + $0x9c] sm:$0xe]
      %v3063 = vld [vmem:[%s2268 + $0xa0] sm:$0xf]
      %v3064 = vld [vmem:[%s2268 + $0xa4] sm:$0x1]
      %v3065 = vld [vmem:[%s2268 + $0xa8] sm:$0xe]
      %v3066 = vld [vmem:[%s2268 + $0xac] sm:$0xf]
      %v3067 = vld [vmem:[%s2268 + $0xb0] sm:$0x1]
      %v3068 = vld [vmem:[%s2268 + $0xb4] sm:$0xe]
      %v3069 = vld [vmem:[%s2268 + $0xb8] sm:$0xf]
      %v3070 = vld [vmem:[%s2268 + $0xbc] sm:$0x1]
      %v3119 = vrot.slane %v3023, 5
      %v3120 = vrot.slane %v3119, 4
      %v3121 = vrot.slane %v3024, 5
      %v3122 = vsel %vm928, %v3120, %v3121
      %v3123 = vrot.slane %v3121, 4
      %v3124 = vrot.slane %v3025, 5
      %v3125 = vsel %vm928, %v3123, %v3124
      %v3126 = vrot.slane %v3026, 5
      %v3127 = vrot.slane %v3126, 4
      %v3128 = vrot.slane %v3027, 5
      %v3129 = vsel %vm928, %v3127, %v3128
      %v3130 = vrot.slane %v3128, 4
      %v3131 = vrot.slane %v3028, 5
      %v3132 = vsel %vm928, %v3130, %v3131
      %v3133 = vrot.slane %v3029, 5
      %v3134 = vrot.slane %v3133, 4
      %v3135 = vrot.slane %v3030, 5
      %v3136 = vsel %vm928, %v3134, %v3135
      %v3137 = vrot.slane %v3135, 4
      %v3138 = vrot.slane %v3031, 5
      %v3139 = vsel %vm928, %v3137, %v3138
      %v3140 = vrot.slane %v3032, 5
      %v3141 = vrot.slane %v3140, 4
      %v3142 = vrot.slane %v3033, 5
      %v3143 = vsel %vm928, %v3141, %v3142
      %v3144 = vrot.slane %v3142, 4
      %v3145 = vrot.slane %v3034, 5
      %v3146 = vsel %vm928, %v3144, %v3145
      %v3147 = vrot.slane %v3035, 5
      %v3148 = vrot.slane %v3147, 4
      %v3149 = vrot.slane %v3036, 5
      %v3150 = vsel %vm928, %v3148, %v3149
      %v3151 = vrot.slane %v3149, 4
      %v3152 = vrot.slane %v3037, 5
      %v3153 = vsel %vm928, %v3151, %v3152
      %v3154 = vrot.slane %v3038, 5
      %v3155 = vrot.slane %v3154, 4
      %v3156 = vrot.slane %v3039, 5
      %v3157 = vsel %vm928, %v3155, %v3156
      %v3158 = vrot.slane %v3156, 4
      %v3159 = vrot.slane %v3040, 5
      %v3160 = vsel %vm928, %v3158, %v3159
      %v3161 = vrot.slane %v3041, 5
      %v3162 = vrot.slane %v3161, 4
      %v3163 = vrot.slane %v3042, 5
      %v3164 = vsel %vm928, %v3162, %v3163
      %v3165 = vrot.slane %v3163, 4
      %v3166 = vrot.slane %v3043, 5
      %v3167 = vsel %vm928, %v3165, %v3166
      %v3168 = vrot.slane %v3044, 5
      %v3169 = vrot.slane %v3168, 4
      %v3170 = vrot.slane %v3045, 5
      %v3171 = vsel %vm928, %v3169, %v3170
      %v3172 = vrot.slane %v3170, 4
      %v3173 = vrot.slane %v3046, 5
      %v3174 = vsel %vm928, %v3172, %v3173
      %v3175 = vrot.slane %v3047, 5
      %v3176 = vrot.slane %v3175, 4
      %v3177 = vrot.slane %v3048, 5
      %v3178 = vsel %vm928, %v3176, %v3177
      %v3179 = vrot.slane %v3177, 4
      %v3180 = vrot.slane %v3049, 5
      %v3181 = vsel %vm928, %v3179, %v3180
      %v3182 = vrot.slane %v3050, 5
      %v3183 = vrot.slane %v3182, 4
      %v3184 = vrot.slane %v3051, 5
      %v3185 = vsel %vm928, %v3183, %v3184
      %v3186 = vrot.slane %v3184, 4
      %v3187 = vrot.slane %v3052, 5
      %v3188 = vsel %vm928, %v3186, %v3187
      %v3189 = vrot.slane %v3053, 5
      %v3190 = vrot.slane %v3189, 4
      %v3191 = vrot.slane %v3054, 5
      %v3192 = vsel %vm928, %v3190, %v3191
      %v3193 = vrot.slane %v3191, 4
      %v3194 = vrot.slane %v3055, 5
      %v3195 = vsel %vm928, %v3193, %v3194
      %v3196 = vrot.slane %v3056, 5
      %v3197 = vrot.slane %v3196, 4
      %v3198 = vrot.slane %v3057, 5
      %v3199 = vsel %vm928, %v3197, %v3198
      %v3200 = vrot.slane %v3198, 4
      %v3201 = vrot.slane %v3058, 5
      %v3202 = vsel %vm928, %v3200, %v3201
      %v3203 = vrot.slane %v3059, 5
      %v3204 = vrot.slane %v3203, 4
      %v3205 = vrot.slane %v3060, 5
      %v3206 = vsel %vm928, %v3204, %v3205
      %v3207 = vrot.slane %v3205, 4
      %v3208 = vrot.slane %v3061, 5
      %v3209 = vsel %vm928, %v3207, %v3208
      %v3210 = vrot.slane %v3062, 5
      %v3211 = vrot.slane %v3210, 4
      %v3212 = vrot.slane %v3063, 5
      %v3213 = vsel %vm928, %v3211, %v3212
      %v3214 = vrot.slane %v3212, 4
      %v3215 = vrot.slane %v3064, 5
      %v3216 = vsel %vm928, %v3214, %v3215
      %v3217 = vrot.slane %v3065, 5
      %v3218 = vrot.slane %v3217, 4
      %v3219 = vrot.slane %v3066, 5
      %v3220 = vsel %vm928, %v3218, %v3219
      %v3221 = vrot.slane %v3219, 4
      %v3222 = vrot.slane %v3067, 5
      %v3223 = vsel %vm928, %v3221, %v3222
      %v3224 = vrot.slane %v3068, 5
      %v3225 = vrot.slane %v3224, 4
      %v3226 = vrot.slane %v3069, 5
      %v3227 = vsel %vm928, %v3225, %v3226
      %v3228 = vrot.slane %v3226, 4
      %v3229 = vrot.slane %v3070, 5
      %v3230 = vsel %vm928, %v3228, %v3229
      %3231 = vrot.lane.b32.xlu0 %v3122, 32
      %v3232 = vpop.permute.xlu0 %3231
      %3233 = vrot.lane.b32.xlu0 %v3125, 32
      %v3234 = vpop.permute.xlu0 %3233
      %3235 = vrot.lane.b32.xlu0 %v3129, 32
      %v3236 = vpop.permute.xlu0 %3235
      %3237 = vrot.lane.b32.xlu0 %v3132, 32
      %v3238 = vpop.permute.xlu0 %3237
      %3239 = vrot.lane.b32.xlu0 %v3136, 32
      %v3240 = vpop.permute.xlu0 %3239
      %3241 = vrot.lane.b32.xlu0 %v3139, 32
      %v3242 = vpop.permute.xlu0 %3241
      %3243 = vrot.lane.b32.xlu0 %v3143, 32
      %v3244 = vpop.permute.xlu0 %3243
      %3245 = vrot.lane.b32.xlu0 %v3146, 32
      %v3246 = vpop.permute.xlu0 %3245
      %3247 = vrot.lane.b32.xlu0 %v3150, 32
      %v3248 = vpop.permute.xlu0 %3247
      %3249 = vrot.lane.b32.xlu0 %v3153, 32
      %v3250 = vpop.permute.xlu0 %3249
      %3251 = vrot.lane.b32.xlu0 %v3157, 32
      %v3252 = vpop.permute.xlu0 %3251
      %3253 = vrot.lane.b32.xlu0 %v3160, 32
      %v3254 = vpop.permute.xlu0 %3253
      %3255 = vrot.lane.b32.xlu0 %v3164, 32
      %v3256 = vpop.permute.xlu0 %3255
      %3257 = vrot.lane.b32.xlu0 %v3167, 32
      %v3258 = vpop.permute.xlu0 %3257
      %3259 = vrot.lane.b32.xlu0 %v3171, 32
      %v3260 = vpop.permute.xlu0 %3259
      %3261 = vrot.lane.b32.xlu0 %v3174, 32
      %v3262 = vpop.permute.xlu0 %3261
      %3263 = vrot.lane.b32.xlu0 %v3178, 32
      %v3264 = vpop.permute.xlu0 %3263
      %3265 = vrot.lane.b32.xlu0 %v3181, 32
      %v3266 = vpop.permute.xlu0 %3265
      %3267 = vrot.lane.b32.xlu0 %v3185, 32
      %v3268 = vpop.permute.xlu0 %3267
      %3269 = vrot.lane.b32.xlu0 %v3188, 32
      %v3270 = vpop.permute.xlu0 %3269
      %3271 = vrot.lane.b32.xlu0 %v3192, 32
      %v3272 = vpop.permute.xlu0 %3271
      %3273 = vrot.lane.b32.xlu0 %v3195, 32
      %v3274 = vpop.permute.xlu0 %3273
      %3275 = vrot.lane.b32.xlu0 %v3199, 32
      %v3276 = vpop.permute.xlu0 %3275
      %3277 = vrot.lane.b32.xlu0 %v3202, 32
      %v3278 = vpop.permute.xlu0 %3277
      %3279 = vrot.lane.b32.xlu0 %v3206, 32
      %v3280 = vpop.permute.xlu0 %3279
      %3281 = vrot.lane.b32.xlu0 %v3209, 32
      %v3282 = vpop.permute.xlu0 %3281
      %3283 = vrot.lane.b32.xlu0 %v3213, 32
      %v3284 = vpop.permute.xlu0 %3283
      %3285 = vrot.lane.b32.xlu0 %v3216, 32
      %v3286 = vpop.permute.xlu0 %3285
      %3287 = vrot.lane.b32.xlu0 %v3220, 32
      %v3288 = vpop.permute.xlu0 %3287
      %3289 = vrot.lane.b32.xlu0 %v3223, 32
      %v3290 = vpop.permute.xlu0 %3289
      %3291 = vrot.lane.b32.xlu0 %v3227, 32
      %v3292 = vpop.permute.xlu0 %3291
      %3293 = vrot.lane.b32.xlu0 %v3230, 32
      %v3294 = vpop.permute.xlu0 %3293
      %vm3327 = vcmask 290048
      %3328 = vst.msk [vmem:[#allocation2] sm:$0xf] %vm3327, %v3232
      %3329 = vst.msk [vmem:[#allocation2 + $0x4] sm:$0xf] %vm3327, %v3234
      %3330 = vst.msk [vmem:[#allocation2 + $0x8] sm:$0xf] %vm3327, %v3236
      %3331 = vst.msk [vmem:[#allocation2 + $0xc] sm:$0xf] %vm3327, %v3238
      %3332 = vst.msk [vmem:[#allocation2 + $0x10] sm:$0xf] %vm3327, %v3240
      %3333 = vst.msk [vmem:[#allocation2 + $0x14] sm:$0xf] %vm3327, %v3242
      %3334 = vst.msk [vmem:[#allocation2 + $0x18] sm:$0xf] %vm3327, %v3244
      %3335 = vst.msk [vmem:[#allocation2 + $0x1c] sm:$0xf] %vm3327, %v3246
      %3336 = vst.msk [vmem:[#allocation2 + $0x20] sm:$0xf] %vm3327, %v3248
      %3337 = vst.msk [vmem:[#allocation2 + $0x24] sm:$0xf] %vm3327, %v3250
      %3338 = vst.msk [vmem:[#allocation2 + $0x28] sm:$0xf] %vm3327, %v3252
      %3339 = vst.msk [vmem:[#allocation2 + $0x2c] sm:$0xf] %vm3327, %v3254
      %3340 = vst.msk [vmem:[#allocation2 + $0x30] sm:$0xf] %vm3327, %v3256
      %3341 = vst.msk [vmem:[#allocation2 + $0x34] sm:$0xf] %vm3327, %v3258
      %3342 = vst.msk [vmem:[#allocation2 + $0x38] sm:$0xf] %vm3327, %v3260
      %3343 = vst.msk [vmem:[#allocation2 + $0x3c] sm:$0xf] %vm3327, %v3262
      %3344 = vst.msk [vmem:[#allocation2 + $0x40] sm:$0xf] %vm3327, %v3264
      %3345 = vst.msk [vmem:[#allocation2 + $0x44] sm:$0xf] %vm3327, %v3266
      %3346 = vst.msk [vmem:[#allocation2 + $0x48] sm:$0xf] %vm3327, %v3268
      %3347 = vst.msk [vmem:[#allocation2 + $0x4c] sm:$0xf] %vm3327, %v3270
      %3348 = vst.msk [vmem:[#allocation2 + $0x50] sm:$0xf] %vm3327, %v3272
      %3349 = vst.msk [vmem:[#allocation2 + $0x54] sm:$0xf] %vm3327, %v3274
      %3350 = vst.msk [vmem:[#allocation2 + $0x58] sm:$0xf] %vm3327, %v3276
      %3351 = vst.msk [vmem:[#allocation2 + $0x5c] sm:$0xf] %vm3327, %v3278
      %3352 = vst.msk [vmem:[#allocation2 + $0x60] sm:$0xf] %vm3327, %v3280
      %3353 = vst.msk [vmem:[#allocation2 + $0x64] sm:$0xf] %vm3327, %v3282
      %3354 = vst.msk [vmem:[#allocation2 + $0x68] sm:$0xf] %vm3327, %v3284
      %3355 = vst.msk [vmem:[#allocation2 + $0x6c] sm:$0xf] %vm3327, %v3286
      %3356 = vst.msk [vmem:[#allocation2 + $0x70] sm:$0xf] %vm3327, %v3288
      %3357 = vst.msk [vmem:[#allocation2 + $0x74] sm:$0xf] %vm3327, %v3290
      %3358 = vst.msk [vmem:[#allocation2 + $0x78] sm:$0xf] %vm3327, %v3292
      %3359 = vst.msk [vmem:[#allocation2 + $0x7c] sm:$0xf] %vm3327, %v3294
      %v3360 = vld [vmem:[#allocation2] sm:$0xf]
      %v3361 = vld [vmem:[#allocation2 + $0x4] sm:$0xf]
      %v3362 = vld [vmem:[#allocation2 + $0x8] sm:$0xf]
      %v3363 = vld [vmem:[#allocation2 + $0xc] sm:$0xf]
      %v3364 = vld [vmem:[#allocation2 + $0x10] sm:$0xf]
      %v3365 = vld [vmem:[#allocation2 + $0x14] sm:$0xf]
      %v3366 = vld [vmem:[#allocation2 + $0x18] sm:$0xf]
      %v3367 = vld [vmem:[#allocation2 + $0x1c] sm:$0xf]
      %v3368 = vld [vmem:[#allocation2 + $0x20] sm:$0xf]
      %v3369 = vld [vmem:[#allocation2 + $0x24] sm:$0xf]
      %v3370 = vld [vmem:[#allocation2 + $0x28] sm:$0xf]
      %v3371 = vld [vmem:[#allocation2 + $0x2c] sm:$0xf]
      %v3372 = vld [vmem:[#allocation2 + $0x30] sm:$0xf]
      %v3373 = vld [vmem:[#allocation2 + $0x34] sm:$0xf]
      %v3374 = vld [vmem:[#allocation2 + $0x38] sm:$0xf]
      %v3375 = vld [vmem:[#allocation2 + $0x3c] sm:$0xf]
      %v3376 = vld [vmem:[#allocation2 + $0x40] sm:$0xf]
      %v3377 = vld [vmem:[#allocation2 + $0x44] sm:$0xf]
      %v3378 = vld [vmem:[#allocation2 + $0x48] sm:$0xf]
      %v3379 = vld [vmem:[#allocation2 + $0x4c] sm:$0xf]
      %v3380 = vld [vmem:[#allocation2 + $0x50] sm:$0xf]
      %v3381 = vld [vmem:[#allocation2 + $0x54] sm:$0xf]
      %v3382 = vld [vmem:[#allocation2 + $0x58] sm:$0xf]
      %v3383 = vld [vmem:[#allocation2 + $0x5c] sm:$0xf]
      %v3384 = vld [vmem:[#allocation2 + $0x60] sm:$0xf]
      %v3385 = vld [vmem:[#allocation2 + $0x64] sm:$0xf]
      %v3386 = vld [vmem:[#allocation2 + $0x68] sm:$0xf]
      %v3387 = vld [vmem:[#allocation2 + $0x6c] sm:$0xf]
      %v3388 = vld [vmem:[#allocation2 + $0x70] sm:$0xf]
      %v3389 = vld [vmem:[#allocation2 + $0x74] sm:$0xf]
      %v3390 = vld [vmem:[#allocation2 + $0x78] sm:$0xf]
      %v3391 = vld [vmem:[#allocation2 + $0x7c] sm:$0xf]
      %v3392 = vld [vmem:[%s1] sm:$0xf]
      %v3393 = vld [vmem:[%s1 + $0x4] sm:$0xf]
      %v3394 = vld [vmem:[%s1 + $0x8] sm:$0xf]
      %v3395 = vld [vmem:[%s1 + $0xc] sm:$0xf]
      %v3396 = vld [vmem:[%s1 + $0x10] sm:$0x3]
      %v3397 = vld [vmem:[%s2] sm:$0x1]
      %v3399 = vperm.slane %v3397, 0
      %v3433 = vunpack.c.l.b16 %v3360
      %v3434 = vunpack.c.l.b16 %v3361
      %v3435 = vunpack.c.l.b16 %v3362
      %v3436 = vunpack.c.l.b16 %v3363
      %v3437 = vunpack.c.l.b16 %v3364
      %v3438 = vunpack.c.l.b16 %v3365
      %v3439 = vunpack.c.l.b16 %v3366
      %v3440 = vunpack.c.l.b16 %v3367
      %v3441 = vunpack.c.l.b16 %v3368
      %v3442 = vunpack.c.l.b16 %v3369
      %v3443 = vunpack.c.l.b16 %v3370
      %v3444 = vunpack.c.l.b16 %v3371
      %v3445 = vunpack.c.l.b16 %v3372
      %v3446 = vunpack.c.l.b16 %v3373
      %v3447 = vunpack.c.l.b16 %v3374
      %v3448 = vunpack.c.l.b16 %v3375
      %v3449 = vunpack.c.l.b16 %v3376
      %v3450 = vunpack.c.l.b16 %v3377
      %v3451 = vunpack.c.l.b16 %v3378
      %v3452 = vunpack.c.l.b16 %v3379
      %v3453 = vunpack.c.l.b16 %v3380
      %v3454 = vunpack.c.l.b16 %v3381
      %v3455 = vunpack.c.l.b16 %v3382
      %v3456 = vunpack.c.l.b16 %v3383
      %v3457 = vunpack.c.l.b16 %v3384
      %v3458 = vunpack.c.l.b16 %v3385
      %v3459 = vunpack.c.l.b16 %v3386
      %v3460 = vunpack.c.l.b16 %v3387
      %v3461 = vunpack.c.l.b16 %v3388
      %v3462 = vunpack.c.l.b16 %v3389
      %v3463 = vunpack.c.l.b16 %v3390
      %v3464 = vunpack.c.l.b16 %v3391
      %v3465 = vpack.c.b16 %v3434, %v3433
      %v3466 = vpack.c.b16 %v3436, %v3435
      %v3467 = vpack.c.b16 %v3438, %v3437
      %v3468 = vpack.c.b16 %v3440, %v3439
      %v3469 = vpack.c.b16 %v3442, %v3441
      %v3470 = vpack.c.b16 %v3444, %v3443
      %v3471 = vpack.c.b16 %v3446, %v3445
      %v3472 = vpack.c.b16 %v3448, %v3447
      %v3473 = vpack.c.b16 %v3450, %v3449
      %v3474 = vpack.c.b16 %v3452, %v3451
      %v3475 = vpack.c.b16 %v3454, %v3453
      %v3476 = vpack.c.b16 %v3456, %v3455
      %v3477 = vpack.c.b16 %v3458, %v3457
      %v3478 = vpack.c.b16 %v3460, %v3459
      %v3479 = vpack.c.b16 %v3462, %v3461
      %v3480 = vpack.c.b16 %v3464, %v3463
      %v3486 = vunpack.c.l.b16 %v3392
      %v3487 = vunpack.c.l.b16 %v3393
      %v3488 = vunpack.c.l.b16 %v3394
      %v3489 = vunpack.c.l.b16 %v3395
      %v3490 = vunpack.c.l.b16 %v3396
      %v3491 = vpack.c.b16 %v3487, %v3486
      %v3492 = vpack.c.b16 %v3489, %v3488
      %v3493 = vpack.c.b16 %v3490, %v3490
      %vm3496 = vcmask 293888
      %v3498 = vsel %vm3496, %v3465, 0
      %v3501 = vsel %vm3496, %v3466, 0
      %v3504 = vsel %vm3496, %v3467, 0
      %v3507 = vsel %vm3496, %v3468, 0
      %v3510 = vsel %vm3496, %v3469, 0
      %v3513 = vsel %vm3496, %v3470, 0
      %v3516 = vsel %vm3496, %v3471, 0
      %v3519 = vsel %vm3496, %v3472, 0
      %v3522 = vsel %vm3496, %v3473, 0
      %v3525 = vsel %vm3496, %v3474, 0
      %v3528 = vsel %vm3496, %v3475, 0
      %v3531 = vsel %vm3496, %v3476, 0
      %v3534 = vsel %vm3496, %v3477, 0
      %v3537 = vsel %vm3496, %v3478, 0
      %v3540 = vsel %vm3496, %v3479, 0
      %v3543 = vsel %vm3496, %v3480, 0
      %vm3545 = vcmask 1041408
      %v3547 = vsel %vm3545, %v3493, 0
      %3549 = vmatpush.bf16.msra.mxu0 0
      %3550 = vmatpush.bf16.msra.mxu0 0
      %3551 = vmatpush.bf16.msra.mxu0 0
      %3552 = vmatpush.bf16.msra.mxu0 0
      %3553 = vmatpush.bf16.msra.mxu0 0
      %3554 = vmatpush.bf16.msra.mxu0 %v3547
      %3555 = vmatpush.bf16.msra.mxu0 %v3492
      %3556 = vmatpush.bf16.msra.mxu0 %v3491
      %3557 = vmatmul.bf16.gmra.mxu0 %v3498
      %v3558 = vpop.f32.mrf.mxu0
      %v3559 = vadd.f32 %v3399, %v3558
      %v3560 = vpop.f32.mrf.mxu0
      %v3561 = vadd.f32 %v3399, %v3560
      %3562 = vmatmul.bf16.gmra.mxu0 %v3501
      %v3563 = vpop.f32.mrf.mxu0
      %v3564 = vadd.f32 %v3399, %v3563
      %v3565 = vpop.f32.mrf.mxu0
      %v3566 = vadd.f32 %v3399, %v3565
      %3567 = vmatmul.bf16.gmra.mxu0 %v3504
      %v3568 = vpop.f32.mrf.mxu0
      %v3569 = vadd.f32 %v3399, %v3568
      %v3570 = vpop.f32.mrf.mxu0
      %v3571 = vadd.f32 %v3399, %v3570
      %3572 = vmatmul.bf16.gmra.mxu0 %v3507
      %v3573 = vpop.f32.mrf.mxu0
      %v3574 = vadd.f32 %v3399, %v3573
      %v3575 = vpop.f32.mrf.mxu0
      %v3576 = vadd.f32 %v3399, %v3575
      %3577 = vmatmul.bf16.gmra.mxu0 %v3510
      %v3578 = vpop.f32.mrf.mxu0
      %v3579 = vadd.f32 %v3399, %v3578
      %v3580 = vpop.f32.mrf.mxu0
      %v3581 = vadd.f32 %v3399, %v3580
      %3582 = vmatmul.bf16.gmra.mxu0 %v3513
      %v3583 = vpop.f32.mrf.mxu0
      %v3584 = vadd.f32 %v3399, %v3583
      %v3585 = vpop.f32.mrf.mxu0
      %v3586 = vadd.f32 %v3399, %v3585
      %3587 = vmatmul.bf16.gmra.mxu0 %v3516
      %v3588 = vpop.f32.mrf.mxu0
      %v3589 = vadd.f32 %v3399, %v3588
      %v3590 = vpop.f32.mrf.mxu0
      %v3591 = vadd.f32 %v3399, %v3590
      %3592 = vmatmul.bf16.gmra.mxu0 %v3519
      %v3593 = vpop.f32.mrf.mxu0
      %v3594 = vadd.f32 %v3399, %v3593
      %v3595 = vpop.f32.mrf.mxu0
      %v3596 = vadd.f32 %v3399, %v3595
      %3597 = vmatmul.bf16.gmra.mxu0 %v3522
      %v3598 = vpop.f32.mrf.mxu0
      %v3599 = vadd.f32 %v3399, %v3598
      %v3600 = vpop.f32.mrf.mxu0
      %v3601 = vadd.f32 %v3399, %v3600
      %3602 = vmatmul.bf16.gmra.mxu0 %v3525
      %v3603 = vpop.f32.mrf.mxu0
      %v3604 = vadd.f32 %v3399, %v3603
      %v3605 = vpop.f32.mrf.mxu0
      %v3606 = vadd.f32 %v3399, %v3605
      %3607 = vmatmul.bf16.gmra.mxu0 %v3528
      %v3608 = vpop.f32.mrf.mxu0
      %v3609 = vadd.f32 %v3399, %v3608
      %v3610 = vpop.f32.mrf.mxu0
      %v3611 = vadd.f32 %v3399, %v3610
      %3612 = vmatmul.bf16.gmra.mxu0 %v3531
      %v3613 = vpop.f32.mrf.mxu0
      %v3614 = vadd.f32 %v3399, %v3613
      %v3615 = vpop.f32.mrf.mxu0
      %v3616 = vadd.f32 %v3399, %v3615
      %3617 = vmatmul.bf16.gmra.mxu0 %v3534
      %v3618 = vpop.f32.mrf.mxu0
      %v3619 = vadd.f32 %v3399, %v3618
      %v3620 = vpop.f32.mrf.mxu0
      %v3621 = vadd.f32 %v3399, %v3620
      %3622 = vmatmul.bf16.gmra.mxu0 %v3537
      %v3623 = vpop.f32.mrf.mxu0
      %v3624 = vadd.f32 %v3399, %v3623
      %v3625 = vpop.f32.mrf.mxu0
      %v3626 = vadd.f32 %v3399, %v3625
      %3627 = vmatmul.bf16.gmra.mxu0 %v3540
      %v3628 = vpop.f32.mrf.mxu0
      %v3629 = vadd.f32 %v3399, %v3628
      %v3630 = vpop.f32.mrf.mxu0
      %v3631 = vadd.f32 %v3399, %v3630
      %3632 = vmatmul.bf16.gmra.mxu0 %v3543
      %v3633 = vpop.f32.mrf.mxu0
      %v3634 = vadd.f32 %v3399, %v3633
      %v3635 = vpop.f32.mrf.mxu0
      %v3636 = vadd.f32 %v3399, %v3635
      %3637 = vdwg.mxu0
      %v3638 = vmax.f32 %v3559, 0.0
      %v3639 = vmax.f32 %v3561, 0.0
      %v3640 = vmax.f32 %v3564, 0.0
      %v3641 = vmax.f32 %v3566, 0.0
      %v3642 = vmax.f32 %v3569, 0.0
      %v3643 = vmax.f32 %v3571, 0.0
      %v3644 = vmax.f32 %v3574, 0.0
      %v3645 = vmax.f32 %v3576, 0.0
      %v3646 = vmax.f32 %v3579, 0.0
      %v3647 = vmax.f32 %v3581, 0.0
      %v3648 = vmax.f32 %v3584, 0.0
      %v3649 = vmax.f32 %v3586, 0.0
      %v3650 = vmax.f32 %v3589, 0.0
      %v3651 = vmax.f32 %v3591, 0.0
      %v3652 = vmax.f32 %v3594, 0.0
      %v3653 = vmax.f32 %v3596, 0.0
      %v3654 = vmax.f32 %v3599, 0.0
      %v3655 = vmax.f32 %v3601, 0.0
      %v3656 = vmax.f32 %v3604, 0.0
      %v3657 = vmax.f32 %v3606, 0.0
      %v3658 = vmax.f32 %v3609, 0.0
      %v3659 = vmax.f32 %v3611, 0.0
      %v3660 = vmax.f32 %v3614, 0.0
      %v3661 = vmax.f32 %v3616, 0.0
      %v3662 = vmax.f32 %v3619, 0.0
      %v3663 = vmax.f32 %v3621, 0.0
      %v3664 = vmax.f32 %v3624, 0.0
      %v3665 = vmax.f32 %v3626, 0.0
      %v3666 = vmax.f32 %v3629, 0.0
      %v3667 = vmax.f32 %v3631, 0.0
      %v3668 = vmax.f32 %v3634, 0.0
      %v3669 = vmax.f32 %v3636, 0.0
      %vm3670 = vcmask 64512
      %3671 = vst.msk [vmem:[%s194] sm:$0xff] %vm3670, %v3638
      %3672 = vst.msk [vmem:[%s194 + $0x8] sm:$0xff] %vm3670, %v3639
      %3673 = vst.msk [vmem:[%s194 + $0x10] sm:$0xff] %vm3670, %v3640
      %3674 = vst.msk [vmem:[%s194 + $0x18] sm:$0xff] %vm3670, %v3641
      %3675 = vst.msk [vmem:[%s194 + $0x20] sm:$0xff] %vm3670, %v3642
      %3676 = vst.msk [vmem:[%s194 + $0x28] sm:$0xff] %vm3670, %v3643
      %3677 = vst.msk [vmem:[%s194 + $0x30] sm:$0xff] %vm3670, %v3644
      %3678 = vst.msk [vmem:[%s194 + $0x38] sm:$0xff] %vm3670, %v3645
      %3679 = vst.msk [vmem:[%s194 + $0x40] sm:$0xff] %vm3670, %v3646
      %3680 = vst.msk [vmem:[%s194 + $0x48] sm:$0xff] %vm3670, %v3647
      %3681 = vst.msk [vmem:[%s194 + $0x50] sm:$0xff] %vm3670, %v3648
      %3682 = vst.msk [vmem:[%s194 + $0x58] sm:$0xff] %vm3670, %v3649
      %3683 = vst.msk [vmem:[%s194 + $0x60] sm:$0xff] %vm3670, %v3650
      %3684 = vst.msk [vmem:[%s194 + $0x68] sm:$0xff] %vm3670, %v3651
      %3685 = vst.msk [vmem:[%s194 + $0x70] sm:$0xff] %vm3670, %v3652
      %3686 = vst.msk [vmem:[%s194 + $0x78] sm:$0xff] %vm3670, %v3653
      %3687 = vst.msk [vmem:[%s194 + $0x80] sm:$0xff] %vm3670, %v3654
      %3688 = vst.msk [vmem:[%s194 + $0x88] sm:$0xff] %vm3670, %v3655
      %3689 = vst.msk [vmem:[%s194 + $0x90] sm:$0xff] %vm3670, %v3656
      %3690 = vst.msk [vmem:[%s194 + $0x98] sm:$0xff] %vm3670, %v3657
      %3691 = vst.msk [vmem:[%s194 + $0xa0] sm:$0xff] %vm3670, %v3658
      %3692 = vst.msk [vmem:[%s194 + $0xa8] sm:$0xff] %vm3670, %v3659
      %3693 = vst.msk [vmem:[%s194 + $0xb0] sm:$0xff] %vm3670, %v3660
      %3694 = vst.msk [vmem:[%s194 + $0xb8] sm:$0xff] %vm3670, %v3661
      %3695 = vst.msk [vmem:[%s194 + $0xc0] sm:$0xff] %vm3670, %v3662
      %3696 = vst.msk [vmem:[%s194 + $0xc8] sm:$0xff] %vm3670, %v3663
      %3697 = vst.msk [vmem:[%s194 + $0xd0] sm:$0xff] %vm3670, %v3664
      %3698 = vst.msk [vmem:[%s194 + $0xd8] sm:$0xff] %vm3670, %v3665
      %3699 = vst.msk [vmem:[%s194 + $0xe0] sm:$0xff] %vm3670, %v3666
      %3700 = vst.msk [vmem:[%s194 + $0xe8] sm:$0xff] %vm3670, %v3667
      %3701 = vst.msk [vmem:[%s194 + $0xf0] sm:$0xff] %vm3670, %v3668
      %3702 = vst.msk [vmem:[%s194 + $0xf8] sm:$0xff] %vm3670, %v3669
      %s3703 = smul.u32 16, %s19
      %p3704 = scmp.lt.s32.totalorder %s18, 1
      %s3705 = scalar_select %p3704, %s18, 1
      %p3706 = scmp.lt.s32.totalorder %s3703, 15
      %s3707 = scalar_select %p3706, %s3703, 15
      %s3708 = smul.addr %s3707, 2
      %s3709 = smul.addr %s3705, 32
      %s3710 = sadd.s32 %s3708, %s3709
      %s3711 = smul.addr %s3710, 8
      %s3712 = scalar_lea.vmem %s3, %s3711
      // Predicated region
      $region33: #{tpu_custom_call.1} parent=31 // pred_check
        %p3713 = pneg %p114
      $region34: #{tpu_custom_call.1} parent=31 // pred_check_branch
        %3715 = sbr.rel (%p3713) target = $region36
      $region35: #{tpu_custom_call.1} parent=31 // pred_region
        %s3716 = smul.u32 16, %s19
      $region36: #{tpu_custom_call.1} parent=31 // pred_fallthru
        _
    $region32: #{tpu_custom_call.1} parent=5 // pred_fallthru
      _
    %p3717 = scmp.le.s32.totalorder 2, %s9
    // Predicated region
    $region37: #{tpu_custom_call.1} parent=5 // pred_check
      %p3718 = pneg %p3717
    $region38: #{tpu_custom_call.1} parent=5 // pred_check_branch
      %3720 = sbr.rel (%p3718) target = $region40
    $region39: #{tpu_custom_call.1} parent=5 // pred_region
      %s3721 = ssub.s32 %s9, 2
      // Predicated region
      $region41: #{tpu_custom_call.1} parent=39 // pred_check
        %p3722 = pneg %p120
      $region42: #{tpu_custom_call.1} parent=39 // pred_check_branch
        %3724 = sbr.rel (%p3722) target = $region44
      $region43: #{tpu_custom_call.1} parent=39 // pred_region
        %s3725 = smul.u32 16, %s21
        %p3726 = scmp.lt.s32.totalorder %s20, 1
        %s3727 = scalar_select %p3726, %s20, 1
        %p3728 = scmp.lt.s32.totalorder %s3725, 15
        %s3729 = scalar_select %p3728, %s3725, 15
        %s3730 = smul.addr %s3729, 2
        %s3731 = smul.addr %s3727, 32
        %s3732 = sadd.s32 %s3730, %s3731
        %s3733 = smul.addr %s3732, 8
        %s3734 = scalar_lea.vmem %s3, %s3733
      $region44: #{tpu_custom_call.1} parent=39 // pred_fallthru
        _
    $region40: #{tpu_custom_call.1} parent=5 // pred_fallthru
      _
  $region6: #{tpu_custom_call.1} parent=0 // loop_footer
    %s13 = sadd.s32 1, %s9
  $region7: #{tpu_custom_call.1} parent=0 // loop_footer_branch
    %8 = sbr.rel target = $region3
  $region8: #{tpu_custom_call.1} parent=0 // loop_exit
    _

// kernel: tpu_custom_call.1
$region0: #{tpu_custom_call.1}
  #allocation0 [shape = 'u32[]', space=smem, size = 0x4, offset = 0x4, fixed_abs, tag = 'smem constant byte address 0x4 - core index']
  #allocation1 [shape = 'u32[72,128]{1,0:T(1,128)}', space=vmem, size = 0x9000, scoped, tag = 'internal scratch']
  #allocation2 [shape = 'bf16[256,36]{1,0:T(8,128)(2,1)}', space=vmem, size = 0x10000, scoped, tag = 'scratch operand']
  %s0 = inlined_call_operand.vmem [shape: bf16[2,1,18,18,4], index: 0, kind: input, shape index: {}]
  %s1 = inlined_call_operand.vmem [shape: bf16[36,8], index: 1, kind: input, shape index: {}]
  %s2 = inlined_call_operand.vmem [shape: f32[1,8], index: 2, kind: input, shape index: {}]
  %s3 = inlined_call_operand.vmem [shape: f32[2,16,16,8], index: 3, kind: output, shape index: {}]
  %s4 = sld [smem:[#allocation0]]
  $region45: #{tpu_custom_call.1} parent=0
    _
  %s6 = ssub.s32 1, %s4
  %s7 = scalar_select 0, %s6, %s4
  loop: start=0, step=1, limit=4
  $region2: #{tpu_custom_call.1} parent=0 // loop_pre_header
    _
  $region3: #{tpu_custom_call.1} parent=0 // loop_header
    %s9 = sphi 0, %s13
    %p10 = scmp.ge.s32.totalorder %s9, 4
    %s16 = sphi 0, %s28
    %s17 = sphi 0, %s24
    %s18 = sphi 0, %s16
    %s19 = sphi 0, %s17
    %s20 = sphi 0, %s18
    %s21 = sphi 0, %s19
    %s31 = sphi 0, %s33
    %s34 = sphi 0, %s31
    %s35 = sphi 0, %s34
    %s51 = sphi 0, %s35
    %s55 = sphi 0, %s55
    %s57 = sphi 0, %s55
    %s58 = sphi 0, %s57
    %s72 = sphi 0, %s58
    %s76 = sphi 0, %s76
    %s78 = sphi 0, %s76
    %s79 = sphi 0, %s78
    %s93 = sphi 0, %s79
    %s101 = sphi 0, %s103
    %s104 = sphi 0, %s101
    %s105 = sphi 0, %s104
    %s121 = sphi 0, %s105
  $region4: #{tpu_custom_call.1} parent=0 // loop_header_branch
    %12 = sbr.rel (%p10) target = $region8
  $region5: #{tpu_custom_call.1} parent=0 // loop_body
    %s14 = ssub.s32 %s9, 1
    %s15 = ssub.s32 %s9, 2
    %s22 = sadd.s32 1, %s17
    %p23 = scmp.ge.s32.totalorder %s22, 1
    %s24 = scalar_select %p23, 0, %s22
    %s25 = sadd.s32 1, %s16
    %s26 = scalar_select %p23, %s25, %s16
    %p27 = scmp.ge.s32.totalorder %s26, 2
    %s28 = scalar_select %p27, 0, %s26
    %s29 = ssub.s32 %s16, %s28
    %p30 = scmp.eq.s32.totalorder %s29, 0
    %s32 = sadd.s32 %s31, 1
    %s33 = scalar_select %p30, %s31, %s32
    %p36 = pneg %p30
    %p37 = scmp.eq.s32.totalorder %s9, 1
    %p38 = por %p36, %p37
    %p39 = scmp.ne.s32.totalorder %s31, %s34
    %p40 = scmp.eq.s32.totalorder %s9, 0
    %p41 = por %p39, %p40
    %p42 = scmp.ne.s32.totalorder %s31, %s34
    %p43 = scmp.eq.s32.totalorder %s14, 1
    %p44 = por %p42, %p43
    %p45 = scmp.ne.s32.totalorder %s34, %s35
    %p46 = scmp.eq.s32.totalorder %s14, 0
    %p47 = por %p45, %p46
    %p48 = scmp.ne.s32.totalorder %s34, %s35
    %p49 = scmp.eq.s32.totalorder %s15, 1
    %p50 = por %p48, %p49
    %p52 = scmp.ne.s32.totalorder %s35, %s51
    %p53 = scmp.eq.s32.totalorder %s15, 0
    %p54 = por %p52, %p53
    %s56 = sadd.s32 %s55, 1
    %p59 = scmp.eq.s32.totalorder %s9, 1
    %p60 = scmp.ne.s32.totalorder %s55, %s57
    %p61 = scmp.eq.s32.totalorder %s9, 0
    %p62 = por %p60, %p61
    %p63 = scmp.ne.s32.totalorder %s55, %s57
    %p64 = scmp.eq.s32.totalorder %s14, 1
    %p65 = por %p63, %p64
    %p66 = scmp.ne.s32.totalorder %s57, %s58
    %p67 = scmp.eq.s32.totalorder %s14, 0
    %p68 = por %p66, %p67
    %p69 = scmp.ne.s32.totalorder %s57, %s58
    %p70 = scmp.eq.s32.totalorder %s15, 1
    %p71 = por %p69, %p70
    %p73 = scmp.ne.s32.totalorder %s58, %s72
    %p74 = scmp.eq.s32.totalorder %s15, 0
    %p75 = por %p73, %p74
    %s77 = sadd.s32 %s76, 1
    %p80 = scmp.eq.s32.totalorder %s9, 1
    %p81 = scmp.ne.s32.totalorder %s76, %s78
    %p82 = scmp.eq.s32.totalorder %s9, 0
    %p83 = por %p81, %p82
    %p84 = scmp.ne.s32.totalorder %s76, %s78
    %p85 = scmp.eq.s32.totalorder %s14, 1
    %p86 = por %p84, %p85
    %p87 = scmp.ne.s32.totalorder %s78, %s79
    %p88 = scmp.eq.s32.totalorder %s14, 0
    %p89 = por %p87, %p88
    %p90 = scmp.ne.s32.totalorder %s78, %s79
    %p91 = scmp.eq.s32.totalorder %s15, 1
    %p92 = por %p90, %p91
    %p94 = scmp.ne.s32.totalorder %s79, %s93
    %p95 = scmp.eq.s32.totalorder %s15, 0
    %p96 = por %p94, %p95
    %s97 = ssub.s32 %s16, %s28
    %s98 = ssub.s32 %s17, %s24
    %s99 = sor.u32 %s97, %s98
    %p100 = scmp.eq.s32.totalorder %s99, 0
    %s102 = sadd.s32 %s101, 1
    %s103 = scalar_select %p100, %s101, %s102
    %p106 = pneg %p100
    %p107 = scmp.eq.s32.totalorder %s9, 1
    %p108 = por %p106, %p107
    %p109 = scmp.ne.s32.totalorder %s101, %s104
    %p110 = scmp.eq.s32.totalorder %s9, 0
    %p111 = por %p109, %p110
    %p112 = scmp.ne.s32.totalorder %s101, %s104
    %p113 = scmp.eq.s32.totalorder %s14, 1
    %p114 = por %p112, %p113
    %p115 = scmp.ne.s32.totalorder %s104, %s105
    %p116 = scmp.eq.s32.totalorder %s14, 0
    %p117 = por %p115, %p116
    %p118 = scmp.ne.s32.totalorder %s104, %s105
    %p119 = scmp.eq.s32.totalorder %s15, 1
    %p120 = por %p118, %p119
    %p122 = scmp.ne.s32.totalorder %s105, %s121
    %p123 = scmp.eq.s32.totalorder %s15, 0
    %p124 = por %p122, %p123
    %p125 = scmp.le.s32.totalorder 1, %s9
    %p126 = scmp.lt.s32.totalorder %s9, 3
    %p127 = pnand %p125, %p126
    %p128 = pneg %p127
    // Predicated region
    $region9: #{tpu_custom_call.1} parent=5 // pred_check
      _
    $region10: #{tpu_custom_call.1} parent=5 // pred_check_branch
      %130 = sbr.rel (%p127) target = $region12
    $region11: #{tpu_custom_call.1} parent=5 // pred_region
      %s131 = ssub.s32 %s9, 1
      // Predicated region
      $region13: #{tpu_custom_call.1} parent=11 // pred_check
        %p132 = pneg %p68
      $region14: #{tpu_custom_call.1} parent=11 // pred_check_branch
        %134 = sbr.rel (%p132) target = $region16
      $region15: #{tpu_custom_call.1} parent=11 // pred_region
        _
      $region16: #{tpu_custom_call.1} parent=11 // pred_fallthru
        _
      // Predicated region
      $region17: #{tpu_custom_call.1} parent=11 // pred_check
        %p135 = pneg %p89
      $region18: #{tpu_custom_call.1} parent=11 // pred_check_branch
        %137 = sbr.rel (%p135) target = $region20
      $region19: #{tpu_custom_call.1} parent=11 // pred_region
        _
      $region20: #{tpu_custom_call.1} parent=11 // pred_fallthru
        _
    $region12: #{tpu_custom_call.1} parent=5 // pred_fallthru
      _
    %p138 = scmp.lt.s32.totalorder %s9, 2
    // Predicated region
    $region21: #{tpu_custom_call.1} parent=5 // pred_check
      %p139 = pneg %p138
    $region22: #{tpu_custom_call.1} parent=5 // pred_check_branch
      %141 = sbr.rel (%p139) target = $region24
    $region23: #{tpu_custom_call.1} parent=5 // pred_region
      // Predicated region
      $region25: #{tpu_custom_call.1} parent=23 // pred_check
        %p142 = pneg %p41
      $region26: #{tpu_custom_call.1} parent=23 // pred_check_branch
        %144 = sbr.rel (%p142) target = $region28
      $region27: #{tpu_custom_call.1} parent=23 // pred_region
        %p145 = scmp.lt.s32.totalorder %s16, 1
        %s146 = scalar_select %p145, %s16, 1
        %s147 = smul.addr %s146, 54
        %s148 = smul.addr %s147, 4
        %s149 = scalar_lea.vmem %s0, %s148
      $region28: #{tpu_custom_call.1} parent=23 // pred_fallthru
        _
    $region24: #{tpu_custom_call.1} parent=5 // pred_fallthru
      _
    %p150 = scmp.le.s32.totalorder 1, %s9
    %p151 = scmp.lt.s32.totalorder %s9, 3
    %p152 = pnand %p150, %p151
    %p153 = pneg %p152
    // Predicated region
    $region29: #{tpu_custom_call.1} parent=5 // pred_check
      _
    $region30: #{tpu_custom_call.1} parent=5 // pred_check_branch
      %155 = sbr.rel (%p152) target = $region32
    $region31: #{tpu_custom_call.1} parent=5 // pred_region
      %s156 = ssub.s32 %s9, 1
      %p157 = scmp.lt.s32.totalorder %s18, 1
      %s158 = scalar_select %p157, %s18, 1
      %s159 = smul.addr %s158, 54
      %s160 = smul.addr %s159, 4
      %s161 = scalar_lea.vmem %s0, %s160
      %p162 = pneg %p47
      %p163 = pneg %p44
      %p164 = pneg %p68
      %p165 = pneg %p65
      %p166 = pneg %p89
      %p167 = pneg %p86
      %p168 = pneg %p117
      %p169 = pneg %p114
      %s170 = smul.u32 16, %s19
      %p171 = scmp.lt.s32.totalorder %s18, 1
      %s172 = scalar_select %p171, %s18, 1
      %p173 = scmp.lt.s32.totalorder %s170, 15
      %s174 = scalar_select %p173, %s170, 15
      %s175 = smul.addr %s174, 2
      %s176 = smul.addr %s172, 32
      %s177 = sadd.s32 %s175, %s176
      %s178 = smul.addr %s177, 8
      %s179 = scalar_lea.vmem %s3, %s178
      %p180 = scmp.lt.s32.totalorder %s18, 1
      %s181 = scalar_select %p180, %s18, 1
      %s182 = smul.addr %s181, 54
      %s183 = smul.addr %s182, 4
      %s184 = scalar_lea.vmem %s0, %s183
      %s185 = smul.u32 16, %s19
      %p186 = scmp.lt.s32.totalorder %s18, 1
      %s187 = scalar_select %p186, %s18, 1
      %p188 = scmp.lt.s32.totalorder %s185, 15
      %s189 = scalar_select %p188, %s185, 15
      %s190 = smul.addr %s189, 2
      %s191 = smul.addr %s187, 32
      %s192 = sadd.s32 %s190, %s191
      %s193 = smul.addr %s192, 8
      %s194 = scalar_lea.vmem %s3, %s193
      %s195 = smul.u32 16, %s19
      %s197 = smul.u32 %s19, 16
      %s198 = smul.u32 %s197, 3
      %s199 = smul.addr %s198, 4
      %s200 = scalar_lea.vmem %s184, %s199
      %v201 = vld [vmem:[%s200] sm:$0xf]
      %v202 = vld [vmem:[%s200 + $0x4] sm:$0xf]
      %v203 = vld [vmem:[%s200 + $0xc] sm:$0xf]
      %v204 = vld [vmem:[%s200 + $0x10] sm:$0xf]
      %v205 = vld [vmem:[%s200 + $0x18] sm:$0xf]
      %v206 = vld [vmem:[%s200 + $0x1c] sm:$0xf]
      %v207 = vld [vmem:[%s200 + $0x24] sm:$0xf]
      %v208 = vld [vmem:[%s200 + $0x28] sm:$0xf]
      %v209 = vld [vmem:[%s200 + $0x30] sm:$0xf]
      %v210 = vld [vmem:[%s200 + $0x34] sm:$0xf]
      %v211 = vld [vmem:[%s200 + $0x3c] sm:$0xf]
      %v212 = vld [vmem:[%s200 + $0x40] sm:$0xf]
      %v213 = vld [vmem:[%s200 + $0x48] sm:$0xf]
      %v214 = vld [vmem:[%s200 + $0x4c] sm:$0xf]
      %v215 = vld [vmem:[%s200 + $0x54] sm:$0xf]
      %v216 = vld [vmem:[%s200 + $0x58] sm:$0xf]
      %v217 = vld [vmem:[%s200 + $0x60] sm:$0xf]
      %v218 = vld [vmem:[%s200 + $0x64] sm:$0xf]
      %v219 = vld [vmem:[%s200 + $0x6c] sm:$0xf]
      %v220 = vld [vmem:[%s200 + $0x70] sm:$0xf]
      %v221 = vld [vmem:[%s200 + $0x78] sm:$0xf]
      %v222 = vld [vmem:[%s200 + $0x7c] sm:$0xf]
      %v223 = vld [vmem:[%s200 + $0x84] sm:$0xf]
      %v224 = vld [vmem:[%s200 + $0x88] sm:$0xf]
      %v225 = vld [vmem:[%s200 + $0x90] sm:$0xf]
      %v226 = vld [vmem:[%s200 + $0x94] sm:$0xf]
      %v227 = vld [vmem:[%s200 + $0x9c] sm:$0xf]
      %v228 = vld [vmem:[%s200 + $0xa0] sm:$0xf]
      %v229 = vld [vmem:[%s200 + $0xa8] sm:$0xf]
      %v230 = vld [vmem:[%s200 + $0xac] sm:$0xf]
      %v231 = vld [vmem:[%s200 + $0xb4] sm:$0xf]
      %v232 = vld [vmem:[%s200 + $0xb8] sm:$0xf]
      %vm233 = vcmask 27648
      %234 = vst.msk [vmem:[#allocation2] sm:$0xf] %vm233, %v201
      %235 = vst.msk [vmem:[#allocation2 + $0x4] sm:$0xf] %vm233, %v202
      %236 = vst.msk [vmem:[#allocation2 + $0x8] sm:$0xf] %vm233, %v203
      %237 = vst.msk [vmem:[#allocation2 + $0xc] sm:$0xf] %vm233, %v204
      %238 = vst.msk [vmem:[#allocation2 + $0x10] sm:$0xf] %vm233, %v205
      %239 = vst.msk [vmem:[#allocation2 + $0x14] sm:$0xf] %vm233, %v206
      %240 = vst.msk [vmem:[#allocation2 + $0x18] sm:$0xf] %vm233, %v207
      %241 = vst.msk [vmem:[#allocation2 + $0x1c] sm:$0xf] %vm233, %v208
      %242 = vst.msk [vmem:[#allocation2 + $0x20] sm:$0xf] %vm233, %v209
      %243 = vst.msk [vmem:[#allocation2 + $0x24] sm:$0xf] %vm233, %v210
      %244 = vst.msk [vmem:[#allocation2 + $0x28] sm:$0xf] %vm233, %v211
      %245 = vst.msk [vmem:[#allocation2 + $0x2c] sm:$0xf] %vm233, %v212
      %246 = vst.msk [vmem:[#allocation2 + $0x30] sm:$0xf] %vm233, %v213
      %247 = vst.msk [vmem:[#allocation2 + $0x34] sm:$0xf] %vm233, %v214
      %248 = vst.msk [vmem:[#allocation2 + $0x38] sm:$0xf] %vm233, %v215
      %249 = vst.msk [vmem:[#allocation2 + $0x3c] sm:$0xf] %vm233, %v216
      %250 = vst.msk [vmem:[#allocation2 + $0x40] sm:$0xf] %vm233, %v217
      %251 = vst.msk [vmem:[#allocation2 + $0x44] sm:$0xf] %vm233, %v218
      %252 = vst.msk [vmem:[#allocation2 + $0x48] sm:$0xf] %vm233, %v219
      %253 = vst.msk [vmem:[#allocation2 + $0x4c] sm:$0xf] %vm233, %v220
      %254 = vst.msk [vmem:[#allocation2 + $0x50] sm:$0xf] %vm233, %v221
      %255 = vst.msk [vmem:[#allocation2 + $0x54] sm:$0xf] %vm233, %v222
      %256 = vst.msk [vmem:[#allocation2 + $0x58] sm:$0xf] %vm233, %v223
      %257 = vst.msk [vmem:[#allocation2 + $0x5c] sm:$0xf] %vm233, %v224
      %258 = vst.msk [vmem:[#allocation2 + $0x60] sm:$0xf] %vm233, %v225
      %259 = vst.msk [vmem:[#allocation2 + $0x64] sm:$0xf] %vm233, %v226
      %260 = vst.msk [vmem:[#allocation2 + $0x68] sm:$0xf] %vm233, %v227
      %261 = vst.msk [vmem:[#allocation2 + $0x6c] sm:$0xf] %vm233, %v228
      %262 = vst.msk [vmem:[#allocation2 + $0x70] sm:$0xf] %vm233, %v229
      %263 = vst.msk [vmem:[#allocation2 + $0x74] sm:$0xf] %vm233, %v230
      %264 = vst.msk [vmem:[#allocation2 + $0x78] sm:$0xf] %vm233, %v231
      %265 = vst.msk [vmem:[#allocation2 + $0x7c] sm:$0xf] %vm233, %v232
      %v266 = vld [vmem:[%s200] sm:$0xf]
      %v267 = vld [vmem:[%s200 + $0x4] sm:$0xf]
      %v268 = vld [vmem:[%s200 + $0x8] sm:$0x1]
      %v269 = vld [vmem:[%s200 + $0xc] sm:$0xf]
      %v270 = vld [vmem:[%s200 + $0x10] sm:$0xf]
      %v271 = vld [vmem:[%s200 + $0x14] sm:$0x1]
      %v272 = vld [vmem:[%s200 + $0x18] sm:$0xf]
      %v273 = vld [vmem:[%s200 + $0x1c] sm:$0xf]
      %v274 = vld [vmem:[%s200 + $0x20] sm:$0x1]
      %v275 = vld [vmem:[%s200 + $0x24] sm:$0xf]
      %v276 = vld [vmem:[%s200 + $0x28] sm:$0xf]
      %v277 = vld [vmem:[%s200 + $0x2c] sm:$0x1]
      %v278 = vld [vmem:[%s200 + $0x30] sm:$0xf]
      %v279 = vld [vmem:[%s200 + $0x34] sm:$0xf]
      %v280 = vld [vmem:[%s200 + $0x38] sm:$0x1]
      %v281 = vld [vmem:[%s200 + $0x3c] sm:$0xf]
      %v282 = vld [vmem:[%s200 + $0x40] sm:$0xf]
      %v283 = vld [vmem:[%s200 + $0x44] sm:$0x1]
      %v284 = vld [vmem:[%s200 + $0x48] sm:$0xf]
      %v285 = vld [vmem:[%s200 + $0x4c] sm:$0xf]
      %v286 = vld [vmem:[%s200 + $0x50] sm:$0x1]
      %v287 = vld [vmem:[%s200 + $0x54] sm:$0xf]
      %v288 = vld [vmem:[%s200 + $0x58] sm:$0xf]
      %v289 = vld [vmem:[%s200 + $0x5c] sm:$0x1]
      %v290 = vld [vmem:[%s200 + $0x60] sm:$0xf]
      %v291 = vld [vmem:[%s200 + $0x64] sm:$0xf]
      %v292 = vld [vmem:[%s200 + $0x68] sm:$0x1]
      %v293 = vld [vmem:[%s200 + $0x6c] sm:$0xf]
      %v294 = vld [vmem:[%s200 + $0x70] sm:$0xf]
      %v295 = vld [vmem:[%s200 + $0x74] sm:$0x1]
      %v296 = vld [vmem:[%s200 + $0x78] sm:$0xf]
      %v297 = vld [vmem:[%s200 + $0x7c] sm:$0xf]
      %v298 = vld [vmem:[%s200 + $0x80] sm:$0x1]
      %v299 = vld [vmem:[%s200 + $0x84] sm:$0xf]
      %v300 = vld [vmem:[%s200 + $0x88] sm:$0xf]
      %v301 = vld [vmem:[%s200 + $0x8c] sm:$0x1]
      %v302 = vld [vmem:[%s200 + $0x90] sm:$0xf]
      %v303 = vld [vmem:[%s200 + $0x94] sm:$0xf]
      %v304 = vld [vmem:[%s200 + $0x98] sm:$0x1]
      %v305 = vld [vmem:[%s200 + $0x9c] sm:$0xf]
      %v306 = vld [vmem:[%s200 + $0xa0] sm:$0xf]
      %v307 = vld [vmem:[%s200 + $0xa4] sm:$0x1]
      %v308 = vld [vmem:[%s200 + $0xa8] sm:$0xf]
      %v309 = vld [vmem:[%s200 + $0xac] sm:$0xf]
      %v310 = vld [vmem:[%s200 + $0xb0] sm:$0x1]
      %v311 = vld [vmem:[%s200 + $0xb4] sm:$0xf]
      %v312 = vld [vmem:[%s200 + $0xb8] sm:$0xf]
      %v313 = vld [vmem:[%s200 + $0xbc] sm:$0x1]
      %vm314 = vsmask.f32 3328
      %vm315 = vsmask.f32 7440
      %vm316 = vmor %vm314, %vm315
      %v318 = vshrl.u32 %v266, 16
      %v320 = vrot.slane %v318, 4
      %v321 = vshll.u32 %v266, 16
      %v323 = vrot.slane %v321, 5
      %v324 = vor.u32 %v320, %v323
      %v325 = vrot.slane %v324, 4
      %v327 = vshll.u32 %v267, 16
      %v329 = vrot.slane %v327, 5
      %v330 = vsel %vm316, %v325, %v329
      %v331 = vshrl.u32 %v267, 16
      %v333 = vrot.slane %v331, 4
      %v334 = vor.u32 %v333, %v329
      %v335 = vrot.slane %v334, 4
      %v337 = vshll.u32 %v268, 16
      %v339 = vrot.slane %v337, 5
      %v340 = vsel %vm316, %v335, %v339
      %v342 = vshrl.u32 %v269, 16
      %v344 = vrot.slane %v342, 4
      %v345 = vshll.u32 %v269, 16
      %v347 = vrot.slane %v345, 5
      %v348 = vor.u32 %v344, %v347
      %v349 = vrot.slane %v348, 4
      %v351 = vshll.u32 %v270, 16
      %v353 = vrot.slane %v351, 5
      %v354 = vsel %vm316, %v349, %v353
      %v355 = vshrl.u32 %v270, 16
      %v357 = vrot.slane %v355, 4
      %v358 = vor.u32 %v357, %v353
      %v359 = vrot.slane %v358, 4
      %v361 = vshll.u32 %v271, 16
      %v363 = vrot.slane %v361, 5
      %v364 = vsel %vm316, %v359, %v363
      %v366 = vshrl.u32 %v272, 16
      %v368 = vrot.slane %v366, 4
      %v369 = vshll.u32 %v272, 16
      %v371 = vrot.slane %v369, 5
      %v372 = vor.u32 %v368, %v371
      %v373 = vrot.slane %v372, 4
      %v375 = vshll.u32 %v273, 16
      %v377 = vrot.slane %v375, 5
      %v378 = vsel %vm316, %v373, %v377
      %v379 = vshrl.u32 %v273, 16
      %v381 = vrot.slane %v379, 4
      %v382 = vor.u32 %v381, %v377
      %v383 = vrot.slane %v382, 4
      %v385 = vshll.u32 %v274, 16
      %v387 = vrot.slane %v385, 5
      %v388 = vsel %vm316, %v383, %v387
      %v390 = vshrl.u32 %v275, 16
      %v392 = vrot.slane %v390, 4
      %v393 = vshll.u32 %v275, 16
      %v395 = vrot.slane %v393, 5
      %v396 = vor.u32 %v392, %v395
      %v397 = vrot.slane %v396, 4
      %v399 = vshll.u32 %v276, 16
      %v401 = vrot.slane %v399, 5
      %v402 = vsel %vm316, %v397, %v401
      %v403 = vshrl.u32 %v276, 16
      %v405 = vrot.slane %v403, 4
      %v406 = vor.u32 %v405, %v401
      %v407 = vrot.slane %v406, 4
      %v409 = vshll.u32 %v277, 16
      %v411 = vrot.slane %v409, 5
      %v412 = vsel %vm316, %v407, %v411
      %v414 = vshrl.u32 %v278, 16
      %v416 = vrot.slane %v414, 4
      %v417 = vshll.u32 %v278, 16
      %v419 = vrot.slane %v417, 5
      %v420 = vor.u32 %v416, %v419
      %v421 = vrot.slane %v420, 4
      %v423 = vshll.u32 %v279, 16
      %v425 = vrot.slane %v423, 5
      %v426 = vsel %vm316, %v421, %v425
      %v427 = vshrl.u32 %v279, 16
      %v429 = vrot.slane %v427, 4
      %v430 = vor.u32 %v429, %v425
      %v431 = vrot.slane %v430, 4
      %v433 = vshll.u32 %v280, 16
      %v435 = vrot.slane %v433, 5
      %v436 = vsel %vm316, %v431, %v435
      %v438 = vshrl.u32 %v281, 16
      %v440 = vrot.slane %v438, 4
      %v441 = vshll.u32 %v281, 16
      %v443 = vrot.slane %v441, 5
      %v444 = vor.u32 %v440, %v443
      %v445 = vrot.slane %v444, 4
      %v447 = vshll.u32 %v282, 16
      %v449 = vrot.slane %v447, 5
      %v450 = vsel %vm316, %v445, %v449
      %v451 = vshrl.u32 %v282, 16
      %v453 = vrot.slane %v451, 4
      %v454 = vor.u32 %v453, %v449
      %v455 = vrot.slane %v454, 4
      %v457 = vshll.u32 %v283, 16
      %v459 = vrot.slane %v457, 5
      %v460 = vsel %vm316, %v455, %v459
      %v462 = vshrl.u32 %v284, 16
      %v464 = vrot.slane %v462, 4
      %v465 = vshll.u32 %v284, 16
      %v467 = vrot.slane %v465, 5
      %v468 = vor.u32 %v464, %v467
      %v469 = vrot.slane %v468, 4
      %v471 = vshll.u32 %v285, 16
      %v473 = vrot.slane %v471, 5
      %v474 = vsel %vm316, %v469, %v473
      %v475 = vshrl.u32 %v285, 16
      %v477 = vrot.slane %v475, 4
      %v478 = vor.u32 %v477, %v473
      %v479 = vrot.slane %v478, 4
      %v481 = vshll.u32 %v286, 16
      %v483 = vrot.slane %v481, 5
      %v484 = vsel %vm316, %v479, %v483
      %v486 = vshrl.u32 %v287, 16
      %v488 = vrot.slane %v486, 4
      %v489 = vshll.u32 %v287, 16
      %v491 = vrot.slane %v489, 5
      %v492 = vor.u32 %v488, %v491
      %v493 = vrot.slane %v492, 4
      %v495 = vshll.u32 %v288, 16
      %v497 = vrot.slane %v495, 5
      %v498 = vsel %vm316, %v493, %v497
      %v499 = vshrl.u32 %v288, 16
      %v501 = vrot.slane %v499, 4
      %v502 = vor.u32 %v501, %v497
      %v503 = vrot.slane %v502, 4
      %v505 = vshll.u32 %v289, 16
      %v507 = vrot.slane %v505, 5
      %v508 = vsel %vm316, %v503, %v507
      %v510 = vshrl.u32 %v290, 16
      %v512 = vrot.slane %v510, 4
      %v513 = vshll.u32 %v290, 16
      %v515 = vrot.slane %v513, 5
      %v516 = vor.u32 %v512, %v515
      %v517 = vrot.slane %v516, 4
      %v519 = vshll.u32 %v291, 16
      %v521 = vrot.slane %v519, 5
      %v522 = vsel %vm316, %v517, %v521
      %v523 = vshrl.u32 %v291, 16
      %v525 = vrot.slane %v523, 4
      %v526 = vor.u32 %v525, %v521
      %v527 = vrot.slane %v526, 4
      %v529 = vshll.u32 %v292, 16
      %v531 = vrot.slane %v529, 5
      %v532 = vsel %vm316, %v527, %v531
      %v534 = vshrl.u32 %v293, 16
      %v536 = vrot.slane %v534, 4
      %v537 = vshll.u32 %v293, 16
      %v539 = vrot.slane %v537, 5
      %v540 = vor.u32 %v536, %v539
      %v541 = vrot.slane %v540, 4
      %v543 = vshll.u32 %v294, 16
      %v545 = vrot.slane %v543, 5
      %v546 = vsel %vm316, %v541, %v545
      %v547 = vshrl.u32 %v294, 16
      %v549 = vrot.slane %v547, 4
      %v550 = vor.u32 %v549, %v545
      %v551 = vrot.slane %v550, 4
      %v553 = vshll.u32 %v295, 16
      %v555 = vrot.slane %v553, 5
      %v556 = vsel %vm316, %v551, %v555
      %v558 = vshrl.u32 %v296, 16
      %v560 = vrot.slane %v558, 4
      %v561 = vshll.u32 %v296, 16
      %v563 = vrot.slane %v561, 5
      %v564 = vor.u32 %v560, %v563
      %v565 = vrot.slane %v564, 4
      %v567 = vshll.u32 %v297, 16
      %v569 = vrot.slane %v567, 5
      %v570 = vsel %vm316, %v565, %v569
      %v571 = vshrl.u32 %v297, 16
      %v573 = vrot.slane %v571, 4
      %v574 = vor.u32 %v573, %v569
      %v575 = vrot.slane %v574, 4
      %v577 = vshll.u32 %v298, 16
      %v579 = vrot.slane %v577, 5
      %v580 = vsel %vm316, %v575, %v579
      %v582 = vshrl.u32 %v299, 16
      %v584 = vrot.slane %v582, 4
      %v585 = vshll.u32 %v299, 16
      %v587 = vrot.slane %v585, 5
      %v588 = vor.u32 %v584, %v587
      %v589 = vrot.slane %v588, 4
      %v591 = vshll.u32 %v300, 16
      %v593 = vrot.slane %v591, 5
      %v594 = vsel %vm316, %v589, %v593
      %v595 = vshrl.u32 %v300, 16
      %v597 = vrot.slane %v595, 4
      %v598 = vor.u32 %v597, %v593
      %v599 = vrot.slane %v598, 4
      %v601 = vshll.u32 %v301, 16
      %v603 = vrot.slane %v601, 5
      %v604 = vsel %vm316, %v599, %v603
      %v606 = vshrl.u32 %v302, 16
      %v608 = vrot.slane %v606, 4
      %v609 = vshll.u32 %v302, 16
      %v611 = vrot.slane %v609, 5
      %v612 = vor.u32 %v608, %v611
      %v613 = vrot.slane %v612, 4
      %v615 = vshll.u32 %v303, 16
      %v617 = vrot.slane %v615, 5
      %v618 = vsel %vm316, %v613, %v617
      %v619 = vshrl.u32 %v303, 16
      %v621 = vrot.slane %v619, 4
      %v622 = vor.u32 %v621, %v617
      %v623 = vrot.slane %v622, 4
      %v625 = vshll.u32 %v304, 16
      %v627 = vrot.slane %v625, 5
      %v628 = vsel %vm316, %v623, %v627
      %v630 = vshrl.u32 %v305, 16
      %v632 = vrot.slane %v630, 4
      %v633 = vshll.u32 %v305, 16
      %v635 = vrot.slane %v633, 5
      %v636 = vor.u32 %v632, %v635
      %v637 = vrot.slane %v636, 4
      %v639 = vshll.u32 %v306, 16
      %v641 = vrot.slane %v639, 5
      %v642 = vsel %vm316, %v637, %v641
      %v643 = vshrl.u32 %v306, 16
      %v645 = vrot.slane %v643, 4
      %v646 = vor.u32 %v645, %v641
      %v647 = vrot.slane %v646, 4
      %v649 = vshll.u32 %v307, 16
      %v651 = vrot.slane %v649, 5
      %v652 = vsel %vm316, %v647, %v651
      %v654 = vshrl.u32 %v308, 16
      %v656 = vrot.slane %v654, 4
      %v657 = vshll.u32 %v308, 16
      %v659 = vrot.slane %v657, 5
      %v660 = vor.u32 %v656, %v659
      %v661 = vrot.slane %v660, 4
      %v663 = vshll.u32 %v309, 16
      %v665 = vrot.slane %v663, 5
      %v666 = vsel %vm316, %v661, %v665
      %v667 = vshrl.u32 %v309, 16
      %v669 = vrot.slane %v667, 4
      %v670 = vor.u32 %v669, %v665
      %v671 = vrot.slane %v670, 4
      %v673 = vshll.u32 %v310, 16
      %v675 = vrot.slane %v673, 5
      %v676 = vsel %vm316, %v671, %v675
      %v678 = vshrl.u32 %v311, 16
      %v680 = vrot.slane %v678, 4
      %v681 = vshll.u32 %v311, 16
      %v683 = vrot.slane %v681, 5
      %v684 = vor.u32 %v680, %v683
      %v685 = vrot.slane %v684, 4
      %v687 = vshll.u32 %v312, 16
      %v689 = vrot.slane %v687, 5
      %v690 = vsel %vm316, %v685, %v689
      %v691 = vshrl.u32 %v312, 16
      %v693 = vrot.slane %v691, 4
      %v694 = vor.u32 %v693, %v689
      %v695 = vrot.slane %v694, 4
      %v697 = vshll.u32 %v313, 16
      %v699 = vrot.slane %v697, 5
      %v700 = vsel %vm316, %v695, %v699
      %701 = vrot.lane.b32.xlu0 %v330, 4
      %v702 = vpop.permute.xlu0 %701
      %703 = vrot.lane.b32.xlu0 %v340, 4
      %v704 = vpop.permute.xlu0 %703
      %705 = vrot.lane.b32.xlu0 %v354, 4
      %v706 = vpop.permute.xlu0 %705
      %707 = vrot.lane.b32.xlu0 %v364, 4
      %v708 = vpop.permute.xlu0 %707
      %709 = vrot.lane.b32.xlu0 %v378, 4
      %v710 = vpop.permute.xlu0 %709
      %711 = vrot.lane.b32.xlu0 %v388, 4
      %v712 = vpop.permute.xlu0 %711
      %713 = vrot.lane.b32.xlu0 %v402, 4
      %v714 = vpop.permute.xlu0 %713
      %715 = vrot.lane.b32.xlu0 %v412, 4
      %v716 = vpop.permute.xlu0 %715
      %717 = vrot.lane.b32.xlu0 %v426, 4
      %v718 = vpop.permute.xlu0 %717
      %719 = vrot.lane.b32.xlu0 %v436, 4
      %v720 = vpop.permute.xlu0 %719
      %721 = vrot.lane.b32.xlu0 %v450, 4
      %v722 = vpop.permute.xlu0 %721
      %723 = vrot.lane.b32.xlu0 %v460, 4
      %v724 = vpop.permute.xlu0 %723
      %725 = vrot.lane.b32.xlu0 %v474, 4
      %v726 = vpop.permute.xlu0 %725
      %727 = vrot.lane.b32.xlu0 %v484, 4
      %v728 = vpop.permute.xlu0 %727
      %729 = vrot.lane.b32.xlu0 %v498, 4
      %v730 = vpop.permute.xlu0 %729
      %731 = vrot.lane.b32.xlu0 %v508, 4
      %v732 = vpop.permute.xlu0 %731
      %733 = vrot.lane.b32.xlu0 %v522, 4
      %v734 = vpop.permute.xlu0 %733
      %735 = vrot.lane.b32.xlu0 %v532, 4
      %v736 = vpop.permute.xlu0 %735
      %737 = vrot.lane.b32.xlu0 %v546, 4
      %v738 = vpop.permute.xlu0 %737
      %739 = vrot.lane.b32.xlu0 %v556, 4
      %v740 = vpop.permute.xlu0 %739
      %741 = vrot.lane.b32.xlu0 %v570, 4
      %v742 = vpop.permute.xlu0 %741
      %743 = vrot.lane.b32.xlu0 %v580, 4
      %v744 = vpop.permute.xlu0 %743
      %745 = vrot.lane.b32.xlu0 %v594, 4
      %v746 = vpop.permute.xlu0 %745
      %747 = vrot.lane.b32.xlu0 %v604, 4
      %v748 = vpop.permute.xlu0 %747
      %749 = vrot.lane.b32.xlu0 %v618, 4
      %v750 = vpop.permute.xlu0 %749
      %751 = vrot.lane.b32.xlu0 %v628, 4
      %v752 = vpop.permute.xlu0 %751
      %753 = vrot.lane.b32.xlu0 %v642, 4
      %v754 = vpop.permute.xlu0 %753
      %755 = vrot.lane.b32.xlu0 %v652, 4
      %v756 = vpop.permute.xlu0 %755
      %757 = vrot.lane.b32.xlu0 %v666, 4
      %v758 = vpop.permute.xlu0 %757
      %759 = vrot.lane.b32.xlu0 %v676, 4
      %v760 = vpop.permute.xlu0 %759
      %761 = vrot.lane.b32.xlu0 %v690, 4
      %v762 = vpop.permute.xlu0 %761
      %763 = vrot.lane.b32.xlu0 %v700, 4
      %v764 = vpop.permute.xlu0 %763
      %vm797 = vcmask 60448
      %798 = vst.msk [vmem:[#allocation2] sm:$0xf] %vm797, %v702
      %799 = vst.msk [vmem:[#allocation2 + $0x4] sm:$0xf] %vm797, %v704
      %800 = vst.msk [vmem:[#allocation2 + $0x8] sm:$0xf] %vm797, %v706
      %801 = vst.msk [vmem:[#allocation2 + $0xc] sm:$0xf] %vm797, %v708
      %802 = vst.msk [vmem:[#allocation2 + $0x10] sm:$0xf] %vm797, %v710
      %803 = vst.msk [vmem:[#allocation2 + $0x14] sm:$0xf] %vm797, %v712
      %804 = vst.msk [vmem:[#allocation2 + $0x18] sm:$0xf] %vm797, %v714
      %805 = vst.msk [vmem:[#allocation2 + $0x1c] sm:$0xf] %vm797, %v716
      %806 = vst.msk [vmem:[#allocation2 + $0x20] sm:$0xf] %vm797, %v718
      %807 = vst.msk [vmem:[#allocation2 + $0x24] sm:$0xf] %vm797, %v720
      %808 = vst.msk [vmem:[#allocation2 + $0x28] sm:$0xf] %vm797, %v722
      %809 = vst.msk [vmem:[#allocation2 + $0x2c] sm:$0xf] %vm797, %v724
      %810 = vst.msk [vmem:[#allocation2 + $0x30] sm:$0xf] %vm797, %v726
      %811 = vst.msk [vmem:[#allocation2 + $0x34] sm:$0xf] %vm797, %v728
      %812 = vst.msk [vmem:[#allocation2 + $0x38] sm:$0xf] %vm797, %v730
      %813 = vst.msk [vmem:[#allocation2 + $0x3c] sm:$0xf] %vm797, %v732
      %814 = vst.msk [vmem:[#allocation2 + $0x40] sm:$0xf] %vm797, %v734
      %815 = vst.msk [vmem:[#allocation2 + $0x44] sm:$0xf] %vm797, %v736
      %816 = vst.msk [vmem:[#allocation2 + $0x48] sm:$0xf] %vm797, %v738
      %817 = vst.msk [vmem:[#allocation2 + $0x4c] sm:$0xf] %vm797, %v740
      %818 = vst.msk [vmem:[#allocation2 + $0x50] sm:$0xf] %vm797, %v742
      %819 = vst.msk [vmem:[#allocation2 + $0x54] sm:$0xf] %vm797, %v744
      %820 = vst.msk [vmem:[#allocation2 + $0x58] sm:$0xf] %vm797, %v746
      %821 = vst.msk [vmem:[#allocation2 + $0x5c] sm:$0xf] %vm797, %v748
      %822 = vst.msk [vmem:[#allocation2 + $0x60] sm:$0xf] %vm797, %v750
      %823 = vst.msk [vmem:[#allocation2 + $0x64] sm:$0xf] %vm797, %v752
      %824 = vst.msk [vmem:[#allocation2 + $0x68] sm:$0xf] %vm797, %v754
      %825 = vst.msk [vmem:[#allocation2 + $0x6c] sm:$0xf] %vm797, %v756
      %826 = vst.msk [vmem:[#allocation2 + $0x70] sm:$0xf] %vm797, %v758
      %827 = vst.msk [vmem:[#allocation2 + $0x74] sm:$0xf] %vm797, %v760
      %828 = vst.msk [vmem:[#allocation2 + $0x78] sm:$0xf] %vm797, %v762
      %829 = vst.msk [vmem:[#allocation2 + $0x7c] sm:$0xf] %vm797, %v764
      %v830 = vld [vmem:[%s200] sm:$0xe]
      %v831 = vld [vmem:[%s200 + $0x4] sm:$0xf]
      %v832 = vld [vmem:[%s200 + $0x8] sm:$0x1]
      %v833 = vld [vmem:[%s200 + $0xc] sm:$0xe]
      %v834 = vld [vmem:[%s200 + $0x10] sm:$0xf]
      %v835 = vld [vmem:[%s200 + $0x14] sm:$0x1]
      %v836 = vld [vmem:[%s200 + $0x18] sm:$0xe]
      %v837 = vld [vmem:[%s200 + $0x1c] sm:$0xf]
      %v838 = vld [vmem:[%s200 + $0x20] sm:$0x1]
      %v839 = vld [vmem:[%s200 + $0x24] sm:$0xe]
      %v840 = vld [vmem:[%s200 + $0x28] sm:$0xf]
      %v841 = vld [vmem:[%s200 + $0x2c] sm:$0x1]
      %v842 = vld [vmem:[%s200 + $0x30] sm:$0xe]
      %v843 = vld [vmem:[%s200 + $0x34] sm:$0xf]
      %v844 = vld [vmem:[%s200 + $0x38] sm:$0x1]
      %v845 = vld [vmem:[%s200 + $0x3c] sm:$0xe]
      %v846 = vld [vmem:[%s200 + $0x40] sm:$0xf]
      %v847 = vld [vmem:[%s200 + $0x44] sm:$0x1]
      %v848 = vld [vmem:[%s200 + $0x48] sm:$0xe]
      %v849 = vld [vmem:[%s200 + $0x4c] sm:$0xf]
      %v850 = vld [vmem:[%s200 + $0x50] sm:$0x1]
      %v851 = vld [vmem:[%s200 + $0x54] sm:$0xe]
      %v852 = vld [vmem:[%s200 + $0x58] sm:$0xf]
      %v853 = vld [vmem:[%s200 + $0x5c] sm:$0x1]
      %v854 = vld [vmem:[%s200 + $0x60] sm:$0xe]
      %v855 = vld [vmem:[%s200 + $0x64] sm:$0xf]
      %v856 = vld [vmem:[%s200 + $0x68] sm:$0x1]
      %v857 = vld [vmem:[%s200 + $0x6c] sm:$0xe]
      %v858 = vld [vmem:[%s200 + $0x70] sm:$0xf]
      %v859 = vld [vmem:[%s200 + $0x74] sm:$0x1]
      %v860 = vld [vmem:[%s200 + $0x78] sm:$0xe]
      %v861 = vld [vmem:[%s200 + $0x7c] sm:$0xf]
      %v862 = vld [vmem:[%s200 + $0x80] sm:$0x1]
      %v863 = vld [vmem:[%s200 + $0x84] sm:$0xe]
      %v864 = vld [vmem:[%s200 + $0x88] sm:$0xf]
      %v865 = vld [vmem:[%s200 + $0x8c] sm:$0x1]
      %v866 = vld [vmem:[%s200 + $0x90] sm:$0xe]
      %v867 = vld [vmem:[%s200 + $0x94] sm:$0xf]
      %v868 = vld [vmem:[%s200 + $0x98] sm:$0x1]
      %v869 = vld [vmem:[%s200 + $0x9c] sm:$0xe]
      %v870 = vld [vmem:[%s200 + $0xa0] sm:$0xf]
      %v871 = vld [vmem:[%s200 + $0xa4] sm:$0x1]
      %v872 = vld [vmem:[%s200 + $0xa8] sm:$0xe]
      %v873 = vld [vmem:[%s200 + $0xac] sm:$0xf]
      %v874 = vld [vmem:[%s200 + $0xb0] sm:$0x1]
      %v875 = vld [vmem:[%s200 + $0xb4] sm:$0xe]
      %v876 = vld [vmem:[%s200 + $0xb8] sm:$0xf]
      %v877 = vld [vmem:[%s200 + $0xbc] sm:$0x1]
      %vm926 = vcmask 1042432
      %vm927 = vcmask 1046532
      %vm928 = vmor %vm926, %vm927
      %v929 = vrot.slane %v830, 5
      %v930 = vrot.slane %v929, 4
      %v931 = vrot.slane %v831, 5
      %v932 = vsel %vm928, %v930, %v931
      %v933 = vrot.slane %v931, 4
      %v934 = vrot.slane %v832, 5
      %v935 = vsel %vm928, %v933, %v934
      %v936 = vrot.slane %v833, 5
      %v937 = vrot.slane %v936, 4
      %v938 = vrot.slane %v834, 5
      %v939 = vsel %vm928, %v937, %v938
      %v940 = vrot.slane %v938, 4
      %v941 = vrot.slane %v835, 5
      %v942 = vsel %vm928, %v940, %v941
      %v943 = vrot.slane %v836, 5
      %v944 = vrot.slane %v943, 4
      %v945 = vrot.slane %v837, 5
      %v946 = vsel %vm928, %v944, %v945
      %v947 = vrot.slane %v945, 4
      %v948 = vrot.slane %v838, 5
      %v949 = vsel %vm928, %v947, %v948
      %v950 = vrot.slane %v839, 5
      %v951 = vrot.slane %v950, 4
      %v952 = vrot.slane %v840, 5
      %v953 = vsel %vm928, %v951, %v952
      %v954 = vrot.slane %v952, 4
      %v955 = vrot.slane %v841, 5
      %v956 = vsel %vm928, %v954, %v955
      %v957 = vrot.slane %v842, 5
      %v958 = vrot.slane %v957, 4
      %v959 = vrot.slane %v843, 5
      %v960 = vsel %vm928, %v958, %v959
      %v961 = vrot.slane %v959, 4
      %v962 = vrot.slane %v844, 5
      %v963 = vsel %vm928, %v961, %v962
      %v964 = vrot.slane %v845, 5
      %v965 = vrot.slane %v964, 4
      %v966 = vrot.slane %v846, 5
      %v967 = vsel %vm928, %v965, %v966
      %v968 = vrot.slane %v966, 4
      %v969 = vrot.slane %v847, 5
      %v970 = vsel %vm928, %v968, %v969
      %v971 = vrot.slane %v848, 5
      %v972 = vrot.slane %v971, 4
      %v973 = vrot.slane %v849, 5
      %v974 = vsel %vm928, %v972, %v973
      %v975 = vrot.slane %v973, 4
      %v976 = vrot.slane %v850, 5
      %v977 = vsel %vm928, %v975, %v976
      %v978 = vrot.slane %v851, 5
      %v979 = vrot.slane %v978, 4
      %v980 = vrot.slane %v852, 5
      %v981 = vsel %vm928, %v979, %v980
      %v982 = vrot.slane %v980, 4
      %v983 = vrot.slane %v853, 5
      %v984 = vsel %vm928, %v982, %v983
      %v985 = vrot.slane %v854, 5
      %v986 = vrot.slane %v985, 4
      %v987 = vrot.slane %v855, 5
      %v988 = vsel %vm928, %v986, %v987
      %v989 = vrot.slane %v987, 4
      %v990 = vrot.slane %v856, 5
      %v991 = vsel %vm928, %v989, %v990
      %v992 = vrot.slane %v857, 5
      %v993 = vrot.slane %v992, 4
      %v994 = vrot.slane %v858, 5
      %v995 = vsel %vm928, %v993, %v994
      %v996 = vrot.slane %v994, 4
      %v997 = vrot.slane %v859, 5
      %v998 = vsel %vm928, %v996, %v997
      %v999 = vrot.slane %v860, 5
      %v1000 = vrot.slane %v999, 4
      %v1001 = vrot.slane %v861, 5
      %v1002 = vsel %vm928, %v1000, %v1001
      %v1003 = vrot.slane %v1001, 4
      %v1004 = vrot.slane %v862, 5
      %v1005 = vsel %vm928, %v1003, %v1004
      %v1006 = vrot.slane %v863, 5
      %v1007 = vrot.slane %v1006, 4
      %v1008 = vrot.slane %v864, 5
      %v1009 = vsel %vm928, %v1007, %v1008
      %v1010 = vrot.slane %v1008, 4
      %v1011 = vrot.slane %v865, 5
      %v1012 = vsel %vm928, %v1010, %v1011
      %v1013 = vrot.slane %v866, 5
      %v1014 = vrot.slane %v1013, 4
      %v1015 = vrot.slane %v867, 5
      %v1016 = vsel %vm928, %v1014, %v1015
      %v1017 = vrot.slane %v1015, 4
      %v1018 = vrot.slane %v868, 5
      %v1019 = vsel %vm928, %v1017, %v1018
      %v1020 = vrot.slane %v869, 5
      %v1021 = vrot.slane %v1020, 4
      %v1022 = vrot.slane %v870, 5
      %v1023 = vsel %vm928, %v1021, %v1022
      %v1024 = vrot.slane %v1022, 4
      %v1025 = vrot.slane %v871, 5
      %v1026 = vsel %vm928, %v1024, %v1025
      %v1027 = vrot.slane %v872, 5
      %v1028 = vrot.slane %v1027, 4
      %v1029 = vrot.slane %v873, 5
      %v1030 = vsel %vm928, %v1028, %v1029
      %v1031 = vrot.slane %v1029, 4
      %v1032 = vrot.slane %v874, 5
      %v1033 = vsel %vm928, %v1031, %v1032
      %v1034 = vrot.slane %v875, 5
      %v1035 = vrot.slane %v1034, 4
      %v1036 = vrot.slane %v876, 5
      %v1037 = vsel %vm928, %v1035, %v1036
      %v1038 = vrot.slane %v1036, 4
      %v1039 = vrot.slane %v877, 5
      %v1040 = vsel %vm928, %v1038, %v1039
      %1041 = vrot.lane.b32.xlu0 %v932, 8
      %v1042 = vpop.permute.xlu0 %1041
      %1043 = vrot.lane.b32.xlu0 %v935, 8
      %v1044 = vpop.permute.xlu0 %1043
      %1045 = vrot.lane.b32.xlu0 %v939, 8
      %v1046 = vpop.permute.xlu0 %1045
      %1047 = vrot.lane.b32.xlu0 %v942, 8
      %v1048 = vpop.permute.xlu0 %1047
      %1049 = vrot.lane.b32.xlu0 %v946, 8
      %v1050 = vpop.permute.xlu0 %1049
      %1051 = vrot.lane.b32.xlu0 %v949, 8
      %v1052 = vpop.permute.xlu0 %1051
      %1053 = vrot.lane.b32.xlu0 %v953, 8
      %v1054 = vpop.permute.xlu0 %1053
      %1055 = vrot.lane.b32.xlu0 %v956, 8
      %v1056 = vpop.permute.xlu0 %1055
      %1057 = vrot.lane.b32.xlu0 %v960, 8
      %v1058 = vpop.permute.xlu0 %1057
      %1059 = vrot.lane.b32.xlu0 %v963, 8
      %v1060 = vpop.permute.xlu0 %1059
      %1061 = vrot.lane.b32.xlu0 %v967, 8
      %v1062 = vpop.permute.xlu0 %1061
      %1063 = vrot.lane.b32.xlu0 %v970, 8
      %v1064 = vpop.permute.xlu0 %1063
      %1065 = vrot.lane.b32.xlu0 %v974, 8
      %v1066 = vpop.permute.xlu0 %1065
      %1067 = vrot.lane.b32.xlu0 %v977, 8
      %v1068 = vpop.permute.xlu0 %1067
      %1069 = vrot.lane.b32.xlu0 %v981, 8
      %v1070 = vpop.permute.xlu0 %1069
      %1071 = vrot.lane.b32.xlu0 %v984, 8
      %v1072 = vpop.permute.xlu0 %1071
      %1073 = vrot.lane.b32.xlu0 %v988, 8
      %v1074 = vpop.permute.xlu0 %1073
      %1075 = vrot.lane.b32.xlu0 %v991, 8
      %v1076 = vpop.permute.xlu0 %1075
      %1077 = vrot.lane.b32.xlu0 %v995, 8
      %v1078 = vpop.permute.xlu0 %1077
      %1079 = vrot.lane.b32.xlu0 %v998, 8
      %v1080 = vpop.permute.xlu0 %1079
      %1081 = vrot.lane.b32.xlu0 %v1002, 8
      %v1082 = vpop.permute.xlu0 %1081
      %1083 = vrot.lane.b32.xlu0 %v1005, 8
      %v1084 = vpop.permute.xlu0 %1083
      %1085 = vrot.lane.b32.xlu0 %v1009, 8
      %v1086 = vpop.permute.xlu0 %1085
      %1087 = vrot.lane.b32.xlu0 %v1012, 8
      %v1088 = vpop.permute.xlu0 %1087
      %1089 = vrot.lane.b32.xlu0 %v1016, 8
      %v1090 = vpop.permute.xlu0 %1089
      %1091 = vrot.lane.b32.xlu0 %v1019, 8
      %v1092 = vpop.permute.xlu0 %1091
      %1093 = vrot.lane.b32.xlu0 %v1023, 8
      %v1094 = vpop.permute.xlu0 %1093
      %1095 = vrot.lane.b32.xlu0 %v1026, 8
      %v1096 = vpop.permute.xlu0 %1095
      %1097 = vrot.lane.b32.xlu0 %v1030, 8
      %v1098 = vpop.permute.xlu0 %1097
      %1099 = vrot.lane.b32.xlu0 %v1033, 8
      %v1100 = vpop.permute.xlu0 %1099
      %1101 = vrot.lane.b32.xlu0 %v1037, 8
      %v1102 = vpop.permute.xlu0 %1101
      %1103 = vrot.lane.b32.xlu0 %v1040, 8
      %v1104 = vpop.permute.xlu0 %1103
      %vm1137 = vcmask 93248
      %1138 = vst.msk [vmem:[#allocation2] sm:$0xf] %vm1137, %v1042
      %1139 = vst.msk [vmem:[#allocation2 + $0x4] sm:$0xf] %vm1137, %v1044
      %1140 = vst.msk [vmem:[#allocation2 + $0x8] sm:$0xf] %vm1137, %v1046
      %1141 = vst.msk [vmem:[#allocation2 + $0xc] sm:$0xf] %vm1137, %v1048
      %1142 = vst.msk [vmem:[#allocation2 + $0x10] sm:$0xf] %vm1137, %v1050
      %1143 = vst.msk [vmem:[#allocation2 + $0x14] sm:$0xf] %vm1137, %v1052
      %1144 = vst.msk [vmem:[#allocation2 + $0x18] sm:$0xf] %vm1137, %v1054
      %1145 = vst.msk [vmem:[#allocation2 + $0x1c] sm:$0xf] %vm1137, %v1056
      %1146 = vst.msk [vmem:[#allocation2 + $0x20] sm:$0xf] %vm1137, %v1058
      %1147 = vst.msk [vmem:[#allocation2 + $0x24] sm:$0xf] %vm1137, %v1060
      %1148 = vst.msk [vmem:[#allocation2 + $0x28] sm:$0xf] %vm1137, %v1062
      %1149 = vst.msk [vmem:[#allocation2 + $0x2c] sm:$0xf] %vm1137, %v1064
      %1150 = vst.msk [vmem:[#allocation2 + $0x30] sm:$0xf] %vm1137, %v1066
      %1151 = vst.msk [vmem:[#allocation2 + $0x34] sm:$0xf] %vm1137, %v1068
      %1152 = vst.msk [vmem:[#allocation2 + $0x38] sm:$0xf] %vm1137, %v1070
      %1153 = vst.msk [vmem:[#allocation2 + $0x3c] sm:$0xf] %vm1137, %v1072
      %1154 = vst.msk [vmem:[#allocation2 + $0x40] sm:$0xf] %vm1137, %v1074
      %1155 = vst.msk [vmem:[#allocation2 + $0x44] sm:$0xf] %vm1137, %v1076
      %1156 = vst.msk [vmem:[#allocation2 + $0x48] sm:$0xf] %vm1137, %v1078
      %1157 = vst.msk [vmem:[#allocation2 + $0x4c] sm:$0xf] %vm1137, %v1080
      %1158 = vst.msk [vmem:[#allocation2 + $0x50] sm:$0xf] %vm1137, %v1082
      %1159 = vst.msk [vmem:[#allocation2 + $0x54] sm:$0xf] %vm1137, %v1084
      %1160 = vst.msk [vmem:[#allocation2 + $0x58] sm:$0xf] %vm1137, %v1086
      %1161 = vst.msk [vmem:[#allocation2 + $0x5c] sm:$0xf] %vm1137, %v1088
      %1162 = vst.msk [vmem:[#allocation2 + $0x60] sm:$0xf] %vm1137, %v1090
      %1163 = vst.msk [vmem:[#allocation2 + $0x64] sm:$0xf] %vm1137, %v1092
      %1164 = vst.msk [vmem:[#allocation2 + $0x68] sm:$0xf] %vm1137, %v1094
      %1165 = vst.msk [vmem:[#allocation2 + $0x6c] sm:$0xf] %vm1137, %v1096
      %1166 = vst.msk [vmem:[#allocation2 + $0x70] sm:$0xf] %vm1137, %v1098
      %1167 = vst.msk [vmem:[#allocation2 + $0x74] sm:$0xf] %vm1137, %v1100
      %1168 = vst.msk [vmem:[#allocation2 + $0x78] sm:$0xf] %vm1137, %v1102
      %1169 = vst.msk [vmem:[#allocation2 + $0x7c] sm:$0xf] %vm1137, %v1104
      %s1170 = sadd.s32 %s197, 1
      %s1171 = smul.u32 %s1170, 3
      %s1172 = smul.addr %s1171, 4
      %s1173 = scalar_lea.vmem %s184, %s1172
      %v1174 = vld [vmem:[%s1173] sm:$0xf]
      %v1175 = vld [vmem:[%s1173 + $0x4] sm:$0xf]
      %v1176 = vld [vmem:[%s1173 + $0xc] sm:$0xf]
      %v1177 = vld [vmem:[%s1173 + $0x10] sm:$0xf]
      %v1178 = vld [vmem:[%s1173 + $0x18] sm:$0xf]
      %v1179 = vld [vmem:[%s1173 + $0x1c] sm:$0xf]
      %v1180 = vld [vmem:[%s1173 + $0x24] sm:$0xf]
      %v1181 = vld [vmem:[%s1173 + $0x28] sm:$0xf]
      %v1182 = vld [vmem:[%s1173 + $0x30] sm:$0xf]
      %v1183 = vld [vmem:[%s1173 + $0x34] sm:$0xf]
      %v1184 = vld [vmem:[%s1173 + $0x3c] sm:$0xf]
      %v1185 = vld [vmem:[%s1173 + $0x40] sm:$0xf]
      %v1186 = vld [vmem:[%s1173 + $0x48] sm:$0xf]
      %v1187 = vld [vmem:[%s1173 + $0x4c] sm:$0xf]
      %v1188 = vld [vmem:[%s1173 + $0x54] sm:$0xf]
      %v1189 = vld [vmem:[%s1173 + $0x58] sm:$0xf]
      %v1190 = vld [vmem:[%s1173 + $0x60] sm:$0xf]
      %v1191 = vld [vmem:[%s1173 + $0x64] sm:$0xf]
      %v1192 = vld [vmem:[%s1173 + $0x6c] sm:$0xf]
      %v1193 = vld [vmem:[%s1173 + $0x70] sm:$0xf]
      %v1194 = vld [vmem:[%s1173 + $0x78] sm:$0xf]
      %v1195 = vld [vmem:[%s1173 + $0x7c] sm:$0xf]
      %v1196 = vld [vmem:[%s1173 + $0x84] sm:$0xf]
      %v1197 = vld [vmem:[%s1173 + $0x88] sm:$0xf]
      %v1198 = vld [vmem:[%s1173 + $0x90] sm:$0xf]
      %v1199 = vld [vmem:[%s1173 + $0x94] sm:$0xf]
      %v1200 = vld [vmem:[%s1173 + $0x9c] sm:$0xf]
      %v1201 = vld [vmem:[%s1173 + $0xa0] sm:$0xf]
      %v1202 = vld [vmem:[%s1173 + $0xa8] sm:$0xf]
      %v1203 = vld [vmem:[%s1173 + $0xac] sm:$0xf]
      %v1204 = vld [vmem:[%s1173 + $0xb4] sm:$0xf]
      %v1205 = vld [vmem:[%s1173 + $0xb8] sm:$0xf]
      %1238 = vrot.lane.b32.xlu0 %v1174, 12
      %v1239 = vpop.permute.xlu0 %1238
      %1240 = vrot.lane.b32.xlu0 %v1175, 12
      %v1241 = vpop.permute.xlu0 %1240
      %1242 = vrot.lane.b32.xlu0 %v1176, 12
      %v1243 = vpop.permute.xlu0 %1242
      %1244 = vrot.lane.b32.xlu0 %v1177, 12
      %v1245 = vpop.permute.xlu0 %1244
      %1246 = vrot.lane.b32.xlu0 %v1178, 12
      %v1247 = vpop.permute.xlu0 %1246
      %1248 = vrot.lane.b32.xlu0 %v1179, 12
      %v1249 = vpop.permute.xlu0 %1248
      %1250 = vrot.lane.b32.xlu0 %v1180, 12
      %v1251 = vpop.permute.xlu0 %1250
      %1252 = vrot.lane.b32.xlu0 %v1181, 12
      %v1253 = vpop.permute.xlu0 %1252
      %1254 = vrot.lane.b32.xlu0 %v1182, 12
      %v1255 = vpop.permute.xlu0 %1254
      %1256 = vrot.lane.b32.xlu0 %v1183, 12
      %v1257 = vpop.permute.xlu0 %1256
      %1258 = vrot.lane.b32.xlu0 %v1184, 12
      %v1259 = vpop.permute.xlu0 %1258
      %1260 = vrot.lane.b32.xlu0 %v1185, 12
      %v1261 = vpop.permute.xlu0 %1260
      %1262 = vrot.lane.b32.xlu0 %v1186, 12
      %v1263 = vpop.permute.xlu0 %1262
      %1264 = vrot.lane.b32.xlu0 %v1187, 12
      %v1265 = vpop.permute.xlu0 %1264
      %1266 = vrot.lane.b32.xlu0 %v1188, 12
      %v1267 = vpop.permute.xlu0 %1266
      %1268 = vrot.lane.b32.xlu0 %v1189, 12
      %v1269 = vpop.permute.xlu0 %1268
      %1270 = vrot.lane.b32.xlu0 %v1190, 12
      %v1271 = vpop.permute.xlu0 %1270
      %1272 = vrot.lane.b32.xlu0 %v1191, 12
      %v1273 = vpop.permute.xlu0 %1272
      %1274 = vrot.lane.b32.xlu0 %v1192, 12
      %v1275 = vpop.permute.xlu0 %1274
      %1276 = vrot.lane.b32.xlu0 %v1193, 12
      %v1277 = vpop.permute.xlu0 %1276
      %1278 = vrot.lane.b32.xlu0 %v1194, 12
      %v1279 = vpop.permute.xlu0 %1278
      %1280 = vrot.lane.b32.xlu0 %v1195, 12
      %v1281 = vpop.permute.xlu0 %1280
      %1282 = vrot.lane.b32.xlu0 %v1196, 12
      %v1283 = vpop.permute.xlu0 %1282
      %1284 = vrot.lane.b32.xlu0 %v1197, 12
      %v1285 = vpop.permute.xlu0 %1284
      %1286 = vrot.lane.b32.xlu0 %v1198, 12
      %v1287 = vpop.permute.xlu0 %1286
      %1288 = vrot.lane.b32.xlu0 %v1199, 12
      %v1289 = vpop.permute.xlu0 %1288
      %1290 = vrot.lane.b32.xlu0 %v1200, 12
      %v1291 = vpop.permute.xlu0 %1290
      %1292 = vrot.lane.b32.xlu0 %v1201, 12
      %v1293 = vpop.permute.xlu0 %1292
      %1294 = vrot.lane.b32.xlu0 %v1202, 12
      %v1295 = vpop.permute.xlu0 %1294
      %1296 = vrot.lane.b32.xlu0 %v1203, 12
      %v1297 = vpop.permute.xlu0 %1296
      %1298 = vrot.lane.b32.xlu0 %v1204, 12
      %v1299 = vpop.permute.xlu0 %1298
      %1300 = vrot.lane.b32.xlu0 %v1205, 12
      %v1301 = vpop.permute.xlu0 %1300
      %vm1334 = vcmask 126048
      %1335 = vst.msk [vmem:[#allocation2] sm:$0xf] %vm1334, %v1239
      %1336 = vst.msk [vmem:[#allocation2 + $0x4] sm:$0xf] %vm1334, %v1241
      %1337 = vst.msk [vmem:[#allocation2 + $0x8] sm:$0xf] %vm1334, %v1243
      %1338 = vst.msk [vmem:[#allocation2 + $0xc] sm:$0xf] %vm1334, %v1245
      %1339 = vst.msk [vmem:[#allocation2 + $0x10] sm:$0xf] %vm1334, %v1247
      %1340 = vst.msk [vmem:[#allocation2 + $0x14] sm:$0xf] %vm1334, %v1249
      %1341 = vst.msk [vmem:[#allocation2 + $0x18] sm:$0xf] %vm1334, %v1251
      %1342 = vst.msk [vmem:[#allocation2 + $0x1c] sm:$0xf] %vm1334, %v1253
      %1343 = vst.msk [vmem:[#allocation2 + $0x20] sm:$0xf] %vm1334, %v1255
      %1344 = vst.msk [vmem:[#allocation2 + $0x24] sm:$0xf] %vm1334, %v1257
      %1345 = vst.msk [vmem:[#allocation2 + $0x28] sm:$0xf] %vm1334, %v1259
      %1346 = vst.msk [vmem:[#allocation2 + $0x2c] sm:$0xf] %vm1334, %v1261
      %1347 = vst.msk [vmem:[#allocation2 + $0x30] sm:$0xf] %vm1334, %v1263
      %1348 = vst.msk [vmem:[#allocation2 + $0x34] sm:$0xf] %vm1334, %v1265
      %1349 = vst.msk [vmem:[#allocation2 + $0x38] sm:$0xf] %vm1334, %v1267
      %1350 = vst.msk [vmem:[#allocation2 + $0x3c] sm:$0xf] %vm1334, %v1269
      %1351 = vst.msk [vmem:[#allocation2 + $0x40] sm:$0xf] %vm1334, %v1271
      %1352 = vst.msk [vmem:[#allocation2 + $0x44] sm:$0xf] %vm1334, %v1273
      %1353 = vst.msk [vmem:[#allocation2 + $0x48] sm:$0xf] %vm1334, %v1275
      %1354 = vst.msk [vmem:[#allocation2 + $0x4c] sm:$0xf] %vm1334, %v1277
      %1355 = vst.msk [vmem:[#allocation2 + $0x50] sm:$0xf] %vm1334, %v1279
      %1356 = vst.msk [vmem:[#allocation2 + $0x54] sm:$0xf] %vm1334, %v1281
      %1357 = vst.msk [vmem:[#allocation2 + $0x58] sm:$0xf] %vm1334, %v1283
      %1358 = vst.msk [vmem:[#allocation2 + $0x5c] sm:$0xf] %vm1334, %v1285
      %1359 = vst.msk [vmem:[#allocation2 + $0x60] sm:$0xf] %vm1334, %v1287
      %1360 = vst.msk [vmem:[#allocation2 + $0x64] sm:$0xf] %vm1334, %v1289
      %1361 = vst.msk [vmem:[#allocation2 + $0x68] sm:$0xf] %vm1334, %v1291
      %1362 = vst.msk [vmem:[#allocation2 + $0x6c] sm:$0xf] %vm1334, %v1293
      %1363 = vst.msk [vmem:[#allocation2 + $0x70] sm:$0xf] %vm1334, %v1295
      %1364 = vst.msk [vmem:[#allocation2 + $0x74] sm:$0xf] %vm1334, %v1297
      %1365 = vst.msk [vmem:[#allocation2 + $0x78] sm:$0xf] %vm1334, %v1299
      %1366 = vst.msk [vmem:[#allocation2 + $0x7c] sm:$0xf] %vm1334, %v1301
      %v1367 = vld [vmem:[%s1173] sm:$0xf]
      %v1368 = vld [vmem:[%s1173 + $0x4] sm:$0xf]
      %v1369 = vld [vmem:[%s1173 + $0x8] sm:$0x1]
      %v1370 = vld [vmem:[%s1173 + $0xc] sm:$0xf]
      %v1371 = vld [vmem:[%s1173 + $0x10] sm:$0xf]
      %v1372 = vld [vmem:[%s1173 + $0x14] sm:$0x1]
      %v1373 = vld [vmem:[%s1173 + $0x18] sm:$0xf]
      %v1374 = vld [vmem:[%s1173 + $0x1c] sm:$0xf]
      %v1375 = vld [vmem:[%s1173 + $0x20] sm:$0x1]
      %v1376 = vld [vmem:[%s1173 + $0x24] sm:$0xf]
      %v1377 = vld [vmem:[%s1173 + $0x28] sm:$0xf]
      %v1378 = vld [vmem:[%s1173 + $0x2c] sm:$0x1]
      %v1379 = vld [vmem:[%s1173 + $0x30] sm:$0xf]
      %v1380 = vld [vmem:[%s1173 + $0x34] sm:$0xf]
      %v1381 = vld [vmem:[%s1173 + $0x38] sm:$0x1]
      %v1382 = vld [vmem:[%s1173 + $0x3c] sm:$0xf]
      %v1383 = vld [vmem:[%s1173 + $0x40] sm:$0xf]
      %v1384 = vld [vmem:[%s1173 + $0x44] sm:$0x1]
      %v1385 = vld [vmem:[%s1173 + $0x48] sm:$0xf]
      %v1386 = vld [vmem:[%s1173 + $0x4c] sm:$0xf]
      %v1387 = vld [vmem:[%s1173 + $0x50] sm:$0x1]
      %v1388 = vld [vmem:[%s1173 + $0x54] sm:$0xf]
      %v1389 = vld [vmem:[%s1173 + $0x58] sm:$0xf]
      %v1390 = vld [vmem:[%s1173 + $0x5c] sm:$0x1]
      %v1391 = vld [vmem:[%s1173 + $0x60] sm:$0xf]
      %v1392 = vld [vmem:[%s1173 + $0x64] sm:$0xf]
      %v1393 = vld [vmem:[%s1173 + $0x68] sm:$0x1]
      %v1394 = vld [vmem:[%s1173 + $0x6c] sm:$0xf]
      %v1395 = vld [vmem:[%s1173 + $0x70] sm:$0xf]
      %v1396 = vld [vmem:[%s1173 + $0x74] sm:$0x1]
      %v1397 = vld [vmem:[%s1173 + $0x78] sm:$0xf]
      %v1398 = vld [vmem:[%s1173 + $0x7c] sm:$0xf]
      %v1399 = vld [vmem:[%s1173 + $0x80] sm:$0x1]
      %v1400 = vld [vmem:[%s1173 + $0x84] sm:$0xf]
      %v1401 = vld [vmem:[%s1173 + $0x88] sm:$0xf]
      %v1402 = vld [vmem:[%s1173 + $0x8c] sm:$0x1]
      %v1403 = vld [vmem:[%s1173 + $0x90] sm:$0xf]
      %v1404 = vld [vmem:[%s1173 + $0x94] sm:$0xf]
      %v1405 = vld [vmem:[%s1173 + $0x98] sm:$0x1]
      %v1406 = vld [vmem:[%s1173 + $0x9c] sm:$0xf]
      %v1407 = vld [vmem:[%s1173 + $0xa0] sm:$0xf]
      %v1408 = vld [vmem:[%s1173 + $0xa4] sm:$0x1]
      %v1409 = vld [vmem:[%s1173 + $0xa8] sm:$0xf]
      %v1410 = vld [vmem:[%s1173 + $0xac] sm:$0xf]
      %v1411 = vld [vmem:[%s1173 + $0xb0] sm:$0x1]
      %v1412 = vld [vmem:[%s1173 + $0xb4] sm:$0xf]
      %v1413 = vld [vmem:[%s1173 + $0xb8] sm:$0xf]
      %v1414 = vld [vmem:[%s1173 + $0xbc] sm:$0x1]
      %v1416 = vshrl.u32 %v1367, 16
      %v1418 = vrot.slane %v1416, 4
      %v1419 = vshll.u32 %v1367, 16
      %v1421 = vrot.slane %v1419, 5
      %v1422 = vor.u32 %v1418, %v1421
      %v1423 = vrot.slane %v1422, 4
      %v1425 = vshll.u32 %v1368, 16
      %v1427 = vrot.slane %v1425, 5
      %v1428 = vsel %vm316, %v1423, %v1427
      %v1429 = vshrl.u32 %v1368, 16
      %v1431 = vrot.slane %v1429, 4
      %v1432 = vor.u32 %v1431, %v1427
      %v1433 = vrot.slane %v1432, 4
      %v1435 = vshll.u32 %v1369, 16
      %v1437 = vrot.slane %v1435, 5
      %v1438 = vsel %vm316, %v1433, %v1437
      %v1440 = vshrl.u32 %v1370, 16
      %v1442 = vrot.slane %v1440, 4
      %v1443 = vshll.u32 %v1370, 16
      %v1445 = vrot.slane %v1443, 5
      %v1446 = vor.u32 %v1442, %v1445
      %v1447 = vrot.slane %v1446, 4
      %v1449 = vshll.u32 %v1371, 16
      %v1451 = vrot.slane %v1449, 5
      %v1452 = vsel %vm316, %v1447, %v1451
      %v1453 = vshrl.u32 %v1371, 16
      %v1455 = vrot.slane %v1453, 4
      %v1456 = vor.u32 %v1455, %v1451
      %v1457 = vrot.slane %v1456, 4
      %v1459 = vshll.u32 %v1372, 16
      %v1461 = vrot.slane %v1459, 5
      %v1462 = vsel %vm316, %v1457, %v1461
      %v1464 = vshrl.u32 %v1373, 16
      %v1466 = vrot.slane %v1464, 4
      %v1467 = vshll.u32 %v1373, 16
      %v1469 = vrot.slane %v1467, 5
      %v1470 = vor.u32 %v1466, %v1469
      %v1471 = vrot.slane %v1470, 4
      %v1473 = vshll.u32 %v1374, 16
      %v1475 = vrot.slane %v1473, 5
      %v1476 = vsel %vm316, %v1471, %v1475
      %v1477 = vshrl.u32 %v1374, 16
      %v1479 = vrot.slane %v1477, 4
      %v1480 = vor.u32 %v1479, %v1475
      %v1481 = vrot.slane %v1480, 4
      %v1483 = vshll.u32 %v1375, 16
      %v1485 = vrot.slane %v1483, 5
      %v1486 = vsel %vm316, %v1481, %v1485
      %v1488 = vshrl.u32 %v1376, 16
      %v1490 = vrot.slane %v1488, 4
      %v1491 = vshll.u32 %v1376, 16
      %v1493 = vrot.slane %v1491, 5
      %v1494 = vor.u32 %v1490, %v1493
      %v1495 = vrot.slane %v1494, 4
      %v1497 = vshll.u32 %v1377, 16
      %v1499 = vrot.slane %v1497, 5
      %v1500 = vsel %vm316, %v1495, %v1499
      %v1501 = vshrl.u32 %v1377, 16
      %v1503 = vrot.slane %v1501, 4
      %v1504 = vor.u32 %v1503, %v1499
      %v1505 = vrot.slane %v1504, 4
      %v1507 = vshll.u32 %v1378, 16
      %v1509 = vrot.slane %v1507, 5
      %v1510 = vsel %vm316, %v1505, %v1509
      %v1512 = vshrl.u32 %v1379, 16
      %v1514 = vrot.slane %v1512, 4
      %v1515 = vshll.u32 %v1379, 16
      %v1517 = vrot.slane %v1515, 5
      %v1518 = vor.u32 %v1514, %v1517
      %v1519 = vrot.slane %v1518, 4
      %v1521 = vshll.u32 %v1380, 16
      %v1523 = vrot.slane %v1521, 5
      %v1524 = vsel %vm316, %v1519, %v1523
      %v1525 = vshrl.u32 %v1380, 16
      %v1527 = vrot.slane %v1525, 4
      %v1528 = vor.u32 %v1527, %v1523
      %v1529 = vrot.slane %v1528, 4
      %v1531 = vshll.u32 %v1381, 16
      %v1533 = vrot.slane %v1531, 5
      %v1534 = vsel %vm316, %v1529, %v1533
      %v1536 = vshrl.u32 %v1382, 16
      %v1538 = vrot.slane %v1536, 4
      %v1539 = vshll.u32 %v1382, 16
      %v1541 = vrot.slane %v1539, 5
      %v1542 = vor.u32 %v1538, %v1541
      %v1543 = vrot.slane %v1542, 4
      %v1545 = vshll.u32 %v1383, 16
      %v1547 = vrot.slane %v1545, 5
      %v1548 = vsel %vm316, %v1543, %v1547
      %v1549 = vshrl.u32 %v1383, 16
      %v1551 = vrot.slane %v1549, 4
      %v1552 = vor.u32 %v1551, %v1547
      %v1553 = vrot.slane %v1552, 4
      %v1555 = vshll.u32 %v1384, 16
      %v1557 = vrot.slane %v1555, 5
      %v1558 = vsel %vm316, %v1553, %v1557
      %v1560 = vshrl.u32 %v1385, 16
      %v1562 = vrot.slane %v1560, 4
      %v1563 = vshll.u32 %v1385, 16
      %v1565 = vrot.slane %v1563, 5
      %v1566 = vor.u32 %v1562, %v1565
      %v1567 = vrot.slane %v1566, 4
      %v1569 = vshll.u32 %v1386, 16
      %v1571 = vrot.slane %v1569, 5
      %v1572 = vsel %vm316, %v1567, %v1571
      %v1573 = vshrl.u32 %v1386, 16
      %v1575 = vrot.slane %v1573, 4
      %v1576 = vor.u32 %v1575, %v1571
      %v1577 = vrot.slane %v1576, 4
      %v1579 = vshll.u32 %v1387, 16
      %v1581 = vrot.slane %v1579, 5
      %v1582 = vsel %vm316, %v1577, %v1581
      %v1584 = vshrl.u32 %v1388, 16
      %v1586 = vrot.slane %v1584, 4
      %v1587 = vshll.u32 %v1388, 16
      %v1589 = vrot.slane %v1587, 5
      %v1590 = vor.u32 %v1586, %v1589
      %v1591 = vrot.slane %v1590, 4
      %v1593 = vshll.u32 %v1389, 16
      %v1595 = vrot.slane %v1593, 5
      %v1596 = vsel %vm316, %v1591, %v1595
      %v1597 = vshrl.u32 %v1389, 16
      %v1599 = vrot.slane %v1597, 4
      %v1600 = vor.u32 %v1599, %v1595
      %v1601 = vrot.slane %v1600, 4
      %v1603 = vshll.u32 %v1390, 16
      %v1605 = vrot.slane %v1603, 5
      %v1606 = vsel %vm316, %v1601, %v1605
      %v1608 = vshrl.u32 %v1391, 16
      %v1610 = vrot.slane %v1608, 4
      %v1611 = vshll.u32 %v1391, 16
      %v1613 = vrot.slane %v1611, 5
      %v1614 = vor.u32 %v1610, %v1613
      %v1615 = vrot.slane %v1614, 4
      %v1617 = vshll.u32 %v1392, 16
      %v1619 = vrot.slane %v1617, 5
      %v1620 = vsel %vm316, %v1615, %v1619
      %v1621 = vshrl.u32 %v1392, 16
      %v1623 = vrot.slane %v1621, 4
      %v1624 = vor.u32 %v1623, %v1619
      %v1625 = vrot.slane %v1624, 4
      %v1627 = vshll.u32 %v1393, 16
      %v1629 = vrot.slane %v1627, 5
      %v1630 = vsel %vm316, %v1625, %v1629
      %v1632 = vshrl.u32 %v1394, 16
      %v1634 = vrot.slane %v1632, 4
      %v1635 = vshll.u32 %v1394, 16
      %v1637 = vrot.slane %v1635, 5
      %v1638 = vor.u32 %v1634, %v1637
      %v1639 = vrot.slane %v1638, 4
      %v1641 = vshll.u32 %v1395, 16
      %v1643 = vrot.slane %v1641, 5
      %v1644 = vsel %vm316, %v1639, %v1643
      %v1645 = vshrl.u32 %v1395, 16
      %v1647 = vrot.slane %v1645, 4
      %v1648 = vor.u32 %v1647, %v1643
      %v1649 = vrot.slane %v1648, 4
      %v1651 = vshll.u32 %v1396, 16
      %v1653 = vrot.slane %v1651, 5
      %v1654 = vsel %vm316, %v1649, %v1653
      %v1656 = vshrl.u32 %v1397, 16
      %v1658 = vrot.slane %v1656, 4
      %v1659 = vshll.u32 %v1397, 16
      %v1661 = vrot.slane %v1659, 5
      %v1662 = vor.u32 %v1658, %v1661
      %v1663 = vrot.slane %v1662, 4
      %v1665 = vshll.u32 %v1398, 16
      %v1667 = vrot.slane %v1665, 5
      %v1668 = vsel %vm316, %v1663, %v1667
      %v1669 = vshrl.u32 %v1398, 16
      %v1671 = vrot.slane %v1669, 4
      %v1672 = vor.u32 %v1671, %v1667
      %v1673 = vrot.slane %v1672, 4
      %v1675 = vshll.u32 %v1399, 16
      %v1677 = vrot.slane %v1675, 5
      %v1678 = vsel %vm316, %v1673, %v1677
      %v1680 = vshrl.u32 %v1400, 16
      %v1682 = vrot.slane %v1680, 4
      %v1683 = vshll.u32 %v1400, 16
      %v1685 = vrot.slane %v1683, 5
      %v1686 = vor.u32 %v1682, %v1685
      %v1687 = vrot.slane %v1686, 4
      %v1689 = vshll.u32 %v1401, 16
      %v1691 = vrot.slane %v1689, 5
      %v1692 = vsel %vm316, %v1687, %v1691
      %v1693 = vshrl.u32 %v1401, 16
      %v1695 = vrot.slane %v1693, 4
      %v1696 = vor.u32 %v1695, %v1691
      %v1697 = vrot.slane %v1696, 4
      %v1699 = vshll.u32 %v1402, 16
      %v1701 = vrot.slane %v1699, 5
      %v1702 = vsel %vm316, %v1697, %v1701
      %v1704 = vshrl.u32 %v1403, 16
      %v1706 = vrot.slane %v1704, 4
      %v1707 = vshll.u32 %v1403, 16
      %v1709 = vrot.slane %v1707, 5
      %v1710 = vor.u32 %v1706, %v1709
      %v1711 = vrot.slane %v1710, 4
      %v1713 = vshll.u32 %v1404, 16
      %v1715 = vrot.slane %v1713, 5
      %v1716 = vsel %vm316, %v1711, %v1715
      %v1717 = vshrl.u32 %v1404, 16
      %v1719 = vrot.slane %v1717, 4
      %v1720 = vor.u32 %v1719, %v1715
      %v1721 = vrot.slane %v1720, 4
      %v1723 = vshll.u32 %v1405, 16
      %v1725 = vrot.slane %v1723, 5
      %v1726 = vsel %vm316, %v1721, %v1725
      %v1728 = vshrl.u32 %v1406, 16
      %v1730 = vrot.slane %v1728, 4
      %v1731 = vshll.u32 %v1406, 16
      %v1733 = vrot.slane %v1731, 5
      %v1734 = vor.u32 %v1730, %v1733
      %v1735 = vrot.slane %v1734, 4
      %v1737 = vshll.u32 %v1407, 16
      %v1739 = vrot.slane %v1737, 5
      %v1740 = vsel %vm316, %v1735, %v1739
      %v1741 = vshrl.u32 %v1407, 16
      %v1743 = vrot.slane %v1741, 4
      %v1744 = vor.u32 %v1743, %v1739
      %v1745 = vrot.slane %v1744, 4
      %v1747 = vshll.u32 %v1408, 16
      %v1749 = vrot.slane %v1747, 5
      %v1750 = vsel %vm316, %v1745, %v1749
      %v1752 = vshrl.u32 %v1409, 16
      %v1754 = vrot.slane %v1752, 4
      %v1755 = vshll.u32 %v1409, 16
      %v1757 = vrot.slane %v1755, 5
      %v1758 = vor.u32 %v1754, %v1757
      %v1759 = vrot.slane %v1758, 4
      %v1761 = vshll.u32 %v1410, 16
      %v1763 = vrot.slane %v1761, 5
      %v1764 = vsel %vm316, %v1759, %v1763
      %v1765 = vshrl.u32 %v1410, 16
      %v1767 = vrot.slane %v1765, 4
      %v1768 = vor.u32 %v1767, %v1763
      %v1769 = vrot.slane %v1768, 4
      %v1771 = vshll.u32 %v1411, 16
      %v1773 = vrot.slane %v1771, 5
      %v1774 = vsel %vm316, %v1769, %v1773
      %v1776 = vshrl.u32 %v1412, 16
      %v1778 = vrot.slane %v1776, 4
      %v1779 = vshll.u32 %v1412, 16
      %v1781 = vrot.slane %v1779, 5
      %v1782 = vor.u32 %v1778, %v1781
      %v1783 = vrot.slane %v1782, 4
      %v1785 = vshll.u32 %v1413, 16
      %v1787 = vrot.slane %v1785, 5
      %v1788 = vsel %vm316, %v1783, %v1787
      %v1789 = vshrl.u32 %v1413, 16
      %v1791 = vrot.slane %v1789, 4
      %v1792 = vor.u32 %v1791, %v1787
      %v1793 = vrot.slane %v1792, 4
      %v1795 = vshll.u32 %v1414, 16
      %v1797 = vrot.slane %v1795, 5
      %v1798 = vsel %vm316, %v1793, %v1797
      %1799 = vrot.lane.b32.xlu0 %v1428, 16
      %v1800 = vpop.permute.xlu0 %1799
      %1801 = vrot.lane.b32.xlu0 %v1438, 16
      %v1802 = vpop.permute.xlu0 %1801
      %1803 = vrot.lane.b32.xlu0 %v1452, 16
      %v1804 = vpop.permute.xlu0 %1803
      %1805 = vrot.lane.b32.xlu0 %v1462, 16
      %v1806 = vpop.permute.xlu0 %1805
      %1807 = vrot.lane.b32.xlu0 %v1476, 16
      %v1808 = vpop.permute.xlu0 %1807
      %1809 = vrot.lane.b32.xlu0 %v1486, 16
      %v1810 = vpop.permute.xlu0 %1809
      %1811 = vrot.lane.b32.xlu0 %v1500, 16
      %v1812 = vpop.permute.xlu0 %1811
      %1813 = vrot.lane.b32.xlu0 %v1510, 16
      %v1814 = vpop.permute.xlu0 %1813
      %1815 = vrot.lane.b32.xlu0 %v1524, 16
      %v1816 = vpop.permute.xlu0 %1815
      %1817 = vrot.lane.b32.xlu0 %v1534, 16
      %v1818 = vpop.permute.xlu0 %1817
      %1819 = vrot.lane.b32.xlu0 %v1548, 16
      %v1820 = vpop.permute.xlu0 %1819
      %1821 = vrot.lane.b32.xlu0 %v1558, 16
      %v1822 = vpop.permute.xlu0 %1821
      %1823 = vrot.lane.b32.xlu0 %v1572, 16
      %v1824 = vpop.permute.xlu0 %1823
      %1825 = vrot.lane.b32.xlu0 %v1582, 16
      %v1826 = vpop.permute.xlu0 %1825
      %1827 = vrot.lane.b32.xlu0 %v1596, 16
      %v1828 = vpop.permute.xlu0 %1827
      %1829 = vrot.lane.b32.xlu0 %v1606, 16
      %v1830 = vpop.permute.xlu0 %1829
      %1831 = vrot.lane.b32.xlu0 %v1620, 16
      %v1832 = vpop.permute.xlu0 %1831
      %1833 = vrot.lane.b32.xlu0 %v1630, 16
      %v1834 = vpop.permute.xlu0 %1833
      %1835 = vrot.lane.b32.xlu0 %v1644, 16
      %v1836 = vpop.permute.xlu0 %1835
      %1837 = vrot.lane.b32.xlu0 %v1654, 16
      %v1838 = vpop.permute.xlu0 %1837
      %1839 = vrot.lane.b32.xlu0 %v1668, 16
      %v1840 = vpop.permute.xlu0 %1839
      %1841 = vrot.lane.b32.xlu0 %v1678, 16
      %v1842 = vpop.permute.xlu0 %1841
      %1843 = vrot.lane.b32.xlu0 %v1692, 16
      %v1844 = vpop.permute.xlu0 %1843
      %1845 = vrot.lane.b32.xlu0 %v1702, 16
      %v1846 = vpop.permute.xlu0 %1845
      %1847 = vrot.lane.b32.xlu0 %v1716, 16
      %v1848 = vpop.permute.xlu0 %1847
      %1849 = vrot.lane.b32.xlu0 %v1726, 16
      %v1850 = vpop.permute.xlu0 %1849
      %1851 = vrot.lane.b32.xlu0 %v1740, 16
      %v1852 = vpop.permute.xlu0 %1851
      %1853 = vrot.lane.b32.xlu0 %v1750, 16
      %v1854 = vpop.permute.xlu0 %1853
      %1855 = vrot.lane.b32.xlu0 %v1764, 16
      %v1856 = vpop.permute.xlu0 %1855
      %1857 = vrot.lane.b32.xlu0 %v1774, 16
      %v1858 = vpop.permute.xlu0 %1857
      %1859 = vrot.lane.b32.xlu0 %v1788, 16
      %v1860 = vpop.permute.xlu0 %1859
      %1861 = vrot.lane.b32.xlu0 %v1798, 16
      %v1862 = vpop.permute.xlu0 %1861
      %vm1895 = vcmask 158848
      %1896 = vst.msk [vmem:[#allocation2] sm:$0xf] %vm1895, %v1800
      %1897 = vst.msk [vmem:[#allocation2 + $0x4] sm:$0xf] %vm1895, %v1802
      %1898 = vst.msk [vmem:[#allocation2 + $0x8] sm:$0xf] %vm1895, %v1804
      %1899 = vst.msk [vmem:[#allocation2 + $0xc] sm:$0xf] %vm1895, %v1806
      %1900 = vst.msk [vmem:[#allocation2 + $0x10] sm:$0xf] %vm1895, %v1808
      %1901 = vst.msk [vmem:[#allocation2 + $0x14] sm:$0xf] %vm1895, %v1810
      %1902 = vst.msk [vmem:[#allocation2 + $0x18] sm:$0xf] %vm1895, %v1812
      %1903 = vst.msk [vmem:[#allocation2 + $0x1c] sm:$0xf] %vm1895, %v1814
      %1904 = vst.msk [vmem:[#allocation2 + $0x20] sm:$0xf] %vm1895, %v1816
      %1905 = vst.msk [vmem:[#allocation2 + $0x24] sm:$0xf] %vm1895, %v1818
      %1906 = vst.msk [vmem:[#allocation2 + $0x28] sm:$0xf] %vm1895, %v1820
      %1907 = vst.msk [vmem:[#allocation2 + $0x2c] sm:$0xf] %vm1895, %v1822
      %1908 = vst.msk [vmem:[#allocation2 + $0x30] sm:$0xf] %vm1895, %v1824
      %1909 = vst.msk [vmem:[#allocation2 + $0x34] sm:$0xf] %vm1895, %v1826
      %1910 = vst.msk [vmem:[#allocation2 + $0x38] sm:$0xf] %vm1895, %v1828
      %1911 = vst.msk [vmem:[#allocation2 + $0x3c] sm:$0xf] %vm1895, %v1830
      %1912 = vst.msk [vmem:[#allocation2 + $0x40] sm:$0xf] %vm1895, %v1832
      %1913 = vst.msk [vmem:[#allocation2 + $0x44] sm:$0xf] %vm1895, %v1834
      %1914 = vst.msk [vmem:[#allocation2 + $0x48] sm:$0xf] %vm1895, %v1836
      %1915 = vst.msk [vmem:[#allocation2 + $0x4c] sm:$0xf] %vm1895, %v1838
      %1916 = vst.msk [vmem:[#allocation2 + $0x50] sm:$0xf] %vm1895, %v1840
      %1917 = vst.msk [vmem:[#allocation2 + $0x54] sm:$0xf] %vm1895, %v1842
      %1918 = vst.msk [vmem:[#allocation2 + $0x58] sm:$0xf] %vm1895, %v1844
      %1919 = vst.msk [vmem:[#allocation2 + $0x5c] sm:$0xf] %vm1895, %v1846
      %1920 = vst.msk [vmem:[#allocation2 + $0x60] sm:$0xf] %vm1895, %v1848
      %1921 = vst.msk [vmem:[#allocation2 + $0x64] sm:$0xf] %vm1895, %v1850
      %1922 = vst.msk [vmem:[#allocation2 + $0x68] sm:$0xf] %vm1895, %v1852
      %1923 = vst.msk [vmem:[#allocation2 + $0x6c] sm:$0xf] %vm1895, %v1854
      %1924 = vst.msk [vmem:[#allocation2 + $0x70] sm:$0xf] %vm1895, %v1856
      %1925 = vst.msk [vmem:[#allocation2 + $0x74] sm:$0xf] %vm1895, %v1858
      %1926 = vst.msk [vmem:[#allocation2 + $0x78] sm:$0xf] %vm1895, %v1860
      %1927 = vst.msk [vmem:[#allocation2 + $0x7c] sm:$0xf] %vm1895, %v1862
      %v1928 = vld [vmem:[%s1173] sm:$0xe]
      %v1929 = vld [vmem:[%s1173 + $0x4] sm:$0xf]
      %v1930 = vld [vmem:[%s1173 + $0x8] sm:$0x1]
      %v1931 = vld [vmem:[%s1173 + $0xc] sm:$0xe]
      %v1932 = vld [vmem:[%s1173 + $0x10] sm:$0xf]
      %v1933 = vld [vmem:[%s1173 + $0x14] sm:$0x1]
      %v1934 = vld [vmem:[%s1173 + $0x18] sm:$0xe]
      %v1935 = vld [vmem:[%s1173 + $0x1c] sm:$0xf]
      %v1936 = vld [vmem:[%s1173 + $0x20] sm:$0x1]
      %v1937 = vld [vmem:[%s1173 + $0x24] sm:$0xe]
      %v1938 = vld [vmem:[%s1173 + $0x28] sm:$0xf]
      %v1939 = vld [vmem:[%s1173 + $0x2c] sm:$0x1]
      %v1940 = vld [vmem:[%s1173 + $0x30] sm:$0xe]
      %v1941 = vld [vmem:[%s1173 + $0x34] sm:$0xf]
      %v1942 = vld [vmem:[%s1173 + $0x38] sm:$0x1]
      %v1943 = vld [vmem:[%s1173 + $0x3c] sm:$0xe]
      %v1944 = vld [vmem:[%s1173 + $0x40] sm:$0xf]
      %v1945 = vld [vmem:[%s1173 + $0x44] sm:$0x1]
      %v1946 = vld [vmem:[%s1173 + $0x48] sm:$0xe]
      %v1947 = vld [vmem:[%s1173 + $0x4c] sm:$0xf]
      %v1948 = vld [vmem:[%s1173 + $0x50] sm:$0x1]
      %v1949 = vld [vmem:[%s1173 + $0x54] sm:$0xe]
      %v1950 = vld [vmem:[%s1173 + $0x58] sm:$0xf]
      %v1951 = vld [vmem:[%s1173 + $0x5c] sm:$0x1]
      %v1952 = vld [vmem:[%s1173 + $0x60] sm:$0xe]
      %v1953 = vld [vmem:[%s1173 + $0x64] sm:$0xf]
      %v1954 = vld [vmem:[%s1173 + $0x68] sm:$0x1]
      %v1955 = vld [vmem:[%s1173 + $0x6c] sm:$0xe]
      %v1956 = vld [vmem:[%s1173 + $0x70] sm:$0xf]
      %v1957 = vld [vmem:[%s1173 + $0x74] sm:$0x1]
      %v1958 = vld [vmem:[%s1173 + $0x78] sm:$0xe]
      %v1959 = vld [vmem:[%s1173 + $0x7c] sm:$0xf]
      %v1960 = vld [vmem:[%s1173 + $0x80] sm:$0x1]
      %v1961 = vld [vmem:[%s1173 + $0x84] sm:$0xe]
      %v1962 = vld [vmem:[%s1173 + $0x88] sm:$0xf]
      %v1963 = vld [vmem:[%s1173 + $0x8c] sm:$0x1]
      %v1964 = vld [vmem:[%s1173 + $0x90] sm:$0xe]
      %v1965 = vld [vmem:[%s1173 + $0x94] sm:$0xf]
      %v1966 = vld [vmem:[%s1173 + $0x98] sm:$0x1]
      %v1967 = vld [vmem:[%s1173 + $0x9c] sm:$0xe]
      %v1968 = vld [vmem:[%s1173 + $0xa0] sm:$0xf]
      %v1969 = vld [vmem:[%s1173 + $0xa4] sm:$0x1]
      %v1970 = vld [vmem:[%s1173 + $0xa8] sm:$0xe]
      %v1971 = vld [vmem:[%s1173 + $0xac] sm:$0xf]
      %v1972 = vld [vmem:[%s1173 + $0xb0] sm:$0x1]
      %v1973 = vld [vmem:[%s1173 + $0xb4] sm:$0xe]
      %v1974 = vld [vmem:[%s1173 + $0xb8] sm:$0xf]
      %v1975 = vld [vmem:[%s1173 + $0xbc] sm:$0x1]
      %v2024 = vrot.slane %v1928, 5
      %v2025 = vrot.slane %v2024, 4
      %v2026 = vrot.slane %v1929, 5
      %v2027 = vsel %vm928, %v2025, %v2026
      %v2028 = vrot.slane %v2026, 4
      %v2029 = vrot.slane %v1930, 5
      %v2030 = vsel %vm928, %v2028, %v2029
      %v2031 = vrot.slane %v1931, 5
      %v2032 = vrot.slane %v2031, 4
      %v2033 = vrot.slane %v1932, 5
      %v2034 = vsel %vm928, %v2032, %v2033
      %v2035 = vrot.slane %v2033, 4
      %v2036 = vrot.slane %v1933, 5
      %v2037 = vsel %vm928, %v2035, %v2036
      %v2038 = vrot.slane %v1934, 5
      %v2039 = vrot.slane %v2038, 4
      %v2040 = vrot.slane %v1935, 5
      %v2041 = vsel %vm928, %v2039, %v2040
      %v2042 = vrot.slane %v2040, 4
      %v2043 = vrot.slane %v1936, 5
      %v2044 = vsel %vm928, %v2042, %v2043
      %v2045 = vrot.slane %v1937, 5
      %v2046 = vrot.slane %v2045, 4
      %v2047 = vrot.slane %v1938, 5
      %v2048 = vsel %vm928, %v2046, %v2047
      %v2049 = vrot.slane %v2047, 4
      %v2050 = vrot.slane %v1939, 5
      %v2051 = vsel %vm928, %v2049, %v2050
      %v2052 = vrot.slane %v1940, 5
      %v2053 = vrot.slane %v2052, 4
      %v2054 = vrot.slane %v1941, 5
      %v2055 = vsel %vm928, %v2053, %v2054
      %v2056 = vrot.slane %v2054, 4
      %v2057 = vrot.slane %v1942, 5
      %v2058 = vsel %vm928, %v2056, %v2057
      %v2059 = vrot.slane %v1943, 5
      %v2060 = vrot.slane %v2059, 4
      %v2061 = vrot.slane %v1944, 5
      %v2062 = vsel %vm928, %v2060, %v2061
      %v2063 = vrot.slane %v2061, 4
      %v2064 = vrot.slane %v1945, 5
      %v2065 = vsel %vm928, %v2063, %v2064
      %v2066 = vrot.slane %v1946, 5
      %v2067 = vrot.slane %v2066, 4
      %v2068 = vrot.slane %v1947, 5
      %v2069 = vsel %vm928, %v2067, %v2068
      %v2070 = vrot.slane %v2068, 4
      %v2071 = vrot.slane %v1948, 5
      %v2072 = vsel %vm928, %v2070, %v2071
      %v2073 = vrot.slane %v1949, 5
      %v2074 = vrot.slane %v2073, 4
      %v2075 = vrot.slane %v1950, 5
      %v2076 = vsel %vm928, %v2074, %v2075
      %v2077 = vrot.slane %v2075, 4
      %v2078 = vrot.slane %v1951, 5
      %v2079 = vsel %vm928, %v2077, %v2078
      %v2080 = vrot.slane %v1952, 5
      %v2081 = vrot.slane %v2080, 4
      %v2082 = vrot.slane %v1953, 5
      %v2083 = vsel %vm928, %v2081, %v2082
      %v2084 = vrot.slane %v2082, 4
      %v2085 = vrot.slane %v1954, 5
      %v2086 = vsel %vm928, %v2084, %v2085
      %v2087 = vrot.slane %v1955, 5
      %v2088 = vrot.slane %v2087, 4
      %v2089 = vrot.slane %v1956, 5
      %v2090 = vsel %vm928, %v2088, %v2089
      %v2091 = vrot.slane %v2089, 4
      %v2092 = vrot.slane %v1957, 5
      %v2093 = vsel %vm928, %v2091, %v2092
      %v2094 = vrot.slane %v1958, 5
      %v2095 = vrot.slane %v2094, 4
      %v2096 = vrot.slane %v1959, 5
      %v2097 = vsel %vm928, %v2095, %v2096
      %v2098 = vrot.slane %v2096, 4
      %v2099 = vrot.slane %v1960, 5
      %v2100 = vsel %vm928, %v2098, %v2099
      %v2101 = vrot.slane %v1961, 5
      %v2102 = vrot.slane %v2101, 4
      %v2103 = vrot.slane %v1962, 5
      %v2104 = vsel %vm928, %v2102, %v2103
      %v2105 = vrot.slane %v2103, 4
      %v2106 = vrot.slane %v1963, 5
      %v2107 = vsel %vm928, %v2105, %v2106
      %v2108 = vrot.slane %v1964, 5
      %v2109 = vrot.slane %v2108, 4
      %v2110 = vrot.slane %v1965, 5
      %v2111 = vsel %vm928, %v2109, %v2110
      %v2112 = vrot.slane %v2110, 4
      %v2113 = vrot.slane %v1966, 5
      %v2114 = vsel %vm928, %v2112, %v2113
      %v2115 = vrot.slane %v1967, 5
      %v2116 = vrot.slane %v2115, 4
      %v2117 = vrot.slane %v1968, 5
      %v2118 = vsel %vm928, %v2116, %v2117
      %v2119 = vrot.slane %v2117, 4
      %v2120 = vrot.slane %v1969, 5
      %v2121 = vsel %vm928, %v2119, %v2120
      %v2122 = vrot.slane %v1970, 5
      %v2123 = vrot.slane %v2122, 4
      %v2124 = vrot.slane %v1971, 5
      %v2125 = vsel %vm928, %v2123, %v2124
      %v2126 = vrot.slane %v2124, 4
      %v2127 = vrot.slane %v1972, 5
      %v2128 = vsel %vm928, %v2126, %v2127
      %v2129 = vrot.slane %v1973, 5
      %v2130 = vrot.slane %v2129, 4
      %v2131 = vrot.slane %v1974, 5
      %v2132 = vsel %vm928, %v2130, %v2131
      %v2133 = vrot.slane %v2131, 4
      %v2134 = vrot.slane %v1975, 5
      %v2135 = vsel %vm928, %v2133, %v2134
      %2136 = vrot.lane.b32.xlu0 %v2027, 20
      %v2137 = vpop.permute.xlu0 %2136
      %2138 = vrot.lane.b32.xlu0 %v2030, 20
      %v2139 = vpop.permute.xlu0 %2138
      %2140 = vrot.lane.b32.xlu0 %v2034, 20
      %v2141 = vpop.permute.xlu0 %2140
      %2142 = vrot.lane.b32.xlu0 %v2037, 20
      %v2143 = vpop.permute.xlu0 %2142
      %2144 = vrot.lane.b32.xlu0 %v2041, 20
      %v2145 = vpop.permute.xlu0 %2144
      %2146 = vrot.lane.b32.xlu0 %v2044, 20
      %v2147 = vpop.permute.xlu0 %2146
      %2148 = vrot.lane.b32.xlu0 %v2048, 20
      %v2149 = vpop.permute.xlu0 %2148
      %2150 = vrot.lane.b32.xlu0 %v2051, 20
      %v2151 = vpop.permute.xlu0 %2150
      %2152 = vrot.lane.b32.xlu0 %v2055, 20
      %v2153 = vpop.permute.xlu0 %2152
      %2154 = vrot.lane.b32.xlu0 %v2058, 20
      %v2155 = vpop.permute.xlu0 %2154
      %2156 = vrot.lane.b32.xlu0 %v2062, 20
      %v2157 = vpop.permute.xlu0 %2156
      %2158 = vrot.lane.b32.xlu0 %v2065, 20
      %v2159 = vpop.permute.xlu0 %2158
      %2160 = vrot.lane.b32.xlu0 %v2069, 20
      %v2161 = vpop.permute.xlu0 %2160
      %2162 = vrot.lane.b32.xlu0 %v2072, 20
      %v2163 = vpop.permute.xlu0 %2162
      %2164 = vrot.lane.b32.xlu0 %v2076, 20
      %v2165 = vpop.permute.xlu0 %2164
      %2166 = vrot.lane.b32.xlu0 %v2079, 20
      %v2167 = vpop.permute.xlu0 %2166
      %2168 = vrot.lane.b32.xlu0 %v2083, 20
      %v2169 = vpop.permute.xlu0 %2168
      %2170 = vrot.lane.b32.xlu0 %v2086, 20
      %v2171 = vpop.permute.xlu0 %2170
      %2172 = vrot.lane.b32.xlu0 %v2090, 20
      %v2173 = vpop.permute.xlu0 %2172
      %2174 = vrot.lane.b32.xlu0 %v2093, 20
      %v2175 = vpop.permute.xlu0 %2174
      %2176 = vrot.lane.b32.xlu0 %v2097, 20
      %v2177 = vpop.permute.xlu0 %2176
      %2178 = vrot.lane.b32.xlu0 %v2100, 20
      %v2179 = vpop.permute.xlu0 %2178
      %2180 = vrot.lane.b32.xlu0 %v2104, 20
      %v2181 = vpop.permute.xlu0 %2180
      %2182 = vrot.lane.b32.xlu0 %v2107, 20
      %v2183 = vpop.permute.xlu0 %2182
      %2184 = vrot.lane.b32.xlu0 %v2111, 20
      %v2185 = vpop.permute.xlu0 %2184
      %2186 = vrot.lane.b32.xlu0 %v2114, 20
      %v2187 = vpop.permute.xlu0 %2186
      %2188 = vrot.lane.b32.xlu0 %v2118, 20
      %v2189 = vpop.permute.xlu0 %2188
      %2190 = vrot.lane.b32.xlu0 %v2121, 20
      %v2191 = vpop.permute.xlu0 %2190
      %2192 = vrot.lane.b32.xlu0 %v2125, 20
      %v2193 = vpop.permute.xlu0 %2192
      %2194 = vrot.lane.b32.xlu0 %v2128, 20
      %v2195 = vpop.permute.xlu0 %2194
      %2196 = vrot.lane.b32.xlu0 %v2132, 20
      %v2197 = vpop.permute.xlu0 %2196
      %2198 = vrot.lane.b32.xlu0 %v2135, 20
      %v2199 = vpop.permute.xlu0 %2198
      %vm2232 = vcmask 191648
      %2233 = vst.msk [vmem:[#allocation2] sm:$0xf] %vm2232, %v2137
      %2234 = vst.msk [vmem:[#allocation2 + $0x4] sm:$0xf] %vm2232, %v2139
      %2235 = vst.msk [vmem:[#allocation2 + $0x8] sm:$0xf] %vm2232, %v2141
      %2236 = vst.msk [vmem:[#allocation2 + $0xc] sm:$0xf] %vm2232, %v2143
      %2237 = vst.msk [vmem:[#allocation2 + $0x10] sm:$0xf] %vm2232, %v2145
      %2238 = vst.msk [vmem:[#allocation2 + $0x14] sm:$0xf] %vm2232, %v2147
      %2239 = vst.msk [vmem:[#allocation2 + $0x18] sm:$0xf] %vm2232, %v2149
      %2240 = vst.msk [vmem:[#allocation2 + $0x1c] sm:$0xf] %vm2232, %v2151
      %2241 = vst.msk [vmem:[#allocation2 + $0x20] sm:$0xf] %vm2232, %v2153
      %2242 = vst.msk [vmem:[#allocation2 + $0x24] sm:$0xf] %vm2232, %v2155
      %2243 = vst.msk [vmem:[#allocation2 + $0x28] sm:$0xf] %vm2232, %v2157
      %2244 = vst.msk [vmem:[#allocation2 + $0x2c] sm:$0xf] %vm2232, %v2159
      %2245 = vst.msk [vmem:[#allocation2 + $0x30] sm:$0xf] %vm2232, %v2161
      %2246 = vst.msk [vmem:[#allocation2 + $0x34] sm:$0xf] %vm2232, %v2163
      %2247 = vst.msk [vmem:[#allocation2 + $0x38] sm:$0xf] %vm2232, %v2165
      %2248 = vst.msk [vmem:[#allocation2 + $0x3c] sm:$0xf] %vm2232, %v2167
      %2249 = vst.msk [vmem:[#allocation2 + $0x40] sm:$0xf] %vm2232, %v2169
      %2250 = vst.msk [vmem:[#allocation2 + $0x44] sm:$0xf] %vm2232, %v2171
      %2251 = vst.msk [vmem:[#allocation2 + $0x48] sm:$0xf] %vm2232, %v2173
      %2252 = vst.msk [vmem:[#allocation2 + $0x4c] sm:$0xf] %vm2232, %v2175
      %2253 = vst.msk [vmem:[#allocation2 + $0x50] sm:$0xf] %vm2232, %v2177
      %2254 = vst.msk [vmem:[#allocation2 + $0x54] sm:$0xf] %vm2232, %v2179
      %2255 = vst.msk [vmem:[#allocation2 + $0x58] sm:$0xf] %vm2232, %v2181
      %2256 = vst.msk [vmem:[#allocation2 + $0x5c] sm:$0xf] %vm2232, %v2183
      %2257 = vst.msk [vmem:[#allocation2 + $0x60] sm:$0xf] %vm2232, %v2185
      %2258 = vst.msk [vmem:[#allocation2 + $0x64] sm:$0xf] %vm2232, %v2187
      %2259 = vst.msk [vmem:[#allocation2 + $0x68] sm:$0xf] %vm2232, %v2189
      %2260 = vst.msk [vmem:[#allocation2 + $0x6c] sm:$0xf] %vm2232, %v2191
      %2261 = vst.msk [vmem:[#allocation2 + $0x70] sm:$0xf] %vm2232, %v2193
      %2262 = vst.msk [vmem:[#allocation2 + $0x74] sm:$0xf] %vm2232, %v2195
      %2263 = vst.msk [vmem:[#allocation2 + $0x78] sm:$0xf] %vm2232, %v2197
      %2264 = vst.msk [vmem:[#allocation2 + $0x7c] sm:$0xf] %vm2232, %v2199
      %s2265 = sadd.s32 %s197, 2
      %s2266 = smul.u32 %s2265, 3
      %s2267 = smul.addr %s2266, 4
      %s2268 = scalar_lea.vmem %s184, %s2267
      %v2269 = vld [vmem:[%s2268] sm:$0xf]
      %v2270 = vld [vmem:[%s2268 + $0x4] sm:$0xf]
      %v2271 = vld [vmem:[%s2268 + $0xc] sm:$0xf]
      %v2272 = vld [vmem:[%s2268 + $0x10] sm:$0xf]
      %v2273 = vld [vmem:[%s2268 + $0x18] sm:$0xf]
      %v2274 = vld [vmem:[%s2268 + $0x1c] sm:$0xf]
      %v2275 = vld [vmem:[%s2268 + $0x24] sm:$0xf]
      %v2276 = vld [vmem:[%s2268 + $0x28] sm:$0xf]
      %v2277 = vld [vmem:[%s2268 + $0x30] sm:$0xf]
      %v2278 = vld [vmem:[%s2268 + $0x34] sm:$0xf]
      %v2279 = vld [vmem:[%s2268 + $0x3c] sm:$0xf]
      %v2280 = vld [vmem:[%s2268 + $0x40] sm:$0xf]
      %v2281 = vld [vmem:[%s2268 + $0x48] sm:$0xf]
      %v2282 = vld [vmem:[%s2268 + $0x4c] sm:$0xf]
      %v2283 = vld [vmem:[%s2268 + $0x54] sm:$0xf]
      %v2284 = vld [vmem:[%s2268 + $0x58] sm:$0xf]
      %v2285 = vld [vmem:[%s2268 + $0x60] sm:$0xf]
      %v2286 = vld [vmem:[%s2268 + $0x64] sm:$0xf]
      %v2287 = vld [vmem:[%s2268 + $0x6c] sm:$0xf]
      %v2288 = vld [vmem:[%s2268 + $0x70] sm:$0xf]
      %v2289 = vld [vmem:[%s2268 + $0x78] sm:$0xf]
      %v2290 = vld [vmem:[%s2268 + $0x7c] sm:$0xf]
      %v2291 = vld [vmem:[%s2268 + $0x84] sm:$0xf]
      %v2292 = vld [vmem:[%s2268 + $0x88] sm:$0xf]
      %v2293 = vld [vmem:[%s2268 + $0x90] sm:$0xf]
      %v2294 = vld [vmem:[%s2268 + $0x94] sm:$0xf]
      %v2295 = vld [vmem:[%s2268 + $0x9c] sm:$0xf]
      %v2296 = vld [vmem:[%s2268 + $0xa0] sm:$0xf]
      %v2297 = vld [vmem:[%s2268 + $0xa8] sm:$0xf]
      %v2298 = vld [vmem:[%s2268 + $0xac] sm:$0xf]
      %v2299 = vld [vmem:[%s2268 + $0xb4] sm:$0xf]
      %v2300 = vld [vmem:[%s2268 + $0xb8] sm:$0xf]
      %2333 = vrot.lane.b32.xlu0 %v2269, 24
      %v2334 = vpop.permute.xlu0 %2333
      %2335 = vrot.lane.b32.xlu0 %v2270, 24
      %v2336 = vpop.permute.xlu0 %2335
      %2337 = vrot.lane.b32.xlu0 %v2271, 24
      %v2338 = vpop.permute.xlu0 %2337
      %2339 = vrot.lane.b32.xlu0 %v2272, 24
      %v2340 = vpop.permute.xlu0 %2339
      %2341 = vrot.lane.b32.xlu0 %v2273, 24
      %v2342 = vpop.permute.xlu0 %2341
      %2343 = vrot.lane.b32.xlu0 %v2274, 24
      %v2344 = vpop.permute.xlu0 %2343
      %2345 = vrot.lane.b32.xlu0 %v2275, 24
      %v2346 = vpop.permute.xlu0 %2345
      %2347 = vrot.lane.b32.xlu0 %v2276, 24
      %v2348 = vpop.permute.xlu0 %2347
      %2349 = vrot.lane.b32.xlu0 %v2277, 24
      %v2350 = vpop.permute.xlu0 %2349
      %2351 = vrot.lane.b32.xlu0 %v2278, 24
      %v2352 = vpop.permute.xlu0 %2351
      %2353 = vrot.lane.b32.xlu0 %v2279, 24
      %v2354 = vpop.permute.xlu0 %2353
      %2355 = vrot.lane.b32.xlu0 %v2280, 24
      %v2356 = vpop.permute.xlu0 %2355
      %2357 = vrot.lane.b32.xlu0 %v2281, 24
      %v2358 = vpop.permute.xlu0 %2357
      %2359 = vrot.lane.b32.xlu0 %v2282, 24
      %v2360 = vpop.permute.xlu0 %2359
      %2361 = vrot.lane.b32.xlu0 %v2283, 24
      %v2362 = vpop.permute.xlu0 %2361
      %2363 = vrot.lane.b32.xlu0 %v2284, 24
      %v2364 = vpop.permute.xlu0 %2363
      %2365 = vrot.lane.b32.xlu0 %v2285, 24
      %v2366 = vpop.permute.xlu0 %2365
      %2367 = vrot.lane.b32.xlu0 %v2286, 24
      %v2368 = vpop.permute.xlu0 %2367
      %2369 = vrot.lane.b32.xlu0 %v2287, 24
      %v2370 = vpop.permute.xlu0 %2369
      %2371 = vrot.lane.b32.xlu0 %v2288, 24
      %v2372 = vpop.permute.xlu0 %2371
      %2373 = vrot.lane.b32.xlu0 %v2289, 24
      %v2374 = vpop.permute.xlu0 %2373
      %2375 = vrot.lane.b32.xlu0 %v2290, 24
      %v2376 = vpop.permute.xlu0 %2375
      %2377 = vrot.lane.b32.xlu0 %v2291, 24
      %v2378 = vpop.permute.xlu0 %2377
      %2379 = vrot.lane.b32.xlu0 %v2292, 24
      %v2380 = vpop.permute.xlu0 %2379
      %2381 = vrot.lane.b32.xlu0 %v2293, 24
      %v2382 = vpop.permute.xlu0 %2381
      %2383 = vrot.lane.b32.xlu0 %v2294, 24
      %v2384 = vpop.permute.xlu0 %2383
      %2385 = vrot.lane.b32.xlu0 %v2295, 24
      %v2386 = vpop.permute.xlu0 %2385
      %2387 = vrot.lane.b32.xlu0 %v2296, 24
      %v2388 = vpop.permute.xlu0 %2387
      %2389 = vrot.lane.b32.xlu0 %v2297, 24
      %v2390 = vpop.permute.xlu0 %2389
      %2391 = vrot.lane.b32.xlu0 %v2298, 24
      %v2392 = vpop.permute.xlu0 %2391
      %2393 = vrot.lane.b32.xlu0 %v2299, 24
      %v2394 = vpop.permute.xlu0 %2393
      %2395 = vrot.lane.b32.xlu0 %v2300, 24
      %v2396 = vpop.permute.xlu0 %2395
      %vm2429 = vcmask 224448
      %2430 = vst.msk [vmem:[#allocation2] sm:$0xf] %vm2429, %v2334
      %2431 = vst.msk [vmem:[#allocation2 + $0x4] sm:$0xf] %vm2429, %v2336
      %2432 = vst.msk [vmem:[#allocation2 + $0x8] sm:$0xf] %vm2429, %v2338
      %2433 = vst.msk [vmem:[#allocation2 + $0xc] sm:$0xf] %vm2429, %v2340
      %2434 = vst.msk [vmem:[#allocation2 + $0x10] sm:$0xf] %vm2429, %v2342
      %2435 = vst.msk [vmem:[#allocation2 + $0x14] sm:$0xf] %vm2429, %v2344
      %2436 = vst.msk [vmem:[#allocation2 + $0x18] sm:$0xf] %vm2429, %v2346
      %2437 = vst.msk [vmem:[#allocation2 + $0x1c] sm:$0xf] %vm2429, %v2348
      %2438 = vst.msk [vmem:[#allocation2 + $0x20] sm:$0xf] %vm2429, %v2350
      %2439 = vst.msk [vmem:[#allocation2 + $0x24] sm:$0xf] %vm2429, %v2352
      %2440 = vst.msk [vmem:[#allocation2 + $0x28] sm:$0xf] %vm2429, %v2354
      %2441 = vst.msk [vmem:[#allocation2 + $0x2c] sm:$0xf] %vm2429, %v2356
      %2442 = vst.msk [vmem:[#allocation2 + $0x30] sm:$0xf] %vm2429, %v2358
      %2443 = vst.msk [vmem:[#allocation2 + $0x34] sm:$0xf] %vm2429, %v2360
      %2444 = vst.msk [vmem:[#allocation2 + $0x38] sm:$0xf] %vm2429, %v2362
      %2445 = vst.msk [vmem:[#allocation2 + $0x3c] sm:$0xf] %vm2429, %v2364
      %2446 = vst.msk [vmem:[#allocation2 + $0x40] sm:$0xf] %vm2429, %v2366
      %2447 = vst.msk [vmem:[#allocation2 + $0x44] sm:$0xf] %vm2429, %v2368
      %2448 = vst.msk [vmem:[#allocation2 + $0x48] sm:$0xf] %vm2429, %v2370
      %2449 = vst.msk [vmem:[#allocation2 + $0x4c] sm:$0xf] %vm2429, %v2372
      %2450 = vst.msk [vmem:[#allocation2 + $0x50] sm:$0xf] %vm2429, %v2374
      %2451 = vst.msk [vmem:[#allocation2 + $0x54] sm:$0xf] %vm2429, %v2376
      %2452 = vst.msk [vmem:[#allocation2 + $0x58] sm:$0xf] %vm2429, %v2378
      %2453 = vst.msk [vmem:[#allocation2 + $0x5c] sm:$0xf] %vm2429, %v2380
      %2454 = vst.msk [vmem:[#allocation2 + $0x60] sm:$0xf] %vm2429, %v2382
      %2455 = vst.msk [vmem:[#allocation2 + $0x64] sm:$0xf] %vm2429, %v2384
      %2456 = vst.msk [vmem:[#allocation2 + $0x68] sm:$0xf] %vm2429, %v2386
      %2457 = vst.msk [vmem:[#allocation2 + $0x6c] sm:$0xf] %vm2429, %v2388
      %2458 = vst.msk [vmem:[#allocation2 + $0x70] sm:$0xf] %vm2429, %v2390
      %2459 = vst.msk [vmem:[#allocation2 + $0x74] sm:$0xf] %vm2429, %v2392
      %2460 = vst.msk [vmem:[#allocation2 + $0x78] sm:$0xf] %vm2429, %v2394
      %2461 = vst.msk [vmem:[#allocation2 + $0x7c] sm:$0xf] %vm2429, %v2396
      %v2462 = vld [vmem:[%s2268] sm:$0xf]
      %v2463 = vld [vmem:[%s2268 + $0x4] sm:$0xf]
      %v2464 = vld [vmem:[%s2268 + $0x8] sm:$0x1]
      %v2465 = vld [vmem:[%s2268 + $0xc] sm:$0xf]
      %v2466 = vld [vmem:[%s2268 + $0x10] sm:$0xf]
      %v2467 = vld [vmem:[%s2268 + $0x14] sm:$0x1]
      %v2468 = vld [vmem:[%s2268 + $0x18] sm:$0xf]
      %v2469 = vld [vmem:[%s2268 + $0x1c] sm:$0xf]
      %v2470 = vld [vmem:[%s2268 + $0x20] sm:$0x1]
      %v2471 = vld [vmem:[%s2268 + $0x24] sm:$0xf]
      %v2472 = vld [vmem:[%s2268 + $0x28] sm:$0xf]
      %v2473 = vld [vmem:[%s2268 + $0x2c] sm:$0x1]
      %v2474 = vld [vmem:[%s2268 + $0x30] sm:$0xf]
      %v2475 = vld [vmem:[%s2268 + $0x34] sm:$0xf]
      %v2476 = vld [vmem:[%s2268 + $0x38] sm:$0x1]
      %v2477 = vld [vmem:[%s2268 + $0x3c] sm:$0xf]
      %v2478 = vld [vmem:[%s2268 + $0x40] sm:$0xf]
      %v2479 = vld [vmem:[%s2268 + $0x44] sm:$0x1]
      %v2480 = vld [vmem:[%s2268 + $0x48] sm:$0xf]
      %v2481 = vld [vmem:[%s2268 + $0x4c] sm:$0xf]
      %v2482 = vld [vmem:[%s2268 + $0x50] sm:$0x1]
      %v2483 = vld [vmem:[%s2268 + $0x54] sm:$0xf]
      %v2484 = vld [vmem:[%s2268 + $0x58] sm:$0xf]
      %v2485 = vld [vmem:[%s2268 + $0x5c] sm:$0x1]
      %v2486 = vld [vmem:[%s2268 + $0x60] sm:$0xf]
      %v2487 = vld [vmem:[%s2268 + $0x64] sm:$0xf]
      %v2488 = vld [vmem:[%s2268 + $0x68] sm:$0x1]
      %v2489 = vld [vmem:[%s2268 + $0x6c] sm:$0xf]
      %v2490 = vld [vmem:[%s2268 + $0x70] sm:$0xf]
      %v2491 = vld [vmem:[%s2268 + $0x74] sm:$0x1]
      %v2492 = vld [vmem:[%s2268 + $0x78] sm:$0xf]
      %v2493 = vld [vmem:[%s2268 + $0x7c] sm:$0xf]
      %v2494 = vld [vmem:[%s2268 + $0x80] sm:$0x1]
      %v2495 = vld [vmem:[%s2268 + $0x84] sm:$0xf]
      %v2496 = vld [vmem:[%s2268 + $0x88] sm:$0xf]
      %v2497 = vld [vmem:[%s2268 + $0x8c] sm:$0x1]
      %v2498 = vld [vmem:[%s2268 + $0x90] sm:$0xf]
      %v2499 = vld [vmem:[%s2268 + $0x94] sm:$0xf]
      %v2500 = vld [vmem:[%s2268 + $0x98] sm:$0x1]
      %v2501 = vld [vmem:[%s2268 + $0x9c] sm:$0xf]
      %v2502 = vld [vmem:[%s2268 + $0xa0] sm:$0xf]
      %v2503 = vld [vmem:[%s2268 + $0xa4] sm:$0x1]
      %v2504 = vld [vmem:[%s2268 + $0xa8] sm:$0xf]
      %v2505 = vld [vmem:[%s2268 + $0xac] sm:$0xf]
      %v2506 = vld [vmem:[%s2268 + $0xb0] sm:$0x1]
      %v2507 = vld [vmem:[%s2268 + $0xb4] sm:$0xf]
      %v2508 = vld [vmem:[%s2268 + $0xb8] sm:$0xf]
      %v2509 = vld [vmem:[%s2268 + $0xbc] sm:$0x1]
      %v2511 = vshrl.u32 %v2462, 16
      %v2513 = vrot.slane %v2511, 4
      %v2514 = vshll.u32 %v2462, 16
      %v2516 = vrot.slane %v2514, 5
      %v2517 = vor.u32 %v2513, %v2516
      %v2518 = vrot.slane %v2517, 4
      %v2520 = vshll.u32 %v2463, 16
      %v2522 = vrot.slane %v2520, 5
      %v2523 = vsel %vm316, %v2518, %v2522
      %v2524 = vshrl.u32 %v2463, 16
      %v2526 = vrot.slane %v2524, 4
      %v2527 = vor.u32 %v2526, %v2522
      %v2528 = vrot.slane %v2527, 4
      %v2530 = vshll.u32 %v2464, 16
      %v2532 = vrot.slane %v2530, 5
      %v2533 = vsel %vm316, %v2528, %v2532
      %v2535 = vshrl.u32 %v2465, 16
      %v2537 = vrot.slane %v2535, 4
      %v2538 = vshll.u32 %v2465, 16
      %v2540 = vrot.slane %v2538, 5
      %v2541 = vor.u32 %v2537, %v2540
      %v2542 = vrot.slane %v2541, 4
      %v2544 = vshll.u32 %v2466, 16
      %v2546 = vrot.slane %v2544, 5
      %v2547 = vsel %vm316, %v2542, %v2546
      %v2548 = vshrl.u32 %v2466, 16
      %v2550 = vrot.slane %v2548, 4
      %v2551 = vor.u32 %v2550, %v2546
      %v2552 = vrot.slane %v2551, 4
      %v2554 = vshll.u32 %v2467, 16
      %v2556 = vrot.slane %v2554, 5
      %v2557 = vsel %vm316, %v2552, %v2556
      %v2559 = vshrl.u32 %v2468, 16
      %v2561 = vrot.slane %v2559, 4
      %v2562 = vshll.u32 %v2468, 16
      %v2564 = vrot.slane %v2562, 5
      %v2565 = vor.u32 %v2561, %v2564
      %v2566 = vrot.slane %v2565, 4
      %v2568 = vshll.u32 %v2469, 16
      %v2570 = vrot.slane %v2568, 5
      %v2571 = vsel %vm316, %v2566, %v2570
      %v2572 = vshrl.u32 %v2469, 16
      %v2574 = vrot.slane %v2572, 4
      %v2575 = vor.u32 %v2574, %v2570
      %v2576 = vrot.slane %v2575, 4
      %v2578 = vshll.u32 %v2470, 16
      %v2580 = vrot.slane %v2578, 5
      %v2581 = vsel %vm316, %v2576, %v2580
      %v2583 = vshrl.u32 %v2471, 16
      %v2585 = vrot.slane %v2583, 4
      %v2586 = vshll.u32 %v2471, 16
      %v2588 = vrot.slane %v2586, 5
      %v2589 = vor.u32 %v2585, %v2588
      %v2590 = vrot.slane %v2589, 4
      %v2592 = vshll.u32 %v2472, 16
      %v2594 = vrot.slane %v2592, 5
      %v2595 = vsel %vm316, %v2590, %v2594
      %v2596 = vshrl.u32 %v2472, 16
      %v2598 = vrot.slane %v2596, 4
      %v2599 = vor.u32 %v2598, %v2594
      %v2600 = vrot.slane %v2599, 4
      %v2602 = vshll.u32 %v2473, 16
      %v2604 = vrot.slane %v2602, 5
      %v2605 = vsel %vm316, %v2600, %v2604
      %v2607 = vshrl.u32 %v2474, 16
      %v2609 = vrot.slane %v2607, 4
      %v2610 = vshll.u32 %v2474, 16
      %v2612 = vrot.slane %v2610, 5
      %v2613 = vor.u32 %v2609, %v2612
      %v2614 = vrot.slane %v2613, 4
      %v2616 = vshll.u32 %v2475, 16
      %v2618 = vrot.slane %v2616, 5
      %v2619 = vsel %vm316, %v2614, %v2618
      %v2620 = vshrl.u32 %v2475, 16
      %v2622 = vrot.slane %v2620, 4
      %v2623 = vor.u32 %v2622, %v2618
      %v2624 = vrot.slane %v2623, 4
      %v2626 = vshll.u32 %v2476, 16
      %v2628 = vrot.slane %v2626, 5
      %v2629 = vsel %vm316, %v2624, %v2628
      %v2631 = vshrl.u32 %v2477, 16
      %v2633 = vrot.slane %v2631, 4
      %v2634 = vshll.u32 %v2477, 16
      %v2636 = vrot.slane %v2634, 5
      %v2637 = vor.u32 %v2633, %v2636
      %v2638 = vrot.slane %v2637, 4
      %v2640 = vshll.u32 %v2478, 16
      %v2642 = vrot.slane %v2640, 5
      %v2643 = vsel %vm316, %v2638, %v2642
      %v2644 = vshrl.u32 %v2478, 16
      %v2646 = vrot.slane %v2644, 4
      %v2647 = vor.u32 %v2646, %v2642
      %v2648 = vrot.slane %v2647, 4
      %v2650 = vshll.u32 %v2479, 16
      %v2652 = vrot.slane %v2650, 5
      %v2653 = vsel %vm316, %v2648, %v2652
      %v2655 = vshrl.u32 %v2480, 16
      %v2657 = vrot.slane %v2655, 4
      %v2658 = vshll.u32 %v2480, 16
      %v2660 = vrot.slane %v2658, 5
      %v2661 = vor.u32 %v2657, %v2660
      %v2662 = vrot.slane %v2661, 4
      %v2664 = vshll.u32 %v2481, 16
      %v2666 = vrot.slane %v2664, 5
      %v2667 = vsel %vm316, %v2662, %v2666
      %v2668 = vshrl.u32 %v2481, 16
      %v2670 = vrot.slane %v2668, 4
      %v2671 = vor.u32 %v2670, %v2666
      %v2672 = vrot.slane %v2671, 4
      %v2674 = vshll.u32 %v2482, 16
      %v2676 = vrot.slane %v2674, 5
      %v2677 = vsel %vm316, %v2672, %v2676
      %v2679 = vshrl.u32 %v2483, 16
      %v2681 = vrot.slane %v2679, 4
      %v2682 = vshll.u32 %v2483, 16
      %v2684 = vrot.slane %v2682, 5
      %v2685 = vor.u32 %v2681, %v2684
      %v2686 = vrot.slane %v2685, 4
      %v2688 = vshll.u32 %v2484, 16
      %v2690 = vrot.slane %v2688, 5
      %v2691 = vsel %vm316, %v2686, %v2690
      %v2692 = vshrl.u32 %v2484, 16
      %v2694 = vrot.slane %v2692, 4
      %v2695 = vor.u32 %v2694, %v2690
      %v2696 = vrot.slane %v2695, 4
      %v2698 = vshll.u32 %v2485, 16
      %v2700 = vrot.slane %v2698, 5
      %v2701 = vsel %vm316, %v2696, %v2700
      %v2703 = vshrl.u32 %v2486, 16
      %v2705 = vrot.slane %v2703, 4
      %v2706 = vshll.u32 %v2486, 16
      %v2708 = vrot.slane %v2706, 5
      %v2709 = vor.u32 %v2705, %v2708
      %v2710 = vrot.slane %v2709, 4
      %v2712 = vshll.u32 %v2487, 16
      %v2714 = vrot.slane %v2712, 5
      %v2715 = vsel %vm316, %v2710, %v2714
      %v2716 = vshrl.u32 %v2487, 16
      %v2718 = vrot.slane %v2716, 4
      %v2719 = vor.u32 %v2718, %v2714
      %v2720 = vrot.slane %v2719, 4
      %v2722 = vshll.u32 %v2488, 16
      %v2724 = vrot.slane %v2722, 5
      %v2725 = vsel %vm316, %v2720, %v2724
      %v2727 = vshrl.u32 %v2489, 16
      %v2729 = vrot.slane %v2727, 4
      %v2730 = vshll.u32 %v2489, 16
      %v2732 = vrot.slane %v2730, 5
      %v2733 = vor.u32 %v2729, %v2732
      %v2734 = vrot.slane %v2733, 4
      %v2736 = vshll.u32 %v2490, 16
      %v2738 = vrot.slane %v2736, 5
      %v2739 = vsel %vm316, %v2734, %v2738
      %v2740 = vshrl.u32 %v2490, 16
      %v2742 = vrot.slane %v2740, 4
      %v2743 = vor.u32 %v2742, %v2738
      %v2744 = vrot.slane %v2743, 4
      %v2746 = vshll.u32 %v2491, 16
      %v2748 = vrot.slane %v2746, 5
      %v2749 = vsel %vm316, %v2744, %v2748
      %v2751 = vshrl.u32 %v2492, 16
      %v2753 = vrot.slane %v2751, 4
      %v2754 = vshll.u32 %v2492, 16
      %v2756 = vrot.slane %v2754, 5
      %v2757 = vor.u32 %v2753, %v2756
      %v2758 = vrot.slane %v2757, 4
      %v2760 = vshll.u32 %v2493, 16
      %v2762 = vrot.slane %v2760, 5
      %v2763 = vsel %vm316, %v2758, %v2762
      %v2764 = vshrl.u32 %v2493, 16
      %v2766 = vrot.slane %v2764, 4
      %v2767 = vor.u32 %v2766, %v2762
      %v2768 = vrot.slane %v2767, 4
      %v2770 = vshll.u32 %v2494, 16
      %v2772 = vrot.slane %v2770, 5
      %v2773 = vsel %vm316, %v2768, %v2772
      %v2775 = vshrl.u32 %v2495, 16
      %v2777 = vrot.slane %v2775, 4
      %v2778 = vshll.u32 %v2495, 16
      %v2780 = vrot.slane %v2778, 5
      %v2781 = vor.u32 %v2777, %v2780
      %v2782 = vrot.slane %v2781, 4
      %v2784 = vshll.u32 %v2496, 16
      %v2786 = vrot.slane %v2784, 5
      %v2787 = vsel %vm316, %v2782, %v2786
      %v2788 = vshrl.u32 %v2496, 16
      %v2790 = vrot.slane %v2788, 4
      %v2791 = vor.u32 %v2790, %v2786
      %v2792 = vrot.slane %v2791, 4
      %v2794 = vshll.u32 %v2497, 16
      %v2796 = vrot.slane %v2794, 5
      %v2797 = vsel %vm316, %v2792, %v2796
      %v2799 = vshrl.u32 %v2498, 16
      %v2801 = vrot.slane %v2799, 4
      %v2802 = vshll.u32 %v2498, 16
      %v2804 = vrot.slane %v2802, 5
      %v2805 = vor.u32 %v2801, %v2804
      %v2806 = vrot.slane %v2805, 4
      %v2808 = vshll.u32 %v2499, 16
      %v2810 = vrot.slane %v2808, 5
      %v2811 = vsel %vm316, %v2806, %v2810
      %v2812 = vshrl.u32 %v2499, 16
      %v2814 = vrot.slane %v2812, 4
      %v2815 = vor.u32 %v2814, %v2810
      %v2816 = vrot.slane %v2815, 4
      %v2818 = vshll.u32 %v2500, 16
      %v2820 = vrot.slane %v2818, 5
      %v2821 = vsel %vm316, %v2816, %v2820
      %v2823 = vshrl.u32 %v2501, 16
      %v2825 = vrot.slane %v2823, 4
      %v2826 = vshll.u32 %v2501, 16
      %v2828 = vrot.slane %v2826, 5
      %v2829 = vor.u32 %v2825, %v2828
      %v2830 = vrot.slane %v2829, 4
      %v2832 = vshll.u32 %v2502, 16
      %v2834 = vrot.slane %v2832, 5
      %v2835 = vsel %vm316, %v2830, %v2834
      %v2836 = vshrl.u32 %v2502, 16
      %v2838 = vrot.slane %v2836, 4
      %v2839 = vor.u32 %v2838, %v2834
      %v2840 = vrot.slane %v2839, 4
      %v2842 = vshll.u32 %v2503, 16
      %v2844 = vrot.slane %v2842, 5
      %v2845 = vsel %vm316, %v2840, %v2844
      %v2847 = vshrl.u32 %v2504, 16
      %v2849 = vrot.slane %v2847, 4
      %v2850 = vshll.u32 %v2504, 16
      %v2852 = vrot.slane %v2850, 5
      %v2853 = vor.u32 %v2849, %v2852
      %v2854 = vrot.slane %v2853, 4
      %v2856 = vshll.u32 %v2505, 16
      %v2858 = vrot.slane %v2856, 5
      %v2859 = vsel %vm316, %v2854, %v2858
      %v2860 = vshrl.u32 %v2505, 16
      %v2862 = vrot.slane %v2860, 4
      %v2863 = vor.u32 %v2862, %v2858
      %v2864 = vrot.slane %v2863, 4
      %v2866 = vshll.u32 %v2506, 16
      %v2868 = vrot.slane %v2866, 5
      %v2869 = vsel %vm316, %v2864, %v2868
      %v2871 = vshrl.u32 %v2507, 16
      %v2873 = vrot.slane %v2871, 4
      %v2874 = vshll.u32 %v2507, 16
      %v2876 = vrot.slane %v2874, 5
      %v2877 = vor.u32 %v2873, %v2876
      %v2878 = vrot.slane %v2877, 4
      %v2880 = vshll.u32 %v2508, 16
      %v2882 = vrot.slane %v2880, 5
      %v2883 = vsel %vm316, %v2878, %v2882
      %v2884 = vshrl.u32 %v2508, 16
      %v2886 = vrot.slane %v2884, 4
      %v2887 = vor.u32 %v2886, %v2882
      %v2888 = vrot.slane %v2887, 4
      %v2890 = vshll.u32 %v2509, 16
      %v2892 = vrot.slane %v2890, 5
      %v2893 = vsel %vm316, %v2888, %v2892
      %2894 = vrot.lane.b32.xlu0 %v2523, 28
      %v2895 = vpop.permute.xlu0 %2894
      %2896 = vrot.lane.b32.xlu0 %v2533, 28
      %v2897 = vpop.permute.xlu0 %2896
      %2898 = vrot.lane.b32.xlu0 %v2547, 28
      %v2899 = vpop.permute.xlu0 %2898
      %2900 = vrot.lane.b32.xlu0 %v2557, 28
      %v2901 = vpop.permute.xlu0 %2900
      %2902 = vrot.lane.b32.xlu0 %v2571, 28
      %v2903 = vpop.permute.xlu0 %2902
      %2904 = vrot.lane.b32.xlu0 %v2581, 28
      %v2905 = vpop.permute.xlu0 %2904
      %2906 = vrot.lane.b32.xlu0 %v2595, 28
      %v2907 = vpop.permute.xlu0 %2906
      %2908 = vrot.lane.b32.xlu0 %v2605, 28
      %v2909 = vpop.permute.xlu0 %2908
      %2910 = vrot.lane.b32.xlu0 %v2619, 28
      %v2911 = vpop.permute.xlu0 %2910
      %2912 = vrot.lane.b32.xlu0 %v2629, 28
      %v2913 = vpop.permute.xlu0 %2912
      %2914 = vrot.lane.b32.xlu0 %v2643, 28
      %v2915 = vpop.permute.xlu0 %2914
      %2916 = vrot.lane.b32.xlu0 %v2653, 28
      %v2917 = vpop.permute.xlu0 %2916
      %2918 = vrot.lane.b32.xlu0 %v2667, 28
      %v2919 = vpop.permute.xlu0 %2918
      %2920 = vrot.lane.b32.xlu0 %v2677, 28
      %v2921 = vpop.permute.xlu0 %2920
      %2922 = vrot.lane.b32.xlu0 %v2691, 28
      %v2923 = vpop.permute.xlu0 %2922
      %2924 = vrot.lane.b32.xlu0 %v2701, 28
      %v2925 = vpop.permute.xlu0 %2924
      %2926 = vrot.lane.b32.xlu0 %v2715, 28
      %v2927 = vpop.permute.xlu0 %2926
      %2928 = vrot.lane.b32.xlu0 %v2725, 28
      %v2929 = vpop.permute.xlu0 %2928
      %2930 = vrot.lane.b32.xlu0 %v2739, 28
      %v2931 = vpop.permute.xlu0 %2930
      %2932 = vrot.lane.b32.xlu0 %v2749, 28
      %v2933 = vpop.permute.xlu0 %2932
      %2934 = vrot.lane.b32.xlu0 %v2763, 28
      %v2935 = vpop.permute.xlu0 %2934
      %2936 = vrot.lane.b32.xlu0 %v2773, 28
      %v2937 = vpop.permute.xlu0 %2936
      %2938 = vrot.lane.b32.xlu0 %v2787, 28
      %v2939 = vpop.permute.xlu0 %2938
      %2940 = vrot.lane.b32.xlu0 %v2797, 28
      %v2941 = vpop.permute.xlu0 %2940
      %2942 = vrot.lane.b32.xlu0 %v2811, 28
      %v2943 = vpop.permute.xlu0 %2942
      %2944 = vrot.lane.b32.xlu0 %v2821, 28
      %v2945 = vpop.permute.xlu0 %2944
      %2946 = vrot.lane.b32.xlu0 %v2835, 28
      %v2947 = vpop.permute.xlu0 %2946
      %2948 = vrot.lane.b32.xlu0 %v2845, 28
      %v2949 = vpop.permute.xlu0 %2948
      %2950 = vrot.lane.b32.xlu0 %v2859, 28
      %v2951 = vpop.permute.xlu0 %2950
      %2952 = vrot.lane.b32.xlu0 %v2869, 28
      %v2953 = vpop.permute.xlu0 %2952
      %2954 = vrot.lane.b32.xlu0 %v2883, 28
      %v2955 = vpop.permute.xlu0 %2954
      %2956 = vrot.lane.b32.xlu0 %v2893, 28
      %v2957 = vpop.permute.xlu0 %2956
      %vm2990 = vcmask 257248
      %2991 = vst.msk [vmem:[#allocation2] sm:$0xf] %vm2990, %v2895
      %2992 = vst.msk [vmem:[#allocation2 + $0x4] sm:$0xf] %vm2990, %v2897
      %2993 = vst.msk [vmem:[#allocation2 + $0x8] sm:$0xf] %vm2990, %v2899
      %2994 = vst.msk [vmem:[#allocation2 + $0xc] sm:$0xf] %vm2990, %v2901
      %2995 = vst.msk [vmem:[#allocation2 + $0x10] sm:$0xf] %vm2990, %v2903
      %2996 = vst.msk [vmem:[#allocation2 + $0x14] sm:$0xf] %vm2990, %v2905
      %2997 = vst.msk [vmem:[#allocation2 + $0x18] sm:$0xf] %vm2990, %v2907
      %2998 = vst.msk [vmem:[#allocation2 + $0x1c] sm:$0xf] %vm2990, %v2909
      %2999 = vst.msk [vmem:[#allocation2 + $0x20] sm:$0xf] %vm2990, %v2911
      %3000 = vst.msk [vmem:[#allocation2 + $0x24] sm:$0xf] %vm2990, %v2913
      %3001 = vst.msk [vmem:[#allocation2 + $0x28] sm:$0xf] %vm2990, %v2915
      %3002 = vst.msk [vmem:[#allocation2 + $0x2c] sm:$0xf] %vm2990, %v2917
      %3003 = vst.msk [vmem:[#allocation2 + $0x30] sm:$0xf] %vm2990, %v2919
      %3004 = vst.msk [vmem:[#allocation2 + $0x34] sm:$0xf] %vm2990, %v2921
      %3005 = vst.msk [vmem:[#allocation2 + $0x38] sm:$0xf] %vm2990, %v2923
      %3006 = vst.msk [vmem:[#allocation2 + $0x3c] sm:$0xf] %vm2990, %v2925
      %3007 = vst.msk [vmem:[#allocation2 + $0x40] sm:$0xf] %vm2990, %v2927
      %3008 = vst.msk [vmem:[#allocation2 + $0x44] sm:$0xf] %vm2990, %v2929
      %3009 = vst.msk [vmem:[#allocation2 + $0x48] sm:$0xf] %vm2990, %v2931
      %3010 = vst.msk [vmem:[#allocation2 + $0x4c] sm:$0xf] %vm2990, %v2933
      %3011 = vst.msk [vmem:[#allocation2 + $0x50] sm:$0xf] %vm2990, %v2935
      %3012 = vst.msk [vmem:[#allocation2 + $0x54] sm:$0xf] %vm2990, %v2937
      %3013 = vst.msk [vmem:[#allocation2 + $0x58] sm:$0xf] %vm2990, %v2939
      %3014 = vst.msk [vmem:[#allocation2 + $0x5c] sm:$0xf] %vm2990, %v2941
      %3015 = vst.msk [vmem:[#allocation2 + $0x60] sm:$0xf] %vm2990, %v2943
      %3016 = vst.msk [vmem:[#allocation2 + $0x64] sm:$0xf] %vm2990, %v2945
      %3017 = vst.msk [vmem:[#allocation2 + $0x68] sm:$0xf] %vm2990, %v2947
      %3018 = vst.msk [vmem:[#allocation2 + $0x6c] sm:$0xf] %vm2990, %v2949
      %3019 = vst.msk [vmem:[#allocation2 + $0x70] sm:$0xf] %vm2990, %v2951
      %3020 = vst.msk [vmem:[#allocation2 + $0x74] sm:$0xf] %vm2990, %v2953
      %3021 = vst.msk [vmem:[#allocation2 + $0x78] sm:$0xf] %vm2990, %v2955
      %3022 = vst.msk [vmem:[#allocation2 + $0x7c] sm:$0xf] %vm2990, %v2957
      %v3023 = vld [vmem:[%s2268] sm:$0xe]
      %v3024 = vld [vmem:[%s2268 + $0x4] sm:$0xf]
      %v3025 = vld [vmem:[%s2268 + $0x8] sm:$0x1]
      %v3026 = vld [vmem:[%s2268 + $0xc] sm:$0xe]
      %v3027 = vld [vmem:[%s2268 + $0x10] sm:$0xf]
      %v3028 = vld [vmem:[%s2268 + $0x14] sm:$0x1]
      %v3029 = vld [vmem:[%s2268 + $0x18] sm:$0xe]
      %v3030 = vld [vmem:[%s2268 + $0x1c] sm:$0xf]
      %v3031 = vld [vmem:[%s2268 + $0x20] sm:$0x1]
      %v3032 = vld [vmem:[%s2268 + $0x24] sm:$0xe]
      %v3033 = vld [vmem:[%s2268 + $0x28] sm:$0xf]
      %v3034 = vld [vmem:[%s2268 + $0x2c] sm:$0x1]
      %v3035 = vld [vmem:[%s2268 + $0x30] sm:$0xe]
      %v3036 = vld [vmem:[%s2268 + $0x34] sm:$0xf]
      %v3037 = vld [vmem:[%s2268 + $0x38] sm:$0x1]
      %v3038 = vld [vmem:[%s2268 + $0x3c] sm:$0xe]
      %v3039 = vld [vmem:[%s2268 + $0x40] sm:$0xf]
      %v3040 = vld [vmem:[%s2268 + $0x44] sm:$0x1]
      %v3041 = vld [vmem:[%s2268 + $0x48] sm:$0xe]
      %v3042 = vld [vmem:[%s2268 + $0x4c] sm:$0xf]
      %v3043 = vld [vmem:[%s2268 + $0x50] sm:$0x1]
      %v3044 = vld [vmem:[%s2268 + $0x54] sm:$0xe]
      %v3045 = vld [vmem:[%s2268 + $0x58] sm:$0xf]
      %v3046 = vld [vmem:[%s2268 + $0x5c] sm:$0x1]
      %v3047 = vld [vmem:[%s2268 + $0x60] sm:$0xe]
      %v3048 = vld [vmem:[%s2268 + $0x64] sm:$0xf]
      %v3049 = vld [vmem:[%s2268 + $0x68] sm:$0x1]
      %v3050 = vld [vmem:[%s2268 + $0x6c] sm:$0xe]
      %v3051 = vld [vmem:[%s2268 + $0x70] sm:$0xf]
      %v3052 = vld [vmem:[%s2268 + $0x74] sm:$0x1]
      %v3053 = vld [vmem:[%s2268 + $0x78] sm:$0xe]
      %v3054 = vld [vmem:[%s2268 + $0x7c] sm:$0xf]
      %v3055 = vld [vmem:[%s2268 + $0x80] sm:$0x1]
      %v3056 = vld [vmem:[%s2268 + $0x84] sm:$0xe]
      %v3057 = vld [vmem:[%s2268 + $0x88] sm:$0xf]
      %v3058 = vld [vmem:[%s2268 + $0x8c] sm:$0x1]
      %v3059 = vld [vmem:[%s2268 + $0x90] sm:$0xe]
      %v3060 = vld [vmem:[%s2268 + $0x94] sm:$0xf]
      %v3061 = vld [vmem:[%s2268 + $0x98] sm:$0x1]
      %v3062 = vld [vmem:[%s2268 + $0x9c] sm:$0xe]
      %v3063 = vld [vmem:[%s2268 + $0xa0] sm:$0xf]
      %v3064 = vld [vmem:[%s2268 + $0xa4] sm:$0x1]
      %v3065 = vld [vmem:[%s2268 + $0xa8] sm:$0xe]
      %v3066 = vld [vmem:[%s2268 + $0xac] sm:$0xf]
      %v3067 = vld [vmem:[%s2268 + $0xb0] sm:$0x1]
      %v3068 = vld [vmem:[%s2268 + $0xb4] sm:$0xe]
      %v3069 = vld [vmem:[%s2268 + $0xb8] sm:$0xf]
      %v3070 = vld [vmem:[%s2268 + $0xbc] sm:$0x1]
      %v3119 = vrot.slane %v3023, 5
      %v3120 = vrot.slane %v3119, 4
      %v3121 = vrot.slane %v3024, 5
      %v3122 = vsel %vm928, %v3120, %v3121
      %v3123 = vrot.slane %v3121, 4
      %v3124 = vrot.slane %v3025, 5
      %v3125 = vsel %vm928, %v3123, %v3124
      %v3126 = vrot.slane %v3026, 5
      %v3127 = vrot.slane %v3126, 4
      %v3128 = vrot.slane %v3027, 5
      %v3129 = vsel %vm928, %v3127, %v3128
      %v3130 = vrot.slane %v3128, 4
      %v3131 = vrot.slane %v3028, 5
      %v3132 = vsel %vm928, %v3130, %v3131
      %v3133 = vrot.slane %v3029, 5
      %v3134 = vrot.slane %v3133, 4
      %v3135 = vrot.slane %v3030, 5
      %v3136 = vsel %vm928, %v3134, %v3135
      %v3137 = vrot.slane %v3135, 4
      %v3138 = vrot.slane %v3031, 5
      %v3139 = vsel %vm928, %v3137, %v3138
      %v3140 = vrot.slane %v3032, 5
      %v3141 = vrot.slane %v3140, 4
      %v3142 = vrot.slane %v3033, 5
      %v3143 = vsel %vm928, %v3141, %v3142
      %v3144 = vrot.slane %v3142, 4
      %v3145 = vrot.slane %v3034, 5
      %v3146 = vsel %vm928, %v3144, %v3145
      %v3147 = vrot.slane %v3035, 5
      %v3148 = vrot.slane %v3147, 4
      %v3149 = vrot.slane %v3036, 5
      %v3150 = vsel %vm928, %v3148, %v3149
      %v3151 = vrot.slane %v3149, 4
      %v3152 = vrot.slane %v3037, 5
      %v3153 = vsel %vm928, %v3151, %v3152
      %v3154 = vrot.slane %v3038, 5
      %v3155 = vrot.slane %v3154, 4
      %v3156 = vrot.slane %v3039, 5
      %v3157 = vsel %vm928, %v3155, %v3156
      %v3158 = vrot.slane %v3156, 4
      %v3159 = vrot.slane %v3040, 5
      %v3160 = vsel %vm928, %v3158, %v3159
      %v3161 = vrot.slane %v3041, 5
      %v3162 = vrot.slane %v3161, 4
      %v3163 = vrot.slane %v3042, 5
      %v3164 = vsel %vm928, %v3162, %v3163
      %v3165 = vrot.slane %v3163, 4
      %v3166 = vrot.slane %v3043, 5
      %v3167 = vsel %vm928, %v3165, %v3166
      %v3168 = vrot.slane %v3044, 5
      %v3169 = vrot.slane %v3168, 4
      %v3170 = vrot.slane %v3045, 5
      %v3171 = vsel %vm928, %v3169, %v3170
      %v3172 = vrot.slane %v3170, 4
      %v3173 = vrot.slane %v3046, 5
      %v3174 = vsel %vm928, %v3172, %v3173
      %v3175 = vrot.slane %v3047, 5
      %v3176 = vrot.slane %v3175, 4
      %v3177 = vrot.slane %v3048, 5
      %v3178 = vsel %vm928, %v3176, %v3177
      %v3179 = vrot.slane %v3177, 4
      %v3180 = vrot.slane %v3049, 5
      %v3181 = vsel %vm928, %v3179, %v3180
      %v3182 = vrot.slane %v3050, 5
      %v3183 = vrot.slane %v3182, 4
      %v3184 = vrot.slane %v3051, 5
      %v3185 = vsel %vm928, %v3183, %v3184
      %v3186 = vrot.slane %v3184, 4
      %v3187 = vrot.slane %v3052, 5
      %v3188 = vsel %vm928, %v3186, %v3187
      %v3189 = vrot.slane %v3053, 5
      %v3190 = vrot.slane %v3189, 4
      %v3191 = vrot.slane %v3054, 5
      %v3192 = vsel %vm928, %v3190, %v3191
      %v3193 = vrot.slane %v3191, 4
      %v3194 = vrot.slane %v3055, 5
      %v3195 = vsel %vm928, %v3193, %v3194
      %v3196 = vrot.slane %v3056, 5
      %v3197 = vrot.slane %v3196, 4
      %v3198 = vrot.slane %v3057, 5
      %v3199 = vsel %vm928, %v3197, %v3198
      %v3200 = vrot.slane %v3198, 4
      %v3201 = vrot.slane %v3058, 5
      %v3202 = vsel %vm928, %v3200, %v3201
      %v3203 = vrot.slane %v3059, 5
      %v3204 = vrot.slane %v3203, 4
      %v3205 = vrot.slane %v3060, 5
      %v3206 = vsel %vm928, %v3204, %v3205
      %v3207 = vrot.slane %v3205, 4
      %v3208 = vrot.slane %v3061, 5
      %v3209 = vsel %vm928, %v3207, %v3208
      %v3210 = vrot.slane %v3062, 5
      %v3211 = vrot.slane %v3210, 4
      %v3212 = vrot.slane %v3063, 5
      %v3213 = vsel %vm928, %v3211, %v3212
      %v3214 = vrot.slane %v3212, 4
      %v3215 = vrot.slane %v3064, 5
      %v3216 = vsel %vm928, %v3214, %v3215
      %v3217 = vrot.slane %v3065, 5
      %v3218 = vrot.slane %v3217, 4
      %v3219 = vrot.slane %v3066, 5
      %v3220 = vsel %vm928, %v3218, %v3219
      %v3221 = vrot.slane %v3219, 4
      %v3222 = vrot.slane %v3067, 5
      %v3223 = vsel %vm928, %v3221, %v3222
      %v3224 = vrot.slane %v3068, 5
      %v3225 = vrot.slane %v3224, 4
      %v3226 = vrot.slane %v3069, 5
      %v3227 = vsel %vm928, %v3225, %v3226
      %v3228 = vrot.slane %v3226, 4
      %v3229 = vrot.slane %v3070, 5
      %v3230 = vsel %vm928, %v3228, %v3229
      %3231 = vrot.lane.b32.xlu0 %v3122, 32
      %v3232 = vpop.permute.xlu0 %3231
      %3233 = vrot.lane.b32.xlu0 %v3125, 32
      %v3234 = vpop.permute.xlu0 %3233
      %3235 = vrot.lane.b32.xlu0 %v3129, 32
      %v3236 = vpop.permute.xlu0 %3235
      %3237 = vrot.lane.b32.xlu0 %v3132, 32
      %v3238 = vpop.permute.xlu0 %3237
      %3239 = vrot.lane.b32.xlu0 %v3136, 32
      %v3240 = vpop.permute.xlu0 %3239
      %3241 = vrot.lane.b32.xlu0 %v3139, 32
      %v3242 = vpop.permute.xlu0 %3241
      %3243 = vrot.lane.b32.xlu0 %v3143, 32
      %v3244 = vpop.permute.xlu0 %3243
      %3245 = vrot.lane.b32.xlu0 %v3146, 32
      %v3246 = vpop.permute.xlu0 %3245
      %3247 = vrot.lane.b32.xlu0 %v3150, 32
      %v3248 = vpop.permute.xlu0 %3247
      %3249 = vrot.lane.b32.xlu0 %v3153, 32
      %v3250 = vpop.permute.xlu0 %3249
      %3251 = vrot.lane.b32.xlu0 %v3157, 32
      %v3252 = vpop.permute.xlu0 %3251
      %3253 = vrot.lane.b32.xlu0 %v3160, 32
      %v3254 = vpop.permute.xlu0 %3253
      %3255 = vrot.lane.b32.xlu0 %v3164, 32
      %v3256 = vpop.permute.xlu0 %3255
      %3257 = vrot.lane.b32.xlu0 %v3167, 32
      %v3258 = vpop.permute.xlu0 %3257
      %3259 = vrot.lane.b32.xlu0 %v3171, 32
      %v3260 = vpop.permute.xlu0 %3259
      %3261 = vrot.lane.b32.xlu0 %v3174, 32
      %v3262 = vpop.permute.xlu0 %3261
      %3263 = vrot.lane.b32.xlu0 %v3178, 32
      %v3264 = vpop.permute.xlu0 %3263
      %3265 = vrot.lane.b32.xlu0 %v3181, 32
      %v3266 = vpop.permute.xlu0 %3265
      %3267 = vrot.lane.b32.xlu0 %v3185, 32
      %v3268 = vpop.permute.xlu0 %3267
      %3269 = vrot.lane.b32.xlu0 %v3188, 32
      %v3270 = vpop.permute.xlu0 %3269
      %3271 = vrot.lane.b32.xlu0 %v3192, 32
      %v3272 = vpop.permute.xlu0 %3271
      %3273 = vrot.lane.b32.xlu0 %v3195, 32
      %v3274 = vpop.permute.xlu0 %3273
      %3275 = vrot.lane.b32.xlu0 %v3199, 32
      %v3276 = vpop.permute.xlu0 %3275
      %3277 = vrot.lane.b32.xlu0 %v3202, 32
      %v3278 = vpop.permute.xlu0 %3277
      %3279 = vrot.lane.b32.xlu0 %v3206, 32
      %v3280 = vpop.permute.xlu0 %3279
      %3281 = vrot.lane.b32.xlu0 %v3209, 32
      %v3282 = vpop.permute.xlu0 %3281
      %3283 = vrot.lane.b32.xlu0 %v3213, 32
      %v3284 = vpop.permute.xlu0 %3283
      %3285 = vrot.lane.b32.xlu0 %v3216, 32
      %v3286 = vpop.permute.xlu0 %3285
      %3287 = vrot.lane.b32.xlu0 %v3220, 32
      %v3288 = vpop.permute.xlu0 %3287
      %3289 = vrot.lane.b32.xlu0 %v3223, 32
      %v3290 = vpop.permute.xlu0 %3289
      %3291 = vrot.lane.b32.xlu0 %v3227, 32
      %v3292 = vpop.permute.xlu0 %3291
      %3293 = vrot.lane.b32.xlu0 %v3230, 32
      %v3294 = vpop.permute.xlu0 %3293
      %vm3327 = vcmask 290048
      %3328 = vst.msk [vmem:[#allocation2] sm:$0xf] %vm3327, %v3232
      %3329 = vst.msk [vmem:[#allocation2 + $0x4] sm:$0xf] %vm3327, %v3234
      %3330 = vst.msk [vmem:[#allocation2 + $0x8] sm:$0xf] %vm3327, %v3236
      %3331 = vst.msk [vmem:[#allocation2 + $0xc] sm:$0xf] %vm3327, %v3238
      %3332 = vst.msk [vmem:[#allocation2 + $0x10] sm:$0xf] %vm3327, %v3240
      %3333 = vst.msk [vmem:[#allocation2 + $0x14] sm:$0xf] %vm3327, %v3242
      %3334 = vst.msk [vmem:[#allocation2 + $0x18] sm:$0xf] %vm3327, %v3244
      %3335 = vst.msk [vmem:[#allocation2 + $0x1c] sm:$0xf] %vm3327, %v3246
      %3336 = vst.msk [vmem:[#allocation2 + $0x20] sm:$0xf] %vm3327, %v3248
      %3337 = vst.msk [vmem:[#allocation2 + $0x24] sm:$0xf] %vm3327, %v3250
      %3338 = vst.msk [vmem:[#allocation2 + $0x28] sm:$0xf] %vm3327, %v3252
      %3339 = vst.msk [vmem:[#allocation2 + $0x2c] sm:$0xf] %vm3327, %v3254
      %3340 = vst.msk [vmem:[#allocation2 + $0x30] sm:$0xf] %vm3327, %v3256
      %3341 = vst.msk [vmem:[#allocation2 + $0x34] sm:$0xf] %vm3327, %v3258
      %3342 = vst.msk [vmem:[#allocation2 + $0x38] sm:$0xf] %vm3327, %v3260
      %3343 = vst.msk [vmem:[#allocation2 + $0x3c] sm:$0xf] %vm3327, %v3262
      %3344 = vst.msk [vmem:[#allocation2 + $0x40] sm:$0xf] %vm3327, %v3264
      %3345 = vst.msk [vmem:[#allocation2 + $0x44] sm:$0xf] %vm3327, %v3266
      %3346 = vst.msk [vmem:[#allocation2 + $0x48] sm:$0xf] %vm3327, %v3268
      %3347 = vst.msk [vmem:[#allocation2 + $0x4c] sm:$0xf] %vm3327, %v3270
      %3348 = vst.msk [vmem:[#allocation2 + $0x50] sm:$0xf] %vm3327, %v3272
      %3349 = vst.msk [vmem:[#allocation2 + $0x54] sm:$0xf] %vm3327, %v3274
      %3350 = vst.msk [vmem:[#allocation2 + $0x58] sm:$0xf] %vm3327, %v3276
      %3351 = vst.msk [vmem:[#allocation2 + $0x5c] sm:$0xf] %vm3327, %v3278
      %3352 = vst.msk [vmem:[#allocation2 + $0x60] sm:$0xf] %vm3327, %v3280
      %3353 = vst.msk [vmem:[#allocation2 + $0x64] sm:$0xf] %vm3327, %v3282
      %3354 = vst.msk [vmem:[#allocation2 + $0x68] sm:$0xf] %vm3327, %v3284
      %3355 = vst.msk [vmem:[#allocation2 + $0x6c] sm:$0xf] %vm3327, %v3286
      %3356 = vst.msk [vmem:[#allocation2 + $0x70] sm:$0xf] %vm3327, %v3288
      %3357 = vst.msk [vmem:[#allocation2 + $0x74] sm:$0xf] %vm3327, %v3290
      %3358 = vst.msk [vmem:[#allocation2 + $0x78] sm:$0xf] %vm3327, %v3292
      %3359 = vst.msk [vmem:[#allocation2 + $0x7c] sm:$0xf] %vm3327, %v3294
      %v3360 = vld [vmem:[#allocation2] sm:$0xf]
      %v3361 = vld [vmem:[#allocation2 + $0x4] sm:$0xf]
      %v3362 = vld [vmem:[#allocation2 + $0x8] sm:$0xf]
      %v3363 = vld [vmem:[#allocation2 + $0xc] sm:$0xf]
      %v3364 = vld [vmem:[#allocation2 + $0x10] sm:$0xf]
      %v3365 = vld [vmem:[#allocation2 + $0x14] sm:$0xf]
      %v3366 = vld [vmem:[#allocation2 + $0x18] sm:$0xf]
      %v3367 = vld [vmem:[#allocation2 + $0x1c] sm:$0xf]
      %v3368 = vld [vmem:[#allocation2 + $0x20] sm:$0xf]
      %v3369 = vld [vmem:[#allocation2 + $0x24] sm:$0xf]
      %v3370 = vld [vmem:[#allocation2 + $0x28] sm:$0xf]
      %v3371 = vld [vmem:[#allocation2 + $0x2c] sm:$0xf]
      %v3372 = vld [vmem:[#allocation2 + $0x30] sm:$0xf]
      %v3373 = vld [vmem:[#allocation2 + $0x34] sm:$0xf]
      %v3374 = vld [vmem:[#allocation2 + $0x38] sm:$0xf]
      %v3375 = vld [vmem:[#allocation2 + $0x3c] sm:$0xf]
      %v3376 = vld [vmem:[#allocation2 + $0x40] sm:$0xf]
      %v3377 = vld [vmem:[#allocation2 + $0x44] sm:$0xf]
      %v3378 = vld [vmem:[#allocation2 + $0x48] sm:$0xf]
      %v3379 = vld [vmem:[#allocation2 + $0x4c] sm:$0xf]
      %v3380 = vld [vmem:[#allocation2 + $0x50] sm:$0xf]
      %v3381 = vld [vmem:[#allocation2 + $0x54] sm:$0xf]
      %v3382 = vld [vmem:[#allocation2 + $0x58] sm:$0xf]
      %v3383 = vld [vmem:[#allocation2 + $0x5c] sm:$0xf]
      %v3384 = vld [vmem:[#allocation2 + $0x60] sm:$0xf]
      %v3385 = vld [vmem:[#allocation2 + $0x64] sm:$0xf]
      %v3386 = vld [vmem:[#allocation2 + $0x68] sm:$0xf]
      %v3387 = vld [vmem:[#allocation2 + $0x6c] sm:$0xf]
      %v3388 = vld [vmem:[#allocation2 + $0x70] sm:$0xf]
      %v3389 = vld [vmem:[#allocation2 + $0x74] sm:$0xf]
      %v3390 = vld [vmem:[#allocation2 + $0x78] sm:$0xf]
      %v3391 = vld [vmem:[#allocation2 + $0x7c] sm:$0xf]
      %v3392 = vld [vmem:[%s1] sm:$0xf]
      %v3393 = vld [vmem:[%s1 + $0x4] sm:$0xf]
      %v3394 = vld [vmem:[%s1 + $0x8] sm:$0xf]
      %v3395 = vld [vmem:[%s1 + $0xc] sm:$0xf]
      %v3396 = vld [vmem:[%s1 + $0x10] sm:$0x3]
      %v3397 = vld [vmem:[%s2] sm:$0x1]
      %v3399 = vperm.slane %v3397, 0
      %v3433 = vunpack.c.l.b16 %v3360
      %v3434 = vunpack.c.l.b16 %v3361
      %v3435 = vunpack.c.l.b16 %v3362
      %v3436 = vunpack.c.l.b16 %v3363
      %v3437 = vunpack.c.l.b16 %v3364
      %v3438 = vunpack.c.l.b16 %v3365
      %v3439 = vunpack.c.l.b16 %v3366
      %v3440 = vunpack.c.l.b16 %v3367
      %v3441 = vunpack.c.l.b16 %v3368
      %v3442 = vunpack.c.l.b16 %v3369
      %v3443 = vunpack.c.l.b16 %v3370
      %v3444 = vunpack.c.l.b16 %v3371
      %v3445 = vunpack.c.l.b16 %v3372
      %v3446 = vunpack.c.l.b16 %v3373
      %v3447 = vunpack.c.l.b16 %v3374
      %v3448 = vunpack.c.l.b16 %v3375
      %v3449 = vunpack.c.l.b16 %v3376
      %v3450 = vunpack.c.l.b16 %v3377
      %v3451 = vunpack.c.l.b16 %v3378
      %v3452 = vunpack.c.l.b16 %v3379
      %v3453 = vunpack.c.l.b16 %v3380
      %v3454 = vunpack.c.l.b16 %v3381
      %v3455 = vunpack.c.l.b16 %v3382
      %v3456 = vunpack.c.l.b16 %v3383
      %v3457 = vunpack.c.l.b16 %v3384
      %v3458 = vunpack.c.l.b16 %v3385
      %v3459 = vunpack.c.l.b16 %v3386
      %v3460 = vunpack.c.l.b16 %v3387
      %v3461 = vunpack.c.l.b16 %v3388
      %v3462 = vunpack.c.l.b16 %v3389
      %v3463 = vunpack.c.l.b16 %v3390
      %v3464 = vunpack.c.l.b16 %v3391
      %v3465 = vpack.c.b16 %v3434, %v3433
      %v3466 = vpack.c.b16 %v3436, %v3435
      %v3467 = vpack.c.b16 %v3438, %v3437
      %v3468 = vpack.c.b16 %v3440, %v3439
      %v3469 = vpack.c.b16 %v3442, %v3441
      %v3470 = vpack.c.b16 %v3444, %v3443
      %v3471 = vpack.c.b16 %v3446, %v3445
      %v3472 = vpack.c.b16 %v3448, %v3447
      %v3473 = vpack.c.b16 %v3450, %v3449
      %v3474 = vpack.c.b16 %v3452, %v3451
      %v3475 = vpack.c.b16 %v3454, %v3453
      %v3476 = vpack.c.b16 %v3456, %v3455
      %v3477 = vpack.c.b16 %v3458, %v3457
      %v3478 = vpack.c.b16 %v3460, %v3459
      %v3479 = vpack.c.b16 %v3462, %v3461
      %v3480 = vpack.c.b16 %v3464, %v3463
      %v3486 = vunpack.c.l.b16 %v3392
      %v3487 = vunpack.c.l.b16 %v3393
      %v3488 = vunpack.c.l.b16 %v3394
      %v3489 = vunpack.c.l.b16 %v3395
      %v3490 = vunpack.c.l.b16 %v3396
      %v3491 = vpack.c.b16 %v3487, %v3486
      %v3492 = vpack.c.b16 %v3489, %v3488
      %v3493 = vpack.c.b16 %v3490, %v3490
      %vm3496 = vcmask 293888
      %v3498 = vsel %vm3496, %v3465, 0
      %v3501 = vsel %vm3496, %v3466, 0
      %v3504 = vsel %vm3496, %v3467, 0
      %v3507 = vsel %vm3496, %v3468, 0
      %v3510 = vsel %vm3496, %v3469, 0
      %v3513 = vsel %vm3496, %v3470, 0
      %v3516 = vsel %vm3496, %v3471, 0
      %v3519 = vsel %vm3496, %v3472, 0
      %v3522 = vsel %vm3496, %v3473, 0
      %v3525 = vsel %vm3496, %v3474, 0
      %v3528 = vsel %vm3496, %v3475, 0
      %v3531 = vsel %vm3496, %v3476, 0
      %v3534 = vsel %vm3496, %v3477, 0
      %v3537 = vsel %vm3496, %v3478, 0
      %v3540 = vsel %vm3496, %v3479, 0
      %v3543 = vsel %vm3496, %v3480, 0
      %vm3545 = vcmask 1041408
      %v3547 = vsel %vm3545, %v3493, 0
      %3549 = vmatpush.bf16.msra.mxu0 0
      %3550 = vmatpush.bf16.msra.mxu0 0
      %3551 = vmatpush.bf16.msra.mxu0 0
      %3552 = vmatpush.bf16.msra.mxu0 0
      %3553 = vmatpush.bf16.msra.mxu0 0
      %3554 = vmatpush.bf16.msra.mxu0 %v3547
      %3555 = vmatpush.bf16.msra.mxu0 %v3492
      %3556 = vmatpush.bf16.msra.mxu0 %v3491
      %3557 = vmatmul.bf16.gmra.mxu0 %v3498
      %v3558 = vpop.f32.mrf.mxu0
      %v3559 = vadd.f32 %v3399, %v3558
      %v3560 = vpop.f32.mrf.mxu0
      %v3561 = vadd.f32 %v3399, %v3560
      %3562 = vmatmul.bf16.gmra.mxu0 %v3501
      %v3563 = vpop.f32.mrf.mxu0
      %v3564 = vadd.f32 %v3399, %v3563
      %v3565 = vpop.f32.mrf.mxu0
      %v3566 = vadd.f32 %v3399, %v3565
      %3567 = vmatmul.bf16.gmra.mxu0 %v3504
      %v3568 = vpop.f32.mrf.mxu0
      %v3569 = vadd.f32 %v3399, %v3568
      %v3570 = vpop.f32.mrf.mxu0
      %v3571 = vadd.f32 %v3399, %v3570
      %3572 = vmatmul.bf16.gmra.mxu0 %v3507
      %v3573 = vpop.f32.mrf.mxu0
      %v3574 = vadd.f32 %v3399, %v3573
      %v3575 = vpop.f32.mrf.mxu0
      %v3576 = vadd.f32 %v3399, %v3575
      %3577 = vmatmul.bf16.gmra.mxu0 %v3510
      %v3578 = vpop.f32.mrf.mxu0
      %v3579 = vadd.f32 %v3399, %v3578
      %v3580 = vpop.f32.mrf.mxu0
      %v3581 = vadd.f32 %v3399, %v3580
      %3582 = vmatmul.bf16.gmra.mxu0 %v3513
      %v3583 = vpop.f32.mrf.mxu0
      %v3584 = vadd.f32 %v3399, %v3583
      %v3585 = vpop.f32.mrf.mxu0
      %v3586 = vadd.f32 %v3399, %v3585
      %3587 = vmatmul.bf16.gmra.mxu0 %v3516
      %v3588 = vpop.f32.mrf.mxu0
      %v3589 = vadd.f32 %v3399, %v3588
      %v3590 = vpop.f32.mrf.mxu0
      %v3591 = vadd.f32 %v3399, %v3590
      %3592 = vmatmul.bf16.gmra.mxu0 %v3519
      %v3593 = vpop.f32.mrf.mxu0
      %v3594 = vadd.f32 %v3399, %v3593
      %v3595 = vpop.f32.mrf.mxu0
      %v3596 = vadd.f32 %v3399, %v3595
      %3597 = vmatmul.bf16.gmra.mxu0 %v3522
      %v3598 = vpop.f32.mrf.mxu0
      %v3599 = vadd.f32 %v3399, %v3598
      %v3600 = vpop.f32.mrf.mxu0
      %v3601 = vadd.f32 %v3399, %v3600
      %3602 = vmatmul.bf16.gmra.mxu0 %v3525
      %v3603 = vpop.f32.mrf.mxu0
      %v3604 = vadd.f32 %v3399, %v3603
      %v3605 = vpop.f32.mrf.mxu0
      %v3606 = vadd.f32 %v3399, %v3605
      %3607 = vmatmul.bf16.gmra.mxu0 %v3528
      %v3608 = vpop.f32.mrf.mxu0
      %v3609 = vadd.f32 %v3399, %v3608
      %v3610 = vpop.f32.mrf.mxu0
      %v3611 = vadd.f32 %v3399, %v3610
      %3612 = vmatmul.bf16.gmra.mxu0 %v3531
      %v3613 = vpop.f32.mrf.mxu0
      %v3614 = vadd.f32 %v3399, %v3613
      %v3615 = vpop.f32.mrf.mxu0
      %v3616 = vadd.f32 %v3399, %v3615
      %3617 = vmatmul.bf16.gmra.mxu0 %v3534
      %v3618 = vpop.f32.mrf.mxu0
      %v3619 = vadd.f32 %v3399, %v3618
      %v3620 = vpop.f32.mrf.mxu0
      %v3621 = vadd.f32 %v3399, %v3620
      %3622 = vmatmul.bf16.gmra.mxu0 %v3537
      %v3623 = vpop.f32.mrf.mxu0
      %v3624 = vadd.f32 %v3399, %v3623
      %v3625 = vpop.f32.mrf.mxu0
      %v3626 = vadd.f32 %v3399, %v3625
      %3627 = vmatmul.bf16.gmra.mxu0 %v3540
      %v3628 = vpop.f32.mrf.mxu0
      %v3629 = vadd.f32 %v3399, %v3628
      %v3630 = vpop.f32.mrf.mxu0
      %v3631 = vadd.f32 %v3399, %v3630
      %3632 = vmatmul.bf16.gmra.mxu0 %v3543
      %v3633 = vpop.f32.mrf.mxu0
      %v3634 = vadd.f32 %v3399, %v3633
      %v3635 = vpop.f32.mrf.mxu0
      %v3636 = vadd.f32 %v3399, %v3635
      %3637 = vdwg.mxu0
      %v3638 = vmax.f32 %v3559, 0.0
      %v3639 = vmax.f32 %v3561, 0.0
      %v3640 = vmax.f32 %v3564, 0.0
      %v3641 = vmax.f32 %v3566, 0.0
      %v3642 = vmax.f32 %v3569, 0.0
      %v3643 = vmax.f32 %v3571, 0.0
      %v3644 = vmax.f32 %v3574, 0.0
      %v3645 = vmax.f32 %v3576, 0.0
      %v3646 = vmax.f32 %v3579, 0.0
      %v3647 = vmax.f32 %v3581, 0.0
      %v3648 = vmax.f32 %v3584, 0.0
      %v3649 = vmax.f32 %v3586, 0.0
      %v3650 = vmax.f32 %v3589, 0.0
      %v3651 = vmax.f32 %v3591, 0.0
      %v3652 = vmax.f32 %v3594, 0.0
      %v3653 = vmax.f32 %v3596, 0.0
      %v3654 = vmax.f32 %v3599, 0.0
      %v3655 = vmax.f32 %v3601, 0.0
      %v3656 = vmax.f32 %v3604, 0.0
      %v3657 = vmax.f32 %v3606, 0.0
      %v3658 = vmax.f32 %v3609, 0.0
      %v3659 = vmax.f32 %v3611, 0.0
      %v3660 = vmax.f32 %v3614, 0.0
      %v3661 = vmax.f32 %v3616, 0.0
      %v3662 = vmax.f32 %v3619, 0.0
      %v3663 = vmax.f32 %v3621, 0.0
      %v3664 = vmax.f32 %v3624, 0.0
      %v3665 = vmax.f32 %v3626, 0.0
      %v3666 = vmax.f32 %v3629, 0.0
      %v3667 = vmax.f32 %v3631, 0.0
      %v3668 = vmax.f32 %v3634, 0.0
      %v3669 = vmax.f32 %v3636, 0.0
      %vm3670 = vcmask 64512
      %3671 = vst.msk [vmem:[%s194] sm:$0xff] %vm3670, %v3638
      %3672 = vst.msk [vmem:[%s194 + $0x8] sm:$0xff] %vm3670, %v3639
      %3673 = vst.msk [vmem:[%s194 + $0x10] sm:$0xff] %vm3670, %v3640
      %3674 = vst.msk [vmem:[%s194 + $0x18] sm:$0xff] %vm3670, %v3641
      %3675 = vst.msk [vmem:[%s194 + $0x20] sm:$0xff] %vm3670, %v3642
      %3676 = vst.msk [vmem:[%s194 + $0x28] sm:$0xff] %vm3670, %v3643
      %3677 = vst.msk [vmem:[%s194 + $0x30] sm:$0xff] %vm3670, %v3644
      %3678 = vst.msk [vmem:[%s194 + $0x38] sm:$0xff] %vm3670, %v3645
      %3679 = vst.msk [vmem:[%s194 + $0x40] sm:$0xff] %vm3670, %v3646
      %3680 = vst.msk [vmem:[%s194 + $0x48] sm:$0xff] %vm3670, %v3647
      %3681 = vst.msk [vmem:[%s194 + $0x50] sm:$0xff] %vm3670, %v3648
      %3682 = vst.msk [vmem:[%s194 + $0x58] sm:$0xff] %vm3670, %v3649
      %3683 = vst.msk [vmem:[%s194 + $0x60] sm:$0xff] %vm3670, %v3650
      %3684 = vst.msk [vmem:[%s194 + $0x68] sm:$0xff] %vm3670, %v3651
      %3685 = vst.msk [vmem:[%s194 + $0x70] sm:$0xff] %vm3670, %v3652
      %3686 = vst.msk [vmem:[%s194 + $0x78] sm:$0xff] %vm3670, %v3653
      %3687 = vst.msk [vmem:[%s194 + $0x80] sm:$0xff] %vm3670, %v3654
      %3688 = vst.msk [vmem:[%s194 + $0x88] sm:$0xff] %vm3670, %v3655
      %3689 = vst.msk [vmem:[%s194 + $0x90] sm:$0xff] %vm3670, %v3656
      %3690 = vst.msk [vmem:[%s194 + $0x98] sm:$0xff] %vm3670, %v3657
      %3691 = vst.msk [vmem:[%s194 + $0xa0] sm:$0xff] %vm3670, %v3658
      %3692 = vst.msk [vmem:[%s194 + $0xa8] sm:$0xff] %vm3670, %v3659
      %3693 = vst.msk [vmem:[%s194 + $0xb0] sm:$0xff] %vm3670, %v3660
      %3694 = vst.msk [vmem:[%s194 + $0xb8] sm:$0xff] %vm3670, %v3661
      %3695 = vst.msk [vmem:[%s194 + $0xc0] sm:$0xff] %vm3670, %v3662
      %3696 = vst.msk [vmem:[%s194 + $0xc8] sm:$0xff] %vm3670, %v3663
      %3697 = vst.msk [vmem:[%s194 + $0xd0] sm:$0xff] %vm3670, %v3664
      %3698 = vst.msk [vmem:[%s194 + $0xd8] sm:$0xff] %vm3670, %v3665
      %3699 = vst.msk [vmem:[%s194 + $0xe0] sm:$0xff] %vm3670, %v3666
      %3700 = vst.msk [vmem:[%s194 + $0xe8] sm:$0xff] %vm3670, %v3667
      %3701 = vst.msk [vmem:[%s194 + $0xf0] sm:$0xff] %vm3670, %v3668
      %3702 = vst.msk [vmem:[%s194 + $0xf8] sm:$0xff] %vm3670, %v3669
      %s3703 = smul.u32 16, %s19
      %p3704 = scmp.lt.s32.totalorder %s18, 1
      %s3705 = scalar_select %p3704, %s18, 1
      %p3706 = scmp.lt.s32.totalorder %s3703, 15
      %s3707 = scalar_select %p3706, %s3703, 15
      %s3708 = smul.addr %s3707, 2
      %s3709 = smul.addr %s3705, 32
      %s3710 = sadd.s32 %s3708, %s3709
      %s3711 = smul.addr %s3710, 8
      %s3712 = scalar_lea.vmem %s3, %s3711
      // Predicated region
      $region33: #{tpu_custom_call.1} parent=31 // pred_check
        %p3713 = pneg %p114
      $region34: #{tpu_custom_call.1} parent=31 // pred_check_branch
        %3715 = sbr.rel (%p3713) target = $region36
      $region35: #{tpu_custom_call.1} parent=31 // pred_region
        %s3716 = smul.u32 16, %s19
      $region36: #{tpu_custom_call.1} parent=31 // pred_fallthru
        _
    $region32: #{tpu_custom_call.1} parent=5 // pred_fallthru
      _
    %p3717 = scmp.le.s32.totalorder 2, %s9
    // Predicated region
    $region37: #{tpu_custom_call.1} parent=5 // pred_check
      %p3718 = pneg %p3717
    $region38: #{tpu_custom_call.1} parent=5 // pred_check_branch
      %3720 = sbr.rel (%p3718) target = $region40
    $region39: #{tpu_custom_call.1} parent=5 // pred_region
      %s3721 = ssub.s32 %s9, 2
      // Predicated region
      $region41: #{tpu_custom_call.1} parent=39 // pred_check
        %p3722 = pneg %p120
      $region42: #{tpu_custom_call.1} parent=39 // pred_check_branch
        %3724 = sbr.rel (%p3722) target = $region44
      $region43: #{tpu_custom_call.1} parent=39 // pred_region
        %s3725 = smul.u32 16, %s21
        %p3726 = scmp.lt.s32.totalorder %s20, 1
        %s3727 = scalar_select %p3726, %s20, 1
        %p3728 = scmp.lt.s32.totalorder %s3725, 15
        %s3729 = scalar_select %p3728, %s3725, 15
        %s3730 = smul.addr %s3729, 2
        %s3731 = smul.addr %s3727, 32
        %s3732 = sadd.s32 %s3730, %s3731
        %s3733 = smul.addr %s3732, 8
        %s3734 = scalar_lea.vmem %s3, %s3733
      $region44: #{tpu_custom_call.1} parent=39 // pred_fallthru
        _
    $region40: #{tpu_custom_call.1} parent=5 // pred_fallthru
      _
  $region6: #{tpu_custom_call.1} parent=0 // loop_footer
    %s13 = sadd.s32 1, %s9
  $region7: #{tpu_custom_call.1} parent=0 // loop_footer_branch
    %8 = sbr.rel target = $region3
  $region8: #{tpu_custom_call.1} parent=0 // loop_exit
    _

</llo_original>
